<compile_context>
chip_gen: v7x
topology: tpu7x:2x2x1
jax: 0.10.0
libtpu: 0.0.40
codegen_flags: <defaults>
</compile_context>

<pallas_src>
import functools

import jax
import jax.numpy as jnp
from jax import lax
from jax.experimental import pallas as pl
from jax.experimental.pallas import tpu as pltpu


def _round_up(a, m):
    return (a + m - 1) // m * m


def _tpu_kind():
    try:
        return jax.devices()[0].device_kind.lower()
    except Exception:
        return ""


def _deform_kernel(x_ref, pq_ref, w_ref, o_ref, slab_ref, *,
                   Hp, Wp, Hp_pad, N, C_pad, c_blk, sec, modulated, sel_bf16):
    """Per-(batch, HW-tile) separable deformable sampling + fused tap-conv.

    x_ref   : (1, C_pad*Hp_pad, Wp_pad) bf16  zero-padded input, row c*Hp_pad+h
    pq_ref  : (1, n_sec*sec, HW_T)      f32   [px ; py ; (mod)] 8-aligned sections
    w_ref   : (O_pad, N*C_pad)          bf16  conv weight, row order n*C_pad + c
    o_ref   : (1, O_pad, HW_T)          f32   output tile
    slab_ref: (N*C_pad, HW_T)           bf16  per-tap sampled values (scratch)
    """
    pq = pq_ref[0]                          # (n_sec*sec, HW_T) f32
    HW_T = pq.shape[1]
    Wp_pad = x_ref.shape[2]

    px = pq[0:N, :]
    py = pq[sec:sec + N, :]

    h_max = jnp.float32(Hp - 1)
    w_max = jnp.float32(Wp - 1)
    flx = jnp.floor(px)
    fly = jnp.floor(py)
    q_lt_x = jnp.clip(flx, 0.0, h_max)
    q_lt_y = jnp.clip(fly, 0.0, w_max)
    q_rb_x = jnp.clip(flx + 1.0, 0.0, h_max)
    q_rb_y = jnp.clip(fly + 1.0, 0.0, w_max)
    pxc = jnp.clip(px, 0.0, h_max)
    pyc = jnp.clip(py, 0.0, w_max)

    # Separable bilinear weights (identical to the PyTorch module):
    #   g_lt = wx_t*wy_l, g_rb = wx_b*wy_r, g_lb = wx_t*wy_r, g_rt = wx_b*wy_l.
    wx_t = 1.0 + (q_lt_x - pxc)             # top-row weight
    wx_b = 1.0 - (q_rb_x - pxc)             # bottom-row weight
    wy_l = 1.0 + (q_lt_y - pyc)             # left-column weight
    wy_r = 1.0 - (q_rb_y - pyc)             # right-column weight
    if modulated:
        mod = pq[2 * sec:2 * sec + N, :]
        # modulation scales the whole bilinear sample; folding it into the
        # row weights is mathematically equivalent.
        wx_t = wx_t * mod
        wx_b = wx_b * mod

    ix_t = q_lt_x.astype(jnp.int32)
    ix_b = q_rb_x.astype(jnp.int32)
    iy_l = q_lt_y.astype(jnp.int32)
    iy_r = q_rb_y.astype(jnp.int32)

    sel_dt = jnp.bfloat16 if sel_bf16 else jnp.float32
    wy_l_s = wy_l.astype(sel_dt)
    wy_r_s = wy_r.astype(sel_dt)

    # small column iotas (no (S, HW_T) resident iota slab)
    w_iota = lax.broadcasted_iota(jnp.int32, (Wp_pad, 1), 0)
    h_iota = lax.broadcasted_iota(jnp.int32, (Hp_pad, 1), 0)

    for n in range(N):
        # column-select matrix (Wp_pad, HW_T): <=2 weighted entries per lane
        # (duplicate clipped indices accumulate, matching the reference).
        mcol = jnp.where(w_iota == iy_l[n:n + 1, :], wy_l_s[n:n + 1, :], 0.0)
        mcol = mcol + jnp.where(w_iota == iy_r[n:n + 1, :], wy_r_s[n:n + 1, :], 0.0)
        mcol_bf = mcol.astype(jnp.bfloat16)
        # row-select weights (Hp_pad, HW_T), modulation already folded in
        srow = jnp.where(h_iota == ix_t[n:n + 1, :], wx_t[n:n + 1, :], 0.0)
        srow = srow + jnp.where(h_iota == ix_b[n:n + 1, :], wx_b[n:n + 1, :], 0.0)
        srow = srow[None, :, :]             # (1, Hp_pad, HW_T) f32

        for c0 in range(0, C_pad, c_blk):
            cb = min(c_blk, C_pad - c0)
            x_blk = x_ref[0, pl.ds(c0 * Hp_pad, cb * Hp_pad), :]   # bf16
            # column gather+combine on the MXU
            xcol = jnp.dot(x_blk, mcol_bf, preferred_element_type=jnp.float32)
            xcol = xcol.reshape(cb, Hp_pad, HW_T)
            # row gather+combine on the VPU (2 nonzero rows per lane)
            val = jnp.sum(xcol * srow, axis=1)                     # (cb, HW_T) f32
            slab_ref[pl.ds(n * C_pad + c0, cb), :] = val.astype(jnp.bfloat16)

    # fused ks*ks-tap "conv": (O_pad, N*C_pad) x (N*C_pad, HW_T), f32 accumulate
    o_ref[0] = jnp.dot(w_ref[...], slab_ref[...],
                       preferred_element_type=jnp.float32)


def _conv3x3(x, w, b, stride):
    y = lax.conv_general_dilated(
        x, w, window_strides=(stride, stride), padding=((1, 1), (1, 1)),
        dimension_numbers=("NCHW", "OIHW", "NCHW"))
    return y + b[None, :, None, None]


def deform_conv2d(x, p_w, p_b, conv_w, m_w=None, m_b=None, *,
                  kernel_size=3, padding=1, stride=1, modulation=False,
                  hw_tile=None, c_block=16):
    B, C, H, W = x.shape
    ks = kernel_size
    N = ks * ks
    O = conv_w.shape[0]

    # chip-aware defaults
    kind = _tpu_kind()
    is_v7 = ("v7" in kind) or ("7x" in kind)
    is_v6 = "v6" in kind
    is_v5 = "v5" in kind
    if hw_tile is None:
        hw_tile = 512 if is_v7 else (1024 if (is_v5 or is_v6) else 512)
    hw_tile = max(128, _round_up(int(hw_tile), 128))    # lane-aligned tiles
    sel_bf16 = bool(is_v6 or is_v7)    # v5e VPU has no bf16 ALU -> keep f32 build

    # offset / modulation branches (glue: plain 3x3 convs, pad=1, stride=stride)
    offset = _conv3x3(x, p_w, p_b, stride)              # (B, 2N, h, w)
    h, w = offset.shape[2], offset.shape[3]
    HW = h * w

    # zero padding of x (ZeroPad2d(padding)) plus alignment padding:
    # C -> sublane multiple, Hp -> sublane multiple (so the (c,h) split of the
    # flattened rows is tile-aligned), Wp -> lane multiple (MXU contraction).
    Hp, Wp = H + 2 * padding, W + 2 * padding
    Hp_pad = _round_up(Hp, 8)
    Wp_pad = _round_up(Wp, 128)
    C_pad = _round_up(C, 8)
    O_pad = _round_up(O, 8)
    x_zp = jnp.pad(x, ((0, 0), (0, C_pad - C),
                       (padding, Hp_pad - H - padding),
                       (padding, Wp_pad - W - padding)))
    x_flat = x_zp.reshape(B, C_pad * Hp_pad, Wp_pad).astype(jnp.bfloat16)

    # sampling coordinates p = p_0 + p_n + offset (padded-image frame)
    d = jnp.arange(-(ks - 1) // 2, (ks - 1) // 2 + 1, dtype=jnp.float32)
    p_n_x = jnp.repeat(d, ks)                           # (N,)
    p_n_y = jnp.tile(d, ks)                             # (N,)
    p_0_x = jnp.arange(1, h * stride + 1, stride, dtype=jnp.float32)
    p_0_y = jnp.arange(1, w * stride + 1, stride, dtype=jnp.float32)
    px = (p_0_x[None, None, :, None] + p_n_x[None, :, None, None]
          + offset[:, :N]).reshape(B, N, HW)
    py = (p_0_y[None, None, None, :] + p_n_y[None, :, None, None]
          + offset[:, N:]).reshape(B, N, HW)

    # coordinate slab: [px ; py ; (mod)], each section padded to 8 sublanes,
    # lane dim padded to a multiple of the (128-aligned) HW tile.
    HW_T = min(hw_tile, _round_up(HW, 128))
    HW_pad = _round_up(HW, HW_T)
    sec = _round_up(N, 8)
    parts = [px, py]
    if modulation:
        modv = jax.nn.sigmoid(_conv3x3(x, m_w, m_b, stride)).reshape(B, N, HW)
        parts.append(modv)
    n_sec = len(parts)
    pq = jnp.concatenate(
        [jnp.pad(p, ((0, 0), (0, sec - N), (0, 0))) for p in parts], axis=1)
    pq = jnp.pad(pq, ((0, 0), (0, 0), (0, HW_pad - HW))).astype(jnp.float32)

    # conv weight (O, C, ks, ks) -> (O_pad, N*C_pad), row order n*C_pad + c
    w_t = jnp.transpose(conv_w.reshape(O, C, N), (0, 2, 1))          # (O, N, C)
    w_t = jnp.pad(w_t, ((0, O_pad - O), (0, 0), (0, C_pad - C)))
    NCp = N * C_pad
    w2 = w_t.reshape(O_pad, NCp).astype(jnp.bfloat16)

    n_hw = HW_pad // HW_T
    c_blk = min(C_pad, _round_up(max(int(c_block), 8), 8))

    # VMEM budget (double-buffered blocks + scratch + per-tap temporaries)
    x_blk_b = C_pad * Hp_pad * Wp_pad * 2
    pq_blk_b = n_sec * sec * HW_T * 4
    out_blk_b = O_pad * HW_T * 4
    slab_b = NCp * HW_T * 2
    tap_tmp_b = (2 * c_blk * Hp_pad * HW_T * 4
                 + Wp_pad * HW_T * 8 + Hp_pad * HW_T * 8)
    need = (2 * (x_blk_b + pq_blk_b + out_blk_b)
            + O_pad * NCp * 2 + slab_b + tap_tmp_b)
    vmem_cap = (48 << 20) if is_v7 else (96 << 20)
    vmem_limit = int(min(vmem_cap, max(32 << 20, 2 * need)))

    flops = int(B * n_hw * (N * (2 * C_pad * Hp_pad * Wp_pad * HW_T
                                 + 3 * C_pad * Hp_pad * HW_T
                                 + 8 * (Wp_pad + Hp_pad) * HW_T)
                            + 2 * O_pad * NCp * HW_T))
    bytes_accessed = int(B * n_hw * (x_blk_b + pq_blk_b + out_blk_b)
                         + O_pad * NCp * 2)

    kernel = functools.partial(
        _deform_kernel, Hp=Hp, Wp=Wp, Hp_pad=Hp_pad, N=N, C_pad=C_pad,
        c_blk=c_blk, sec=sec, modulated=modulation, sel_bf16=sel_bf16)

    out = pl.pallas_call(
        kernel,
        out_shape=jax.ShapeDtypeStruct((B, O_pad, HW_pad), jnp.float32),
        grid=(B, n_hw),
        in_specs=[
            pl.BlockSpec((1, C_pad * Hp_pad, Wp_pad), lambda b, t: (b, 0, 0)),
            pl.BlockSpec((1, n_sec * sec, HW_T), lambda b, t: (b, 0, t)),
            pl.BlockSpec((O_pad, NCp), lambda b, t: (0, 0)),
        ],
        out_specs=pl.BlockSpec((1, O_pad, HW_T), lambda b, t: (b, 0, t)),
        scratch_shapes=[pltpu.VMEM((NCp, HW_T), jnp.bfloat16)],
        compiler_params=pltpu.CompilerParams(
            dimension_semantics=("parallel", "parallel"),
            vmem_limit_bytes=vmem_limit),
        cost_estimate=pl.CostEstimate(flops=flops, transcendentals=0,
                                      bytes_accessed=bytes_accessed),
    )(x_flat, pq, w2)
    return out[:, :O, :HW].reshape(B, O, h, w)


def deform_conv2d_ref(x, p_w, p_b, conv_w, m_w=None, m_b=None, *,
                      kernel_size=3, padding=1, stride=1, modulation=False):
    """Pure-JAX reference reproducing the PyTorch forward exactly."""
    B, C, H, W = x.shape
    ks = kernel_size
    N = ks * ks
    O = conv_w.shape[0]
    offset = _conv3x3(x, p_w, p_b, stride)
    h, w = offset.shape[2], offset.shape[3]
    if modulation:
        modv = jax.nn.sigmoid(_conv3x3(x, m_w, m_b, stride))   # (B, N, h, w)
    x_pad = jnp.pad(x, ((0, 0), (0, 0), (padding, padding), (padding, padding)))
    Hp, Wp = H + 2 * padding, W + 2 * padding
    d = jnp.arange(-(ks - 1) // 2, (ks - 1) // 2 + 1, dtype=jnp.float32)
    p_n_x = jnp.repeat(d, ks)
    p_n_y = jnp.tile(d, ks)
    p_0_x = jnp.arange(1, h * stride + 1, stride, dtype=jnp.float32)
    p_0_y = jnp.arange(1, w * stride + 1, stride, dtype=jnp.float32)
    px = p_0_x[None, None, :, None] + p_n_x[None, :, None, None] + offset[:, :N]
    py = p_0_y[None, None, None, :] + p_n_y[None, :, None, None] + offset[:, N:]
    flx, fly = jnp.floor(px), jnp.floor(py)
    q_lt_x = jnp.clip(flx, 0, Hp - 1)
    q_lt_y = jnp.clip(fly, 0, Wp - 1)
    q_rb_x = jnp.clip(flx + 1, 0, Hp - 1)
    q_rb_y = jnp.clip(fly + 1, 0, Wp - 1)
    pxc = jnp.clip(px, 0, Hp - 1)
    pyc = jnp.clip(py, 0, Wp - 1)
    g_lt = (1 + (q_lt_x - pxc)) * (1 + (q_lt_y - pyc))
    g_rb = (1 - (q_rb_x - pxc)) * (1 - (q_rb_y - pyc))
    g_lb = (1 + (q_lt_x - pxc)) * (1 - (q_rb_y - pyc))
    g_rt = (1 - (q_rb_x - pxc)) * (1 + (q_lt_y - pyc))
    x_flat = x_pad.reshape(B, C, -1)

    def gather(ix, iy):
        idx = (ix.astype(jnp.int32) * Wp + iy.astype(jnp.int32)).reshape(B, 1, -1)
        idx = jnp.broadcast_to(idx, (B, C, idx.shape[-1]))
        return jnp.take_along_axis(x_flat, idx, axis=-1).reshape(B, C, N, h, w)

    x_lt = gather(q_lt_x, q_lt_y)
    x_rb = gather(q_rb_x, q_rb_y)
    x_lb = gather(q_lt_x, q_rb_y)
    x_rt = gather(q_rb_x, q_lt_y)
    xo = (g_lt[:, None] * x_lt + g_rb[:, None] * x_rb
          + g_lb[:, None] * x_lb + g_rt[:, None] * x_rt)      # (B, C, N, h, w)
    if modulation:
        xo = xo * modv[:, None, :, :, :]
    return jnp.einsum("bcnhw,ocn->bohw", xo, conv_w.reshape(O, C, N))


if __name__ == "__main__":
    key = jax.random.PRNGKey(0)
    k1, k2, k3, k4, k5, k6 = jax.random.split(key, 6)
    B, C, H, W = 2, 4, 16, 16
    O, ks = 8, 3
    N = ks * ks

    x = jax.random.normal(k1, (B, C, H, W), jnp.float32)
    p_w = 0.1 * jax.random.normal(k2, (2 * N, C, 3, 3), jnp.float32)
    p_b = 0.1 * jax.random.normal(k3, (2 * N,), jnp.float32)
    conv_w = 0.1 * jax.random.normal(k4, (O, C, ks, ks), jnp.float32)
    m_w = 0.1 * jax.random.normal(k5, (N, C, 3, 3), jnp.float32)
    m_b = 0.1 * jax.random.normal(k6, (N,), jnp.float32)

    # Config A: DeformConv2d(C, O, 3, padding=1, stride=1, modulation=False)
    out = deform_conv2d(x, p_w, p_b, conv_w,
                        kernel_size=ks, padding=1, stride=1, modulation=False)
    out = jax.block_until_ready(out)
    assert out.shape == (B, O, H, W)
    ref = deform_conv2d_ref(x, p_w, p_b, conv_w,
                            kernel_size=ks, padding=1, stride=1, modulation=False)
    err = float(jnp.max(jnp.abs(out - ref)))
    if err > 5e-2:
        raise AssertionError(f"config A mismatch vs reference: max abs err {err}")

    # Config B: the FeatureComPreBlock instantiation (embed_dims=4):
    # DeformConv2d(C, 2C, 3, padding=1, stride=2, modulation=True)
    out2 = deform_conv2d(x, p_w, p_b, conv_w, m_w, m_b,
                         kernel_size=ks, padding=1, stride=2, modulation=True)
    out2 = jax.block_until_ready(out2)
    assert out2.shape == (B, O, H // 2, W // 2)
    ref2 = deform_conv2d_ref(x, p_w, p_b, conv_w, m_w, m_b,
                             kernel_size=ks, padding=1, stride=2, modulation=True)
    err2 = float(jnp.max(jnp.abs(out2 - ref2)))
    if err2 > 5e-2:
        raise AssertionError(f"config B mismatch vs reference: max abs err {err2}")

    print("KERNEL_OK")
</pallas_src>

<mosaic_0001>
module attributes {stable_mosaic.version = 11 : i64} {
  func.func @_deform_kernel(%arg0: i32, %arg1: i32, %arg2: memref<1x192x128xbf16, #tpu.memory_space<vmem>>, %arg3: memref<1x32x256xf32, #tpu.memory_space<vmem>>, %arg4: memref<8x72xbf16, #tpu.memory_space<vmem>>, %arg5: memref<1x8x256xf32, #tpu.memory_space<vmem>>, %arg6: memref<72x256xbf16, #tpu.memory_space<vmem>>) attributes {dimension_semantics = [#tpu.dimension_semantics<parallel>, #tpu.dimension_semantics<parallel>], iteration_bounds = array<i64: 2, 1>, scalar_prefetch = 0 : i64, scratch_operands = 1 : i64, tpu.core_type = #tpu.core_type<tc>, window_params = [{transform_indices = @transform_0, window_bounds = array<i64: 1, 192, 128>}, {transform_indices = @transform_1, window_bounds = array<i64: 1, 32, 256>}, {pipeline_mode = #tpu.pipeline_mode<synchronous>, transform_indices = @transform_2, window_bounds = array<i64: 8, 72>}, {transform_indices = @transform_3, window_bounds = array<i64: 1, 8, 256>}]} {
    %c0 = arith.constant 0 : index
    %c0_0 = arith.constant 0 : index
    %c0_1 = arith.constant 0 : index
    %0 = vector.load %arg3[%c0, %c0_0, %c0_1] : memref<1x32x256xf32, #tpu.memory_space<vmem>>, vector<1x32x256xf32>
    %1 = vector.shape_cast %0 : vector<1x32x256xf32> to vector<32x256xf32>
    %2 = vector.extract_strided_slice %1 {offsets = [0, 0], sizes = [9, 256], strides = [1, 1]} : vector<32x256xf32> to vector<9x256xf32>
    %3 = vector.extract_strided_slice %1 {offsets = [16, 0], sizes = [9, 256], strides = [1, 1]} : vector<32x256xf32> to vector<9x256xf32>
    %4 = math.floor %2 : vector<9x256xf32>
    %5 = math.floor %3 : vector<9x256xf32>
    %cst = arith.constant 0.000000e+00 : f32
    %cst_2 = arith.constant 1.700000e+01 : f32
    %6 = vector.broadcast %cst : f32 to vector<9x256xf32>
    %7 = arith.maximumf %6, %4 : vector<9x256xf32>
    %8 = vector.broadcast %cst_2 : f32 to vector<9x256xf32>
    %9 = arith.minimumf %8, %7 : vector<9x256xf32>
    %cst_3 = arith.constant 0.000000e+00 : f32
    %cst_4 = arith.constant 1.700000e+01 : f32
    %10 = vector.broadcast %cst_3 : f32 to vector<9x256xf32>
    %11 = arith.maximumf %10, %5 : vector<9x256xf32>
    %12 = vector.broadcast %cst_4 : f32 to vector<9x256xf32>
    %13 = arith.minimumf %12, %11 : vector<9x256xf32>
    %cst_5 = arith.constant 1.000000e+00 : f32
    %14 = vector.broadcast %cst_5 : f32 to vector<9x256xf32>
    %15 = arith.addf %4, %14 : vector<9x256xf32>
    %cst_6 = arith.constant 0.000000e+00 : f32
    %cst_7 = arith.constant 1.700000e+01 : f32
    %16 = vector.broadcast %cst_6 : f32 to vector<9x256xf32>
    %17 = arith.maximumf %16, %15 : vector<9x256xf32>
    %18 = vector.broadcast %cst_7 : f32 to vector<9x256xf32>
    %19 = arith.minimumf %18, %17 : vector<9x256xf32>
    %cst_8 = arith.constant 1.000000e+00 : f32
    %20 = vector.broadcast %cst_8 : f32 to vector<9x256xf32>
    %21 = arith.addf %5, %20 : vector<9x256xf32>
    %cst_9 = arith.constant 0.000000e+00 : f32
    %cst_10 = arith.constant 1.700000e+01 : f32
    %22 = vector.broadcast %cst_9 : f32 to vector<9x256xf32>
    %23 = arith.maximumf %22, %21 : vector<9x256xf32>
    %24 = vector.broadcast %cst_10 : f32 to vector<9x256xf32>
    %25 = arith.minimumf %24, %23 : vector<9x256xf32>
    %cst_11 = arith.constant 0.000000e+00 : f32
    %cst_12 = arith.constant 1.700000e+01 : f32
    %26 = vector.broadcast %cst_11 : f32 to vector<9x256xf32>
    %27 = arith.maximumf %26, %2 : vector<9x256xf32>
    %28 = vector.broadcast %cst_12 : f32 to vector<9x256xf32>
    %29 = arith.minimumf %28, %27 : vector<9x256xf32>
    %cst_13 = arith.constant 0.000000e+00 : f32
    %cst_14 = arith.constant 1.700000e+01 : f32
    %30 = vector.broadcast %cst_13 : f32 to vector<9x256xf32>
    %31 = arith.maximumf %30, %3 : vector<9x256xf32>
    %32 = vector.broadcast %cst_14 : f32 to vector<9x256xf32>
    %33 = arith.minimumf %32, %31 : vector<9x256xf32>
    %34 = arith.subf %9, %29 : vector<9x256xf32>
    %cst_15 = arith.constant 1.000000e+00 : f32
    %35 = vector.broadcast %cst_15 : f32 to vector<9x256xf32>
    %36 = arith.addf %35, %34 : vector<9x256xf32>
    %37 = arith.subf %19, %29 : vector<9x256xf32>
    %cst_16 = arith.constant 1.000000e+00 : f32
    %38 = vector.broadcast %cst_16 : f32 to vector<9x256xf32>
    %39 = arith.subf %38, %37 : vector<9x256xf32>
    %40 = arith.subf %13, %33 : vector<9x256xf32>
    %cst_17 = arith.constant 1.000000e+00 : f32
    %41 = vector.broadcast %cst_17 : f32 to vector<9x256xf32>
    %42 = arith.addf %41, %40 : vector<9x256xf32>
    %43 = arith.subf %25, %33 : vector<9x256xf32>
    %cst_18 = arith.constant 1.000000e+00 : f32
    %44 = vector.broadcast %cst_18 : f32 to vector<9x256xf32>
    %45 = arith.subf %44, %43 : vector<9x256xf32>
    %46 = arith.fptosi %9 : vector<9x256xf32> to vector<9x256xi32>
    %47 = arith.fptosi %19 : vector<9x256xf32> to vector<9x256xi32>
    %48 = arith.fptosi %13 : vector<9x256xf32> to vector<9x256xi32>
    %49 = arith.fptosi %25 : vector<9x256xf32> to vector<9x256xi32>
    %50 = tpu.iota {dimensions = array<i32: 0>} : vector<128x1xi32>
    %51 = tpu.iota {dimensions = array<i32: 0>} : vector<24x1xi32>
    %52 = vector.extract_strided_slice %48 {offsets = [0, 0], sizes = [1, 256], strides = [1, 1]} : vector<9x256xi32> to vector<1x256xi32>
    %53 = vector.broadcast %50 : vector<128x1xi32> to vector<128x256xi32>
    %54 = vector.broadcast %52 : vector<1x256xi32> to vector<128x256xi32>
    %55 = arith.cmpi eq, %53, %54 : vector<128x256xi32>
    %56 = vector.extract_strided_slice %42 {offsets = [0, 0], sizes = [1, 256], strides = [1, 1]} : vector<9x256xf32> to vector<1x256xf32>
    %cst_19 = arith.constant 0.000000e+00 : f32
    %57 = vector.shape_cast %56 : vector<1x256xf32> to vector<1x256xf32>
    %58 = vector.broadcast %57 : vector<1x256xf32> to vector<128x256xf32>
    %59 = vector.broadcast %cst_19 : f32 to vector<128x256xf32>
    %60 = arith.select %55, %58, %59 : vector<128x256xi1>, vector<128x256xf32>
    %61 = vector.extract_strided_slice %49 {offsets = [0, 0], sizes = [1, 256], strides = [1, 1]} : vector<9x256xi32> to vector<1x256xi32>
    %62 = vector.broadcast %50 : vector<128x1xi32> to vector<128x256xi32>
    %63 = vector.broadcast %61 : vector<1x256xi32> to vector<128x256xi32>
    %64 = arith.cmpi eq, %62, %63 : vector<128x256xi32>
    %65 = vector.extract_strided_slice %45 {offsets = [0, 0], sizes = [1, 256], strides = [1, 1]} : vector<9x256xf32> to vector<1x256xf32>
    %cst_20 = arith.constant 0.000000e+00 : f32
    %66 = vector.shape_cast %65 : vector<1x256xf32> to vector<1x256xf32>
    %67 = vector.broadcast %66 : vector<1x256xf32> to vector<128x256xf32>
    %68 = vector.broadcast %cst_20 : f32 to vector<128x256xf32>
    %69 = arith.select %64, %67, %68 : vector<128x256xi1>, vector<128x256xf32>
    %70 = arith.addf %60, %69 : vector<128x256xf32>
    %71 = arith.truncf %70 : vector<128x256xf32> to vector<128x256xbf16>
    %72 = vector.extract_strided_slice %46 {offsets = [0, 0], sizes = [1, 256], strides = [1, 1]} : vector<9x256xi32> to vector<1x256xi32>
    %73 = vector.broadcast %51 : vector<24x1xi32> to vector<24x256xi32>
    %74 = vector.broadcast %72 : vector<1x256xi32> to vector<24x256xi32>
    %75 = arith.cmpi eq, %73, %74 : vector<24x256xi32>
    %76 = vector.extract_strided_slice %36 {offsets = [0, 0], sizes = [1, 256], strides = [1, 1]} : vector<9x256xf32> to vector<1x256xf32>
    %cst_21 = arith.constant 0.000000e+00 : f32
    %77 = vector.shape_cast %76 : vector<1x256xf32> to vector<1x256xf32>
    %78 = vector.broadcast %77 : vector<1x256xf32> to vector<24x256xf32>
    %79 = vector.broadcast %cst_21 : f32 to vector<24x256xf32>
    %80 = arith.select %75, %78, %79 : vector<24x256xi1>, vector<24x256xf32>
    %81 = vector.extract_strided_slice %47 {offsets = [0, 0], sizes = [1, 256], strides = [1, 1]} : vector<9x256xi32> to vector<1x256xi32>
    %82 = vector.broadcast %51 : vector<24x1xi32> to vector<24x256xi32>
    %83 = vector.broadcast %81 : vector<1x256xi32> to vector<24x256xi32>
    %84 = arith.cmpi eq, %82, %83 : vector<24x256xi32>
    %85 = vector.extract_strided_slice %39 {offsets = [0, 0], sizes = [1, 256], strides = [1, 1]} : vector<9x256xf32> to vector<1x256xf32>
    %cst_22 = arith.constant 0.000000e+00 : f32
    %86 = vector.shape_cast %85 : vector<1x256xf32> to vector<1x256xf32>
    %87 = vector.broadcast %86 : vector<1x256xf32> to vector<24x256xf32>
    %88 = vector.broadcast %cst_22 : f32 to vector<24x256xf32>
    %89 = arith.select %84, %87, %88 : vector<24x256xi1>, vector<24x256xf32>
    %90 = arith.addf %80, %89 : vector<24x256xf32>
    %91 = vector.shape_cast %90 : vector<24x256xf32> to vector<1x24x256xf32>
    %c0_23 = arith.constant 0 : index
    %c0_24 = arith.constant 0 : index
    %c0_25 = arith.constant 0 : index
    %92 = vector.load %arg2[%c0_23, %c0_24, %c0_25] : memref<1x192x128xbf16, #tpu.memory_space<vmem>>, vector<1x192x128xbf16>
    %93 = vector.shape_cast %92 : vector<1x192x128xbf16> to vector<192x128xbf16>
    %cst_26 = arith.constant dense<0.000000e+00> : vector<192x256xf32>
    %94 = tpu.matmul %93, %71, %cst_26 {dimension_numbers = #tpu.dot_dimension_numbers<[1], [0], [0], [1], [0, 0, 1, 1], [], []>} : vector<192x128xbf16>, vector<128x256xbf16>, vector<192x256xf32> -> vector<192x256xf32>
    %95 = vector.shape_cast %94 : vector<192x256xf32> to vector<8x24x256xf32>
    %96 = vector.broadcast %91 : vector<1x24x256xf32> to vector<8x24x256xf32>
    %97 = arith.mulf %95, %96 : vector<8x24x256xf32>
    %cst_27 = arith.constant dense<0.000000e+00> : vector<8x256xf32>
    %98 = vector.multi_reduction <add>, %97, %cst_27 [1] : vector<8x24x256xf32> to vector<8x256xf32>
    %99 = arith.truncf %98 : vector<8x256xf32> to vector<8x256xbf16>
    %c0_28 = arith.constant 0 : index
    %c0_29 = arith.constant 0 : index
    %100 = vector.load %arg6[%c0_28, %c0_29] : memref<72x256xbf16, #tpu.memory_space<vmem>>, vector<8x256xbf16>
    tpu.vector_store %arg6[%c0_28, %c0_29], %99 {strides = array<i32>} : memref<72x256xbf16, #tpu.memory_space<vmem>>, vector<8x256xbf16>,
    %101 = vector.extract_strided_slice %48 {offsets = [1, 0], sizes = [1, 256], strides = [1, 1]} : vector<9x256xi32> to vector<1x256xi32>
    %102 = vector.broadcast %50 : vector<128x1xi32> to vector<128x256xi32>
    %103 = vector.broadcast %101 : vector<1x256xi32> to vector<128x256xi32>
    %104 = arith.cmpi eq, %102, %103 : vector<128x256xi32>
    %105 = vector.extract_strided_slice %42 {offsets = [1, 0], sizes = [1, 256], strides = [1, 1]} : vector<9x256xf32> to vector<1x256xf32>
    %cst_30 = arith.constant 0.000000e+00 : f32
    %106 = vector.shape_cast %105 : vector<1x256xf32> to vector<1x256xf32>
    %107 = vector.broadcast %106 : vector<1x256xf32> to vector<128x256xf32>
    %108 = vector.broadcast %cst_30 : f32 to vector<128x256xf32>
    %109 = arith.select %104, %107, %108 : vector<128x256xi1>, vector<128x256xf32>
    %110 = vector.extract_strided_slice %49 {offsets = [1, 0], sizes = [1, 256], strides = [1, 1]} : vector<9x256xi32> to vector<1x256xi32>
    %111 = vector.broadcast %50 : vector<128x1xi32> to vector<128x256xi32>
    %112 = vector.broadcast %110 : vector<1x256xi32> to vector<128x256xi32>
    %113 = arith.cmpi eq, %111, %112 : vector<128x256xi32>
    %114 = vector.extract_strided_slice %45 {offsets = [1, 0], sizes = [1, 256], strides = [1, 1]} : vector<9x256xf32> to vector<1x256xf32>
    %cst_31 = arith.constant 0.000000e+00 : f32
    %115 = vector.shape_cast %114 : vector<1x256xf32> to vector<1x256xf32>
    %116 = vector.broadcast %115 : vector<1x256xf32> to vector<128x256xf32>
    %117 = vector.broadcast %cst_31 : f32 to vector<128x256xf32>
    %118 = arith.select %113, %116, %117 : vector<128x256xi1>, vector<128x256xf32>
    %119 = arith.addf %109, %118 : vector<128x256xf32>
    %120 = arith.truncf %119 : vector<128x256xf32> to vector<128x256xbf16>
    %121 = vector.extract_strided_slice %46 {offsets = [1, 0], sizes = [1, 256], strides = [1, 1]} : vector<9x256xi32> to vector<1x256xi32>
    %122 = vector.broadcast %51 : vector<24x1xi32> to vector<24x256xi32>
    %123 = vector.broadcast %121 : vector<1x256xi32> to vector<24x256xi32>
    %124 = arith.cmpi eq, %122, %123 : vector<24x256xi32>
    %125 = vector.extract_strided_slice %36 {offsets = [1, 0], sizes = [1, 256], strides = [1, 1]} : vector<9x256xf32> to vector<1x256xf32>
    %cst_32 = arith.constant 0.000000e+00 : f32
    %126 = vector.shape_cast %125 : vector<1x256xf32> to vector<1x256xf32>
    %127 = vector.broadcast %126 : vector<1x256xf32> to vector<24x256xf32>
    %128 = vector.broadcast %cst_32 : f32 to vector<24x256xf32>
    %129 = arith.select %124, %127, %128 : vector<24x256xi1>, vector<24x256xf32>
    %130 = vector.extract_strided_slice %47 {offsets = [1, 0], sizes = [1, 256], strides = [1, 1]} : vector<9x256xi32> to vector<1x256xi32>
    %131 = vector.broadcast %51 : vector<24x1xi32> to vector<24x256xi32>
    %132 = vector.broadcast %130 : vector<1x256xi32> to vector<24x256xi32>
    %133 = arith.cmpi eq, %131, %132 : vector<24x256xi32>
    %134 = vector.extract_strided_slice %39 {offsets = [1, 0], sizes = [1, 256], strides = [1, 1]} : vector<9x256xf32> to vector<1x256xf32>
    %cst_33 = arith.constant 0.000000e+00 : f32
    %135 = vector.shape_cast %134 : vector<1x256xf32> to vector<1x256xf32>
    %136 = vector.broadcast %135 : vector<1x256xf32> to vector<24x256xf32>
    %137 = vector.broadcast %cst_33 : f32 to vector<24x256xf32>
    %138 = arith.select %133, %136, %137 : vector<24x256xi1>, vector<24x256xf32>
    %139 = arith.addf %129, %138 : vector<24x256xf32>
    %140 = vector.shape_cast %139 : vector<24x256xf32> to vector<1x24x256xf32>
    %c0_34 = arith.constant 0 : index
    %c0_35 = arith.constant 0 : index
    %c0_36 = arith.constant 0 : index
    %141 = vector.load %arg2[%c0_34, %c0_35, %c0_36] : memref<1x192x128xbf16, #tpu.memory_space<vmem>>, vector<1x192x128xbf16>
    %142 = vector.shape_cast %141 : vector<1x192x128xbf16> to vector<192x128xbf16>
    %cst_37 = arith.constant dense<0.000000e+00> : vector<192x256xf32>
    %143 = tpu.matmul %142, %120, %cst_37 {dimension_numbers = #tpu.dot_dimension_numbers<[1], [0], [0], [1], [0, 0, 1, 1], [], []>} : vector<192x128xbf16>, vector<128x256xbf16>, vector<192x256xf32> -> vector<192x256xf32>
    %144 = vector.shape_cast %143 : vector<192x256xf32> to vector<8x24x256xf32>
    %145 = vector.broadcast %140 : vector<1x24x256xf32> to vector<8x24x256xf32>
    %146 = arith.mulf %144, %145 : vector<8x24x256xf32>
    %cst_38 = arith.constant dense<0.000000e+00> : vector<8x256xf32>
    %147 = vector.multi_reduction <add>, %146, %cst_38 [1] : vector<8x24x256xf32> to vector<8x256xf32>
    %148 = arith.truncf %147 : vector<8x256xf32> to vector<8x256xbf16>
    %c8 = arith.constant 8 : index
    %c0_39 = arith.constant 0 : index
    %149 = vector.load %arg6[%c8, %c0_39] : memref<72x256xbf16, #tpu.memory_space<vmem>>, vector<8x256xbf16>
    tpu.vector_store %arg6[%c8, %c0_39], %148 {strides = array<i32>} : memref<72x256xbf16, #tpu.memory_space<vmem>>, vector<8x256xbf16>,
    %150 = vector.extract_strided_slice %48 {offsets = [2, 0], sizes = [1, 256], strides = [1, 1]} : vector<9x256xi32> to vector<1x256xi32>
    %151 = vector.broadcast %50 : vector<128x1xi32> to vector<128x256xi32>
    %152 = vector.broadcast %150 : vector<1x256xi32> to vector<128x256xi32>
    %153 = arith.cmpi eq, %151, %152 : vector<128x256xi32>
    %154 = vector.extract_strided_slice %42 {offsets = [2, 0], sizes = [1, 256], strides = [1, 1]} : vector<9x256xf32> to vector<1x256xf32>
    %cst_40 = arith.constant 0.000000e+00 : f32
    %155 = vector.shape_cast %154 : vector<1x256xf32> to vector<1x256xf32>
    %156 = vector.broadcast %155 : vector<1x256xf32> to vector<128x256xf32>
    %157 = vector.broadcast %cst_40 : f32 to vector<128x256xf32>
    %158 = arith.select %153, %156, %157 : vector<128x256xi1>, vector<128x256xf32>
    %159 = vector.extract_strided_slice %49 {offsets = [2, 0], sizes = [1, 256], strides = [1, 1]} : vector<9x256xi32> to vector<1x256xi32>
    %160 = vector.broadcast %50 : vector<128x1xi32> to vector<128x256xi32>
    %161 = vector.broadcast %159 : vector<1x256xi32> to vector<128x256xi32>
    %162 = arith.cmpi eq, %160, %161 : vector<128x256xi32>
    %163 = vector.extract_strided_slice %45 {offsets = [2, 0], sizes = [1, 256], strides = [1, 1]} : vector<9x256xf32> to vector<1x256xf32>
    %cst_41 = arith.constant 0.000000e+00 : f32
    %164 = vector.shape_cast %163 : vector<1x256xf32> to vector<1x256xf32>
    %165 = vector.broadcast %164 : vector<1x256xf32> to vector<128x256xf32>
    %166 = vector.broadcast %cst_41 : f32 to vector<128x256xf32>
    %167 = arith.select %162, %165, %166 : vector<128x256xi1>, vector<128x256xf32>
    %168 = arith.addf %158, %167 : vector<128x256xf32>
    %169 = arith.truncf %168 : vector<128x256xf32> to vector<128x256xbf16>
    %170 = vector.extract_strided_slice %46 {offsets = [2, 0], sizes = [1, 256], strides = [1, 1]} : vector<9x256xi32> to vector<1x256xi32>
    %171 = vector.broadcast %51 : vector<24x1xi32> to vector<24x256xi32>
    %172 = vector.broadcast %170 : vector<1x256xi32> to vector<24x256xi32>
    %173 = arith.cmpi eq, %171, %172 : vector<24x256xi32>
    %174 = vector.extract_strided_slice %36 {offsets = [2, 0], sizes = [1, 256], strides = [1, 1]} : vector<9x256xf32> to vector<1x256xf32>
    %cst_42 = arith.constant 0.000000e+00 : f32
    %175 = vector.shape_cast %174 : vector<1x256xf32> to vector<1x256xf32>
    %176 = vector.broadcast %175 : vector<1x256xf32> to vector<24x256xf32>
    %177 = vector.broadcast %cst_42 : f32 to vector<24x256xf32>
    %178 = arith.select %173, %176, %177 : vector<24x256xi1>, vector<24x256xf32>
    %179 = vector.extract_strided_slice %47 {offsets = [2, 0], sizes = [1, 256], strides = [1, 1]} : vector<9x256xi32> to vector<1x256xi32>
    %180 = vector.broadcast %51 : vector<24x1xi32> to vector<24x256xi32>
    %181 = vector.broadcast %179 : vector<1x256xi32> to vector<24x256xi32>
    %182 = arith.cmpi eq, %180, %181 : vector<24x256xi32>
    %183 = vector.extract_strided_slice %39 {offsets = [2, 0], sizes = [1, 256], strides = [1, 1]} : vector<9x256xf32> to vector<1x256xf32>
    %cst_43 = arith.constant 0.000000e+00 : f32
    %184 = vector.shape_cast %183 : vector<1x256xf32> to vector<1x256xf32>
    %185 = vector.broadcast %184 : vector<1x256xf32> to vector<24x256xf32>
    %186 = vector.broadcast %cst_43 : f32 to vector<24x256xf32>
    %187 = arith.select %182, %185, %186 : vector<24x256xi1>, vector<24x256xf32>
    %188 = arith.addf %178, %187 : vector<24x256xf32>
    %189 = vector.shape_cast %188 : vector<24x256xf32> to vector<1x24x256xf32>
    %c0_44 = arith.constant 0 : index
    %c0_45 = arith.constant 0 : index
    %c0_46 = arith.constant 0 : index
    %190 = vector.load %arg2[%c0_44, %c0_45, %c0_46] : memref<1x192x128xbf16, #tpu.memory_space<vmem>>, vector<1x192x128xbf16>
    %191 = vector.shape_cast %190 : vector<1x192x128xbf16> to vector<192x128xbf16>
    %cst_47 = arith.constant dense<0.000000e+00> : vector<192x256xf32>
    %192 = tpu.matmul %191, %169, %cst_47 {dimension_numbers = #tpu.dot_dimension_numbers<[1], [0], [0], [1], [0, 0, 1, 1], [], []>} : vector<192x128xbf16>, vector<128x256xbf16>, vector<192x256xf32> -> vector<192x256xf32>
    %193 = vector.shape_cast %192 : vector<192x256xf32> to vector<8x24x256xf32>
    %194 = vector.broadcast %189 : vector<1x24x256xf32> to vector<8x24x256xf32>
    %195 = arith.mulf %193, %194 : vector<8x24x256xf32>
    %cst_48 = arith.constant dense<0.000000e+00> : vector<8x256xf32>
    %196 = vector.multi_reduction <add>, %195, %cst_48 [1] : vector<8x24x256xf32> to vector<8x256xf32>
    %197 = arith.truncf %196 : vector<8x256xf32> to vector<8x256xbf16>
    %c16 = arith.constant 16 : index
    %c0_49 = arith.constant 0 : index
    %198 = vector.load %arg6[%c16, %c0_49] : memref<72x256xbf16, #tpu.memory_space<vmem>>, vector<8x256xbf16>
    tpu.vector_store %arg6[%c16, %c0_49], %197 {strides = array<i32>} : memref<72x256xbf16, #tpu.memory_space<vmem>>, vector<8x256xbf16>,
    %199 = vector.extract_strided_slice %48 {offsets = [3, 0], sizes = [1, 256], strides = [1, 1]} : vector<9x256xi32> to vector<1x256xi32>
    %200 = vector.broadcast %50 : vector<128x1xi32> to vector<128x256xi32>
    %201 = vector.broadcast %199 : vector<1x256xi32> to vector<128x256xi32>
    %202 = arith.cmpi eq, %200, %201 : vector<128x256xi32>
    %203 = vector.extract_strided_slice %42 {offsets = [3, 0], sizes = [1, 256], strides = [1, 1]} : vector<9x256xf32> to vector<1x256xf32>
    %cst_50 = arith.constant 0.000000e+00 : f32
    %204 = vector.shape_cast %203 : vector<1x256xf32> to vector<1x256xf32>
    %205 = vector.broadcast %204 : vector<1x256xf32> to vector<128x256xf32>
    %206 = vector.broadcast %cst_50 : f32 to vector<128x256xf32>
    %207 = arith.select %202, %205, %206 : vector<128x256xi1>, vector<128x256xf32>
    %208 = vector.extract_strided_slice %49 {offsets = [3, 0], sizes = [1, 256], strides = [1, 1]} : vector<9x256xi32> to vector<1x256xi32>
    %209 = vector.broadcast %50 : vector<128x1xi32> to vector<128x256xi32>
    %210 = vector.broadcast %208 : vector<1x256xi32> to vector<128x256xi32>
    %211 = arith.cmpi eq, %209, %210 : vector<128x256xi32>
    %212 = vector.extract_strided_slice %45 {offsets = [3, 0], sizes = [1, 256], strides = [1, 1]} : vector<9x256xf32> to vector<1x256xf32>
    %cst_51 = arith.constant 0.000000e+00 : f32
    %213 = vector.shape_cast %212 : vector<1x256xf32> to vector<1x256xf32>
    %214 = vector.broadcast %213 : vector<1x256xf32> to vector<128x256xf32>
    %215 = vector.broadcast %cst_51 : f32 to vector<128x256xf32>
    %216 = arith.select %211, %214, %215 : vector<128x256xi1>, vector<128x256xf32>
    %217 = arith.addf %207, %216 : vector<128x256xf32>
    %218 = arith.truncf %217 : vector<128x256xf32> to vector<128x256xbf16>
    %219 = vector.extract_strided_slice %46 {offsets = [3, 0], sizes = [1, 256], strides = [1, 1]} : vector<9x256xi32> to vector<1x256xi32>
    %220 = vector.broadcast %51 : vector<24x1xi32> to vector<24x256xi32>
    %221 = vector.broadcast %219 : vector<1x256xi32> to vector<24x256xi32>
    %222 = arith.cmpi eq, %220, %221 : vector<24x256xi32>
    %223 = vector.extract_strided_slice %36 {offsets = [3, 0], sizes = [1, 256], strides = [1, 1]} : vector<9x256xf32> to vector<1x256xf32>
    %cst_52 = arith.constant 0.000000e+00 : f32
    %224 = vector.shape_cast %223 : vector<1x256xf32> to vector<1x256xf32>
    %225 = vector.broadcast %224 : vector<1x256xf32> to vector<24x256xf32>
    %226 = vector.broadcast %cst_52 : f32 to vector<24x256xf32>
    %227 = arith.select %222, %225, %226 : vector<24x256xi1>, vector<24x256xf32>
    %228 = vector.extract_strided_slice %47 {offsets = [3, 0], sizes = [1, 256], strides = [1, 1]} : vector<9x256xi32> to vector<1x256xi32>
    %229 = vector.broadcast %51 : vector<24x1xi32> to vector<24x256xi32>
    %230 = vector.broadcast %228 : vector<1x256xi32> to vector<24x256xi32>
    %231 = arith.cmpi eq, %229, %230 : vector<24x256xi32>
    %232 = vector.extract_strided_slice %39 {offsets = [3, 0], sizes = [1, 256], strides = [1, 1]} : vector<9x256xf32> to vector<1x256xf32>
    %cst_53 = arith.constant 0.000000e+00 : f32
    %233 = vector.shape_cast %232 : vector<1x256xf32> to vector<1x256xf32>
    %234 = vector.broadcast %233 : vector<1x256xf32> to vector<24x256xf32>
    %235 = vector.broadcast %cst_53 : f32 to vector<24x256xf32>
    %236 = arith.select %231, %234, %235 : vector<24x256xi1>, vector<24x256xf32>
    %237 = arith.addf %227, %236 : vector<24x256xf32>
    %238 = vector.shape_cast %237 : vector<24x256xf32> to vector<1x24x256xf32>
    %c0_54 = arith.constant 0 : index
    %c0_55 = arith.constant 0 : index
    %c0_56 = arith.constant 0 : index
    %239 = vector.load %arg2[%c0_54, %c0_55, %c0_56] : memref<1x192x128xbf16, #tpu.memory_space<vmem>>, vector<1x192x128xbf16>
    %240 = vector.shape_cast %239 : vector<1x192x128xbf16> to vector<192x128xbf16>
    %cst_57 = arith.constant dense<0.000000e+00> : vector<192x256xf32>
    %241 = tpu.matmul %240, %218, %cst_57 {dimension_numbers = #tpu.dot_dimension_numbers<[1], [0], [0], [1], [0, 0, 1, 1], [], []>} : vector<192x128xbf16>, vector<128x256xbf16>, vector<192x256xf32> -> vector<192x256xf32>
    %242 = vector.shape_cast %241 : vector<192x256xf32> to vector<8x24x256xf32>
    %243 = vector.broadcast %238 : vector<1x24x256xf32> to vector<8x24x256xf32>
    %244 = arith.mulf %242, %243 : vector<8x24x256xf32>
    %cst_58 = arith.constant dense<0.000000e+00> : vector<8x256xf32>
    %245 = vector.multi_reduction <add>, %244, %cst_58 [1] : vector<8x24x256xf32> to vector<8x256xf32>
    %246 = arith.truncf %245 : vector<8x256xf32> to vector<8x256xbf16>
    %c24 = arith.constant 24 : index
    %c0_59 = arith.constant 0 : index
    %247 = vector.load %arg6[%c24, %c0_59] : memref<72x256xbf16, #tpu.memory_space<vmem>>, vector<8x256xbf16>
    tpu.vector_store %arg6[%c24, %c0_59], %246 {strides = array<i32>} : memref<72x256xbf16, #tpu.memory_space<vmem>>, vector<8x256xbf16>,
    %248 = vector.extract_strided_slice %48 {offsets = [4, 0], sizes = [1, 256], strides = [1, 1]} : vector<9x256xi32> to vector<1x256xi32>
    %249 = vector.broadcast %50 : vector<128x1xi32> to vector<128x256xi32>
    %250 = vector.broadcast %248 : vector<1x256xi32> to vector<128x256xi32>
    %251 = arith.cmpi eq, %249, %250 : vector<128x256xi32>
    %252 = vector.extract_strided_slice %42 {offsets = [4, 0], sizes = [1, 256], strides = [1, 1]} : vector<9x256xf32> to vector<1x256xf32>
    %cst_60 = arith.constant 0.000000e+00 : f32
    %253 = vector.shape_cast %252 : vector<1x256xf32> to vector<1x256xf32>
    %254 = vector.broadcast %253 : vector<1x256xf32> to vector<128x256xf32>
    %255 = vector.broadcast %cst_60 : f32 to vector<128x256xf32>
    %256 = arith.select %251, %254, %255 : vector<128x256xi1>, vector<128x256xf32>
    %257 = vector.extract_strided_slice %49 {offsets = [4, 0], sizes = [1, 256], strides = [1, 1]} : vector<9x256xi32> to vector<1x256xi32>
    %258 = vector.broadcast %50 : vector<128x1xi32> to vector<128x256xi32>
    %259 = vector.broadcast %257 : vector<1x256xi32> to vector<128x256xi32>
    %260 = arith.cmpi eq, %258, %259 : vector<128x256xi32>
    %261 = vector.extract_strided_slice %45 {offsets = [4, 0], sizes = [1, 256], strides = [1, 1]} : vector<9x256xf32> to vector<1x256xf32>
    %cst_61 = arith.constant 0.000000e+00 : f32
    %262 = vector.shape_cast %261 : vector<1x256xf32> to vector<1x256xf32>
    %263 = vector.broadcast %262 : vector<1x256xf32> to vector<128x256xf32>
    %264 = vector.broadcast %cst_61 : f32 to vector<128x256xf32>
    %265 = arith.select %260, %263, %264 : vector<128x256xi1>, vector<128x256xf32>
    %266 = arith.addf %256, %265 : vector<128x256xf32>
    %267 = arith.truncf %266 : vector<128x256xf32> to vector<128x256xbf16>
    %268 = vector.extract_strided_slice %46 {offsets = [4, 0], sizes = [1, 256], strides = [1, 1]} : vector<9x256xi32> to vector<1x256xi32>
    %269 = vector.broadcast %51 : vector<24x1xi32> to vector<24x256xi32>
    %270 = vector.broadcast %268 : vector<1x256xi32> to vector<24x256xi32>
    %271 = arith.cmpi eq, %269, %270 : vector<24x256xi32>
    %272 = vector.extract_strided_slice %36 {offsets = [4, 0], sizes = [1, 256], strides = [1, 1]} : vector<9x256xf32> to vector<1x256xf32>
    %cst_62 = arith.constant 0.000000e+00 : f32
    %273 = vector.shape_cast %272 : vector<1x256xf32> to vector<1x256xf32>
    %274 = vector.broadcast %273 : vector<1x256xf32> to vector<24x256xf32>
    %275 = vector.broadcast %cst_62 : f32 to vector<24x256xf32>
    %276 = arith.select %271, %274, %275 : vector<24x256xi1>, vector<24x256xf32>
    %277 = vector.extract_strided_slice %47 {offsets = [4, 0], sizes = [1, 256], strides = [1, 1]} : vector<9x256xi32> to vector<1x256xi32>
    %278 = vector.broadcast %51 : vector<24x1xi32> to vector<24x256xi32>
    %279 = vector.broadcast %277 : vector<1x256xi32> to vector<24x256xi32>
    %280 = arith.cmpi eq, %278, %279 : vector<24x256xi32>
    %281 = vector.extract_strided_slice %39 {offsets = [4, 0], sizes = [1, 256], strides = [1, 1]} : vector<9x256xf32> to vector<1x256xf32>
    %cst_63 = arith.constant 0.000000e+00 : f32
    %282 = vector.shape_cast %281 : vector<1x256xf32> to vector<1x256xf32>
    %283 = vector.broadcast %282 : vector<1x256xf32> to vector<24x256xf32>
    %284 = vector.broadcast %cst_63 : f32 to vector<24x256xf32>
    %285 = arith.select %280, %283, %284 : vector<24x256xi1>, vector<24x256xf32>
    %286 = arith.addf %276, %285 : vector<24x256xf32>
    %287 = vector.shape_cast %286 : vector<24x256xf32> to vector<1x24x256xf32>
    %c0_64 = arith.constant 0 : index
    %c0_65 = arith.constant 0 : index
    %c0_66 = arith.constant 0 : index
    %288 = vector.load %arg2[%c0_64, %c0_65, %c0_66] : memref<1x192x128xbf16, #tpu.memory_space<vmem>>, vector<1x192x128xbf16>
    %289 = vector.shape_cast %288 : vector<1x192x128xbf16> to vector<192x128xbf16>
    %cst_67 = arith.constant dense<0.000000e+00> : vector<192x256xf32>
    %290 = tpu.matmul %289, %267, %cst_67 {dimension_numbers = #tpu.dot_dimension_numbers<[1], [0], [0], [1], [0, 0, 1, 1], [], []>} : vector<192x128xbf16>, vector<128x256xbf16>, vector<192x256xf32> -> vector<192x256xf32>
    %291 = vector.shape_cast %290 : vector<192x256xf32> to vector<8x24x256xf32>
    %292 = vector.broadcast %287 : vector<1x24x256xf32> to vector<8x24x256xf32>
    %293 = arith.mulf %291, %292 : vector<8x24x256xf32>
    %cst_68 = arith.constant dense<0.000000e+00> : vector<8x256xf32>
    %294 = vector.multi_reduction <add>, %293, %cst_68 [1] : vector<8x24x256xf32> to vector<8x256xf32>
    %295 = arith.truncf %294 : vector<8x256xf32> to vector<8x256xbf16>
    %c32 = arith.constant 32 : index
    %c0_69 = arith.constant 0 : index
    %296 = vector.load %arg6[%c32, %c0_69] : memref<72x256xbf16, #tpu.memory_space<vmem>>, vector<8x256xbf16>
    tpu.vector_store %arg6[%c32, %c0_69], %295 {strides = array<i32>} : memref<72x256xbf16, #tpu.memory_space<vmem>>, vector<8x256xbf16>,
    %297 = vector.extract_strided_slice %48 {offsets = [5, 0], sizes = [1, 256], strides = [1, 1]} : vector<9x256xi32> to vector<1x256xi32>
    %298 = vector.broadcast %50 : vector<128x1xi32> to vector<128x256xi32>
    %299 = vector.broadcast %297 : vector<1x256xi32> to vector<128x256xi32>
    %300 = arith.cmpi eq, %298, %299 : vector<128x256xi32>
    %301 = vector.extract_strided_slice %42 {offsets = [5, 0], sizes = [1, 256], strides = [1, 1]} : vector<9x256xf32> to vector<1x256xf32>
    %cst_70 = arith.constant 0.000000e+00 : f32
    %302 = vector.shape_cast %301 : vector<1x256xf32> to vector<1x256xf32>
    %303 = vector.broadcast %302 : vector<1x256xf32> to vector<128x256xf32>
    %304 = vector.broadcast %cst_70 : f32 to vector<128x256xf32>
    %305 = arith.select %300, %303, %304 : vector<128x256xi1>, vector<128x256xf32>
    %306 = vector.extract_strided_slice %49 {offsets = [5, 0], sizes = [1, 256], strides = [1, 1]} : vector<9x256xi32> to vector<1x256xi32>
    %307 = vector.broadcast %50 : vector<128x1xi32> to vector<128x256xi32>
    %308 = vector.broadcast %306 : vector<1x256xi32> to vector<128x256xi32>
    %309 = arith.cmpi eq, %307, %308 : vector<128x256xi32>
    %310 = vector.extract_strided_slice %45 {offsets = [5, 0], sizes = [1, 256], strides = [1, 1]} : vector<9x256xf32> to vector<1x256xf32>
    %cst_71 = arith.constant 0.000000e+00 : f32
    %311 = vector.shape_cast %310 : vector<1x256xf32> to vector<1x256xf32>
    %312 = vector.broadcast %311 : vector<1x256xf32> to vector<128x256xf32>
    %313 = vector.broadcast %cst_71 : f32 to vector<128x256xf32>
    %314 = arith.select %309, %312, %313 : vector<128x256xi1>, vector<128x256xf32>
    %315 = arith.addf %305, %314 : vector<128x256xf32>
    %316 = arith.truncf %315 : vector<128x256xf32> to vector<128x256xbf16>
    %317 = vector.extract_strided_slice %46 {offsets = [5, 0], sizes = [1, 256], strides = [1, 1]} : vector<9x256xi32> to vector<1x256xi32>
    %318 = vector.broadcast %51 : vector<24x1xi32> to vector<24x256xi32>
    %319 = vector.broadcast %317 : vector<1x256xi32> to vector<24x256xi32>
    %320 = arith.cmpi eq, %318, %319 : vector<24x256xi32>
    %321 = vector.extract_strided_slice %36 {offsets = [5, 0], sizes = [1, 256], strides = [1, 1]} : vector<9x256xf32> to vector<1x256xf32>
    %cst_72 = arith.constant 0.000000e+00 : f32
    %322 = vector.shape_cast %321 : vector<1x256xf32> to vector<1x256xf32>
    %323 = vector.broadcast %322 : vector<1x256xf32> to vector<24x256xf32>
    %324 = vector.broadcast %cst_72 : f32 to vector<24x256xf32>
    %325 = arith.select %320, %323, %324 : vector<24x256xi1>, vector<24x256xf32>
    %326 = vector.extract_strided_slice %47 {offsets = [5, 0], sizes = [1, 256], strides = [1, 1]} : vector<9x256xi32> to vector<1x256xi32>
    %327 = vector.broadcast %51 : vector<24x1xi32> to vector<24x256xi32>
    %328 = vector.broadcast %326 : vector<1x256xi32> to vector<24x256xi32>
    %329 = arith.cmpi eq, %327, %328 : vector<24x256xi32>
    %330 = vector.extract_strided_slice %39 {offsets = [5, 0], sizes = [1, 256], strides = [1, 1]} : vector<9x256xf32> to vector<1x256xf32>
    %cst_73 = arith.constant 0.000000e+00 : f32
    %331 = vector.shape_cast %330 : vector<1x256xf32> to vector<1x256xf32>
    %332 = vector.broadcast %331 : vector<1x256xf32> to vector<24x256xf32>
    %333 = vector.broadcast %cst_73 : f32 to vector<24x256xf32>
    %334 = arith.select %329, %332, %333 : vector<24x256xi1>, vector<24x256xf32>
    %335 = arith.addf %325, %334 : vector<24x256xf32>
    %336 = vector.shape_cast %335 : vector<24x256xf32> to vector<1x24x256xf32>
    %c0_74 = arith.constant 0 : index
    %c0_75 = arith.constant 0 : index
    %c0_76 = arith.constant 0 : index
    %337 = vector.load %arg2[%c0_74, %c0_75, %c0_76] : memref<1x192x128xbf16, #tpu.memory_space<vmem>>, vector<1x192x128xbf16>
    %338 = vector.shape_cast %337 : vector<1x192x128xbf16> to vector<192x128xbf16>
    %cst_77 = arith.constant dense<0.000000e+00> : vector<192x256xf32>
    %339 = tpu.matmul %338, %316, %cst_77 {dimension_numbers = #tpu.dot_dimension_numbers<[1], [0], [0], [1], [0, 0, 1, 1], [], []>} : vector<192x128xbf16>, vector<128x256xbf16>, vector<192x256xf32> -> vector<192x256xf32>
    %340 = vector.shape_cast %339 : vector<192x256xf32> to vector<8x24x256xf32>
    %341 = vector.broadcast %336 : vector<1x24x256xf32> to vector<8x24x256xf32>
    %342 = arith.mulf %340, %341 : vector<8x24x256xf32>
    %cst_78 = arith.constant dense<0.000000e+00> : vector<8x256xf32>
    %343 = vector.multi_reduction <add>, %342, %cst_78 [1] : vector<8x24x256xf32> to vector<8x256xf32>
    %344 = arith.truncf %343 : vector<8x256xf32> to vector<8x256xbf16>
    %c40 = arith.constant 40 : index
    %c0_79 = arith.constant 0 : index
    %345 = vector.load %arg6[%c40, %c0_79] : memref<72x256xbf16, #tpu.memory_space<vmem>>, vector<8x256xbf16>
    tpu.vector_store %arg6[%c40, %c0_79], %344 {strides = array<i32>} : memref<72x256xbf16, #tpu.memory_space<vmem>>, vector<8x256xbf16>,
    %346 = vector.extract_strided_slice %48 {offsets = [6, 0], sizes = [1, 256], strides = [1, 1]} : vector<9x256xi32> to vector<1x256xi32>
    %347 = vector.broadcast %50 : vector<128x1xi32> to vector<128x256xi32>
    %348 = vector.broadcast %346 : vector<1x256xi32> to vector<128x256xi32>
    %349 = arith.cmpi eq, %347, %348 : vector<128x256xi32>
    %350 = vector.extract_strided_slice %42 {offsets = [6, 0], sizes = [1, 256], strides = [1, 1]} : vector<9x256xf32> to vector<1x256xf32>
    %cst_80 = arith.constant 0.000000e+00 : f32
    %351 = vector.shape_cast %350 : vector<1x256xf32> to vector<1x256xf32>
    %352 = vector.broadcast %351 : vector<1x256xf32> to vector<128x256xf32>
    %353 = vector.broadcast %cst_80 : f32 to vector<128x256xf32>
    %354 = arith.select %349, %352, %353 : vector<128x256xi1>, vector<128x256xf32>
    %355 = vector.extract_strided_slice %49 {offsets = [6, 0], sizes = [1, 256], strides = [1, 1]} : vector<9x256xi32> to vector<1x256xi32>
    %356 = vector.broadcast %50 : vector<128x1xi32> to vector<128x256xi32>
    %357 = vector.broadcast %355 : vector<1x256xi32> to vector<128x256xi32>
    %358 = arith.cmpi eq, %356, %357 : vector<128x256xi32>
    %359 = vector.extract_strided_slice %45 {offsets = [6, 0], sizes = [1, 256], strides = [1, 1]} : vector<9x256xf32> to vector<1x256xf32>
    %cst_81 = arith.constant 0.000000e+00 : f32
    %360 = vector.shape_cast %359 : vector<1x256xf32> to vector<1x256xf32>
    %361 = vector.broadcast %360 : vector<1x256xf32> to vector<128x256xf32>
    %362 = vector.broadcast %cst_81 : f32 to vector<128x256xf32>
    %363 = arith.select %358, %361, %362 : vector<128x256xi1>, vector<128x256xf32>
    %364 = arith.addf %354, %363 : vector<128x256xf32>
    %365 = arith.truncf %364 : vector<128x256xf32> to vector<128x256xbf16>
    %366 = vector.extract_strided_slice %46 {offsets = [6, 0], sizes = [1, 256], strides = [1, 1]} : vector<9x256xi32> to vector<1x256xi32>
    %367 = vector.broadcast %51 : vector<24x1xi32> to vector<24x256xi32>
    %368 = vector.broadcast %366 : vector<1x256xi32> to vector<24x256xi32>
    %369 = arith.cmpi eq, %367, %368 : vector<24x256xi32>
    %370 = vector.extract_strided_slice %36 {offsets = [6, 0], sizes = [1, 256], strides = [1, 1]} : vector<9x256xf32> to vector<1x256xf32>
    %cst_82 = arith.constant 0.000000e+00 : f32
    %371 = vector.shape_cast %370 : vector<1x256xf32> to vector<1x256xf32>
    %372 = vector.broadcast %371 : vector<1x256xf32> to vector<24x256xf32>
    %373 = vector.broadcast %cst_82 : f32 to vector<24x256xf32>
    %374 = arith.select %369, %372, %373 : vector<24x256xi1>, vector<24x256xf32>
    %375 = vector.extract_strided_slice %47 {offsets = [6, 0], sizes = [1, 256], strides = [1, 1]} : vector<9x256xi32> to vector<1x256xi32>
    %376 = vector.broadcast %51 : vector<24x1xi32> to vector<24x256xi32>
    %377 = vector.broadcast %375 : vector<1x256xi32> to vector<24x256xi32>
    %378 = arith.cmpi eq, %376, %377 : vector<24x256xi32>
    %379 = vector.extract_strided_slice %39 {offsets = [6, 0], sizes = [1, 256], strides = [1, 1]} : vector<9x256xf32> to vector<1x256xf32>
    %cst_83 = arith.constant 0.000000e+00 : f32
    %380 = vector.shape_cast %379 : vector<1x256xf32> to vector<1x256xf32>
    %381 = vector.broadcast %380 : vector<1x256xf32> to vector<24x256xf32>
    %382 = vector.broadcast %cst_83 : f32 to vector<24x256xf32>
    %383 = arith.select %378, %381, %382 : vector<24x256xi1>, vector<24x256xf32>
    %384 = arith.addf %374, %383 : vector<24x256xf32>
    %385 = vector.shape_cast %384 : vector<24x256xf32> to vector<1x24x256xf32>
    %c0_84 = arith.constant 0 : index
    %c0_85 = arith.constant 0 : index
    %c0_86 = arith.constant 0 : index
    %386 = vector.load %arg2[%c0_84, %c0_85, %c0_86] : memref<1x192x128xbf16, #tpu.memory_space<vmem>>, vector<1x192x128xbf16>
    %387 = vector.shape_cast %386 : vector<1x192x128xbf16> to vector<192x128xbf16>
    %cst_87 = arith.constant dense<0.000000e+00> : vector<192x256xf32>
    %388 = tpu.matmul %387, %365, %cst_87 {dimension_numbers = #tpu.dot_dimension_numbers<[1], [0], [0], [1], [0, 0, 1, 1], [], []>} : vector<192x128xbf16>, vector<128x256xbf16>, vector<192x256xf32> -> vector<192x256xf32>
    %389 = vector.shape_cast %388 : vector<192x256xf32> to vector<8x24x256xf32>
    %390 = vector.broadcast %385 : vector<1x24x256xf32> to vector<8x24x256xf32>
    %391 = arith.mulf %389, %390 : vector<8x24x256xf32>
    %cst_88 = arith.constant dense<0.000000e+00> : vector<8x256xf32>
    %392 = vector.multi_reduction <add>, %391, %cst_88 [1] : vector<8x24x256xf32> to vector<8x256xf32>
    %393 = arith.truncf %392 : vector<8x256xf32> to vector<8x256xbf16>
    %c48 = arith.constant 48 : index
    %c0_89 = arith.constant 0 : index
    %394 = vector.load %arg6[%c48, %c0_89] : memref<72x256xbf16, #tpu.memory_space<vmem>>, vector<8x256xbf16>
    tpu.vector_store %arg6[%c48, %c0_89], %393 {strides = array<i32>} : memref<72x256xbf16, #tpu.memory_space<vmem>>, vector<8x256xbf16>,
    %395 = vector.extract_strided_slice %48 {offsets = [7, 0], sizes = [1, 256], strides = [1, 1]} : vector<9x256xi32> to vector<1x256xi32>
    %396 = vector.broadcast %50 : vector<128x1xi32> to vector<128x256xi32>
    %397 = vector.broadcast %395 : vector<1x256xi32> to vector<128x256xi32>
    %398 = arith.cmpi eq, %396, %397 : vector<128x256xi32>
    %399 = vector.extract_strided_slice %42 {offsets = [7, 0], sizes = [1, 256], strides = [1, 1]} : vector<9x256xf32> to vector<1x256xf32>
    %cst_90 = arith.constant 0.000000e+00 : f32
    %400 = vector.shape_cast %399 : vector<1x256xf32> to vector<1x256xf32>
    %401 = vector.broadcast %400 : vector<1x256xf32> to vector<128x256xf32>
    %402 = vector.broadcast %cst_90 : f32 to vector<128x256xf32>
    %403 = arith.select %398, %401, %402 : vector<128x256xi1>, vector<128x256xf32>
    %404 = vector.extract_strided_slice %49 {offsets = [7, 0], sizes = [1, 256], strides = [1, 1]} : vector<9x256xi32> to vector<1x256xi32>
    %405 = vector.broadcast %50 : vector<128x1xi32> to vector<128x256xi32>
    %406 = vector.broadcast %404 : vector<1x256xi32> to vector<128x256xi32>
    %407 = arith.cmpi eq, %405, %406 : vector<128x256xi32>
    %408 = vector.extract_strided_slice %45 {offsets = [7, 0], sizes = [1, 256], strides = [1, 1]} : vector<9x256xf32> to vector<1x256xf32>
    %cst_91 = arith.constant 0.000000e+00 : f32
    %409 = vector.shape_cast %408 : vector<1x256xf32> to vector<1x256xf32>
    %410 = vector.broadcast %409 : vector<1x256xf32> to vector<128x256xf32>
    %411 = vector.broadcast %cst_91 : f32 to vector<128x256xf32>
    %412 = arith.select %407, %410, %411 : vector<128x256xi1>, vector<128x256xf32>
    %413 = arith.addf %403, %412 : vector<128x256xf32>
    %414 = arith.truncf %413 : vector<128x256xf32> to vector<128x256xbf16>
    %415 = vector.extract_strided_slice %46 {offsets = [7, 0], sizes = [1, 256], strides = [1, 1]} : vector<9x256xi32> to vector<1x256xi32>
    %416 = vector.broadcast %51 : vector<24x1xi32> to vector<24x256xi32>
    %417 = vector.broadcast %415 : vector<1x256xi32> to vector<24x256xi32>
    %418 = arith.cmpi eq, %416, %417 : vector<24x256xi32>
    %419 = vector.extract_strided_slice %36 {offsets = [7, 0], sizes = [1, 256], strides = [1, 1]} : vector<9x256xf32> to vector<1x256xf32>
    %cst_92 = arith.constant 0.000000e+00 : f32
    %420 = vector.shape_cast %419 : vector<1x256xf32> to vector<1x256xf32>
    %421 = vector.broadcast %420 : vector<1x256xf32> to vector<24x256xf32>
    %422 = vector.broadcast %cst_92 : f32 to vector<24x256xf32>
    %423 = arith.select %418, %421, %422 : vector<24x256xi1>, vector<24x256xf32>
    %424 = vector.extract_strided_slice %47 {offsets = [7, 0], sizes = [1, 256], strides = [1, 1]} : vector<9x256xi32> to vector<1x256xi32>
    %425 = vector.broadcast %51 : vector<24x1xi32> to vector<24x256xi32>
    %426 = vector.broadcast %424 : vector<1x256xi32> to vector<24x256xi32>
    %427 = arith.cmpi eq, %425, %426 : vector<24x256xi32>
    %428 = vector.extract_strided_slice %39 {offsets = [7, 0], sizes = [1, 256], strides = [1, 1]} : vector<9x256xf32> to vector<1x256xf32>
    %cst_93 = arith.constant 0.000000e+00 : f32
    %429 = vector.shape_cast %428 : vector<1x256xf32> to vector<1x256xf32>
    %430 = vector.broadcast %429 : vector<1x256xf32> to vector<24x256xf32>
    %431 = vector.broadcast %cst_93 : f32 to vector<24x256xf32>
    %432 = arith.select %427, %430, %431 : vector<24x256xi1>, vector<24x256xf32>
    %433 = arith.addf %423, %432 : vector<24x256xf32>
    %434 = vector.shape_cast %433 : vector<24x256xf32> to vector<1x24x256xf32>
    %c0_94 = arith.constant 0 : index
    %c0_95 = arith.constant 0 : index
    %c0_96 = arith.constant 0 : index
    %435 = vector.load %arg2[%c0_94, %c0_95, %c0_96] : memref<1x192x128xbf16, #tpu.memory_space<vmem>>, vector<1x192x128xbf16>
    %436 = vector.shape_cast %435 : vector<1x192x128xbf16> to vector<192x128xbf16>
    %cst_97 = arith.constant dense<0.000000e+00> : vector<192x256xf32>
    %437 = tpu.matmul %436, %414, %cst_97 {dimension_numbers = #tpu.dot_dimension_numbers<[1], [0], [0], [1], [0, 0, 1, 1], [], []>} : vector<192x128xbf16>, vector<128x256xbf16>, vector<192x256xf32> -> vector<192x256xf32>
    %438 = vector.shape_cast %437 : vector<192x256xf32> to vector<8x24x256xf32>
    %439 = vector.broadcast %434 : vector<1x24x256xf32> to vector<8x24x256xf32>
    %440 = arith.mulf %438, %439 : vector<8x24x256xf32>
    %cst_98 = arith.constant dense<0.000000e+00> : vector<8x256xf32>
    %441 = vector.multi_reduction <add>, %440, %cst_98 [1] : vector<8x24x256xf32> to vector<8x256xf32>
    %442 = arith.truncf %441 : vector<8x256xf32> to vector<8x256xbf16>
    %c56 = arith.constant 56 : index
    %c0_99 = arith.constant 0 : index
    %443 = vector.load %arg6[%c56, %c0_99] : memref<72x256xbf16, #tpu.memory_space<vmem>>, vector<8x256xbf16>
    tpu.vector_store %arg6[%c56, %c0_99], %442 {strides = array<i32>} : memref<72x256xbf16, #tpu.memory_space<vmem>>, vector<8x256xbf16>,
    %444 = vector.extract_strided_slice %48 {offsets = [8, 0], sizes = [1, 256], strides = [1, 1]} : vector<9x256xi32> to vector<1x256xi32>
    %445 = vector.broadcast %50 : vector<128x1xi32> to vector<128x256xi32>
    %446 = vector.broadcast %444 : vector<1x256xi32> to vector<128x256xi32>
    %447 = arith.cmpi eq, %445, %446 : vector<128x256xi32>
    %448 = vector.extract_strided_slice %42 {offsets = [8, 0], sizes = [1, 256], strides = [1, 1]} : vector<9x256xf32> to vector<1x256xf32>
    %cst_100 = arith.constant 0.000000e+00 : f32
    %449 = vector.shape_cast %448 : vector<1x256xf32> to vector<1x256xf32>
    %450 = vector.broadcast %449 : vector<1x256xf32> to vector<128x256xf32>
    %451 = vector.broadcast %cst_100 : f32 to vector<128x256xf32>
    %452 = arith.select %447, %450, %451 : vector<128x256xi1>, vector<128x256xf32>
    %453 = vector.extract_strided_slice %49 {offsets = [8, 0], sizes = [1, 256], strides = [1, 1]} : vector<9x256xi32> to vector<1x256xi32>
    %454 = vector.broadcast %50 : vector<128x1xi32> to vector<128x256xi32>
    %455 = vector.broadcast %453 : vector<1x256xi32> to vector<128x256xi32>
    %456 = arith.cmpi eq, %454, %455 : vector<128x256xi32>
    %457 = vector.extract_strided_slice %45 {offsets = [8, 0], sizes = [1, 256], strides = [1, 1]} : vector<9x256xf32> to vector<1x256xf32>
    %cst_101 = arith.constant 0.000000e+00 : f32
    %458 = vector.shape_cast %457 : vector<1x256xf32> to vector<1x256xf32>
    %459 = vector.broadcast %458 : vector<1x256xf32> to vector<128x256xf32>
    %460 = vector.broadcast %cst_101 : f32 to vector<128x256xf32>
    %461 = arith.select %456, %459, %460 : vector<128x256xi1>, vector<128x256xf32>
    %462 = arith.addf %452, %461 : vector<128x256xf32>
    %463 = arith.truncf %462 : vector<128x256xf32> to vector<128x256xbf16>
    %464 = vector.extract_strided_slice %46 {offsets = [8, 0], sizes = [1, 256], strides = [1, 1]} : vector<9x256xi32> to vector<1x256xi32>
    %465 = vector.broadcast %51 : vector<24x1xi32> to vector<24x256xi32>
    %466 = vector.broadcast %464 : vector<1x256xi32> to vector<24x256xi32>
    %467 = arith.cmpi eq, %465, %466 : vector<24x256xi32>
    %468 = vector.extract_strided_slice %36 {offsets = [8, 0], sizes = [1, 256], strides = [1, 1]} : vector<9x256xf32> to vector<1x256xf32>
    %cst_102 = arith.constant 0.000000e+00 : f32
    %469 = vector.shape_cast %468 : vector<1x256xf32> to vector<1x256xf32>
    %470 = vector.broadcast %469 : vector<1x256xf32> to vector<24x256xf32>
    %471 = vector.broadcast %cst_102 : f32 to vector<24x256xf32>
    %472 = arith.select %467, %470, %471 : vector<24x256xi1>, vector<24x256xf32>
    %473 = vector.extract_strided_slice %47 {offsets = [8, 0], sizes = [1, 256], strides = [1, 1]} : vector<9x256xi32> to vector<1x256xi32>
    %474 = vector.broadcast %51 : vector<24x1xi32> to vector<24x256xi32>
    %475 = vector.broadcast %473 : vector<1x256xi32> to vector<24x256xi32>
    %476 = arith.cmpi eq, %474, %475 : vector<24x256xi32>
    %477 = vector.extract_strided_slice %39 {offsets = [8, 0], sizes = [1, 256], strides = [1, 1]} : vector<9x256xf32> to vector<1x256xf32>
    %cst_103 = arith.constant 0.000000e+00 : f32
    %478 = vector.shape_cast %477 : vector<1x256xf32> to vector<1x256xf32>
    %479 = vector.broadcast %478 : vector<1x256xf32> to vector<24x256xf32>
    %480 = vector.broadcast %cst_103 : f32 to vector<24x256xf32>
    %481 = arith.select %476, %479, %480 : vector<24x256xi1>, vector<24x256xf32>
    %482 = arith.addf %472, %481 : vector<24x256xf32>
    %483 = vector.shape_cast %482 : vector<24x256xf32> to vector<1x24x256xf32>
    %c0_104 = arith.constant 0 : index
    %c0_105 = arith.constant 0 : index
    %c0_106 = arith.constant 0 : index
    %484 = vector.load %arg2[%c0_104, %c0_105, %c0_106] : memref<1x192x128xbf16, #tpu.memory_space<vmem>>, vector<1x192x128xbf16>
    %485 = vector.shape_cast %484 : vector<1x192x128xbf16> to vector<192x128xbf16>
    %cst_107 = arith.constant dense<0.000000e+00> : vector<192x256xf32>
    %486 = tpu.matmul %485, %463, %cst_107 {dimension_numbers = #tpu.dot_dimension_numbers<[1], [0], [0], [1], [0, 0, 1, 1], [], []>} : vector<192x128xbf16>, vector<128x256xbf16>, vector<192x256xf32> -> vector<192x256xf32>
    %487 = vector.shape_cast %486 : vector<192x256xf32> to vector<8x24x256xf32>
    %488 = vector.broadcast %483 : vector<1x24x256xf32> to vector<8x24x256xf32>
    %489 = arith.mulf %487, %488 : vector<8x24x256xf32>
    %cst_108 = arith.constant dense<0.000000e+00> : vector<8x256xf32>
    %490 = vector.multi_reduction <add>, %489, %cst_108 [1] : vector<8x24x256xf32> to vector<8x256xf32>
    %491 = arith.truncf %490 : vector<8x256xf32> to vector<8x256xbf16>
    %c64 = arith.constant 64 : index
    %c0_109 = arith.constant 0 : index
    %492 = vector.load %arg6[%c64, %c0_109] : memref<72x256xbf16, #tpu.memory_space<vmem>>, vector<8x256xbf16>
    tpu.vector_store %arg6[%c64, %c0_109], %491 {strides = array<i32>} : memref<72x256xbf16, #tpu.memory_space<vmem>>, vector<8x256xbf16>,
    %c0_110 = arith.constant 0 : index
    %c0_111 = arith.constant 0 : index
    %493 = vector.load %arg4[%c0_110, %c0_111] : memref<8x72xbf16, #tpu.memory_space<vmem>>, vector<8x72xbf16>
    %c0_112 = arith.constant 0 : index
    %c0_113 = arith.constant 0 : index
    %494 = vector.load %arg6[%c0_112, %c0_113] : memref<72x256xbf16, #tpu.memory_space<vmem>>, vector<72x256xbf16>
    %cst_114 = arith.constant dense<0.000000e+00> : vector<8x256xf32>
    %495 = tpu.matmul %493, %494, %cst_114 {dimension_numbers = #tpu.dot_dimension_numbers<[1], [0], [0], [1], [0, 0, 1, 1], [], []>} : vector<8x72xbf16>, vector<72x256xbf16>, vector<8x256xf32> -> vector<8x256xf32>
    %c0_115 = arith.constant 0 : index
    %c0_116 = arith.constant 0 : index
    %c0_117 = arith.constant 0 : index
    %496 = vector.load %arg5[%c0_115, %c0_116, %c0_117] : memref<1x8x256xf32, #tpu.memory_space<vmem>>, vector<1x8x256xf32>
    %497 = vector.shape_cast %496 : vector<1x8x256xf32> to vector<8x256xf32>
    %498 = vector.shape_cast %495 : vector<8x256xf32> to vector<1x8x256xf32>
    tpu.vector_store %arg5[%c0_115, %c0_116, %c0_117], %498 {strides = array<i32>} : memref<1x8x256xf32, #tpu.memory_space<vmem>>, vector<1x8x256xf32>,
    return
  }
  func.func @transform_0(%arg0: i32, %arg1: i32) -> (i32, i32, i32) {
    %c0_i32 = arith.constant 0 : i32
    %c0_i32_0 = arith.constant 0 : i32
    %c0_i32_1 = arith.constant 0 : i32
    return %arg0, %c0_i32, %c0_i32_0 : i32, i32, i32
  }
  func.func @transform_1(%arg0: i32, %arg1: i32) -> (i32, i32, i32) {
    %c0_i32 = arith.constant 0 : i32
    %c0_i32_0 = arith.constant 0 : i32
    return %arg0, %c0_i32, %arg1 : i32, i32, i32
  }
  func.func @transform_2(%arg0: i32, %arg1: i32) -> (i32, i32) {
    %c0_i32 = arith.constant 0 : i32
    %c0_i32_0 = arith.constant 0 : i32
    %c0_i32_1 = arith.constant 0 : i32
    return %c0_i32, %c0_i32_0 : i32, i32
  }
  func.func @transform_3(%arg0: i32, %arg1: i32) -> (i32, i32, i32) {
    %c0_i32 = arith.constant 0 : i32
    %c0_i32_0 = arith.constant 0 : i32
    return %arg0, %c0_i32, %arg1 : i32, i32, i32
  }
}

</mosaic_0001>

<llo_original>
// kernel: tpu_custom_call.1
$region0: #{tpu_custom_call.1}
  #allocation0 [shape = 'u32[]', space=smem, size = 0x4, offset = 0x4, fixed_abs, tag = 'smem constant byte address 0x4 - core index']
  #allocation1 [shape = 'u32[144,128]{1,0:T(1,128)}', space=vmem, size = 0x12000, scoped, tag = 'internal scratch']
  #allocation2 [shape = 'bf16[72,256]{1,0:T(8,128)(2,1)}', space=vmem, size = 0x9000, scoped, tag = 'scratch operand']
  %s0 = inlined_call_operand.hbm [shape: bf16[2,192,128], index: 0, kind: input, shape index: {}]
  %s1 = inlined_call_operand.hbm [shape: f32[2,32,256], index: 1, kind: input, shape index: {}]
  %s2 = inlined_call_operand.vmem [shape: bf16[8,72], index: 2, kind: input, shape index: {}]
  %s3 = inlined_call_operand.hbm [shape: f32[2,8,256], index: 3, kind: output, shape index: {}]
  %s4 = sld [smem:[#allocation0]]
  $region53: #{tpu_custom_call.1} parent=0
    _
  %s6 = ssub.s32 1, %s4
  %s7 = scalar_select 0, %s6, %s4
  $region1: #{tpu_custom_call.1} parent=0
    #allocation3 [shape = 'u8[98304]{0}', space=vmem, size = 0x18000, scoped, tag = 'input window, operand 0']
    #allocation4 [shape = 's32[2]{0}', space=sflag, size = 0x8, scoped, tag = 'scoped memory for tpu_custom_call.1']
    #allocation5 [shape = 's32[2]{0}', space=sflag, size = 0x8, scoped, tag = 'scoped memory for tpu_custom_call.1']
    #allocation6 [shape = 'u8[65536]{0}', space=vmem, size = 0x10000, scoped, tag = 'input window, operand 1']
    #allocation7 [shape = 's32[2]{0}', space=sflag, size = 0x8, scoped, tag = 'scoped memory for tpu_custom_call.1']
    #allocation8 [shape = 'u8[16384]{0}', space=vmem, size = 0x4000, scoped, tag = 'output window, operand 0']
    %8 = vsyncpa [#allocation4], 0
    %s9 = scalar_lea.sflag [#allocation4], 1
    %10 = vsyncpa %s9, 0
    %11 = vsyncpa [#allocation7], 0
    %s12 = scalar_lea.sflag [#allocation7], 1
    %13 = vsyncpa %s12, 0
    %14 = vsyncpa [#allocation5], 0
    %s15 = scalar_lea.sflag [#allocation5], 1
    %16 = vsyncpa %s15, 0
    loop: start=0, step=1, limit=4
    $region2: #{tpu_custom_call.1} parent=1 // loop_pre_header
      _
    $region3: #{tpu_custom_call.1} parent=1 // loop_header
      %s18 = sphi 0, %s22
      %p19 = scmp.ge.s32.totalorder %s18, 4
      %s25 = sphi 0, %s37
      %s26 = sphi 0, %s33
      %s27 = sphi 0, %s25
      %s28 = sphi 0, %s26
      %s29 = sphi 0, %s27
      %s30 = sphi 0, %s28
      %s40 = sphi 0, %s42
      %s43 = sphi 0, %s40
      %s44 = sphi 0, %s43
      %s60 = sphi 0, %s44
      %s68 = sphi 0, %s70
      %s71 = sphi 0, %s68
      %s72 = sphi 0, %s71
      %s88 = sphi 0, %s72
      %s92 = sphi 0, %s92
      %s94 = sphi 0, %s92
      %s95 = sphi 0, %s94
      %s109 = sphi 0, %s95
      %s117 = sphi 0, %s119
      %s120 = sphi 0, %s117
      %s121 = sphi 0, %s120
      %s137 = sphi 0, %s121
    $region4: #{tpu_custom_call.1} parent=1 // loop_header_branch
      %21 = sbr.rel (%p19) target = $region8
    $region5: #{tpu_custom_call.1} parent=1 // loop_body
      %s23 = ssub.s32 %s18, 1
      %s24 = ssub.s32 %s18, 2
      %s31 = sadd.s32 1, %s26
      %p32 = scmp.ge.s32.totalorder %s31, 1
      %s33 = scalar_select %p32, 0, %s31
      %s34 = sadd.s32 1, %s25
      %s35 = scalar_select %p32, %s34, %s25
      %p36 = scmp.ge.s32.totalorder %s35, 2
      %s37 = scalar_select %p36, 0, %s35
      %s38 = ssub.s32 %s25, %s37
      %p39 = scmp.eq.s32.totalorder %s38, 0
      %s41 = sadd.s32 %s40, 1
      %s42 = scalar_select %p39, %s40, %s41
      %p45 = pneg %p39
      %p46 = scmp.eq.s32.totalorder %s18, 1
      %p47 = por %p45, %p46
      %p48 = scmp.ne.s32.totalorder %s40, %s43
      %p49 = scmp.eq.s32.totalorder %s18, 0
      %p50 = por %p48, %p49
      %p51 = scmp.ne.s32.totalorder %s40, %s43
      %p52 = scmp.eq.s32.totalorder %s23, 1
      %p53 = por %p51, %p52
      %p54 = scmp.ne.s32.totalorder %s43, %s44
      %p55 = scmp.eq.s32.totalorder %s23, 0
      %p56 = por %p54, %p55
      %p57 = scmp.ne.s32.totalorder %s43, %s44
      %p58 = scmp.eq.s32.totalorder %s24, 1
      %p59 = por %p57, %p58
      %p61 = scmp.ne.s32.totalorder %s44, %s60
      %p62 = scmp.eq.s32.totalorder %s24, 0
      %p63 = por %p61, %p62
      %s64 = ssub.s32 %s25, %s37
      %s65 = ssub.s32 %s26, %s33
      %s66 = sor.u32 %s64, %s65
      %p67 = scmp.eq.s32.totalorder %s66, 0
      %s69 = sadd.s32 %s68, 1
      %s70 = scalar_select %p67, %s68, %s69
      %p73 = pneg %p67
      %p74 = scmp.eq.s32.totalorder %s18, 1
      %p75 = por %p73, %p74
      %p76 = scmp.ne.s32.totalorder %s68, %s71
      %p77 = scmp.eq.s32.totalorder %s18, 0
      %p78 = por %p76, %p77
      %p79 = scmp.ne.s32.totalorder %s68, %s71
      %p80 = scmp.eq.s32.totalorder %s23, 1
      %p81 = por %p79, %p80
      %p82 = scmp.ne.s32.totalorder %s71, %s72
      %p83 = scmp.eq.s32.totalorder %s23, 0
      %p84 = por %p82, %p83
      %p85 = scmp.ne.s32.totalorder %s71, %s72
      %p86 = scmp.eq.s32.totalorder %s24, 1
      %p87 = por %p85, %p86
      %p89 = scmp.ne.s32.totalorder %s72, %s88
      %p90 = scmp.eq.s32.totalorder %s24, 0
      %p91 = por %p89, %p90
      %s93 = sadd.s32 %s92, 1
      %p96 = scmp.eq.s32.totalorder %s18, 1
      %p97 = scmp.ne.s32.totalorder %s92, %s94
      %p98 = scmp.eq.s32.totalorder %s18, 0
      %p99 = por %p97, %p98
      %p100 = scmp.ne.s32.totalorder %s92, %s94
      %p101 = scmp.eq.s32.totalorder %s23, 1
      %p102 = por %p100, %p101
      %p103 = scmp.ne.s32.totalorder %s94, %s95
      %p104 = scmp.eq.s32.totalorder %s23, 0
      %p105 = por %p103, %p104
      %p106 = scmp.ne.s32.totalorder %s94, %s95
      %p107 = scmp.eq.s32.totalorder %s24, 1
      %p108 = por %p106, %p107
      %p110 = scmp.ne.s32.totalorder %s95, %s109
      %p111 = scmp.eq.s32.totalorder %s24, 0
      %p112 = por %p110, %p111
      %s113 = ssub.s32 %s25, %s37
      %s114 = ssub.s32 %s26, %s33
      %s115 = sor.u32 %s113, %s114
      %p116 = scmp.eq.s32.totalorder %s115, 0
      %s118 = sadd.s32 %s117, 1
      %s119 = scalar_select %p116, %s117, %s118
      %p122 = pneg %p116
      %p123 = scmp.eq.s32.totalorder %s18, 1
      %p124 = por %p122, %p123
      %p125 = scmp.ne.s32.totalorder %s117, %s120
      %p126 = scmp.eq.s32.totalorder %s18, 0
      %p127 = por %p125, %p126
      %p128 = scmp.ne.s32.totalorder %s117, %s120
      %p129 = scmp.eq.s32.totalorder %s23, 1
      %p130 = por %p128, %p129
      %p131 = scmp.ne.s32.totalorder %s120, %s121
      %p132 = scmp.eq.s32.totalorder %s23, 0
      %p133 = por %p131, %p132
      %p134 = scmp.ne.s32.totalorder %s120, %s121
      %p135 = scmp.eq.s32.totalorder %s24, 1
      %p136 = por %p134, %p135
      %p138 = scmp.ne.s32.totalorder %s121, %s137
      %p139 = scmp.eq.s32.totalorder %s24, 0
      %p140 = por %p138, %p139
      %p141 = scmp.le.s32.totalorder 1, %s18
      %p142 = scmp.lt.s32.totalorder %s18, 3
      %p143 = pnand %p141, %p142
      %p144 = pneg %p143
      // Predicated region
      $region9: #{tpu_custom_call.1} parent=5 // pred_check
        _
      $region10: #{tpu_custom_call.1} parent=5 // pred_check_branch
        %146 = sbr.rel (%p143) target = $region12
      $region11: #{tpu_custom_call.1} parent=5 // pred_region
        %s147 = ssub.s32 %s18, 1
        // Predicated region
        $region13: #{tpu_custom_call.1} parent=11 // pred_check
          %p148 = pneg %p105
        $region14: #{tpu_custom_call.1} parent=11 // pred_check_branch
          %150 = sbr.rel (%p148) target = $region16
        $region15: #{tpu_custom_call.1} parent=11 // pred_region
          _
        $region16: #{tpu_custom_call.1} parent=11 // pred_fallthru
          _
      $region12: #{tpu_custom_call.1} parent=5 // pred_fallthru
        _
      %p151 = scmp.lt.s32.totalorder %s18, 2
      // Predicated region
      $region17: #{tpu_custom_call.1} parent=5 // pred_check
        %p152 = pneg %p151
      $region18: #{tpu_custom_call.1} parent=5 // pred_check_branch
        %154 = sbr.rel (%p152) target = $region20
      $region19: #{tpu_custom_call.1} parent=5 // pred_region
        // Predicated region
        $region21: #{tpu_custom_call.1} parent=19 // pred_check
          %p155 = pneg %p50
        $region22: #{tpu_custom_call.1} parent=19 // pred_check_branch
          %157 = sbr.rel (%p155) target = $region24
        $region23: #{tpu_custom_call.1} parent=19 // pred_region
          %s158 = sand.u32 %s40, 1
          %s159 = scalar_lea.sflag [#allocation4], %s158
          %s160 = sand.u32 %s40, 1
          %s161 = smul.addr %s160, 96
          %s162 = scalar_lea.vmem [#allocation3], %s161
          %s164 = ssub.s32 1536, 1536
          %165 = vsyncadd %s159, %s164
          %s166 = smul.addr %s25, 24
          %s167 = smul.addr %s166, 64
          %s168 = scalar_lea.hbm %s0, %s167
          %s169 = sshll.u32 %s162, 4
          %s170 = int_to_ptr.vmem [resolvable:$true] %s169
          %175 = dma.hbm_to_vmem [thread:$0]  %s168, 1536, %s170, %s159, 64, 64, 4
        $region24: #{tpu_custom_call.1} parent=19 // pred_fallthru
          _
        // Predicated region
        $region25: #{tpu_custom_call.1} parent=19 // pred_check
          %p176 = pneg %p78
        $region26: #{tpu_custom_call.1} parent=19 // pred_check_branch
          %178 = sbr.rel (%p176) target = $region28
        $region27: #{tpu_custom_call.1} parent=19 // pred_region
          %s179 = sand.u32 %s68, 1
          %s180 = scalar_lea.sflag [#allocation7], %s179
          %s181 = sand.u32 %s68, 1
          %s182 = smul.addr %s181, 64
          %s183 = scalar_lea.vmem [#allocation6], %s182
          %s184 = smul.u32 2, %s26
          %s186 = ssub.s32 1024, 1024
          %187 = vsyncadd %s180, %s186
          %s188 = smul.addr %s25, 8
          %s189 = sadd.s32 %s184, %s188
          %s190 = smul.addr %s189, 128
          %s191 = scalar_lea.hbm %s1, %s190
          %s192 = sshll.u32 %s183, 4
          %s193 = int_to_ptr.vmem [resolvable:$true] %s192
          %198 = dma.hbm_to_vmem [thread:$0]  %s191, 1024, %s193, %s180, 256, 256, 16
        $region28: #{tpu_custom_call.1} parent=19 // pred_fallthru
          _
      $region20: #{tpu_custom_call.1} parent=5 // pred_fallthru
        _
      %p199 = scmp.le.s32.totalorder 1, %s18
      %p200 = scmp.lt.s32.totalorder %s18, 3
      %p201 = pnand %p199, %p200
      %p202 = pneg %p201
      // Predicated region
      $region29: #{tpu_custom_call.1} parent=5 // pred_check
        _
      $region30: #{tpu_custom_call.1} parent=5 // pred_check_branch
        %204 = sbr.rel (%p201) target = $region32
      $region31: #{tpu_custom_call.1} parent=5 // pred_region
        %s205 = ssub.s32 %s18, 1
        %s206 = sand.u32 %s43, 1
        %s207 = scalar_lea.sflag [#allocation4], %s206
        %s208 = sand.u32 %s43, 1
        %s209 = smul.addr %s208, 96
        %s210 = scalar_lea.vmem [#allocation3], %s209
        // Predicated region
        $region33: #{tpu_custom_call.1} parent=31 // pred_check
          %p211 = pneg %p56
        $region34: #{tpu_custom_call.1} parent=31 // pred_check_branch
          %213 = sbr.rel (%p211) target = $region36
        $region35: #{tpu_custom_call.1} parent=31 // pred_region
          %214 = dma.done %s207, 1536
        $region36: #{tpu_custom_call.1} parent=31 // pred_fallthru
          _
        %s215 = sand.u32 %s71, 1
        %s216 = scalar_lea.sflag [#allocation7], %s215
        %s217 = sand.u32 %s71, 1
        %s218 = smul.addr %s217, 64
        %s219 = scalar_lea.vmem [#allocation6], %s218
        // Predicated region
        $region37: #{tpu_custom_call.1} parent=31 // pred_check
          %p220 = pneg %p84
        $region38: #{tpu_custom_call.1} parent=31 // pred_check_branch
          %222 = sbr.rel (%p220) target = $region40
        $region39: #{tpu_custom_call.1} parent=31 // pred_region
          %223 = dma.done %s216, 1024
        $region40: #{tpu_custom_call.1} parent=31 // pred_fallthru
          _
        %s224 = sand.u32 %s43, 1
        %s225 = scalar_lea.sflag [#allocation4], %s224
        %s226 = sand.u32 %s43, 1
        %s227 = smul.addr %s226, 96
        %s228 = scalar_lea.vmem [#allocation3], %s227
        %p229 = pneg %p56
        %p230 = pneg %p53
        %s231 = sand.u32 %s71, 1
        %s232 = scalar_lea.sflag [#allocation7], %s231
        %s233 = sand.u32 %s71, 1
        %s234 = smul.addr %s233, 64
        %s235 = scalar_lea.vmem [#allocation6], %s234
        %p236 = pneg %p84
        %p237 = pneg %p81
        %p238 = pneg %p105
        %p239 = pneg %p102
        %p240 = pneg %p133
        %p241 = pneg %p130
        %s242 = sand.u32 %s120, 1
        %s243 = scalar_lea.sflag [#allocation5], %s242
        %s244 = sand.u32 %s120, 1
        %s245 = smul.addr %s244, 16
        %s246 = scalar_lea.vmem [#allocation8], %s245
        %s247 = smul.u32 2, %s28
        %s248 = smul.u32 2, %s28
        %v250 = vld [vmem:[%s219] sm:$0xff]
        %v251 = vld [vmem:[%s219 + $0x8] sm:$0xff]
        %v252 = vld [vmem:[%s219 + $0x10] sm:$0xff]
        %v253 = vld [vmem:[%s219 + $0x18] sm:$0xff]
        %v254 = vld [vmem:[%s219 + $0x20] sm:$0xff]
        %v255 = vld [vmem:[%s219 + $0x28] sm:$0xff]
        %v256 = vld [vmem:[%s219 + $0x30] sm:$0xff]
        %v257 = vld [vmem:[%s219 + $0x38] sm:$0xff]
        %v258 = vfloor.f32 %v250
        %v259 = vfloor.f32 %v251
        %v260 = vfloor.f32 %v252
        %v261 = vfloor.f32 %v253
        %v262 = vfloor.f32 %v254
        %v263 = vfloor.f32 %v255
        %v264 = vfloor.f32 %v256
        %v265 = vfloor.f32 %v257
        %v266 = vmax.f32 %v258, 0.0
        %v267 = vmax.f32 %v259, 0.0
        %v268 = vmax.f32 %v260, 0.0
        %v269 = vmax.f32 %v261, 0.0
        %v270 = vmin.f32 %v266, 17.0
        %v271 = vmin.f32 %v267, 17.0
        %v272 = vmin.f32 %v268, 17.0
        %v273 = vmin.f32 %v269, 17.0
        %v274 = vmax.f32 %v262, 0.0
        %v275 = vmax.f32 %v263, 0.0
        %v276 = vmax.f32 %v264, 0.0
        %v277 = vmax.f32 %v265, 0.0
        %v278 = vmin.f32 %v274, 17.0
        %v279 = vmin.f32 %v275, 17.0
        %v280 = vmin.f32 %v276, 17.0
        %v281 = vmin.f32 %v277, 17.0
        %v282 = vadd.f32 %v258, 1.0
        %v283 = vadd.f32 %v259, 1.0
        %v284 = vadd.f32 %v260, 1.0
        %v285 = vadd.f32 %v261, 1.0
        %v286 = vmax.f32 %v282, 0.0
        %v287 = vmax.f32 %v283, 0.0
        %v288 = vmax.f32 %v284, 0.0
        %v289 = vmax.f32 %v285, 0.0
        %v290 = vmin.f32 %v286, 17.0
        %v291 = vmin.f32 %v287, 17.0
        %v292 = vmin.f32 %v288, 17.0
        %v293 = vmin.f32 %v289, 17.0
        %v294 = vadd.f32 %v262, 1.0
        %v295 = vadd.f32 %v263, 1.0
        %v296 = vadd.f32 %v264, 1.0
        %v297 = vadd.f32 %v265, 1.0
        %v298 = vmax.f32 %v294, 0.0
        %v299 = vmax.f32 %v295, 0.0
        %v300 = vmax.f32 %v296, 0.0
        %v301 = vmax.f32 %v297, 0.0
        %v302 = vmin.f32 %v298, 17.0
        %v303 = vmin.f32 %v299, 17.0
        %v304 = vmin.f32 %v300, 17.0
        %v305 = vmin.f32 %v301, 17.0
        %v306 = vmax.f32 %v250, 0.0
        %v307 = vmax.f32 %v251, 0.0
        %v308 = vmax.f32 %v252, 0.0
        %v309 = vmax.f32 %v253, 0.0
        %v310 = vmin.f32 %v306, 17.0
        %v311 = vmin.f32 %v307, 17.0
        %v312 = vmin.f32 %v308, 17.0
        %v313 = vmin.f32 %v309, 17.0
        %v314 = vmax.f32 %v254, 0.0
        %v315 = vmax.f32 %v255, 0.0
        %v316 = vmax.f32 %v256, 0.0
        %v317 = vmax.f32 %v257, 0.0
        %v318 = vmin.f32 %v314, 17.0
        %v319 = vmin.f32 %v315, 17.0
        %v320 = vmin.f32 %v316, 17.0
        %v321 = vmin.f32 %v317, 17.0
        %v322 = vsub.f32 %v270, %v310
        %v323 = vsub.f32 %v271, %v311
        %v324 = vsub.f32 %v272, %v312
        %v325 = vsub.f32 %v273, %v313
        %v326 = vadd.f32 %v322, 1.0
        %v327 = vadd.f32 %v323, 1.0
        %v328 = vadd.f32 %v324, 1.0
        %v329 = vadd.f32 %v325, 1.0
        %v330 = vsub.f32 %v290, %v310
        %v331 = vsub.f32 %v291, %v311
        %v332 = vsub.f32 %v292, %v312
        %v333 = vsub.f32 %v293, %v313
        %v334 = vsub.f32 1.0, %v330
        %v335 = vsub.f32 1.0, %v331
        %v336 = vsub.f32 1.0, %v332
        %v337 = vsub.f32 1.0, %v333
        %v338 = vsub.f32 %v278, %v318
        %v339 = vsub.f32 %v279, %v319
        %v340 = vsub.f32 %v280, %v320
        %v341 = vsub.f32 %v281, %v321
        %v342 = vadd.f32 %v338, 1.0
        %v343 = vadd.f32 %v339, 1.0
        %v344 = vadd.f32 %v340, 1.0
        %v345 = vadd.f32 %v341, 1.0
        %v346 = vsub.f32 %v302, %v318
        %v347 = vsub.f32 %v303, %v319
        %v348 = vsub.f32 %v304, %v320
        %v349 = vsub.f32 %v305, %v321
        %v350 = vsub.f32 1.0, %v346
        %v351 = vsub.f32 1.0, %v347
        %v352 = vsub.f32 1.0, %v348
        %v353 = vsub.f32 1.0, %v349
        %v354 = vcvt.f32.s32.to.zero.pseudo %v270
        %v355 = vcvt.f32.s32.to.zero.pseudo %v271
        %v356 = vcvt.f32.s32.to.zero.pseudo %v272
        %v357 = vcvt.f32.s32.to.zero.pseudo %v273
        %v358 = vcvt.f32.s32.to.zero.pseudo %v290
        %v359 = vcvt.f32.s32.to.zero.pseudo %v291
        %v360 = vcvt.f32.s32.to.zero.pseudo %v292
        %v361 = vcvt.f32.s32.to.zero.pseudo %v293
        %v362 = vcvt.f32.s32.to.zero.pseudo %v278
        %v363 = vcvt.f32.s32.to.zero.pseudo %v279
        %v364 = vcvt.f32.s32.to.zero.pseudo %v280
        %v365 = vcvt.f32.s32.to.zero.pseudo %v281
        %v366 = vcvt.f32.s32.to.zero.pseudo %v302
        %v367 = vcvt.f32.s32.to.zero.pseudo %v303
        %v368 = vcvt.f32.s32.to.zero.pseudo %v304
        %v369 = vcvt.f32.s32.to.zero.pseudo %v305
        %v370 = vlaneseq
        %v371 = vshrl.u32 %v370, 7
        %v372 = vadd.s32 %v371, 8
        %v373 = vadd.s32 %v371, 16
        %v374 = vadd.s32 %v371, 24
        %v375 = vadd.s32 %v371, 32
        %v376 = vadd.s32 %v371, 40
        %v377 = vadd.s32 %v371, 48
        %v378 = vadd.s32 %v371, 56
        %v379 = vadd.s32 %v371, 64
        %v380 = vadd.s32 %v371, 72
        %v381 = vadd.s32 %v371, 80
        %v382 = vadd.s32 %v371, 88
        %v383 = vadd.s32 %v371, 96
        %v384 = vadd.s32 %v371, 104
        %v385 = vadd.s32 %v371, 112
        %v386 = vadd.s32 %v371, 120
        %v387 = vlaneseq
        %v388 = vshrl.u32 %v387, 7
        %v389 = vsub.s32 0, %v388
        %v390 = vrot.slane %v362, %v389
        %v391 = vlaneseq
        %v392 = vshrl.u32 %v391, 7
        %v393 = vsub.s32 0, %v392
        %v394 = vrot.slane %v363, %v393
        %vm395 = vcmp.eq.s32.totalorder %v371, %v390
        %vm396 = vcmp.eq.s32.totalorder %v371, %v394
        %vm397 = vcmp.eq.s32.totalorder %v372, %v390
        %vm398 = vcmp.eq.s32.totalorder %v372, %v394
        %vm399 = vcmp.eq.s32.totalorder %v373, %v390
        %vm400 = vcmp.eq.s32.totalorder %v373, %v394
        %vm401 = vcmp.eq.s32.totalorder %v374, %v390
        %vm402 = vcmp.eq.s32.totalorder %v374, %v394
        %vm403 = vcmp.eq.s32.totalorder %v375, %v390
        %vm404 = vcmp.eq.s32.totalorder %v375, %v394
        %vm405 = vcmp.eq.s32.totalorder %v376, %v390
        %vm406 = vcmp.eq.s32.totalorder %v376, %v394
        %vm407 = vcmp.eq.s32.totalorder %v377, %v390
        %vm408 = vcmp.eq.s32.totalorder %v377, %v394
        %vm409 = vcmp.eq.s32.totalorder %v378, %v390
        %vm410 = vcmp.eq.s32.totalorder %v378, %v394
        %vm411 = vcmp.eq.s32.totalorder %v379, %v390
        %vm412 = vcmp.eq.s32.totalorder %v379, %v394
        %vm413 = vcmp.eq.s32.totalorder %v380, %v390
        %vm414 = vcmp.eq.s32.totalorder %v380, %v394
        %vm415 = vcmp.eq.s32.totalorder %v381, %v390
        %vm416 = vcmp.eq.s32.totalorder %v381, %v394
        %vm417 = vcmp.eq.s32.totalorder %v382, %v390
        %vm418 = vcmp.eq.s32.totalorder %v382, %v394
        %vm419 = vcmp.eq.s32.totalorder %v383, %v390
        %vm420 = vcmp.eq.s32.totalorder %v383, %v394
        %vm421 = vcmp.eq.s32.totalorder %v384, %v390
        %vm422 = vcmp.eq.s32.totalorder %v384, %v394
        %vm423 = vcmp.eq.s32.totalorder %v385, %v390
        %vm424 = vcmp.eq.s32.totalorder %v385, %v394
        %vm425 = vcmp.eq.s32.totalorder %v386, %v390
        %vm426 = vcmp.eq.s32.totalorder %v386, %v394
        %v427 = vlaneseq
        %v428 = vshrl.u32 %v427, 7
        %v429 = vsub.s32 0, %v428
        %v430 = vrot.slane %v342, %v429
        %v431 = vlaneseq
        %v432 = vshrl.u32 %v431, 7
        %v433 = vsub.s32 0, %v432
        %v434 = vrot.slane %v343, %v433
        %v435 = vsel %vm395, %v430, 0.0
        %v436 = vsel %vm396, %v434, 0.0
        %v437 = vsel %vm397, %v430, 0.0
        %v438 = vsel %vm398, %v434, 0.0
        %v439 = vsel %vm399, %v430, 0.0
        %v440 = vsel %vm400, %v434, 0.0
        %v441 = vsel %vm401, %v430, 0.0
        %v442 = vsel %vm402, %v434, 0.0
        %v443 = vsel %vm403, %v430, 0.0
        %v444 = vsel %vm404, %v434, 0.0
        %v445 = vsel %vm405, %v430, 0.0
        %v446 = vsel %vm406, %v434, 0.0
        %v447 = vsel %vm407, %v430, 0.0
        %v448 = vsel %vm408, %v434, 0.0
        %v449 = vsel %vm409, %v430, 0.0
        %v450 = vsel %vm410, %v434, 0.0
        %v451 = vsel %vm411, %v430, 0.0
        %v452 = vsel %vm412, %v434, 0.0
        %v453 = vsel %vm413, %v430, 0.0
        %v454 = vsel %vm414, %v434, 0.0
        %v455 = vsel %vm415, %v430, 0.0
        %v456 = vsel %vm416, %v434, 0.0
        %v457 = vsel %vm417, %v430, 0.0
        %v458 = vsel %vm418, %v434, 0.0
        %v459 = vsel %vm419, %v430, 0.0
        %v460 = vsel %vm420, %v434, 0.0
        %v461 = vsel %vm421, %v430, 0.0
        %v462 = vsel %vm422, %v434, 0.0
        %v463 = vsel %vm423, %v430, 0.0
        %v464 = vsel %vm424, %v434, 0.0
        %v465 = vsel %vm425, %v430, 0.0
        %v466 = vsel %vm426, %v434, 0.0
        %v467 = vlaneseq
        %v468 = vshrl.u32 %v467, 7
        %v469 = vsub.s32 0, %v468
        %v470 = vrot.slane %v366, %v469
        %v471 = vlaneseq
        %v472 = vshrl.u32 %v471, 7
        %v473 = vsub.s32 0, %v472
        %v474 = vrot.slane %v367, %v473
        %vm475 = vcmp.eq.s32.totalorder %v371, %v470
        %vm476 = vcmp.eq.s32.totalorder %v371, %v474
        %vm477 = vcmp.eq.s32.totalorder %v372, %v470
        %vm478 = vcmp.eq.s32.totalorder %v372, %v474
        %vm479 = vcmp.eq.s32.totalorder %v373, %v470
        %vm480 = vcmp.eq.s32.totalorder %v373, %v474
        %vm481 = vcmp.eq.s32.totalorder %v374, %v470
        %vm482 = vcmp.eq.s32.totalorder %v374, %v474
        %vm483 = vcmp.eq.s32.totalorder %v375, %v470
        %vm484 = vcmp.eq.s32.totalorder %v375, %v474
        %vm485 = vcmp.eq.s32.totalorder %v376, %v470
        %vm486 = vcmp.eq.s32.totalorder %v376, %v474
        %vm487 = vcmp.eq.s32.totalorder %v377, %v470
        %vm488 = vcmp.eq.s32.totalorder %v377, %v474
        %vm489 = vcmp.eq.s32.totalorder %v378, %v470
        %vm490 = vcmp.eq.s32.totalorder %v378, %v474
        %vm491 = vcmp.eq.s32.totalorder %v379, %v470
        %vm492 = vcmp.eq.s32.totalorder %v379, %v474
        %vm493 = vcmp.eq.s32.totalorder %v380, %v470
        %vm494 = vcmp.eq.s32.totalorder %v380, %v474
        %vm495 = vcmp.eq.s32.totalorder %v381, %v470
        %vm496 = vcmp.eq.s32.totalorder %v381, %v474
        %vm497 = vcmp.eq.s32.totalorder %v382, %v470
        %vm498 = vcmp.eq.s32.totalorder %v382, %v474
        %vm499 = vcmp.eq.s32.totalorder %v383, %v470
        %vm500 = vcmp.eq.s32.totalorder %v383, %v474
        %vm501 = vcmp.eq.s32.totalorder %v384, %v470
        %vm502 = vcmp.eq.s32.totalorder %v384, %v474
        %vm503 = vcmp.eq.s32.totalorder %v385, %v470
        %vm504 = vcmp.eq.s32.totalorder %v385, %v474
        %vm505 = vcmp.eq.s32.totalorder %v386, %v470
        %vm506 = vcmp.eq.s32.totalorder %v386, %v474
        %v507 = vlaneseq
        %v508 = vshrl.u32 %v507, 7
        %v509 = vsub.s32 0, %v508
        %v510 = vrot.slane %v350, %v509
        %v511 = vlaneseq
        %v512 = vshrl.u32 %v511, 7
        %v513 = vsub.s32 0, %v512
        %v514 = vrot.slane %v351, %v513
        %v515 = vsel %vm475, %v510, 0.0
        %v516 = vsel %vm476, %v514, 0.0
        %v517 = vsel %vm477, %v510, 0.0
        %v518 = vsel %vm478, %v514, 0.0
        %v519 = vsel %vm479, %v510, 0.0
        %v520 = vsel %vm480, %v514, 0.0
        %v521 = vsel %vm481, %v510, 0.0
        %v522 = vsel %vm482, %v514, 0.0
        %v523 = vsel %vm483, %v510, 0.0
        %v524 = vsel %vm484, %v514, 0.0
        %v525 = vsel %vm485, %v510, 0.0
        %v526 = vsel %vm486, %v514, 0.0
        %v527 = vsel %vm487, %v510, 0.0
        %v528 = vsel %vm488, %v514, 0.0
        %v529 = vsel %vm489, %v510, 0.0
        %v530 = vsel %vm490, %v514, 0.0
        %v531 = vsel %vm491, %v510, 0.0
        %v532 = vsel %vm492, %v514, 0.0
        %v533 = vsel %vm493, %v510, 0.0
        %v534 = vsel %vm494, %v514, 0.0
        %v535 = vsel %vm495, %v510, 0.0
        %v536 = vsel %vm496, %v514, 0.0
        %v537 = vsel %vm497, %v510, 0.0
        %v538 = vsel %vm498, %v514, 0.0
        %v539 = vsel %vm499, %v510, 0.0
        %v540 = vsel %vm500, %v514, 0.0
        %v541 = vsel %vm501, %v510, 0.0
        %v542 = vsel %vm502, %v514, 0.0
        %v543 = vsel %vm503, %v510, 0.0
        %v544 = vsel %vm504, %v514, 0.0
        %v545 = vsel %vm505, %v510, 0.0
        %v546 = vsel %vm506, %v514, 0.0
        %v547 = vadd.f32 %v435, %v515
        %v548 = vadd.f32 %v436, %v516
        %v549 = vadd.f32 %v437, %v517
        %v550 = vadd.f32 %v438, %v518
        %v551 = vadd.f32 %v439, %v519
        %v552 = vadd.f32 %v440, %v520
        %v553 = vadd.f32 %v441, %v521
        %v554 = vadd.f32 %v442, %v522
        %v555 = vadd.f32 %v443, %v523
        %v556 = vadd.f32 %v444, %v524
        %v557 = vadd.f32 %v445, %v525
        %v558 = vadd.f32 %v446, %v526
        %v559 = vadd.f32 %v447, %v527
        %v560 = vadd.f32 %v448, %v528
        %v561 = vadd.f32 %v449, %v529
        %v562 = vadd.f32 %v450, %v530
        %v563 = vadd.f32 %v451, %v531
        %v564 = vadd.f32 %v452, %v532
        %v565 = vadd.f32 %v453, %v533
        %v566 = vadd.f32 %v454, %v534
        %v567 = vadd.f32 %v455, %v535
        %v568 = vadd.f32 %v456, %v536
        %v569 = vadd.f32 %v457, %v537
        %v570 = vadd.f32 %v458, %v538
        %v571 = vadd.f32 %v459, %v539
        %v572 = vadd.f32 %v460, %v540
        %v573 = vadd.f32 %v461, %v541
        %v574 = vadd.f32 %v462, %v542
        %v575 = vadd.f32 %v463, %v543
        %v576 = vadd.f32 %v464, %v544
        %v577 = vadd.f32 %v465, %v545
        %v578 = vadd.f32 %v466, %v546
        %v579 = vpack.c.bf16 %v549, %v547
        %v580 = vpack.c.bf16 %v550, %v548
        %v581 = vpack.c.bf16 %v553, %v551
        %v582 = vpack.c.bf16 %v554, %v552
        %v583 = vpack.c.bf16 %v557, %v555
        %v584 = vpack.c.bf16 %v558, %v556
        %v585 = vpack.c.bf16 %v561, %v559
        %v586 = vpack.c.bf16 %v562, %v560
        %v587 = vpack.c.bf16 %v565, %v563
        %v588 = vpack.c.bf16 %v566, %v564
        %v589 = vpack.c.bf16 %v569, %v567
        %v590 = vpack.c.bf16 %v570, %v568
        %v591 = vpack.c.bf16 %v573, %v571
        %v592 = vpack.c.bf16 %v574, %v572
        %v593 = vpack.c.bf16 %v577, %v575
        %v594 = vpack.c.bf16 %v578, %v576
        %v595 = vlaneseq
        %v596 = vshrl.u32 %v595, 7
        %v597 = vsub.s32 0, %v596
        %v598 = vrot.slane %v354, %v597
        %v599 = vlaneseq
        %v600 = vshrl.u32 %v599, 7
        %v601 = vsub.s32 0, %v600
        %v602 = vrot.slane %v355, %v601
        %vm603 = vcmp.eq.s32.totalorder %v371, %v598
        %vm604 = vcmp.eq.s32.totalorder %v371, %v602
        %vm605 = vcmp.eq.s32.totalorder %v372, %v598
        %vm606 = vcmp.eq.s32.totalorder %v372, %v602
        %vm607 = vcmp.eq.s32.totalorder %v373, %v598
        %vm608 = vcmp.eq.s32.totalorder %v373, %v602
        %v609 = vlaneseq
        %v610 = vshrl.u32 %v609, 7
        %v611 = vsub.s32 0, %v610
        %v612 = vrot.slane %v326, %v611
        %v613 = vlaneseq
        %v614 = vshrl.u32 %v613, 7
        %v615 = vsub.s32 0, %v614
        %v616 = vrot.slane %v327, %v615
        %v617 = vsel %vm603, %v612, 0.0
        %v618 = vsel %vm604, %v616, 0.0
        %v619 = vsel %vm605, %v612, 0.0
        %v620 = vsel %vm606, %v616, 0.0
        %v621 = vsel %vm607, %v612, 0.0
        %v622 = vsel %vm608, %v616, 0.0
        %v623 = vlaneseq
        %v624 = vshrl.u32 %v623, 7
        %v625 = vsub.s32 0, %v624
        %v626 = vrot.slane %v358, %v625
        %v627 = vlaneseq
        %v628 = vshrl.u32 %v627, 7
        %v629 = vsub.s32 0, %v628
        %v630 = vrot.slane %v359, %v629
        %vm631 = vcmp.eq.s32.totalorder %v371, %v626
        %vm632 = vcmp.eq.s32.totalorder %v371, %v630
        %vm633 = vcmp.eq.s32.totalorder %v372, %v626
        %vm634 = vcmp.eq.s32.totalorder %v372, %v630
        %vm635 = vcmp.eq.s32.totalorder %v373, %v626
        %vm636 = vcmp.eq.s32.totalorder %v373, %v630
        %v637 = vlaneseq
        %v638 = vshrl.u32 %v637, 7
        %v639 = vsub.s32 0, %v638
        %v640 = vrot.slane %v334, %v639
        %v641 = vlaneseq
        %v642 = vshrl.u32 %v641, 7
        %v643 = vsub.s32 0, %v642
        %v644 = vrot.slane %v335, %v643
        %v645 = vsel %vm631, %v640, 0.0
        %v646 = vsel %vm632, %v644, 0.0
        %v647 = vsel %vm633, %v640, 0.0
        %v648 = vsel %vm634, %v644, 0.0
        %v649 = vsel %vm635, %v640, 0.0
        %v650 = vsel %vm636, %v644, 0.0
        %v651 = vadd.f32 %v617, %v645
        %v652 = vadd.f32 %v618, %v646
        %v653 = vadd.f32 %v619, %v647
        %v654 = vadd.f32 %v620, %v648
        %v655 = vadd.f32 %v621, %v649
        %v656 = vadd.f32 %v622, %v650
        %v657 = vld [vmem:[%s210] sm:$0xf]
        %v658 = vld [vmem:[%s210 + $0x4] sm:$0xf]
        %v659 = vld [vmem:[%s210 + $0x8] sm:$0xf]
        %v660 = vld [vmem:[%s210 + $0xc] sm:$0xf]
        %v661 = vld [vmem:[%s210 + $0x10] sm:$0xf]
        %v662 = vld [vmem:[%s210 + $0x14] sm:$0xf]
        %v663 = vld [vmem:[%s210 + $0x18] sm:$0xf]
        %v664 = vld [vmem:[%s210 + $0x1c] sm:$0xf]
        %v665 = vld [vmem:[%s210 + $0x20] sm:$0xf]
        %v666 = vld [vmem:[%s210 + $0x24] sm:$0xf]
        %v667 = vld [vmem:[%s210 + $0x28] sm:$0xf]
        %v668 = vld [vmem:[%s210 + $0x2c] sm:$0xf]
        %v669 = vld [vmem:[%s210 + $0x30] sm:$0xf]
        %v670 = vld [vmem:[%s210 + $0x34] sm:$0xf]
        %v671 = vld [vmem:[%s210 + $0x38] sm:$0xf]
        %v672 = vld [vmem:[%s210 + $0x3c] sm:$0xf]
        %v673 = vld [vmem:[%s210 + $0x40] sm:$0xf]
        %v674 = vld [vmem:[%s210 + $0x44] sm:$0xf]
        %v675 = vld [vmem:[%s210 + $0x48] sm:$0xf]
        %v676 = vld [vmem:[%s210 + $0x4c] sm:$0xf]
        %v677 = vld [vmem:[%s210 + $0x50] sm:$0xf]
        %v678 = vld [vmem:[%s210 + $0x54] sm:$0xf]
        %v679 = vld [vmem:[%s210 + $0x58] sm:$0xf]
        %v680 = vld [vmem:[%s210 + $0x5c] sm:$0xf]
        %v705 = vunpack.c.l.b16 %v657
        %v706 = vunpack.c.l.b16 %v658
        %v707 = vunpack.c.l.b16 %v659
        %v708 = vunpack.c.l.b16 %v660
        %v709 = vunpack.c.l.b16 %v661
        %v710 = vunpack.c.l.b16 %v662
        %v711 = vunpack.c.l.b16 %v663
        %v712 = vunpack.c.l.b16 %v664
        %v713 = vunpack.c.l.b16 %v665
        %v714 = vunpack.c.l.b16 %v666
        %v715 = vunpack.c.l.b16 %v667
        %v716 = vunpack.c.l.b16 %v668
        %v717 = vunpack.c.l.b16 %v669
        %v718 = vunpack.c.l.b16 %v670
        %v719 = vunpack.c.l.b16 %v671
        %v720 = vunpack.c.l.b16 %v672
        %v721 = vunpack.c.l.b16 %v673
        %v722 = vunpack.c.l.b16 %v674
        %v723 = vunpack.c.l.b16 %v675
        %v724 = vunpack.c.l.b16 %v676
        %v725 = vunpack.c.l.b16 %v677
        %v726 = vunpack.c.l.b16 %v678
        %v727 = vunpack.c.l.b16 %v679
        %v728 = vunpack.c.l.b16 %v680
        %v729 = vpack.c.b16 %v706, %v705
        %v730 = vpack.c.b16 %v708, %v707
        %v731 = vpack.c.b16 %v710, %v709
        %v732 = vpack.c.b16 %v712, %v711
        %v733 = vpack.c.b16 %v714, %v713
        %v734 = vpack.c.b16 %v716, %v715
        %v735 = vpack.c.b16 %v718, %v717
        %v736 = vpack.c.b16 %v720, %v719
        %v737 = vpack.c.b16 %v722, %v721
        %v738 = vpack.c.b16 %v724, %v723
        %v739 = vpack.c.b16 %v726, %v725
        %v740 = vpack.c.b16 %v728, %v727
        %753 = vmatprep.subr.bf16.mxu0 %v580
        %754 = vmatpush1.bf16.msra.mxu0 %v579
        %755 = vmatprep.subr.bf16.mxu0 %v582
        %756 = vmatpush1.bf16.msra.mxu0 %v581
        %757 = vmatprep.subr.bf16.mxu0 %v584
        %758 = vmatpush1.bf16.msra.mxu0 %v583
        %759 = vmatprep.subr.bf16.mxu0 %v586
        %760 = vmatpush1.bf16.msra.mxu0 %v585
        %761 = vmatprep.subr.bf16.mxu0 %v588
        %762 = vmatpush1.bf16.msra.mxu0 %v587
        %763 = vmatprep.subr.bf16.mxu0 %v590
        %764 = vmatpush1.bf16.msra.mxu0 %v589
        %765 = vmatprep.subr.bf16.mxu0 %v592
        %766 = vmatpush1.bf16.msra.mxu0 %v591
        %767 = vmatprep.subr.bf16.mxu0 %v594
        %768 = vmatpush1.bf16.msra.mxu0 %v593
        %769 = vmatprep.subr.bf16.mxu0 0
        %770 = vmatpush1.bf16.msra.mxu0 0
        %771 = vmatprep.subr.bf16.mxu0 0
        %772 = vmatpush1.bf16.msra.mxu0 0
        %773 = vmatprep.subr.bf16.mxu0 0
        %774 = vmatpush1.bf16.msra.mxu0 0
        %775 = vmatprep.subr.bf16.mxu0 0
        %776 = vmatpush1.bf16.msra.mxu0 0
        %777 = vmatprep.subr.bf16.mxu0 0
        %778 = vmatpush1.bf16.msra.mxu0 0
        %779 = vmatprep.subr.bf16.mxu0 0
        %780 = vmatpush1.bf16.msra.mxu0 0
        %781 = vmatprep.subr.bf16.mxu0 0
        %782 = vmatpush1.bf16.msra.mxu0 0
        %783 = vmatprep.subr.bf16.mxu0 0
        %784 = vmatpush1.bf16.msra.mxu0 0
        %785 = vmatprep.mubr.bf16.mxu0 0
        %786 = vmatmul.mubr.bf16.gmra.mrb[0].mxu0 %v729
        %v787 = vpop.f32.mrb[0].mxu0
        %v788 = vadd.f32 0.0, %v787
        %v789 = vpop.f32.mrb[0].mxu0
        %v790 = vadd.f32 0.0, %v789
        %v791 = vpop.f32.mrb[0].mxu0
        %v792 = vadd.f32 0.0, %v791
        %v793 = vpop.f32.mrb[0].mxu0
        %v794 = vadd.f32 0.0, %v793
        %795 = vmatprep.mubr.bf16.mxu0 0
        %796 = vmatmul.mubr.bf16.gmra.mrb[0].mxu0 %v730
        %v797 = vpop.f32.mrb[0].mxu0
        %v798 = vadd.f32 0.0, %v797
        %v799 = vpop.f32.mrb[0].mxu0
        %v800 = vadd.f32 0.0, %v799
        %v801 = vpop.f32.mrb[0].mxu0
        %v802 = vadd.f32 0.0, %v801
        %v803 = vpop.f32.mrb[0].mxu0
        %v804 = vadd.f32 0.0, %v803
        %805 = vmatprep.mubr.bf16.mxu0 0
        %806 = vmatmul.mubr.bf16.gmra.mrb[0].mxu0 %v731
        %v807 = vpop.f32.mrb[0].mxu0
        %v808 = vadd.f32 0.0, %v807
        %v809 = vpop.f32.mrb[0].mxu0
        %v810 = vadd.f32 0.0, %v809
        %v811 = vpop.f32.mrb[0].mxu0
        %v812 = vadd.f32 0.0, %v811
        %v813 = vpop.f32.mrb[0].mxu0
        %v814 = vadd.f32 0.0, %v813
        %815 = vmatprep.mubr.bf16.mxu0 0
        %816 = vmatmul.mubr.bf16.gmra.mrb[0].mxu0 %v732
        %v817 = vpop.f32.mrb[0].mxu0
        %v818 = vadd.f32 0.0, %v817
        %v819 = vpop.f32.mrb[0].mxu0
        %v820 = vadd.f32 0.0, %v819
        %v821 = vpop.f32.mrb[0].mxu0
        %v822 = vadd.f32 0.0, %v821
        %v823 = vpop.f32.mrb[0].mxu0
        %v824 = vadd.f32 0.0, %v823
        %825 = vmatprep.mubr.bf16.mxu0 0
        %826 = vmatmul.mubr.bf16.gmra.mrb[0].mxu0 %v733
        %v827 = vpop.f32.mrb[0].mxu0
        %v828 = vadd.f32 0.0, %v827
        %v829 = vpop.f32.mrb[0].mxu0
        %v830 = vadd.f32 0.0, %v829
        %v831 = vpop.f32.mrb[0].mxu0
        %v832 = vadd.f32 0.0, %v831
        %v833 = vpop.f32.mrb[0].mxu0
        %v834 = vadd.f32 0.0, %v833
        %835 = vmatprep.mubr.bf16.mxu0 0
        %836 = vmatmul.mubr.bf16.gmra.mrb[0].mxu0 %v734
        %v837 = vpop.f32.mrb[0].mxu0
        %v838 = vadd.f32 0.0, %v837
        %v839 = vpop.f32.mrb[0].mxu0
        %v840 = vadd.f32 0.0, %v839
        %v841 = vpop.f32.mrb[0].mxu0
        %v842 = vadd.f32 0.0, %v841
        %v843 = vpop.f32.mrb[0].mxu0
        %v844 = vadd.f32 0.0, %v843
        %845 = vmatprep.mubr.bf16.mxu0 0
        %846 = vmatmul.mubr.bf16.gmra.mrb[0].mxu0 %v735
        %v847 = vpop.f32.mrb[0].mxu0
        %v848 = vadd.f32 0.0, %v847
        %v849 = vpop.f32.mrb[0].mxu0
        %v850 = vadd.f32 0.0, %v849
        %v851 = vpop.f32.mrb[0].mxu0
        %v852 = vadd.f32 0.0, %v851
        %v853 = vpop.f32.mrb[0].mxu0
        %v854 = vadd.f32 0.0, %v853
        %855 = vmatprep.mubr.bf16.mxu0 0
        %856 = vmatmul.mubr.bf16.gmra.mrb[0].mxu0 %v736
        %v857 = vpop.f32.mrb[0].mxu0
        %v858 = vadd.f32 0.0, %v857
        %v859 = vpop.f32.mrb[0].mxu0
        %v860 = vadd.f32 0.0, %v859
        %v861 = vpop.f32.mrb[0].mxu0
        %v862 = vadd.f32 0.0, %v861
        %v863 = vpop.f32.mrb[0].mxu0
        %v864 = vadd.f32 0.0, %v863
        %865 = vmatprep.mubr.bf16.mxu0 0
        %866 = vmatmul.mubr.bf16.gmra.mrb[0].mxu0 %v737
        %v867 = vpop.f32.mrb[0].mxu0
        %v868 = vadd.f32 0.0, %v867
        %v869 = vpop.f32.mrb[0].mxu0
        %v870 = vadd.f32 0.0, %v869
        %v871 = vpop.f32.mrb[0].mxu0
        %v872 = vadd.f32 0.0, %v871
        %v873 = vpop.f32.mrb[0].mxu0
        %v874 = vadd.f32 0.0, %v873
        %875 = vmatprep.mubr.bf16.mxu0 0
        %876 = vmatmul.mubr.bf16.gmra.mrb[0].mxu0 %v738
        %v877 = vpop.f32.mrb[0].mxu0
        %v878 = vadd.f32 0.0, %v877
        %v879 = vpop.f32.mrb[0].mxu0
        %v880 = vadd.f32 0.0, %v879
        %v881 = vpop.f32.mrb[0].mxu0
        %v882 = vadd.f32 0.0, %v881
        %v883 = vpop.f32.mrb[0].mxu0
        %v884 = vadd.f32 0.0, %v883
        %885 = vmatprep.mubr.bf16.mxu0 0
        %886 = vmatmul.mubr.bf16.gmra.mrb[0].mxu0 %v739
        %v887 = vpop.f32.mrb[0].mxu0
        %v888 = vadd.f32 0.0, %v887
        %v889 = vpop.f32.mrb[0].mxu0
        %v890 = vadd.f32 0.0, %v889
        %v891 = vpop.f32.mrb[0].mxu0
        %v892 = vadd.f32 0.0, %v891
        %v893 = vpop.f32.mrb[0].mxu0
        %v894 = vadd.f32 0.0, %v893
        %895 = vmatprep.mubr.bf16.mxu0 0
        %896 = vmatmul.mubr.bf16.gmra.mrb[0].mxu0 %v740
        %v897 = vpop.f32.mrb[0].mxu0
        %v898 = vadd.f32 0.0, %v897
        %v899 = vpop.f32.mrb[0].mxu0
        %v900 = vadd.f32 0.0, %v899
        %v901 = vpop.f32.mrb[0].mxu0
        %v902 = vadd.f32 0.0, %v901
        %v903 = vpop.f32.mrb[0].mxu0
        %v904 = vadd.f32 0.0, %v903
        %905 = vdwg.mxu0
        %v906 = vmul.f32 %v788, %v651
        %v907 = vmul.f32 %v790, %v652
        %v908 = vmul.f32 %v792, %v653
        %v909 = vmul.f32 %v794, %v654
        %v910 = vmul.f32 %v798, %v655
        %v911 = vmul.f32 %v800, %v656
        %v912 = vmul.f32 %v802, %v651
        %v913 = vmul.f32 %v804, %v652
        %v914 = vmul.f32 %v808, %v653
        %v915 = vmul.f32 %v810, %v654
        %v916 = vmul.f32 %v812, %v655
        %v917 = vmul.f32 %v814, %v656
        %v918 = vmul.f32 %v818, %v651
        %v919 = vmul.f32 %v820, %v652
        %v920 = vmul.f32 %v822, %v653
        %v921 = vmul.f32 %v824, %v654
        %v922 = vmul.f32 %v828, %v655
        %v923 = vmul.f32 %v830, %v656
        %v924 = vmul.f32 %v832, %v651
        %v925 = vmul.f32 %v834, %v652
        %v926 = vmul.f32 %v838, %v653
        %v927 = vmul.f32 %v840, %v654
        %v928 = vmul.f32 %v842, %v655
        %v929 = vmul.f32 %v844, %v656
        %v930 = vmul.f32 %v848, %v651
        %v931 = vmul.f32 %v850, %v652
        %v932 = vmul.f32 %v852, %v653
        %v933 = vmul.f32 %v854, %v654
        %v934 = vmul.f32 %v858, %v655
        %v935 = vmul.f32 %v860, %v656
        %v936 = vmul.f32 %v862, %v651
        %v937 = vmul.f32 %v864, %v652
        %v938 = vmul.f32 %v868, %v653
        %v939 = vmul.f32 %v870, %v654
        %v940 = vmul.f32 %v872, %v655
        %v941 = vmul.f32 %v874, %v656
        %v942 = vmul.f32 %v878, %v651
        %v943 = vmul.f32 %v880, %v652
        %v944 = vmul.f32 %v882, %v653
        %v945 = vmul.f32 %v884, %v654
        %v946 = vmul.f32 %v888, %v655
        %v947 = vmul.f32 %v890, %v656
        %v948 = vmul.f32 %v892, %v651
        %v949 = vmul.f32 %v894, %v652
        %v950 = vmul.f32 %v898, %v653
        %v951 = vmul.f32 %v900, %v654
        %v952 = vmul.f32 %v902, %v655
        %v953 = vmul.f32 %v904, %v656
        %v954 = vadd.f32 %v906, %v908
        %v955 = vadd.f32 %v954, %v910
        %v956 = vrot.slane %v955, 4
        %v957 = vadd.f32 %v955, %v956
        %v958 = vrot.slane %v957, 2
        %v959 = vadd.f32 %v957, %v958
        %v960 = vrot.slane %v959, 1
        %v961 = vadd.f32 %v959, %v960
        %v962 = vadd.f32 %v907, %v909
        %v963 = vadd.f32 %v962, %v911
        %v964 = vrot.slane %v963, 4
        %v965 = vadd.f32 %v963, %v964
        %v966 = vrot.slane %v965, 2
        %v967 = vadd.f32 %v965, %v966
        %v968 = vrot.slane %v967, 1
        %v969 = vadd.f32 %v967, %v968
        %v970 = vadd.f32 %v912, %v914
        %v971 = vadd.f32 %v970, %v916
        %v972 = vrot.slane %v971, 4
        %v973 = vadd.f32 %v971, %v972
        %v974 = vrot.slane %v973, 2
        %v975 = vadd.f32 %v973, %v974
        %v976 = vrot.slane %v975, 1
        %v977 = vadd.f32 %v975, %v976
        %v978 = vadd.f32 %v913, %v915
        %v979 = vadd.f32 %v978, %v917
        %v980 = vrot.slane %v979, 4
        %v981 = vadd.f32 %v979, %v980
        %v982 = vrot.slane %v981, 2
        %v983 = vadd.f32 %v981, %v982
        %v984 = vrot.slane %v983, 1
        %v985 = vadd.f32 %v983, %v984
        %v986 = vadd.f32 %v918, %v920
        %v987 = vadd.f32 %v986, %v922
        %v988 = vrot.slane %v987, 4
        %v989 = vadd.f32 %v987, %v988
        %v990 = vrot.slane %v989, 2
        %v991 = vadd.f32 %v989, %v990
        %v992 = vrot.slane %v991, 1
        %v993 = vadd.f32 %v991, %v992
        %v994 = vadd.f32 %v919, %v921
        %v995 = vadd.f32 %v994, %v923
        %v996 = vrot.slane %v995, 4
        %v997 = vadd.f32 %v995, %v996
        %v998 = vrot.slane %v997, 2
        %v999 = vadd.f32 %v997, %v998
        %v1000 = vrot.slane %v999, 1
        %v1001 = vadd.f32 %v999, %v1000
        %v1002 = vadd.f32 %v924, %v926
        %v1003 = vadd.f32 %v1002, %v928
        %v1004 = vrot.slane %v1003, 4
        %v1005 = vadd.f32 %v1003, %v1004
        %v1006 = vrot.slane %v1005, 2
        %v1007 = vadd.f32 %v1005, %v1006
        %v1008 = vrot.slane %v1007, 1
        %v1009 = vadd.f32 %v1007, %v1008
        %v1010 = vadd.f32 %v925, %v927
        %v1011 = vadd.f32 %v1010, %v929
        %v1012 = vrot.slane %v1011, 4
        %v1013 = vadd.f32 %v1011, %v1012
        %v1014 = vrot.slane %v1013, 2
        %v1015 = vadd.f32 %v1013, %v1014
        %v1016 = vrot.slane %v1015, 1
        %v1017 = vadd.f32 %v1015, %v1016
        %v1018 = vadd.f32 %v930, %v932
        %v1019 = vadd.f32 %v1018, %v934
        %v1020 = vrot.slane %v1019, 4
        %v1021 = vadd.f32 %v1019, %v1020
        %v1022 = vrot.slane %v1021, 2
        %v1023 = vadd.f32 %v1021, %v1022
        %v1024 = vrot.slane %v1023, 1
        %v1025 = vadd.f32 %v1023, %v1024
        %v1026 = vadd.f32 %v931, %v933
        %v1027 = vadd.f32 %v1026, %v935
        %v1028 = vrot.slane %v1027, 4
        %v1029 = vadd.f32 %v1027, %v1028
        %v1030 = vrot.slane %v1029, 2
        %v1031 = vadd.f32 %v1029, %v1030
        %v1032 = vrot.slane %v1031, 1
        %v1033 = vadd.f32 %v1031, %v1032
        %v1034 = vadd.f32 %v936, %v938
        %v1035 = vadd.f32 %v1034, %v940
        %v1036 = vrot.slane %v1035, 4
        %v1037 = vadd.f32 %v1035, %v1036
        %v1038 = vrot.slane %v1037, 2
        %v1039 = vadd.f32 %v1037, %v1038
        %v1040 = vrot.slane %v1039, 1
        %v1041 = vadd.f32 %v1039, %v1040
        %v1042 = vadd.f32 %v937, %v939
        %v1043 = vadd.f32 %v1042, %v941
        %v1044 = vrot.slane %v1043, 4
        %v1045 = vadd.f32 %v1043, %v1044
        %v1046 = vrot.slane %v1045, 2
        %v1047 = vadd.f32 %v1045, %v1046
        %v1048 = vrot.slane %v1047, 1
        %v1049 = vadd.f32 %v1047, %v1048
        %v1050 = vadd.f32 %v942, %v944
        %v1051 = vadd.f32 %v1050, %v946
        %v1052 = vrot.slane %v1051, 4
        %v1053 = vadd.f32 %v1051, %v1052
        %v1054 = vrot.slane %v1053, 2
        %v1055 = vadd.f32 %v1053, %v1054
        %v1056 = vrot.slane %v1055, 1
        %v1057 = vadd.f32 %v1055, %v1056
        %v1058 = vadd.f32 %v943, %v945
        %v1059 = vadd.f32 %v1058, %v947
        %v1060 = vrot.slane %v1059, 4
        %v1061 = vadd.f32 %v1059, %v1060
        %v1062 = vrot.slane %v1061, 2
        %v1063 = vadd.f32 %v1061, %v1062
        %v1064 = vrot.slane %v1063, 1
        %v1065 = vadd.f32 %v1063, %v1064
        %v1066 = vadd.f32 %v948, %v950
        %v1067 = vadd.f32 %v1066, %v952
        %v1068 = vrot.slane %v1067, 4
        %v1069 = vadd.f32 %v1067, %v1068
        %v1070 = vrot.slane %v1069, 2
        %v1071 = vadd.f32 %v1069, %v1070
        %v1072 = vrot.slane %v1071, 1
        %v1073 = vadd.f32 %v1071, %v1072
        %v1074 = vadd.f32 %v949, %v951
        %v1075 = vadd.f32 %v1074, %v953
        %v1076 = vrot.slane %v1075, 4
        %v1077 = vadd.f32 %v1075, %v1076
        %v1078 = vrot.slane %v1077, 2
        %v1079 = vadd.f32 %v1077, %v1078
        %v1080 = vrot.slane %v1079, 1
        %v1081 = vadd.f32 %v1079, %v1080
        %v1082 = vpack.c.bf16 %v961, %v961
        %v1083 = vpack.c.bf16 %v969, %v969
        %v1084 = vpack.c.bf16 %v977, %v977
        %v1085 = vpack.c.bf16 %v985, %v985
        %v1086 = vpack.c.bf16 %v993, %v993
        %v1087 = vpack.c.bf16 %v1001, %v1001
        %v1088 = vpack.c.bf16 %v1009, %v1009
        %v1089 = vpack.c.bf16 %v1017, %v1017
        %v1090 = vpack.c.bf16 %v1025, %v1025
        %v1091 = vpack.c.bf16 %v1033, %v1033
        %v1092 = vpack.c.bf16 %v1041, %v1041
        %v1093 = vpack.c.bf16 %v1049, %v1049
        %v1094 = vpack.c.bf16 %v1057, %v1057
        %v1095 = vpack.c.bf16 %v1065, %v1065
        %v1096 = vpack.c.bf16 %v1073, %v1073
        %v1097 = vpack.c.bf16 %v1081, %v1081
        %v1114 = vunpack.c.l.b16 %v1082
        %v1115 = vunpack.c.l.b16 %v1083
        %v1116 = vunpack.c.l.b16 %v1084
        %v1117 = vunpack.c.l.b16 %v1085
        %v1118 = vunpack.c.l.b16 %v1086
        %v1119 = vunpack.c.l.b16 %v1087
        %v1120 = vunpack.c.l.b16 %v1088
        %v1121 = vunpack.c.l.b16 %v1089
        %v1122 = vunpack.c.l.b16 %v1090
        %v1123 = vunpack.c.l.b16 %v1091
        %v1124 = vunpack.c.l.b16 %v1092
        %v1125 = vunpack.c.l.b16 %v1093
        %v1126 = vunpack.c.l.b16 %v1094
        %v1127 = vunpack.c.l.b16 %v1095
        %v1128 = vunpack.c.l.b16 %v1096
        %v1129 = vunpack.c.l.b16 %v1097
        %v1130 = vpack.c.b16 %v1115, %v1114
        %v1131 = vpack.c.b16 %v1117, %v1116
        %v1132 = vpack.c.b16 %v1119, %v1118
        %v1133 = vpack.c.b16 %v1121, %v1120
        %v1134 = vpack.c.b16 %v1123, %v1122
        %v1135 = vpack.c.b16 %v1125, %v1124
        %v1136 = vpack.c.b16 %v1127, %v1126
        %v1137 = vpack.c.b16 %v1129, %v1128
        %v1138 = vunpack.c.l.b16 %v1130
        %v1139 = vunpack.c.h.b16 %v1130
        %v1140 = vunpack.c.l.b16 %v1131
        %v1141 = vunpack.c.h.b16 %v1131
        %v1142 = vunpack.c.l.b16 %v1132
        %v1143 = vunpack.c.h.b16 %v1132
        %v1144 = vunpack.c.l.b16 %v1133
        %v1145 = vunpack.c.h.b16 %v1133
        %v1146 = vunpack.c.l.b16 %v1134
        %v1147 = vunpack.c.h.b16 %v1134
        %v1148 = vunpack.c.l.b16 %v1135
        %v1149 = vunpack.c.h.b16 %v1135
        %v1150 = vunpack.c.l.b16 %v1136
        %v1151 = vunpack.c.h.b16 %v1136
        %v1152 = vunpack.c.l.b16 %v1137
        %v1153 = vunpack.c.h.b16 %v1137
        %vm1154 = vcmask 1041409
        %v1155 = vsel %vm1154, %v1140, %v1138
        %vm1156 = vcmask 1042434
        %v1157 = vsel %vm1156, %v1142, %v1155
        %vm1158 = vcmask 1043459
        %v1159 = vsel %vm1158, %v1144, %v1157
        %vm1160 = vcmask 1044484
        %v1161 = vsel %vm1160, %v1146, %v1159
        %vm1162 = vcmask 1045509
        %v1163 = vsel %vm1162, %v1148, %v1161
        %vm1164 = vcmask 1046534
        %v1165 = vsel %vm1164, %v1150, %v1163
        %vm1166 = vcmask 1047559
        %v1167 = vsel %vm1166, %v1152, %v1165
        %v1168 = vsel %vm1154, %v1141, %v1139
        %v1169 = vsel %vm1156, %v1143, %v1168
        %v1170 = vsel %vm1158, %v1145, %v1169
        %v1171 = vsel %vm1160, %v1147, %v1170
        %v1172 = vsel %vm1162, %v1149, %v1171
        %v1173 = vsel %vm1164, %v1151, %v1172
        %v1174 = vsel %vm1166, %v1153, %v1173
        %v1175 = vpack.c.b16 %v1174, %v1167
        %1177 = vst [vmem:[#allocation2] sm:$0xff] %v1175
        %v1178 = vlaneseq
        %v1179 = vshrl.u32 %v1178, 7
        %v1180 = vsub.s32 1, %v1179
        %v1181 = vrot.slane %v362, %v1180
        %v1182 = vlaneseq
        %v1183 = vshrl.u32 %v1182, 7
        %v1184 = vsub.s32 1, %v1183
        %v1185 = vrot.slane %v363, %v1184
        %vm1186 = vcmp.eq.s32.totalorder %v371, %v1181
        %vm1187 = vcmp.eq.s32.totalorder %v371, %v1185
        %vm1188 = vcmp.eq.s32.totalorder %v372, %v1181
        %vm1189 = vcmp.eq.s32.totalorder %v372, %v1185
        %vm1190 = vcmp.eq.s32.totalorder %v373, %v1181
        %vm1191 = vcmp.eq.s32.totalorder %v373, %v1185
        %vm1192 = vcmp.eq.s32.totalorder %v374, %v1181
        %vm1193 = vcmp.eq.s32.totalorder %v374, %v1185
        %vm1194 = vcmp.eq.s32.totalorder %v375, %v1181
        %vm1195 = vcmp.eq.s32.totalorder %v375, %v1185
        %vm1196 = vcmp.eq.s32.totalorder %v376, %v1181
        %vm1197 = vcmp.eq.s32.totalorder %v376, %v1185
        %vm1198 = vcmp.eq.s32.totalorder %v377, %v1181
        %vm1199 = vcmp.eq.s32.totalorder %v377, %v1185
        %vm1200 = vcmp.eq.s32.totalorder %v378, %v1181
        %vm1201 = vcmp.eq.s32.totalorder %v378, %v1185
        %vm1202 = vcmp.eq.s32.totalorder %v379, %v1181
        %vm1203 = vcmp.eq.s32.totalorder %v379, %v1185
        %vm1204 = vcmp.eq.s32.totalorder %v380, %v1181
        %vm1205 = vcmp.eq.s32.totalorder %v380, %v1185
        %vm1206 = vcmp.eq.s32.totalorder %v381, %v1181
        %vm1207 = vcmp.eq.s32.totalorder %v381, %v1185
        %vm1208 = vcmp.eq.s32.totalorder %v382, %v1181
        %vm1209 = vcmp.eq.s32.totalorder %v382, %v1185
        %vm1210 = vcmp.eq.s32.totalorder %v383, %v1181
        %vm1211 = vcmp.eq.s32.totalorder %v383, %v1185
        %vm1212 = vcmp.eq.s32.totalorder %v384, %v1181
        %vm1213 = vcmp.eq.s32.totalorder %v384, %v1185
        %vm1214 = vcmp.eq.s32.totalorder %v385, %v1181
        %vm1215 = vcmp.eq.s32.totalorder %v385, %v1185
        %vm1216 = vcmp.eq.s32.totalorder %v386, %v1181
        %vm1217 = vcmp.eq.s32.totalorder %v386, %v1185
        %v1218 = vlaneseq
        %v1219 = vshrl.u32 %v1218, 7
        %v1220 = vsub.s32 1, %v1219
        %v1221 = vrot.slane %v342, %v1220
        %v1222 = vlaneseq
        %v1223 = vshrl.u32 %v1222, 7
        %v1224 = vsub.s32 1, %v1223
        %v1225 = vrot.slane %v343, %v1224
        %v1226 = vsel %vm1186, %v1221, 0.0
        %v1227 = vsel %vm1187, %v1225, 0.0
        %v1228 = vsel %vm1188, %v1221, 0.0
        %v1229 = vsel %vm1189, %v1225, 0.0
        %v1230 = vsel %vm1190, %v1221, 0.0
        %v1231 = vsel %vm1191, %v1225, 0.0
        %v1232 = vsel %vm1192, %v1221, 0.0
        %v1233 = vsel %vm1193, %v1225, 0.0
        %v1234 = vsel %vm1194, %v1221, 0.0
        %v1235 = vsel %vm1195, %v1225, 0.0
        %v1236 = vsel %vm1196, %v1221, 0.0
        %v1237 = vsel %vm1197, %v1225, 0.0
        %v1238 = vsel %vm1198, %v1221, 0.0
        %v1239 = vsel %vm1199, %v1225, 0.0
        %v1240 = vsel %vm1200, %v1221, 0.0
        %v1241 = vsel %vm1201, %v1225, 0.0
        %v1242 = vsel %vm1202, %v1221, 0.0
        %v1243 = vsel %vm1203, %v1225, 0.0
        %v1244 = vsel %vm1204, %v1221, 0.0
        %v1245 = vsel %vm1205, %v1225, 0.0
        %v1246 = vsel %vm1206, %v1221, 0.0
        %v1247 = vsel %vm1207, %v1225, 0.0
        %v1248 = vsel %vm1208, %v1221, 0.0
        %v1249 = vsel %vm1209, %v1225, 0.0
        %v1250 = vsel %vm1210, %v1221, 0.0
        %v1251 = vsel %vm1211, %v1225, 0.0
        %v1252 = vsel %vm1212, %v1221, 0.0
        %v1253 = vsel %vm1213, %v1225, 0.0
        %v1254 = vsel %vm1214, %v1221, 0.0
        %v1255 = vsel %vm1215, %v1225, 0.0
        %v1256 = vsel %vm1216, %v1221, 0.0
        %v1257 = vsel %vm1217, %v1225, 0.0
        %v1258 = vlaneseq
        %v1259 = vshrl.u32 %v1258, 7
        %v1260 = vsub.s32 1, %v1259
        %v1261 = vrot.slane %v366, %v1260
        %v1262 = vlaneseq
        %v1263 = vshrl.u32 %v1262, 7
        %v1264 = vsub.s32 1, %v1263
        %v1265 = vrot.slane %v367, %v1264
        %vm1266 = vcmp.eq.s32.totalorder %v371, %v1261
        %vm1267 = vcmp.eq.s32.totalorder %v371, %v1265
        %vm1268 = vcmp.eq.s32.totalorder %v372, %v1261
        %vm1269 = vcmp.eq.s32.totalorder %v372, %v1265
        %vm1270 = vcmp.eq.s32.totalorder %v373, %v1261
        %vm1271 = vcmp.eq.s32.totalorder %v373, %v1265
        %vm1272 = vcmp.eq.s32.totalorder %v374, %v1261
        %vm1273 = vcmp.eq.s32.totalorder %v374, %v1265
        %vm1274 = vcmp.eq.s32.totalorder %v375, %v1261
        %vm1275 = vcmp.eq.s32.totalorder %v375, %v1265
        %vm1276 = vcmp.eq.s32.totalorder %v376, %v1261
        %vm1277 = vcmp.eq.s32.totalorder %v376, %v1265
        %vm1278 = vcmp.eq.s32.totalorder %v377, %v1261
        %vm1279 = vcmp.eq.s32.totalorder %v377, %v1265
        %vm1280 = vcmp.eq.s32.totalorder %v378, %v1261
        %vm1281 = vcmp.eq.s32.totalorder %v378, %v1265
        %vm1282 = vcmp.eq.s32.totalorder %v379, %v1261
        %vm1283 = vcmp.eq.s32.totalorder %v379, %v1265
        %vm1284 = vcmp.eq.s32.totalorder %v380, %v1261
        %vm1285 = vcmp.eq.s32.totalorder %v380, %v1265
        %vm1286 = vcmp.eq.s32.totalorder %v381, %v1261
        %vm1287 = vcmp.eq.s32.totalorder %v381, %v1265
        %vm1288 = vcmp.eq.s32.totalorder %v382, %v1261
        %vm1289 = vcmp.eq.s32.totalorder %v382, %v1265
        %vm1290 = vcmp.eq.s32.totalorder %v383, %v1261
        %vm1291 = vcmp.eq.s32.totalorder %v383, %v1265
        %vm1292 = vcmp.eq.s32.totalorder %v384, %v1261
        %vm1293 = vcmp.eq.s32.totalorder %v384, %v1265
        %vm1294 = vcmp.eq.s32.totalorder %v385, %v1261
        %vm1295 = vcmp.eq.s32.totalorder %v385, %v1265
        %vm1296 = vcmp.eq.s32.totalorder %v386, %v1261
        %vm1297 = vcmp.eq.s32.totalorder %v386, %v1265
        %v1298 = vlaneseq
        %v1299 = vshrl.u32 %v1298, 7
        %v1300 = vsub.s32 1, %v1299
        %v1301 = vrot.slane %v350, %v1300
        %v1302 = vlaneseq
        %v1303 = vshrl.u32 %v1302, 7
        %v1304 = vsub.s32 1, %v1303
        %v1305 = vrot.slane %v351, %v1304
        %v1306 = vsel %vm1266, %v1301, 0.0
        %v1307 = vsel %vm1267, %v1305, 0.0
        %v1308 = vsel %vm1268, %v1301, 0.0
        %v1309 = vsel %vm1269, %v1305, 0.0
        %v1310 = vsel %vm1270, %v1301, 0.0
        %v1311 = vsel %vm1271, %v1305, 0.0
        %v1312 = vsel %vm1272, %v1301, 0.0
        %v1313 = vsel %vm1273, %v1305, 0.0
        %v1314 = vsel %vm1274, %v1301, 0.0
        %v1315 = vsel %vm1275, %v1305, 0.0
        %v1316 = vsel %vm1276, %v1301, 0.0
        %v1317 = vsel %vm1277, %v1305, 0.0
        %v1318 = vsel %vm1278, %v1301, 0.0
        %v1319 = vsel %vm1279, %v1305, 0.0
        %v1320 = vsel %vm1280, %v1301, 0.0
        %v1321 = vsel %vm1281, %v1305, 0.0
        %v1322 = vsel %vm1282, %v1301, 0.0
        %v1323 = vsel %vm1283, %v1305, 0.0
        %v1324 = vsel %vm1284, %v1301, 0.0
        %v1325 = vsel %vm1285, %v1305, 0.0
        %v1326 = vsel %vm1286, %v1301, 0.0
        %v1327 = vsel %vm1287, %v1305, 0.0
        %v1328 = vsel %vm1288, %v1301, 0.0
        %v1329 = vsel %vm1289, %v1305, 0.0
        %v1330 = vsel %vm1290, %v1301, 0.0
        %v1331 = vsel %vm1291, %v1305, 0.0
        %v1332 = vsel %vm1292, %v1301, 0.0
        %v1333 = vsel %vm1293, %v1305, 0.0
        %v1334 = vsel %vm1294, %v1301, 0.0
        %v1335 = vsel %vm1295, %v1305, 0.0
        %v1336 = vsel %vm1296, %v1301, 0.0
        %v1337 = vsel %vm1297, %v1305, 0.0
        %v1338 = vadd.f32 %v1226, %v1306
        %v1339 = vadd.f32 %v1227, %v1307
        %v1340 = vadd.f32 %v1228, %v1308
        %v1341 = vadd.f32 %v1229, %v1309
        %v1342 = vadd.f32 %v1230, %v1310
        %v1343 = vadd.f32 %v1231, %v1311
        %v1344 = vadd.f32 %v1232, %v1312
        %v1345 = vadd.f32 %v1233, %v1313
        %v1346 = vadd.f32 %v1234, %v1314
        %v1347 = vadd.f32 %v1235, %v1315
        %v1348 = vadd.f32 %v1236, %v1316
        %v1349 = vadd.f32 %v1237, %v1317
        %v1350 = vadd.f32 %v1238, %v1318
        %v1351 = vadd.f32 %v1239, %v1319
        %v1352 = vadd.f32 %v1240, %v1320
        %v1353 = vadd.f32 %v1241, %v1321
        %v1354 = vadd.f32 %v1242, %v1322
        %v1355 = vadd.f32 %v1243, %v1323
        %v1356 = vadd.f32 %v1244, %v1324
        %v1357 = vadd.f32 %v1245, %v1325
        %v1358 = vadd.f32 %v1246, %v1326
        %v1359 = vadd.f32 %v1247, %v1327
        %v1360 = vadd.f32 %v1248, %v1328
        %v1361 = vadd.f32 %v1249, %v1329
        %v1362 = vadd.f32 %v1250, %v1330
        %v1363 = vadd.f32 %v1251, %v1331
        %v1364 = vadd.f32 %v1252, %v1332
        %v1365 = vadd.f32 %v1253, %v1333
        %v1366 = vadd.f32 %v1254, %v1334
        %v1367 = vadd.f32 %v1255, %v1335
        %v1368 = vadd.f32 %v1256, %v1336
        %v1369 = vadd.f32 %v1257, %v1337
        %v1370 = vpack.c.bf16 %v1340, %v1338
        %v1371 = vpack.c.bf16 %v1341, %v1339
        %v1372 = vpack.c.bf16 %v1344, %v1342
        %v1373 = vpack.c.bf16 %v1345, %v1343
        %v1374 = vpack.c.bf16 %v1348, %v1346
        %v1375 = vpack.c.bf16 %v1349, %v1347
        %v1376 = vpack.c.bf16 %v1352, %v1350
        %v1377 = vpack.c.bf16 %v1353, %v1351
        %v1378 = vpack.c.bf16 %v1356, %v1354
        %v1379 = vpack.c.bf16 %v1357, %v1355
        %v1380 = vpack.c.bf16 %v1360, %v1358
        %v1381 = vpack.c.bf16 %v1361, %v1359
        %v1382 = vpack.c.bf16 %v1364, %v1362
        %v1383 = vpack.c.bf16 %v1365, %v1363
        %v1384 = vpack.c.bf16 %v1368, %v1366
        %v1385 = vpack.c.bf16 %v1369, %v1367
        %v1386 = vlaneseq
        %v1387 = vshrl.u32 %v1386, 7
        %v1388 = vsub.s32 1, %v1387
        %v1389 = vrot.slane %v354, %v1388
        %v1390 = vlaneseq
        %v1391 = vshrl.u32 %v1390, 7
        %v1392 = vsub.s32 1, %v1391
        %v1393 = vrot.slane %v355, %v1392
        %vm1394 = vcmp.eq.s32.totalorder %v371, %v1389
        %vm1395 = vcmp.eq.s32.totalorder %v371, %v1393
        %vm1396 = vcmp.eq.s32.totalorder %v372, %v1389
        %vm1397 = vcmp.eq.s32.totalorder %v372, %v1393
        %vm1398 = vcmp.eq.s32.totalorder %v373, %v1389
        %vm1399 = vcmp.eq.s32.totalorder %v373, %v1393
        %v1400 = vlaneseq
        %v1401 = vshrl.u32 %v1400, 7
        %v1402 = vsub.s32 1, %v1401
        %v1403 = vrot.slane %v326, %v1402
        %v1404 = vlaneseq
        %v1405 = vshrl.u32 %v1404, 7
        %v1406 = vsub.s32 1, %v1405
        %v1407 = vrot.slane %v327, %v1406
        %v1408 = vsel %vm1394, %v1403, 0.0
        %v1409 = vsel %vm1395, %v1407, 0.0
        %v1410 = vsel %vm1396, %v1403, 0.0
        %v1411 = vsel %vm1397, %v1407, 0.0
        %v1412 = vsel %vm1398, %v1403, 0.0
        %v1413 = vsel %vm1399, %v1407, 0.0
        %v1414 = vlaneseq
        %v1415 = vshrl.u32 %v1414, 7
        %v1416 = vsub.s32 1, %v1415
        %v1417 = vrot.slane %v358, %v1416
        %v1418 = vlaneseq
        %v1419 = vshrl.u32 %v1418, 7
        %v1420 = vsub.s32 1, %v1419
        %v1421 = vrot.slane %v359, %v1420
        %vm1422 = vcmp.eq.s32.totalorder %v371, %v1417
        %vm1423 = vcmp.eq.s32.totalorder %v371, %v1421
        %vm1424 = vcmp.eq.s32.totalorder %v372, %v1417
        %vm1425 = vcmp.eq.s32.totalorder %v372, %v1421
        %vm1426 = vcmp.eq.s32.totalorder %v373, %v1417
        %vm1427 = vcmp.eq.s32.totalorder %v373, %v1421
        %v1428 = vlaneseq
        %v1429 = vshrl.u32 %v1428, 7
        %v1430 = vsub.s32 1, %v1429
        %v1431 = vrot.slane %v334, %v1430
        %v1432 = vlaneseq
        %v1433 = vshrl.u32 %v1432, 7
        %v1434 = vsub.s32 1, %v1433
        %v1435 = vrot.slane %v335, %v1434
        %v1436 = vsel %vm1422, %v1431, 0.0
        %v1437 = vsel %vm1423, %v1435, 0.0
        %v1438 = vsel %vm1424, %v1431, 0.0
        %v1439 = vsel %vm1425, %v1435, 0.0
        %v1440 = vsel %vm1426, %v1431, 0.0
        %v1441 = vsel %vm1427, %v1435, 0.0
        %v1442 = vadd.f32 %v1408, %v1436
        %v1443 = vadd.f32 %v1409, %v1437
        %v1444 = vadd.f32 %v1410, %v1438
        %v1445 = vadd.f32 %v1411, %v1439
        %v1446 = vadd.f32 %v1412, %v1440
        %v1447 = vadd.f32 %v1413, %v1441
        %v1448 = vld [vmem:[%s210] sm:$0xf]
        %v1449 = vld [vmem:[%s210 + $0x4] sm:$0xf]
        %v1450 = vld [vmem:[%s210 + $0x8] sm:$0xf]
        %v1451 = vld [vmem:[%s210 + $0xc] sm:$0xf]
        %v1452 = vld [vmem:[%s210 + $0x10] sm:$0xf]
        %v1453 = vld [vmem:[%s210 + $0x14] sm:$0xf]
        %v1454 = vld [vmem:[%s210 + $0x18] sm:$0xf]
        %v1455 = vld [vmem:[%s210 + $0x1c] sm:$0xf]
        %v1456 = vld [vmem:[%s210 + $0x20] sm:$0xf]
        %v1457 = vld [vmem:[%s210 + $0x24] sm:$0xf]
        %v1458 = vld [vmem:[%s210 + $0x28] sm:$0xf]
        %v1459 = vld [vmem:[%s210 + $0x2c] sm:$0xf]
        %v1460 = vld [vmem:[%s210 + $0x30] sm:$0xf]
        %v1461 = vld [vmem:[%s210 + $0x34] sm:$0xf]
        %v1462 = vld [vmem:[%s210 + $0x38] sm:$0xf]
        %v1463 = vld [vmem:[%s210 + $0x3c] sm:$0xf]
        %v1464 = vld [vmem:[%s210 + $0x40] sm:$0xf]
        %v1465 = vld [vmem:[%s210 + $0x44] sm:$0xf]
        %v1466 = vld [vmem:[%s210 + $0x48] sm:$0xf]
        %v1467 = vld [vmem:[%s210 + $0x4c] sm:$0xf]
        %v1468 = vld [vmem:[%s210 + $0x50] sm:$0xf]
        %v1469 = vld [vmem:[%s210 + $0x54] sm:$0xf]
        %v1470 = vld [vmem:[%s210 + $0x58] sm:$0xf]
        %v1471 = vld [vmem:[%s210 + $0x5c] sm:$0xf]
        %v1496 = vunpack.c.l.b16 %v1448
        %v1497 = vunpack.c.l.b16 %v1449
        %v1498 = vunpack.c.l.b16 %v1450
        %v1499 = vunpack.c.l.b16 %v1451
        %v1500 = vunpack.c.l.b16 %v1452
        %v1501 = vunpack.c.l.b16 %v1453
        %v1502 = vunpack.c.l.b16 %v1454
        %v1503 = vunpack.c.l.b16 %v1455
        %v1504 = vunpack.c.l.b16 %v1456
        %v1505 = vunpack.c.l.b16 %v1457
        %v1506 = vunpack.c.l.b16 %v1458
        %v1507 = vunpack.c.l.b16 %v1459
        %v1508 = vunpack.c.l.b16 %v1460
        %v1509 = vunpack.c.l.b16 %v1461
        %v1510 = vunpack.c.l.b16 %v1462
        %v1511 = vunpack.c.l.b16 %v1463
        %v1512 = vunpack.c.l.b16 %v1464
        %v1513 = vunpack.c.l.b16 %v1465
        %v1514 = vunpack.c.l.b16 %v1466
        %v1515 = vunpack.c.l.b16 %v1467
        %v1516 = vunpack.c.l.b16 %v1468
        %v1517 = vunpack.c.l.b16 %v1469
        %v1518 = vunpack.c.l.b16 %v1470
        %v1519 = vunpack.c.l.b16 %v1471
        %v1520 = vpack.c.b16 %v1497, %v1496
        %v1521 = vpack.c.b16 %v1499, %v1498
        %v1522 = vpack.c.b16 %v1501, %v1500
        %v1523 = vpack.c.b16 %v1503, %v1502
        %v1524 = vpack.c.b16 %v1505, %v1504
        %v1525 = vpack.c.b16 %v1507, %v1506
        %v1526 = vpack.c.b16 %v1509, %v1508
        %v1527 = vpack.c.b16 %v1511, %v1510
        %v1528 = vpack.c.b16 %v1513, %v1512
        %v1529 = vpack.c.b16 %v1515, %v1514
        %v1530 = vpack.c.b16 %v1517, %v1516
        %v1531 = vpack.c.b16 %v1519, %v1518
        %1544 = vmatprep.subr.bf16.mxu0 %v1371
        %1545 = vmatpush1.bf16.msra.mxu0 %v1370
        %1546 = vmatprep.subr.bf16.mxu0 %v1373
        %1547 = vmatpush1.bf16.msra.mxu0 %v1372
        %1548 = vmatprep.subr.bf16.mxu0 %v1375
        %1549 = vmatpush1.bf16.msra.mxu0 %v1374
        %1550 = vmatprep.subr.bf16.mxu0 %v1377
        %1551 = vmatpush1.bf16.msra.mxu0 %v1376
        %1552 = vmatprep.subr.bf16.mxu0 %v1379
        %1553 = vmatpush1.bf16.msra.mxu0 %v1378
        %1554 = vmatprep.subr.bf16.mxu0 %v1381
        %1555 = vmatpush1.bf16.msra.mxu0 %v1380
        %1556 = vmatprep.subr.bf16.mxu0 %v1383
        %1557 = vmatpush1.bf16.msra.mxu0 %v1382
        %1558 = vmatprep.subr.bf16.mxu0 %v1385
        %1559 = vmatpush1.bf16.msra.mxu0 %v1384
        %1560 = vmatprep.subr.bf16.mxu0 0
        %1561 = vmatpush1.bf16.msra.mxu0 0
        %1562 = vmatprep.subr.bf16.mxu0 0
        %1563 = vmatpush1.bf16.msra.mxu0 0
        %1564 = vmatprep.subr.bf16.mxu0 0
        %1565 = vmatpush1.bf16.msra.mxu0 0
        %1566 = vmatprep.subr.bf16.mxu0 0
        %1567 = vmatpush1.bf16.msra.mxu0 0
        %1568 = vmatprep.subr.bf16.mxu0 0
        %1569 = vmatpush1.bf16.msra.mxu0 0
        %1570 = vmatprep.subr.bf16.mxu0 0
        %1571 = vmatpush1.bf16.msra.mxu0 0
        %1572 = vmatprep.subr.bf16.mxu0 0
        %1573 = vmatpush1.bf16.msra.mxu0 0
        %1574 = vmatprep.subr.bf16.mxu0 0
        %1575 = vmatpush1.bf16.msra.mxu0 0
        %1576 = vmatprep.mubr.bf16.mxu0 0
        %1577 = vmatmul.mubr.bf16.gmra.mrb[0].mxu0 %v1520
        %v1578 = vpop.f32.mrb[0].mxu0
        %v1579 = vadd.f32 0.0, %v1578
        %v1580 = vpop.f32.mrb[0].mxu0
        %v1581 = vadd.f32 0.0, %v1580
        %v1582 = vpop.f32.mrb[0].mxu0
        %v1583 = vadd.f32 0.0, %v1582
        %v1584 = vpop.f32.mrb[0].mxu0
        %v1585 = vadd.f32 0.0, %v1584
        %1586 = vmatprep.mubr.bf16.mxu0 0
        %1587 = vmatmul.mubr.bf16.gmra.mrb[0].mxu0 %v1521
        %v1588 = vpop.f32.mrb[0].mxu0
        %v1589 = vadd.f32 0.0, %v1588
        %v1590 = vpop.f32.mrb[0].mxu0
        %v1591 = vadd.f32 0.0, %v1590
        %v1592 = vpop.f32.mrb[0].mxu0
        %v1593 = vadd.f32 0.0, %v1592
        %v1594 = vpop.f32.mrb[0].mxu0
        %v1595 = vadd.f32 0.0, %v1594
        %1596 = vmatprep.mubr.bf16.mxu0 0
        %1597 = vmatmul.mubr.bf16.gmra.mrb[0].mxu0 %v1522
        %v1598 = vpop.f32.mrb[0].mxu0
        %v1599 = vadd.f32 0.0, %v1598
        %v1600 = vpop.f32.mrb[0].mxu0
        %v1601 = vadd.f32 0.0, %v1600
        %v1602 = vpop.f32.mrb[0].mxu0
        %v1603 = vadd.f32 0.0, %v1602
        %v1604 = vpop.f32.mrb[0].mxu0
        %v1605 = vadd.f32 0.0, %v1604
        %1606 = vmatprep.mubr.bf16.mxu0 0
        %1607 = vmatmul.mubr.bf16.gmra.mrb[0].mxu0 %v1523
        %v1608 = vpop.f32.mrb[0].mxu0
        %v1609 = vadd.f32 0.0, %v1608
        %v1610 = vpop.f32.mrb[0].mxu0
        %v1611 = vadd.f32 0.0, %v1610
        %v1612 = vpop.f32.mrb[0].mxu0
        %v1613 = vadd.f32 0.0, %v1612
        %v1614 = vpop.f32.mrb[0].mxu0
        %v1615 = vadd.f32 0.0, %v1614
        %1616 = vmatprep.mubr.bf16.mxu0 0
        %1617 = vmatmul.mubr.bf16.gmra.mrb[0].mxu0 %v1524
        %v1618 = vpop.f32.mrb[0].mxu0
        %v1619 = vadd.f32 0.0, %v1618
        %v1620 = vpop.f32.mrb[0].mxu0
        %v1621 = vadd.f32 0.0, %v1620
        %v1622 = vpop.f32.mrb[0].mxu0
        %v1623 = vadd.f32 0.0, %v1622
        %v1624 = vpop.f32.mrb[0].mxu0
        %v1625 = vadd.f32 0.0, %v1624
        %1626 = vmatprep.mubr.bf16.mxu0 0
        %1627 = vmatmul.mubr.bf16.gmra.mrb[0].mxu0 %v1525
        %v1628 = vpop.f32.mrb[0].mxu0
        %v1629 = vadd.f32 0.0, %v1628
        %v1630 = vpop.f32.mrb[0].mxu0
        %v1631 = vadd.f32 0.0, %v1630
        %v1632 = vpop.f32.mrb[0].mxu0
        %v1633 = vadd.f32 0.0, %v1632
        %v1634 = vpop.f32.mrb[0].mxu0
        %v1635 = vadd.f32 0.0, %v1634
        %1636 = vmatprep.mubr.bf16.mxu0 0
        %1637 = vmatmul.mubr.bf16.gmra.mrb[0].mxu0 %v1526
        %v1638 = vpop.f32.mrb[0].mxu0
        %v1639 = vadd.f32 0.0, %v1638
        %v1640 = vpop.f32.mrb[0].mxu0
        %v1641 = vadd.f32 0.0, %v1640
        %v1642 = vpop.f32.mrb[0].mxu0
        %v1643 = vadd.f32 0.0, %v1642
        %v1644 = vpop.f32.mrb[0].mxu0
        %v1645 = vadd.f32 0.0, %v1644
        %1646 = vmatprep.mubr.bf16.mxu0 0
        %1647 = vmatmul.mubr.bf16.gmra.mrb[0].mxu0 %v1527
        %v1648 = vpop.f32.mrb[0].mxu0
        %v1649 = vadd.f32 0.0, %v1648
        %v1650 = vpop.f32.mrb[0].mxu0
        %v1651 = vadd.f32 0.0, %v1650
        %v1652 = vpop.f32.mrb[0].mxu0
        %v1653 = vadd.f32 0.0, %v1652
        %v1654 = vpop.f32.mrb[0].mxu0
        %v1655 = vadd.f32 0.0, %v1654
        %1656 = vmatprep.mubr.bf16.mxu0 0
        %1657 = vmatmul.mubr.bf16.gmra.mrb[0].mxu0 %v1528
        %v1658 = vpop.f32.mrb[0].mxu0
        %v1659 = vadd.f32 0.0, %v1658
        %v1660 = vpop.f32.mrb[0].mxu0
        %v1661 = vadd.f32 0.0, %v1660
        %v1662 = vpop.f32.mrb[0].mxu0
        %v1663 = vadd.f32 0.0, %v1662
        %v1664 = vpop.f32.mrb[0].mxu0
        %v1665 = vadd.f32 0.0, %v1664
        %1666 = vmatprep.mubr.bf16.mxu0 0
        %1667 = vmatmul.mubr.bf16.gmra.mrb[0].mxu0 %v1529
        %v1668 = vpop.f32.mrb[0].mxu0
        %v1669 = vadd.f32 0.0, %v1668
        %v1670 = vpop.f32.mrb[0].mxu0
        %v1671 = vadd.f32 0.0, %v1670
        %v1672 = vpop.f32.mrb[0].mxu0
        %v1673 = vadd.f32 0.0, %v1672
        %v1674 = vpop.f32.mrb[0].mxu0
        %v1675 = vadd.f32 0.0, %v1674
        %1676 = vmatprep.mubr.bf16.mxu0 0
        %1677 = vmatmul.mubr.bf16.gmra.mrb[0].mxu0 %v1530
        %v1678 = vpop.f32.mrb[0].mxu0
        %v1679 = vadd.f32 0.0, %v1678
        %v1680 = vpop.f32.mrb[0].mxu0
        %v1681 = vadd.f32 0.0, %v1680
        %v1682 = vpop.f32.mrb[0].mxu0
        %v1683 = vadd.f32 0.0, %v1682
        %v1684 = vpop.f32.mrb[0].mxu0
        %v1685 = vadd.f32 0.0, %v1684
        %1686 = vmatprep.mubr.bf16.mxu0 0
        %1687 = vmatmul.mubr.bf16.gmra.mrb[0].mxu0 %v1531
        %v1688 = vpop.f32.mrb[0].mxu0
        %v1689 = vadd.f32 0.0, %v1688
        %v1690 = vpop.f32.mrb[0].mxu0
        %v1691 = vadd.f32 0.0, %v1690
        %v1692 = vpop.f32.mrb[0].mxu0
        %v1693 = vadd.f32 0.0, %v1692
        %v1694 = vpop.f32.mrb[0].mxu0
        %v1695 = vadd.f32 0.0, %v1694
        %1696 = vdwg.mxu0
        %v1697 = vmul.f32 %v1579, %v1442
        %v1698 = vmul.f32 %v1581, %v1443
        %v1699 = vmul.f32 %v1583, %v1444
        %v1700 = vmul.f32 %v1585, %v1445
        %v1701 = vmul.f32 %v1589, %v1446
        %v1702 = vmul.f32 %v1591, %v1447
        %v1703 = vmul.f32 %v1593, %v1442
        %v1704 = vmul.f32 %v1595, %v1443
        %v1705 = vmul.f32 %v1599, %v1444
        %v1706 = vmul.f32 %v1601, %v1445
        %v1707 = vmul.f32 %v1603, %v1446
        %v1708 = vmul.f32 %v1605, %v1447
        %v1709 = vmul.f32 %v1609, %v1442
        %v1710 = vmul.f32 %v1611, %v1443
        %v1711 = vmul.f32 %v1613, %v1444
        %v1712 = vmul.f32 %v1615, %v1445
        %v1713 = vmul.f32 %v1619, %v1446
        %v1714 = vmul.f32 %v1621, %v1447
        %v1715 = vmul.f32 %v1623, %v1442
        %v1716 = vmul.f32 %v1625, %v1443
        %v1717 = vmul.f32 %v1629, %v1444
        %v1718 = vmul.f32 %v1631, %v1445
        %v1719 = vmul.f32 %v1633, %v1446
        %v1720 = vmul.f32 %v1635, %v1447
        %v1721 = vmul.f32 %v1639, %v1442
        %v1722 = vmul.f32 %v1641, %v1443
        %v1723 = vmul.f32 %v1643, %v1444
        %v1724 = vmul.f32 %v1645, %v1445
        %v1725 = vmul.f32 %v1649, %v1446
        %v1726 = vmul.f32 %v1651, %v1447
        %v1727 = vmul.f32 %v1653, %v1442
        %v1728 = vmul.f32 %v1655, %v1443
        %v1729 = vmul.f32 %v1659, %v1444
        %v1730 = vmul.f32 %v1661, %v1445
        %v1731 = vmul.f32 %v1663, %v1446
        %v1732 = vmul.f32 %v1665, %v1447
        %v1733 = vmul.f32 %v1669, %v1442
        %v1734 = vmul.f32 %v1671, %v1443
        %v1735 = vmul.f32 %v1673, %v1444
        %v1736 = vmul.f32 %v1675, %v1445
        %v1737 = vmul.f32 %v1679, %v1446
        %v1738 = vmul.f32 %v1681, %v1447
        %v1739 = vmul.f32 %v1683, %v1442
        %v1740 = vmul.f32 %v1685, %v1443
        %v1741 = vmul.f32 %v1689, %v1444
        %v1742 = vmul.f32 %v1691, %v1445
        %v1743 = vmul.f32 %v1693, %v1446
        %v1744 = vmul.f32 %v1695, %v1447
        %v1745 = vadd.f32 %v1697, %v1699
        %v1746 = vadd.f32 %v1745, %v1701
        %v1747 = vrot.slane %v1746, 4
        %v1748 = vadd.f32 %v1746, %v1747
        %v1749 = vrot.slane %v1748, 2
        %v1750 = vadd.f32 %v1748, %v1749
        %v1751 = vrot.slane %v1750, 1
        %v1752 = vadd.f32 %v1750, %v1751
        %v1753 = vadd.f32 %v1698, %v1700
        %v1754 = vadd.f32 %v1753, %v1702
        %v1755 = vrot.slane %v1754, 4
        %v1756 = vadd.f32 %v1754, %v1755
        %v1757 = vrot.slane %v1756, 2
        %v1758 = vadd.f32 %v1756, %v1757
        %v1759 = vrot.slane %v1758, 1
        %v1760 = vadd.f32 %v1758, %v1759
        %v1761 = vadd.f32 %v1703, %v1705
        %v1762 = vadd.f32 %v1761, %v1707
        %v1763 = vrot.slane %v1762, 4
        %v1764 = vadd.f32 %v1762, %v1763
        %v1765 = vrot.slane %v1764, 2
        %v1766 = vadd.f32 %v1764, %v1765
        %v1767 = vrot.slane %v1766, 1
        %v1768 = vadd.f32 %v1766, %v1767
        %v1769 = vadd.f32 %v1704, %v1706
        %v1770 = vadd.f32 %v1769, %v1708
        %v1771 = vrot.slane %v1770, 4
        %v1772 = vadd.f32 %v1770, %v1771
        %v1773 = vrot.slane %v1772, 2
        %v1774 = vadd.f32 %v1772, %v1773
        %v1775 = vrot.slane %v1774, 1
        %v1776 = vadd.f32 %v1774, %v1775
        %v1777 = vadd.f32 %v1709, %v1711
        %v1778 = vadd.f32 %v1777, %v1713
        %v1779 = vrot.slane %v1778, 4
        %v1780 = vadd.f32 %v1778, %v1779
        %v1781 = vrot.slane %v1780, 2
        %v1782 = vadd.f32 %v1780, %v1781
        %v1783 = vrot.slane %v1782, 1
        %v1784 = vadd.f32 %v1782, %v1783
        %v1785 = vadd.f32 %v1710, %v1712
        %v1786 = vadd.f32 %v1785, %v1714
        %v1787 = vrot.slane %v1786, 4
        %v1788 = vadd.f32 %v1786, %v1787
        %v1789 = vrot.slane %v1788, 2
        %v1790 = vadd.f32 %v1788, %v1789
        %v1791 = vrot.slane %v1790, 1
        %v1792 = vadd.f32 %v1790, %v1791
        %v1793 = vadd.f32 %v1715, %v1717
        %v1794 = vadd.f32 %v1793, %v1719
        %v1795 = vrot.slane %v1794, 4
        %v1796 = vadd.f32 %v1794, %v1795
        %v1797 = vrot.slane %v1796, 2
        %v1798 = vadd.f32 %v1796, %v1797
        %v1799 = vrot.slane %v1798, 1
        %v1800 = vadd.f32 %v1798, %v1799
        %v1801 = vadd.f32 %v1716, %v1718
        %v1802 = vadd.f32 %v1801, %v1720
        %v1803 = vrot.slane %v1802, 4
        %v1804 = vadd.f32 %v1802, %v1803
        %v1805 = vrot.slane %v1804, 2
        %v1806 = vadd.f32 %v1804, %v1805
        %v1807 = vrot.slane %v1806, 1
        %v1808 = vadd.f32 %v1806, %v1807
        %v1809 = vadd.f32 %v1721, %v1723
        %v1810 = vadd.f32 %v1809, %v1725
        %v1811 = vrot.slane %v1810, 4
        %v1812 = vadd.f32 %v1810, %v1811
        %v1813 = vrot.slane %v1812, 2
        %v1814 = vadd.f32 %v1812, %v1813
        %v1815 = vrot.slane %v1814, 1
        %v1816 = vadd.f32 %v1814, %v1815
        %v1817 = vadd.f32 %v1722, %v1724
        %v1818 = vadd.f32 %v1817, %v1726
        %v1819 = vrot.slane %v1818, 4
        %v1820 = vadd.f32 %v1818, %v1819
        %v1821 = vrot.slane %v1820, 2
        %v1822 = vadd.f32 %v1820, %v1821
        %v1823 = vrot.slane %v1822, 1
        %v1824 = vadd.f32 %v1822, %v1823
        %v1825 = vadd.f32 %v1727, %v1729
        %v1826 = vadd.f32 %v1825, %v1731
        %v1827 = vrot.slane %v1826, 4
        %v1828 = vadd.f32 %v1826, %v1827
        %v1829 = vrot.slane %v1828, 2
        %v1830 = vadd.f32 %v1828, %v1829
        %v1831 = vrot.slane %v1830, 1
        %v1832 = vadd.f32 %v1830, %v1831
        %v1833 = vadd.f32 %v1728, %v1730
        %v1834 = vadd.f32 %v1833, %v1732
        %v1835 = vrot.slane %v1834, 4
        %v1836 = vadd.f32 %v1834, %v1835
        %v1837 = vrot.slane %v1836, 2
        %v1838 = vadd.f32 %v1836, %v1837
        %v1839 = vrot.slane %v1838, 1
        %v1840 = vadd.f32 %v1838, %v1839
        %v1841 = vadd.f32 %v1733, %v1735
        %v1842 = vadd.f32 %v1841, %v1737
        %v1843 = vrot.slane %v1842, 4
        %v1844 = vadd.f32 %v1842, %v1843
        %v1845 = vrot.slane %v1844, 2
        %v1846 = vadd.f32 %v1844, %v1845
        %v1847 = vrot.slane %v1846, 1
        %v1848 = vadd.f32 %v1846, %v1847
        %v1849 = vadd.f32 %v1734, %v1736
        %v1850 = vadd.f32 %v1849, %v1738
        %v1851 = vrot.slane %v1850, 4
        %v1852 = vadd.f32 %v1850, %v1851
        %v1853 = vrot.slane %v1852, 2
        %v1854 = vadd.f32 %v1852, %v1853
        %v1855 = vrot.slane %v1854, 1
        %v1856 = vadd.f32 %v1854, %v1855
        %v1857 = vadd.f32 %v1739, %v1741
        %v1858 = vadd.f32 %v1857, %v1743
        %v1859 = vrot.slane %v1858, 4
        %v1860 = vadd.f32 %v1858, %v1859
        %v1861 = vrot.slane %v1860, 2
        %v1862 = vadd.f32 %v1860, %v1861
        %v1863 = vrot.slane %v1862, 1
        %v1864 = vadd.f32 %v1862, %v1863
        %v1865 = vadd.f32 %v1740, %v1742
        %v1866 = vadd.f32 %v1865, %v1744
        %v1867 = vrot.slane %v1866, 4
        %v1868 = vadd.f32 %v1866, %v1867
        %v1869 = vrot.slane %v1868, 2
        %v1870 = vadd.f32 %v1868, %v1869
        %v1871 = vrot.slane %v1870, 1
        %v1872 = vadd.f32 %v1870, %v1871
        %v1873 = vpack.c.bf16 %v1752, %v1752
        %v1874 = vpack.c.bf16 %v1760, %v1760
        %v1875 = vpack.c.bf16 %v1768, %v1768
        %v1876 = vpack.c.bf16 %v1776, %v1776
        %v1877 = vpack.c.bf16 %v1784, %v1784
        %v1878 = vpack.c.bf16 %v1792, %v1792
        %v1879 = vpack.c.bf16 %v1800, %v1800
        %v1880 = vpack.c.bf16 %v1808, %v1808
        %v1881 = vpack.c.bf16 %v1816, %v1816
        %v1882 = vpack.c.bf16 %v1824, %v1824
        %v1883 = vpack.c.bf16 %v1832, %v1832
        %v1884 = vpack.c.bf16 %v1840, %v1840
        %v1885 = vpack.c.bf16 %v1848, %v1848
        %v1886 = vpack.c.bf16 %v1856, %v1856
        %v1887 = vpack.c.bf16 %v1864, %v1864
        %v1888 = vpack.c.bf16 %v1872, %v1872
        %v1905 = vunpack.c.l.b16 %v1873
        %v1906 = vunpack.c.l.b16 %v1874
        %v1907 = vunpack.c.l.b16 %v1875
        %v1908 = vunpack.c.l.b16 %v1876
        %v1909 = vunpack.c.l.b16 %v1877
        %v1910 = vunpack.c.l.b16 %v1878
        %v1911 = vunpack.c.l.b16 %v1879
        %v1912 = vunpack.c.l.b16 %v1880
        %v1913 = vunpack.c.l.b16 %v1881
        %v1914 = vunpack.c.l.b16 %v1882
        %v1915 = vunpack.c.l.b16 %v1883
        %v1916 = vunpack.c.l.b16 %v1884
        %v1917 = vunpack.c.l.b16 %v1885
        %v1918 = vunpack.c.l.b16 %v1886
        %v1919 = vunpack.c.l.b16 %v1887
        %v1920 = vunpack.c.l.b16 %v1888
        %v1921 = vpack.c.b16 %v1906, %v1905
        %v1922 = vpack.c.b16 %v1908, %v1907
        %v1923 = vpack.c.b16 %v1910, %v1909
        %v1924 = vpack.c.b16 %v1912, %v1911
        %v1925 = vpack.c.b16 %v1914, %v1913
        %v1926 = vpack.c.b16 %v1916, %v1915
        %v1927 = vpack.c.b16 %v1918, %v1917
        %v1928 = vpack.c.b16 %v1920, %v1919
        %v1929 = vunpack.c.l.b16 %v1921
        %v1930 = vunpack.c.h.b16 %v1921
        %v1931 = vunpack.c.l.b16 %v1922
        %v1932 = vunpack.c.h.b16 %v1922
        %v1933 = vunpack.c.l.b16 %v1923
        %v1934 = vunpack.c.h.b16 %v1923
        %v1935 = vunpack.c.l.b16 %v1924
        %v1936 = vunpack.c.h.b16 %v1924
        %v1937 = vunpack.c.l.b16 %v1925
        %v1938 = vunpack.c.h.b16 %v1925
        %v1939 = vunpack.c.l.b16 %v1926
        %v1940 = vunpack.c.h.b16 %v1926
        %v1941 = vunpack.c.l.b16 %v1927
        %v1942 = vunpack.c.h.b16 %v1927
        %v1943 = vunpack.c.l.b16 %v1928
        %v1944 = vunpack.c.h.b16 %v1928
        %v1945 = vsel %vm1154, %v1931, %v1929
        %v1946 = vsel %vm1156, %v1933, %v1945
        %v1947 = vsel %vm1158, %v1935, %v1946
        %v1948 = vsel %vm1160, %v1937, %v1947
        %v1949 = vsel %vm1162, %v1939, %v1948
        %v1950 = vsel %vm1164, %v1941, %v1949
        %v1951 = vsel %vm1166, %v1943, %v1950
        %v1952 = vsel %vm1154, %v1932, %v1930
        %v1953 = vsel %vm1156, %v1934, %v1952
        %v1954 = vsel %vm1158, %v1936, %v1953
        %v1955 = vsel %vm1160, %v1938, %v1954
        %v1956 = vsel %vm1162, %v1940, %v1955
        %v1957 = vsel %vm1164, %v1942, %v1956
        %v1958 = vsel %vm1166, %v1944, %v1957
        %v1959 = vpack.c.b16 %v1958, %v1951
        %1961 = vst [vmem:[#allocation2 + $0x8] sm:$0xff] %v1959
        %v1962 = vlaneseq
        %v1963 = vshrl.u32 %v1962, 7
        %v1964 = vsub.s32 2, %v1963
        %v1965 = vrot.slane %v362, %v1964
        %v1966 = vlaneseq
        %v1967 = vshrl.u32 %v1966, 7
        %v1968 = vsub.s32 2, %v1967
        %v1969 = vrot.slane %v363, %v1968
        %vm1970 = vcmp.eq.s32.totalorder %v371, %v1965
        %vm1971 = vcmp.eq.s32.totalorder %v371, %v1969
        %vm1972 = vcmp.eq.s32.totalorder %v372, %v1965
        %vm1973 = vcmp.eq.s32.totalorder %v372, %v1969
        %vm1974 = vcmp.eq.s32.totalorder %v373, %v1965
        %vm1975 = vcmp.eq.s32.totalorder %v373, %v1969
        %vm1976 = vcmp.eq.s32.totalorder %v374, %v1965
        %vm1977 = vcmp.eq.s32.totalorder %v374, %v1969
        %vm1978 = vcmp.eq.s32.totalorder %v375, %v1965
        %vm1979 = vcmp.eq.s32.totalorder %v375, %v1969
        %vm1980 = vcmp.eq.s32.totalorder %v376, %v1965
        %vm1981 = vcmp.eq.s32.totalorder %v376, %v1969
        %vm1982 = vcmp.eq.s32.totalorder %v377, %v1965
        %vm1983 = vcmp.eq.s32.totalorder %v377, %v1969
        %vm1984 = vcmp.eq.s32.totalorder %v378, %v1965
        %vm1985 = vcmp.eq.s32.totalorder %v378, %v1969
        %vm1986 = vcmp.eq.s32.totalorder %v379, %v1965
        %vm1987 = vcmp.eq.s32.totalorder %v379, %v1969
        %vm1988 = vcmp.eq.s32.totalorder %v380, %v1965
        %vm1989 = vcmp.eq.s32.totalorder %v380, %v1969
        %vm1990 = vcmp.eq.s32.totalorder %v381, %v1965
        %vm1991 = vcmp.eq.s32.totalorder %v381, %v1969
        %vm1992 = vcmp.eq.s32.totalorder %v382, %v1965
        %vm1993 = vcmp.eq.s32.totalorder %v382, %v1969
        %vm1994 = vcmp.eq.s32.totalorder %v383, %v1965
        %vm1995 = vcmp.eq.s32.totalorder %v383, %v1969
        %vm1996 = vcmp.eq.s32.totalorder %v384, %v1965
        %vm1997 = vcmp.eq.s32.totalorder %v384, %v1969
        %vm1998 = vcmp.eq.s32.totalorder %v385, %v1965
        %vm1999 = vcmp.eq.s32.totalorder %v385, %v1969
        %vm2000 = vcmp.eq.s32.totalorder %v386, %v1965
        %vm2001 = vcmp.eq.s32.totalorder %v386, %v1969
        %v2002 = vlaneseq
        %v2003 = vshrl.u32 %v2002, 7
        %v2004 = vsub.s32 2, %v2003
        %v2005 = vrot.slane %v342, %v2004
        %v2006 = vlaneseq
        %v2007 = vshrl.u32 %v2006, 7
        %v2008 = vsub.s32 2, %v2007
        %v2009 = vrot.slane %v343, %v2008
        %v2010 = vsel %vm1970, %v2005, 0.0
        %v2011 = vsel %vm1971, %v2009, 0.0
        %v2012 = vsel %vm1972, %v2005, 0.0
        %v2013 = vsel %vm1973, %v2009, 0.0
        %v2014 = vsel %vm1974, %v2005, 0.0
        %v2015 = vsel %vm1975, %v2009, 0.0
        %v2016 = vsel %vm1976, %v2005, 0.0
        %v2017 = vsel %vm1977, %v2009, 0.0
        %v2018 = vsel %vm1978, %v2005, 0.0
        %v2019 = vsel %vm1979, %v2009, 0.0
        %v2020 = vsel %vm1980, %v2005, 0.0
        %v2021 = vsel %vm1981, %v2009, 0.0
        %v2022 = vsel %vm1982, %v2005, 0.0
        %v2023 = vsel %vm1983, %v2009, 0.0
        %v2024 = vsel %vm1984, %v2005, 0.0
        %v2025 = vsel %vm1985, %v2009, 0.0
        %v2026 = vsel %vm1986, %v2005, 0.0
        %v2027 = vsel %vm1987, %v2009, 0.0
        %v2028 = vsel %vm1988, %v2005, 0.0
        %v2029 = vsel %vm1989, %v2009, 0.0
        %v2030 = vsel %vm1990, %v2005, 0.0
        %v2031 = vsel %vm1991, %v2009, 0.0
        %v2032 = vsel %vm1992, %v2005, 0.0
        %v2033 = vsel %vm1993, %v2009, 0.0
        %v2034 = vsel %vm1994, %v2005, 0.0
        %v2035 = vsel %vm1995, %v2009, 0.0
        %v2036 = vsel %vm1996, %v2005, 0.0
        %v2037 = vsel %vm1997, %v2009, 0.0
        %v2038 = vsel %vm1998, %v2005, 0.0
        %v2039 = vsel %vm1999, %v2009, 0.0
        %v2040 = vsel %vm2000, %v2005, 0.0
        %v2041 = vsel %vm2001, %v2009, 0.0
        %v2042 = vlaneseq
        %v2043 = vshrl.u32 %v2042, 7
        %v2044 = vsub.s32 2, %v2043
        %v2045 = vrot.slane %v366, %v2044
        %v2046 = vlaneseq
        %v2047 = vshrl.u32 %v2046, 7
        %v2048 = vsub.s32 2, %v2047
        %v2049 = vrot.slane %v367, %v2048
        %vm2050 = vcmp.eq.s32.totalorder %v371, %v2045
        %vm2051 = vcmp.eq.s32.totalorder %v371, %v2049
        %vm2052 = vcmp.eq.s32.totalorder %v372, %v2045
        %vm2053 = vcmp.eq.s32.totalorder %v372, %v2049
        %vm2054 = vcmp.eq.s32.totalorder %v373, %v2045
        %vm2055 = vcmp.eq.s32.totalorder %v373, %v2049
        %vm2056 = vcmp.eq.s32.totalorder %v374, %v2045
        %vm2057 = vcmp.eq.s32.totalorder %v374, %v2049
        %vm2058 = vcmp.eq.s32.totalorder %v375, %v2045
        %vm2059 = vcmp.eq.s32.totalorder %v375, %v2049
        %vm2060 = vcmp.eq.s32.totalorder %v376, %v2045
        %vm2061 = vcmp.eq.s32.totalorder %v376, %v2049
        %vm2062 = vcmp.eq.s32.totalorder %v377, %v2045
        %vm2063 = vcmp.eq.s32.totalorder %v377, %v2049
        %vm2064 = vcmp.eq.s32.totalorder %v378, %v2045
        %vm2065 = vcmp.eq.s32.totalorder %v378, %v2049
        %vm2066 = vcmp.eq.s32.totalorder %v379, %v2045
        %vm2067 = vcmp.eq.s32.totalorder %v379, %v2049
        %vm2068 = vcmp.eq.s32.totalorder %v380, %v2045
        %vm2069 = vcmp.eq.s32.totalorder %v380, %v2049
        %vm2070 = vcmp.eq.s32.totalorder %v381, %v2045
        %vm2071 = vcmp.eq.s32.totalorder %v381, %v2049
        %vm2072 = vcmp.eq.s32.totalorder %v382, %v2045
        %vm2073 = vcmp.eq.s32.totalorder %v382, %v2049
        %vm2074 = vcmp.eq.s32.totalorder %v383, %v2045
        %vm2075 = vcmp.eq.s32.totalorder %v383, %v2049
        %vm2076 = vcmp.eq.s32.totalorder %v384, %v2045
        %vm2077 = vcmp.eq.s32.totalorder %v384, %v2049
        %vm2078 = vcmp.eq.s32.totalorder %v385, %v2045
        %vm2079 = vcmp.eq.s32.totalorder %v385, %v2049
        %vm2080 = vcmp.eq.s32.totalorder %v386, %v2045
        %vm2081 = vcmp.eq.s32.totalorder %v386, %v2049
        %v2082 = vlaneseq
        %v2083 = vshrl.u32 %v2082, 7
        %v2084 = vsub.s32 2, %v2083
        %v2085 = vrot.slane %v350, %v2084
        %v2086 = vlaneseq
        %v2087 = vshrl.u32 %v2086, 7
        %v2088 = vsub.s32 2, %v2087
        %v2089 = vrot.slane %v351, %v2088
        %v2090 = vsel %vm2050, %v2085, 0.0
        %v2091 = vsel %vm2051, %v2089, 0.0
        %v2092 = vsel %vm2052, %v2085, 0.0
        %v2093 = vsel %vm2053, %v2089, 0.0
        %v2094 = vsel %vm2054, %v2085, 0.0
        %v2095 = vsel %vm2055, %v2089, 0.0
        %v2096 = vsel %vm2056, %v2085, 0.0
        %v2097 = vsel %vm2057, %v2089, 0.0
        %v2098 = vsel %vm2058, %v2085, 0.0
        %v2099 = vsel %vm2059, %v2089, 0.0
        %v2100 = vsel %vm2060, %v2085, 0.0
        %v2101 = vsel %vm2061, %v2089, 0.0
        %v2102 = vsel %vm2062, %v2085, 0.0
        %v2103 = vsel %vm2063, %v2089, 0.0
        %v2104 = vsel %vm2064, %v2085, 0.0
        %v2105 = vsel %vm2065, %v2089, 0.0
        %v2106 = vsel %vm2066, %v2085, 0.0
        %v2107 = vsel %vm2067, %v2089, 0.0
        %v2108 = vsel %vm2068, %v2085, 0.0
        %v2109 = vsel %vm2069, %v2089, 0.0
        %v2110 = vsel %vm2070, %v2085, 0.0
        %v2111 = vsel %vm2071, %v2089, 0.0
        %v2112 = vsel %vm2072, %v2085, 0.0
        %v2113 = vsel %vm2073, %v2089, 0.0
        %v2114 = vsel %vm2074, %v2085, 0.0
        %v2115 = vsel %vm2075, %v2089, 0.0
        %v2116 = vsel %vm2076, %v2085, 0.0
        %v2117 = vsel %vm2077, %v2089, 0.0
        %v2118 = vsel %vm2078, %v2085, 0.0
        %v2119 = vsel %vm2079, %v2089, 0.0
        %v2120 = vsel %vm2080, %v2085, 0.0
        %v2121 = vsel %vm2081, %v2089, 0.0
        %v2122 = vadd.f32 %v2010, %v2090
        %v2123 = vadd.f32 %v2011, %v2091
        %v2124 = vadd.f32 %v2012, %v2092
        %v2125 = vadd.f32 %v2013, %v2093
        %v2126 = vadd.f32 %v2014, %v2094
        %v2127 = vadd.f32 %v2015, %v2095
        %v2128 = vadd.f32 %v2016, %v2096
        %v2129 = vadd.f32 %v2017, %v2097
        %v2130 = vadd.f32 %v2018, %v2098
        %v2131 = vadd.f32 %v2019, %v2099
        %v2132 = vadd.f32 %v2020, %v2100
        %v2133 = vadd.f32 %v2021, %v2101
        %v2134 = vadd.f32 %v2022, %v2102
        %v2135 = vadd.f32 %v2023, %v2103
        %v2136 = vadd.f32 %v2024, %v2104
        %v2137 = vadd.f32 %v2025, %v2105
        %v2138 = vadd.f32 %v2026, %v2106
        %v2139 = vadd.f32 %v2027, %v2107
        %v2140 = vadd.f32 %v2028, %v2108
        %v2141 = vadd.f32 %v2029, %v2109
        %v2142 = vadd.f32 %v2030, %v2110
        %v2143 = vadd.f32 %v2031, %v2111
        %v2144 = vadd.f32 %v2032, %v2112
        %v2145 = vadd.f32 %v2033, %v2113
        %v2146 = vadd.f32 %v2034, %v2114
        %v2147 = vadd.f32 %v2035, %v2115
        %v2148 = vadd.f32 %v2036, %v2116
        %v2149 = vadd.f32 %v2037, %v2117
        %v2150 = vadd.f32 %v2038, %v2118
        %v2151 = vadd.f32 %v2039, %v2119
        %v2152 = vadd.f32 %v2040, %v2120
        %v2153 = vadd.f32 %v2041, %v2121
        %v2154 = vpack.c.bf16 %v2124, %v2122
        %v2155 = vpack.c.bf16 %v2125, %v2123
        %v2156 = vpack.c.bf16 %v2128, %v2126
        %v2157 = vpack.c.bf16 %v2129, %v2127
        %v2158 = vpack.c.bf16 %v2132, %v2130
        %v2159 = vpack.c.bf16 %v2133, %v2131
        %v2160 = vpack.c.bf16 %v2136, %v2134
        %v2161 = vpack.c.bf16 %v2137, %v2135
        %v2162 = vpack.c.bf16 %v2140, %v2138
        %v2163 = vpack.c.bf16 %v2141, %v2139
        %v2164 = vpack.c.bf16 %v2144, %v2142
        %v2165 = vpack.c.bf16 %v2145, %v2143
        %v2166 = vpack.c.bf16 %v2148, %v2146
        %v2167 = vpack.c.bf16 %v2149, %v2147
        %v2168 = vpack.c.bf16 %v2152, %v2150
        %v2169 = vpack.c.bf16 %v2153, %v2151
        %v2170 = vlaneseq
        %v2171 = vshrl.u32 %v2170, 7
        %v2172 = vsub.s32 2, %v2171
        %v2173 = vrot.slane %v354, %v2172
        %v2174 = vlaneseq
        %v2175 = vshrl.u32 %v2174, 7
        %v2176 = vsub.s32 2, %v2175
        %v2177 = vrot.slane %v355, %v2176
        %vm2178 = vcmp.eq.s32.totalorder %v371, %v2173
        %vm2179 = vcmp.eq.s32.totalorder %v371, %v2177
        %vm2180 = vcmp.eq.s32.totalorder %v372, %v2173
        %vm2181 = vcmp.eq.s32.totalorder %v372, %v2177
        %vm2182 = vcmp.eq.s32.totalorder %v373, %v2173
        %vm2183 = vcmp.eq.s32.totalorder %v373, %v2177
        %v2184 = vlaneseq
        %v2185 = vshrl.u32 %v2184, 7
        %v2186 = vsub.s32 2, %v2185
        %v2187 = vrot.slane %v326, %v2186
        %v2188 = vlaneseq
        %v2189 = vshrl.u32 %v2188, 7
        %v2190 = vsub.s32 2, %v2189
        %v2191 = vrot.slane %v327, %v2190
        %v2192 = vsel %vm2178, %v2187, 0.0
        %v2193 = vsel %vm2179, %v2191, 0.0
        %v2194 = vsel %vm2180, %v2187, 0.0
        %v2195 = vsel %vm2181, %v2191, 0.0
        %v2196 = vsel %vm2182, %v2187, 0.0
        %v2197 = vsel %vm2183, %v2191, 0.0
        %v2198 = vlaneseq
        %v2199 = vshrl.u32 %v2198, 7
        %v2200 = vsub.s32 2, %v2199
        %v2201 = vrot.slane %v358, %v2200
        %v2202 = vlaneseq
        %v2203 = vshrl.u32 %v2202, 7
        %v2204 = vsub.s32 2, %v2203
        %v2205 = vrot.slane %v359, %v2204
        %vm2206 = vcmp.eq.s32.totalorder %v371, %v2201
        %vm2207 = vcmp.eq.s32.totalorder %v371, %v2205
        %vm2208 = vcmp.eq.s32.totalorder %v372, %v2201
        %vm2209 = vcmp.eq.s32.totalorder %v372, %v2205
        %vm2210 = vcmp.eq.s32.totalorder %v373, %v2201
        %vm2211 = vcmp.eq.s32.totalorder %v373, %v2205
        %v2212 = vlaneseq
        %v2213 = vshrl.u32 %v2212, 7
        %v2214 = vsub.s32 2, %v2213
        %v2215 = vrot.slane %v334, %v2214
        %v2216 = vlaneseq
        %v2217 = vshrl.u32 %v2216, 7
        %v2218 = vsub.s32 2, %v2217
        %v2219 = vrot.slane %v335, %v2218
        %v2220 = vsel %vm2206, %v2215, 0.0
        %v2221 = vsel %vm2207, %v2219, 0.0
        %v2222 = vsel %vm2208, %v2215, 0.0
        %v2223 = vsel %vm2209, %v2219, 0.0
        %v2224 = vsel %vm2210, %v2215, 0.0
        %v2225 = vsel %vm2211, %v2219, 0.0
        %v2226 = vadd.f32 %v2192, %v2220
        %v2227 = vadd.f32 %v2193, %v2221
        %v2228 = vadd.f32 %v2194, %v2222
        %v2229 = vadd.f32 %v2195, %v2223
        %v2230 = vadd.f32 %v2196, %v2224
        %v2231 = vadd.f32 %v2197, %v2225
        %v2232 = vld [vmem:[%s210] sm:$0xf]
        %v2233 = vld [vmem:[%s210 + $0x4] sm:$0xf]
        %v2234 = vld [vmem:[%s210 + $0x8] sm:$0xf]
        %v2235 = vld [vmem:[%s210 + $0xc] sm:$0xf]
        %v2236 = vld [vmem:[%s210 + $0x10] sm:$0xf]
        %v2237 = vld [vmem:[%s210 + $0x14] sm:$0xf]
        %v2238 = vld [vmem:[%s210 + $0x18] sm:$0xf]
        %v2239 = vld [vmem:[%s210 + $0x1c] sm:$0xf]
        %v2240 = vld [vmem:[%s210 + $0x20] sm:$0xf]
        %v2241 = vld [vmem:[%s210 + $0x24] sm:$0xf]
        %v2242 = vld [vmem:[%s210 + $0x28] sm:$0xf]
        %v2243 = vld [vmem:[%s210 + $0x2c] sm:$0xf]
        %v2244 = vld [vmem:[%s210 + $0x30] sm:$0xf]
        %v2245 = vld [vmem:[%s210 + $0x34] sm:$0xf]
        %v2246 = vld [vmem:[%s210 + $0x38] sm:$0xf]
        %v2247 = vld [vmem:[%s210 + $0x3c] sm:$0xf]
        %v2248 = vld [vmem:[%s210 + $0x40] sm:$0xf]
        %v2249 = vld [vmem:[%s210 + $0x44] sm:$0xf]
        %v2250 = vld [vmem:[%s210 + $0x48] sm:$0xf]
        %v2251 = vld [vmem:[%s210 + $0x4c] sm:$0xf]
        %v2252 = vld [vmem:[%s210 + $0x50] sm:$0xf]
        %v2253 = vld [vmem:[%s210 + $0x54] sm:$0xf]
        %v2254 = vld [vmem:[%s210 + $0x58] sm:$0xf]
        %v2255 = vld [vmem:[%s210 + $0x5c] sm:$0xf]
        %v2280 = vunpack.c.l.b16 %v2232
        %v2281 = vunpack.c.l.b16 %v2233
        %v2282 = vunpack.c.l.b16 %v2234
        %v2283 = vunpack.c.l.b16 %v2235
        %v2284 = vunpack.c.l.b16 %v2236
        %v2285 = vunpack.c.l.b16 %v2237
        %v2286 = vunpack.c.l.b16 %v2238
        %v2287 = vunpack.c.l.b16 %v2239
        %v2288 = vunpack.c.l.b16 %v2240
        %v2289 = vunpack.c.l.b16 %v2241
        %v2290 = vunpack.c.l.b16 %v2242
        %v2291 = vunpack.c.l.b16 %v2243
        %v2292 = vunpack.c.l.b16 %v2244
        %v2293 = vunpack.c.l.b16 %v2245
        %v2294 = vunpack.c.l.b16 %v2246
        %v2295 = vunpack.c.l.b16 %v2247
        %v2296 = vunpack.c.l.b16 %v2248
        %v2297 = vunpack.c.l.b16 %v2249
        %v2298 = vunpack.c.l.b16 %v2250
        %v2299 = vunpack.c.l.b16 %v2251
        %v2300 = vunpack.c.l.b16 %v2252
        %v2301 = vunpack.c.l.b16 %v2253
        %v2302 = vunpack.c.l.b16 %v2254
        %v2303 = vunpack.c.l.b16 %v2255
        %v2304 = vpack.c.b16 %v2281, %v2280
        %v2305 = vpack.c.b16 %v2283, %v2282
        %v2306 = vpack.c.b16 %v2285, %v2284
        %v2307 = vpack.c.b16 %v2287, %v2286
        %v2308 = vpack.c.b16 %v2289, %v2288
        %v2309 = vpack.c.b16 %v2291, %v2290
        %v2310 = vpack.c.b16 %v2293, %v2292
        %v2311 = vpack.c.b16 %v2295, %v2294
        %v2312 = vpack.c.b16 %v2297, %v2296
        %v2313 = vpack.c.b16 %v2299, %v2298
        %v2314 = vpack.c.b16 %v2301, %v2300
        %v2315 = vpack.c.b16 %v2303, %v2302
        %2328 = vmatprep.subr.bf16.mxu0 %v2155
        %2329 = vmatpush1.bf16.msra.mxu0 %v2154
        %2330 = vmatprep.subr.bf16.mxu0 %v2157
        %2331 = vmatpush1.bf16.msra.mxu0 %v2156
        %2332 = vmatprep.subr.bf16.mxu0 %v2159
        %2333 = vmatpush1.bf16.msra.mxu0 %v2158
        %2334 = vmatprep.subr.bf16.mxu0 %v2161
        %2335 = vmatpush1.bf16.msra.mxu0 %v2160
        %2336 = vmatprep.subr.bf16.mxu0 %v2163
        %2337 = vmatpush1.bf16.msra.mxu0 %v2162
        %2338 = vmatprep.subr.bf16.mxu0 %v2165
        %2339 = vmatpush1.bf16.msra.mxu0 %v2164
        %2340 = vmatprep.subr.bf16.mxu0 %v2167
        %2341 = vmatpush1.bf16.msra.mxu0 %v2166
        %2342 = vmatprep.subr.bf16.mxu0 %v2169
        %2343 = vmatpush1.bf16.msra.mxu0 %v2168
        %2344 = vmatprep.subr.bf16.mxu0 0
        %2345 = vmatpush1.bf16.msra.mxu0 0
        %2346 = vmatprep.subr.bf16.mxu0 0
        %2347 = vmatpush1.bf16.msra.mxu0 0
        %2348 = vmatprep.subr.bf16.mxu0 0
        %2349 = vmatpush1.bf16.msra.mxu0 0
        %2350 = vmatprep.subr.bf16.mxu0 0
        %2351 = vmatpush1.bf16.msra.mxu0 0
        %2352 = vmatprep.subr.bf16.mxu0 0
        %2353 = vmatpush1.bf16.msra.mxu0 0
        %2354 = vmatprep.subr.bf16.mxu0 0
        %2355 = vmatpush1.bf16.msra.mxu0 0
        %2356 = vmatprep.subr.bf16.mxu0 0
        %2357 = vmatpush1.bf16.msra.mxu0 0
        %2358 = vmatprep.subr.bf16.mxu0 0
        %2359 = vmatpush1.bf16.msra.mxu0 0
        %2360 = vmatprep.mubr.bf16.mxu0 0
        %2361 = vmatmul.mubr.bf16.gmra.mrb[0].mxu0 %v2304
        %v2362 = vpop.f32.mrb[0].mxu0
        %v2363 = vadd.f32 0.0, %v2362
        %v2364 = vpop.f32.mrb[0].mxu0
        %v2365 = vadd.f32 0.0, %v2364
        %v2366 = vpop.f32.mrb[0].mxu0
        %v2367 = vadd.f32 0.0, %v2366
        %v2368 = vpop.f32.mrb[0].mxu0
        %v2369 = vadd.f32 0.0, %v2368
        %2370 = vmatprep.mubr.bf16.mxu0 0
        %2371 = vmatmul.mubr.bf16.gmra.mrb[0].mxu0 %v2305
        %v2372 = vpop.f32.mrb[0].mxu0
        %v2373 = vadd.f32 0.0, %v2372
        %v2374 = vpop.f32.mrb[0].mxu0
        %v2375 = vadd.f32 0.0, %v2374
        %v2376 = vpop.f32.mrb[0].mxu0
        %v2377 = vadd.f32 0.0, %v2376
        %v2378 = vpop.f32.mrb[0].mxu0
        %v2379 = vadd.f32 0.0, %v2378
        %2380 = vmatprep.mubr.bf16.mxu0 0
        %2381 = vmatmul.mubr.bf16.gmra.mrb[0].mxu0 %v2306
        %v2382 = vpop.f32.mrb[0].mxu0
        %v2383 = vadd.f32 0.0, %v2382
        %v2384 = vpop.f32.mrb[0].mxu0
        %v2385 = vadd.f32 0.0, %v2384
        %v2386 = vpop.f32.mrb[0].mxu0
        %v2387 = vadd.f32 0.0, %v2386
        %v2388 = vpop.f32.mrb[0].mxu0
        %v2389 = vadd.f32 0.0, %v2388
        %2390 = vmatprep.mubr.bf16.mxu0 0
        %2391 = vmatmul.mubr.bf16.gmra.mrb[0].mxu0 %v2307
        %v2392 = vpop.f32.mrb[0].mxu0
        %v2393 = vadd.f32 0.0, %v2392
        %v2394 = vpop.f32.mrb[0].mxu0
        %v2395 = vadd.f32 0.0, %v2394
        %v2396 = vpop.f32.mrb[0].mxu0
        %v2397 = vadd.f32 0.0, %v2396
        %v2398 = vpop.f32.mrb[0].mxu0
        %v2399 = vadd.f32 0.0, %v2398
        %2400 = vmatprep.mubr.bf16.mxu0 0
        %2401 = vmatmul.mubr.bf16.gmra.mrb[0].mxu0 %v2308
        %v2402 = vpop.f32.mrb[0].mxu0
        %v2403 = vadd.f32 0.0, %v2402
        %v2404 = vpop.f32.mrb[0].mxu0
        %v2405 = vadd.f32 0.0, %v2404
        %v2406 = vpop.f32.mrb[0].mxu0
        %v2407 = vadd.f32 0.0, %v2406
        %v2408 = vpop.f32.mrb[0].mxu0
        %v2409 = vadd.f32 0.0, %v2408
        %2410 = vmatprep.mubr.bf16.mxu0 0
        %2411 = vmatmul.mubr.bf16.gmra.mrb[0].mxu0 %v2309
        %v2412 = vpop.f32.mrb[0].mxu0
        %v2413 = vadd.f32 0.0, %v2412
        %v2414 = vpop.f32.mrb[0].mxu0
        %v2415 = vadd.f32 0.0, %v2414
        %v2416 = vpop.f32.mrb[0].mxu0
        %v2417 = vadd.f32 0.0, %v2416
        %v2418 = vpop.f32.mrb[0].mxu0
        %v2419 = vadd.f32 0.0, %v2418
        %2420 = vmatprep.mubr.bf16.mxu0 0
        %2421 = vmatmul.mubr.bf16.gmra.mrb[0].mxu0 %v2310
        %v2422 = vpop.f32.mrb[0].mxu0
        %v2423 = vadd.f32 0.0, %v2422
        %v2424 = vpop.f32.mrb[0].mxu0
        %v2425 = vadd.f32 0.0, %v2424
        %v2426 = vpop.f32.mrb[0].mxu0
        %v2427 = vadd.f32 0.0, %v2426
        %v2428 = vpop.f32.mrb[0].mxu0
        %v2429 = vadd.f32 0.0, %v2428
        %2430 = vmatprep.mubr.bf16.mxu0 0
        %2431 = vmatmul.mubr.bf16.gmra.mrb[0].mxu0 %v2311
        %v2432 = vpop.f32.mrb[0].mxu0
        %v2433 = vadd.f32 0.0, %v2432
        %v2434 = vpop.f32.mrb[0].mxu0
        %v2435 = vadd.f32 0.0, %v2434
        %v2436 = vpop.f32.mrb[0].mxu0
        %v2437 = vadd.f32 0.0, %v2436
        %v2438 = vpop.f32.mrb[0].mxu0
        %v2439 = vadd.f32 0.0, %v2438
        %2440 = vmatprep.mubr.bf16.mxu0 0
        %2441 = vmatmul.mubr.bf16.gmra.mrb[0].mxu0 %v2312
        %v2442 = vpop.f32.mrb[0].mxu0
        %v2443 = vadd.f32 0.0, %v2442
        %v2444 = vpop.f32.mrb[0].mxu0
        %v2445 = vadd.f32 0.0, %v2444
        %v2446 = vpop.f32.mrb[0].mxu0
        %v2447 = vadd.f32 0.0, %v2446
        %v2448 = vpop.f32.mrb[0].mxu0
        %v2449 = vadd.f32 0.0, %v2448
        %2450 = vmatprep.mubr.bf16.mxu0 0
        %2451 = vmatmul.mubr.bf16.gmra.mrb[0].mxu0 %v2313
        %v2452 = vpop.f32.mrb[0].mxu0
        %v2453 = vadd.f32 0.0, %v2452
        %v2454 = vpop.f32.mrb[0].mxu0
        %v2455 = vadd.f32 0.0, %v2454
        %v2456 = vpop.f32.mrb[0].mxu0
        %v2457 = vadd.f32 0.0, %v2456
        %v2458 = vpop.f32.mrb[0].mxu0
        %v2459 = vadd.f32 0.0, %v2458
        %2460 = vmatprep.mubr.bf16.mxu0 0
        %2461 = vmatmul.mubr.bf16.gmra.mrb[0].mxu0 %v2314
        %v2462 = vpop.f32.mrb[0].mxu0
        %v2463 = vadd.f32 0.0, %v2462
        %v2464 = vpop.f32.mrb[0].mxu0
        %v2465 = vadd.f32 0.0, %v2464
        %v2466 = vpop.f32.mrb[0].mxu0
        %v2467 = vadd.f32 0.0, %v2466
        %v2468 = vpop.f32.mrb[0].mxu0
        %v2469 = vadd.f32 0.0, %v2468
        %2470 = vmatprep.mubr.bf16.mxu0 0
        %2471 = vmatmul.mubr.bf16.gmra.mrb[0].mxu0 %v2315
        %v2472 = vpop.f32.mrb[0].mxu0
        %v2473 = vadd.f32 0.0, %v2472
        %v2474 = vpop.f32.mrb[0].mxu0
        %v2475 = vadd.f32 0.0, %v2474
        %v2476 = vpop.f32.mrb[0].mxu0
        %v2477 = vadd.f32 0.0, %v2476
        %v2478 = vpop.f32.mrb[0].mxu0
        %v2479 = vadd.f32 0.0, %v2478
        %2480 = vdwg.mxu0
        %v2481 = vmul.f32 %v2363, %v2226
        %v2482 = vmul.f32 %v2365, %v2227
        %v2483 = vmul.f32 %v2367, %v2228
        %v2484 = vmul.f32 %v2369, %v2229
        %v2485 = vmul.f32 %v2373, %v2230
        %v2486 = vmul.f32 %v2375, %v2231
        %v2487 = vmul.f32 %v2377, %v2226
        %v2488 = vmul.f32 %v2379, %v2227
        %v2489 = vmul.f32 %v2383, %v2228
        %v2490 = vmul.f32 %v2385, %v2229
        %v2491 = vmul.f32 %v2387, %v2230
        %v2492 = vmul.f32 %v2389, %v2231
        %v2493 = vmul.f32 %v2393, %v2226
        %v2494 = vmul.f32 %v2395, %v2227
        %v2495 = vmul.f32 %v2397, %v2228
        %v2496 = vmul.f32 %v2399, %v2229
        %v2497 = vmul.f32 %v2403, %v2230
        %v2498 = vmul.f32 %v2405, %v2231
        %v2499 = vmul.f32 %v2407, %v2226
        %v2500 = vmul.f32 %v2409, %v2227
        %v2501 = vmul.f32 %v2413, %v2228
        %v2502 = vmul.f32 %v2415, %v2229
        %v2503 = vmul.f32 %v2417, %v2230
        %v2504 = vmul.f32 %v2419, %v2231
        %v2505 = vmul.f32 %v2423, %v2226
        %v2506 = vmul.f32 %v2425, %v2227
        %v2507 = vmul.f32 %v2427, %v2228
        %v2508 = vmul.f32 %v2429, %v2229
        %v2509 = vmul.f32 %v2433, %v2230
        %v2510 = vmul.f32 %v2435, %v2231
        %v2511 = vmul.f32 %v2437, %v2226
        %v2512 = vmul.f32 %v2439, %v2227
        %v2513 = vmul.f32 %v2443, %v2228
        %v2514 = vmul.f32 %v2445, %v2229
        %v2515 = vmul.f32 %v2447, %v2230
        %v2516 = vmul.f32 %v2449, %v2231
        %v2517 = vmul.f32 %v2453, %v2226
        %v2518 = vmul.f32 %v2455, %v2227
        %v2519 = vmul.f32 %v2457, %v2228
        %v2520 = vmul.f32 %v2459, %v2229
        %v2521 = vmul.f32 %v2463, %v2230
        %v2522 = vmul.f32 %v2465, %v2231
        %v2523 = vmul.f32 %v2467, %v2226
        %v2524 = vmul.f32 %v2469, %v2227
        %v2525 = vmul.f32 %v2473, %v2228
        %v2526 = vmul.f32 %v2475, %v2229
        %v2527 = vmul.f32 %v2477, %v2230
        %v2528 = vmul.f32 %v2479, %v2231
        %v2529 = vadd.f32 %v2481, %v2483
        %v2530 = vadd.f32 %v2529, %v2485
        %v2531 = vrot.slane %v2530, 4
        %v2532 = vadd.f32 %v2530, %v2531
        %v2533 = vrot.slane %v2532, 2
        %v2534 = vadd.f32 %v2532, %v2533
        %v2535 = vrot.slane %v2534, 1
        %v2536 = vadd.f32 %v2534, %v2535
        %v2537 = vadd.f32 %v2482, %v2484
        %v2538 = vadd.f32 %v2537, %v2486
        %v2539 = vrot.slane %v2538, 4
        %v2540 = vadd.f32 %v2538, %v2539
        %v2541 = vrot.slane %v2540, 2
        %v2542 = vadd.f32 %v2540, %v2541
        %v2543 = vrot.slane %v2542, 1
        %v2544 = vadd.f32 %v2542, %v2543
        %v2545 = vadd.f32 %v2487, %v2489
        %v2546 = vadd.f32 %v2545, %v2491
        %v2547 = vrot.slane %v2546, 4
        %v2548 = vadd.f32 %v2546, %v2547
        %v2549 = vrot.slane %v2548, 2
        %v2550 = vadd.f32 %v2548, %v2549
        %v2551 = vrot.slane %v2550, 1
        %v2552 = vadd.f32 %v2550, %v2551
        %v2553 = vadd.f32 %v2488, %v2490
        %v2554 = vadd.f32 %v2553, %v2492
        %v2555 = vrot.slane %v2554, 4
        %v2556 = vadd.f32 %v2554, %v2555
        %v2557 = vrot.slane %v2556, 2
        %v2558 = vadd.f32 %v2556, %v2557
        %v2559 = vrot.slane %v2558, 1
        %v2560 = vadd.f32 %v2558, %v2559
        %v2561 = vadd.f32 %v2493, %v2495
        %v2562 = vadd.f32 %v2561, %v2497
        %v2563 = vrot.slane %v2562, 4
        %v2564 = vadd.f32 %v2562, %v2563
        %v2565 = vrot.slane %v2564, 2
        %v2566 = vadd.f32 %v2564, %v2565
        %v2567 = vrot.slane %v2566, 1
        %v2568 = vadd.f32 %v2566, %v2567
        %v2569 = vadd.f32 %v2494, %v2496
        %v2570 = vadd.f32 %v2569, %v2498
        %v2571 = vrot.slane %v2570, 4
        %v2572 = vadd.f32 %v2570, %v2571
        %v2573 = vrot.slane %v2572, 2
        %v2574 = vadd.f32 %v2572, %v2573
        %v2575 = vrot.slane %v2574, 1
        %v2576 = vadd.f32 %v2574, %v2575
        %v2577 = vadd.f32 %v2499, %v2501
        %v2578 = vadd.f32 %v2577, %v2503
        %v2579 = vrot.slane %v2578, 4
        %v2580 = vadd.f32 %v2578, %v2579
        %v2581 = vrot.slane %v2580, 2
        %v2582 = vadd.f32 %v2580, %v2581
        %v2583 = vrot.slane %v2582, 1
        %v2584 = vadd.f32 %v2582, %v2583
        %v2585 = vadd.f32 %v2500, %v2502
        %v2586 = vadd.f32 %v2585, %v2504
        %v2587 = vrot.slane %v2586, 4
        %v2588 = vadd.f32 %v2586, %v2587
        %v2589 = vrot.slane %v2588, 2
        %v2590 = vadd.f32 %v2588, %v2589
        %v2591 = vrot.slane %v2590, 1
        %v2592 = vadd.f32 %v2590, %v2591
        %v2593 = vadd.f32 %v2505, %v2507
        %v2594 = vadd.f32 %v2593, %v2509
        %v2595 = vrot.slane %v2594, 4
        %v2596 = vadd.f32 %v2594, %v2595
        %v2597 = vrot.slane %v2596, 2
        %v2598 = vadd.f32 %v2596, %v2597
        %v2599 = vrot.slane %v2598, 1
        %v2600 = vadd.f32 %v2598, %v2599
        %v2601 = vadd.f32 %v2506, %v2508
        %v2602 = vadd.f32 %v2601, %v2510
        %v2603 = vrot.slane %v2602, 4
        %v2604 = vadd.f32 %v2602, %v2603
        %v2605 = vrot.slane %v2604, 2
        %v2606 = vadd.f32 %v2604, %v2605
        %v2607 = vrot.slane %v2606, 1
        %v2608 = vadd.f32 %v2606, %v2607
        %v2609 = vadd.f32 %v2511, %v2513
        %v2610 = vadd.f32 %v2609, %v2515
        %v2611 = vrot.slane %v2610, 4
        %v2612 = vadd.f32 %v2610, %v2611
        %v2613 = vrot.slane %v2612, 2
        %v2614 = vadd.f32 %v2612, %v2613
        %v2615 = vrot.slane %v2614, 1
        %v2616 = vadd.f32 %v2614, %v2615
        %v2617 = vadd.f32 %v2512, %v2514
        %v2618 = vadd.f32 %v2617, %v2516
        %v2619 = vrot.slane %v2618, 4
        %v2620 = vadd.f32 %v2618, %v2619
        %v2621 = vrot.slane %v2620, 2
        %v2622 = vadd.f32 %v2620, %v2621
        %v2623 = vrot.slane %v2622, 1
        %v2624 = vadd.f32 %v2622, %v2623
        %v2625 = vadd.f32 %v2517, %v2519
        %v2626 = vadd.f32 %v2625, %v2521
        %v2627 = vrot.slane %v2626, 4
        %v2628 = vadd.f32 %v2626, %v2627
        %v2629 = vrot.slane %v2628, 2
        %v2630 = vadd.f32 %v2628, %v2629
        %v2631 = vrot.slane %v2630, 1
        %v2632 = vadd.f32 %v2630, %v2631
        %v2633 = vadd.f32 %v2518, %v2520
        %v2634 = vadd.f32 %v2633, %v2522
        %v2635 = vrot.slane %v2634, 4
        %v2636 = vadd.f32 %v2634, %v2635
        %v2637 = vrot.slane %v2636, 2
        %v2638 = vadd.f32 %v2636, %v2637
        %v2639 = vrot.slane %v2638, 1
        %v2640 = vadd.f32 %v2638, %v2639
        %v2641 = vadd.f32 %v2523, %v2525
        %v2642 = vadd.f32 %v2641, %v2527
        %v2643 = vrot.slane %v2642, 4
        %v2644 = vadd.f32 %v2642, %v2643
        %v2645 = vrot.slane %v2644, 2
        %v2646 = vadd.f32 %v2644, %v2645
        %v2647 = vrot.slane %v2646, 1
        %v2648 = vadd.f32 %v2646, %v2647
        %v2649 = vadd.f32 %v2524, %v2526
        %v2650 = vadd.f32 %v2649, %v2528
        %v2651 = vrot.slane %v2650, 4
        %v2652 = vadd.f32 %v2650, %v2651
        %v2653 = vrot.slane %v2652, 2
        %v2654 = vadd.f32 %v2652, %v2653
        %v2655 = vrot.slane %v2654, 1
        %v2656 = vadd.f32 %v2654, %v2655
        %v2657 = vpack.c.bf16 %v2536, %v2536
        %v2658 = vpack.c.bf16 %v2544, %v2544
        %v2659 = vpack.c.bf16 %v2552, %v2552
        %v2660 = vpack.c.bf16 %v2560, %v2560
        %v2661 = vpack.c.bf16 %v2568, %v2568
        %v2662 = vpack.c.bf16 %v2576, %v2576
        %v2663 = vpack.c.bf16 %v2584, %v2584
        %v2664 = vpack.c.bf16 %v2592, %v2592
        %v2665 = vpack.c.bf16 %v2600, %v2600
        %v2666 = vpack.c.bf16 %v2608, %v2608
        %v2667 = vpack.c.bf16 %v2616, %v2616
        %v2668 = vpack.c.bf16 %v2624, %v2624
        %v2669 = vpack.c.bf16 %v2632, %v2632
        %v2670 = vpack.c.bf16 %v2640, %v2640
        %v2671 = vpack.c.bf16 %v2648, %v2648
        %v2672 = vpack.c.bf16 %v2656, %v2656
        %v2689 = vunpack.c.l.b16 %v2657
        %v2690 = vunpack.c.l.b16 %v2658
        %v2691 = vunpack.c.l.b16 %v2659
        %v2692 = vunpack.c.l.b16 %v2660
        %v2693 = vunpack.c.l.b16 %v2661
        %v2694 = vunpack.c.l.b16 %v2662
        %v2695 = vunpack.c.l.b16 %v2663
        %v2696 = vunpack.c.l.b16 %v2664
        %v2697 = vunpack.c.l.b16 %v2665
        %v2698 = vunpack.c.l.b16 %v2666
        %v2699 = vunpack.c.l.b16 %v2667
        %v2700 = vunpack.c.l.b16 %v2668
        %v2701 = vunpack.c.l.b16 %v2669
        %v2702 = vunpack.c.l.b16 %v2670
        %v2703 = vunpack.c.l.b16 %v2671
        %v2704 = vunpack.c.l.b16 %v2672
        %v2705 = vpack.c.b16 %v2690, %v2689
        %v2706 = vpack.c.b16 %v2692, %v2691
        %v2707 = vpack.c.b16 %v2694, %v2693
        %v2708 = vpack.c.b16 %v2696, %v2695
        %v2709 = vpack.c.b16 %v2698, %v2697
        %v2710 = vpack.c.b16 %v2700, %v2699
        %v2711 = vpack.c.b16 %v2702, %v2701
        %v2712 = vpack.c.b16 %v2704, %v2703
        %v2713 = vunpack.c.l.b16 %v2705
        %v2714 = vunpack.c.h.b16 %v2705
        %v2715 = vunpack.c.l.b16 %v2706
        %v2716 = vunpack.c.h.b16 %v2706
        %v2717 = vunpack.c.l.b16 %v2707
        %v2718 = vunpack.c.h.b16 %v2707
        %v2719 = vunpack.c.l.b16 %v2708
        %v2720 = vunpack.c.h.b16 %v2708
        %v2721 = vunpack.c.l.b16 %v2709
        %v2722 = vunpack.c.h.b16 %v2709
        %v2723 = vunpack.c.l.b16 %v2710
        %v2724 = vunpack.c.h.b16 %v2710
        %v2725 = vunpack.c.l.b16 %v2711
        %v2726 = vunpack.c.h.b16 %v2711
        %v2727 = vunpack.c.l.b16 %v2712
        %v2728 = vunpack.c.h.b16 %v2712
        %v2729 = vsel %vm1154, %v2715, %v2713
        %v2730 = vsel %vm1156, %v2717, %v2729
        %v2731 = vsel %vm1158, %v2719, %v2730
        %v2732 = vsel %vm1160, %v2721, %v2731
        %v2733 = vsel %vm1162, %v2723, %v2732
        %v2734 = vsel %vm1164, %v2725, %v2733
        %v2735 = vsel %vm1166, %v2727, %v2734
        %v2736 = vsel %vm1154, %v2716, %v2714
        %v2737 = vsel %vm1156, %v2718, %v2736
        %v2738 = vsel %vm1158, %v2720, %v2737
        %v2739 = vsel %vm1160, %v2722, %v2738
        %v2740 = vsel %vm1162, %v2724, %v2739
        %v2741 = vsel %vm1164, %v2726, %v2740
        %v2742 = vsel %vm1166, %v2728, %v2741
        %v2743 = vpack.c.b16 %v2742, %v2735
        %2745 = vst [vmem:[#allocation2 + $0x10] sm:$0xff] %v2743
        %v2746 = vlaneseq
        %v2747 = vshrl.u32 %v2746, 7
        %v2748 = vsub.s32 3, %v2747
        %v2749 = vrot.slane %v362, %v2748
        %v2750 = vlaneseq
        %v2751 = vshrl.u32 %v2750, 7
        %v2752 = vsub.s32 3, %v2751
        %v2753 = vrot.slane %v363, %v2752
        %vm2754 = vcmp.eq.s32.totalorder %v371, %v2749
        %vm2755 = vcmp.eq.s32.totalorder %v371, %v2753
        %vm2756 = vcmp.eq.s32.totalorder %v372, %v2749
        %vm2757 = vcmp.eq.s32.totalorder %v372, %v2753
        %vm2758 = vcmp.eq.s32.totalorder %v373, %v2749
        %vm2759 = vcmp.eq.s32.totalorder %v373, %v2753
        %vm2760 = vcmp.eq.s32.totalorder %v374, %v2749
        %vm2761 = vcmp.eq.s32.totalorder %v374, %v2753
        %vm2762 = vcmp.eq.s32.totalorder %v375, %v2749
        %vm2763 = vcmp.eq.s32.totalorder %v375, %v2753
        %vm2764 = vcmp.eq.s32.totalorder %v376, %v2749
        %vm2765 = vcmp.eq.s32.totalorder %v376, %v2753
        %vm2766 = vcmp.eq.s32.totalorder %v377, %v2749
        %vm2767 = vcmp.eq.s32.totalorder %v377, %v2753
        %vm2768 = vcmp.eq.s32.totalorder %v378, %v2749
        %vm2769 = vcmp.eq.s32.totalorder %v378, %v2753
        %vm2770 = vcmp.eq.s32.totalorder %v379, %v2749
        %vm2771 = vcmp.eq.s32.totalorder %v379, %v2753
        %vm2772 = vcmp.eq.s32.totalorder %v380, %v2749
        %vm2773 = vcmp.eq.s32.totalorder %v380, %v2753
        %vm2774 = vcmp.eq.s32.totalorder %v381, %v2749
        %vm2775 = vcmp.eq.s32.totalorder %v381, %v2753
        %vm2776 = vcmp.eq.s32.totalorder %v382, %v2749
        %vm2777 = vcmp.eq.s32.totalorder %v382, %v2753
        %vm2778 = vcmp.eq.s32.totalorder %v383, %v2749
        %vm2779 = vcmp.eq.s32.totalorder %v383, %v2753
        %vm2780 = vcmp.eq.s32.totalorder %v384, %v2749
        %vm2781 = vcmp.eq.s32.totalorder %v384, %v2753
        %vm2782 = vcmp.eq.s32.totalorder %v385, %v2749
        %vm2783 = vcmp.eq.s32.totalorder %v385, %v2753
        %vm2784 = vcmp.eq.s32.totalorder %v386, %v2749
        %vm2785 = vcmp.eq.s32.totalorder %v386, %v2753
        %v2786 = vlaneseq
        %v2787 = vshrl.u32 %v2786, 7
        %v2788 = vsub.s32 3, %v2787
        %v2789 = vrot.slane %v342, %v2788
        %v2790 = vlaneseq
        %v2791 = vshrl.u32 %v2790, 7
        %v2792 = vsub.s32 3, %v2791
        %v2793 = vrot.slane %v343, %v2792
        %v2794 = vsel %vm2754, %v2789, 0.0
        %v2795 = vsel %vm2755, %v2793, 0.0
        %v2796 = vsel %vm2756, %v2789, 0.0
        %v2797 = vsel %vm2757, %v2793, 0.0
        %v2798 = vsel %vm2758, %v2789, 0.0
        %v2799 = vsel %vm2759, %v2793, 0.0
        %v2800 = vsel %vm2760, %v2789, 0.0
        %v2801 = vsel %vm2761, %v2793, 0.0
        %v2802 = vsel %vm2762, %v2789, 0.0
        %v2803 = vsel %vm2763, %v2793, 0.0
        %v2804 = vsel %vm2764, %v2789, 0.0
        %v2805 = vsel %vm2765, %v2793, 0.0
        %v2806 = vsel %vm2766, %v2789, 0.0
        %v2807 = vsel %vm2767, %v2793, 0.0
        %v2808 = vsel %vm2768, %v2789, 0.0
        %v2809 = vsel %vm2769, %v2793, 0.0
        %v2810 = vsel %vm2770, %v2789, 0.0
        %v2811 = vsel %vm2771, %v2793, 0.0
        %v2812 = vsel %vm2772, %v2789, 0.0
        %v2813 = vsel %vm2773, %v2793, 0.0
        %v2814 = vsel %vm2774, %v2789, 0.0
        %v2815 = vsel %vm2775, %v2793, 0.0
        %v2816 = vsel %vm2776, %v2789, 0.0
        %v2817 = vsel %vm2777, %v2793, 0.0
        %v2818 = vsel %vm2778, %v2789, 0.0
        %v2819 = vsel %vm2779, %v2793, 0.0
        %v2820 = vsel %vm2780, %v2789, 0.0
        %v2821 = vsel %vm2781, %v2793, 0.0
        %v2822 = vsel %vm2782, %v2789, 0.0
        %v2823 = vsel %vm2783, %v2793, 0.0
        %v2824 = vsel %vm2784, %v2789, 0.0
        %v2825 = vsel %vm2785, %v2793, 0.0
        %v2826 = vlaneseq
        %v2827 = vshrl.u32 %v2826, 7
        %v2828 = vsub.s32 3, %v2827
        %v2829 = vrot.slane %v366, %v2828
        %v2830 = vlaneseq
        %v2831 = vshrl.u32 %v2830, 7
        %v2832 = vsub.s32 3, %v2831
        %v2833 = vrot.slane %v367, %v2832
        %vm2834 = vcmp.eq.s32.totalorder %v371, %v2829
        %vm2835 = vcmp.eq.s32.totalorder %v371, %v2833
        %vm2836 = vcmp.eq.s32.totalorder %v372, %v2829
        %vm2837 = vcmp.eq.s32.totalorder %v372, %v2833
        %vm2838 = vcmp.eq.s32.totalorder %v373, %v2829
        %vm2839 = vcmp.eq.s32.totalorder %v373, %v2833
        %vm2840 = vcmp.eq.s32.totalorder %v374, %v2829
        %vm2841 = vcmp.eq.s32.totalorder %v374, %v2833
        %vm2842 = vcmp.eq.s32.totalorder %v375, %v2829
        %vm2843 = vcmp.eq.s32.totalorder %v375, %v2833
        %vm2844 = vcmp.eq.s32.totalorder %v376, %v2829
        %vm2845 = vcmp.eq.s32.totalorder %v376, %v2833
        %vm2846 = vcmp.eq.s32.totalorder %v377, %v2829
        %vm2847 = vcmp.eq.s32.totalorder %v377, %v2833
        %vm2848 = vcmp.eq.s32.totalorder %v378, %v2829
        %vm2849 = vcmp.eq.s32.totalorder %v378, %v2833
        %vm2850 = vcmp.eq.s32.totalorder %v379, %v2829
        %vm2851 = vcmp.eq.s32.totalorder %v379, %v2833
        %vm2852 = vcmp.eq.s32.totalorder %v380, %v2829
        %vm2853 = vcmp.eq.s32.totalorder %v380, %v2833
        %vm2854 = vcmp.eq.s32.totalorder %v381, %v2829
        %vm2855 = vcmp.eq.s32.totalorder %v381, %v2833
        %vm2856 = vcmp.eq.s32.totalorder %v382, %v2829
        %vm2857 = vcmp.eq.s32.totalorder %v382, %v2833
        %vm2858 = vcmp.eq.s32.totalorder %v383, %v2829
        %vm2859 = vcmp.eq.s32.totalorder %v383, %v2833
        %vm2860 = vcmp.eq.s32.totalorder %v384, %v2829
        %vm2861 = vcmp.eq.s32.totalorder %v384, %v2833
        %vm2862 = vcmp.eq.s32.totalorder %v385, %v2829
        %vm2863 = vcmp.eq.s32.totalorder %v385, %v2833
        %vm2864 = vcmp.eq.s32.totalorder %v386, %v2829
        %vm2865 = vcmp.eq.s32.totalorder %v386, %v2833
        %v2866 = vlaneseq
        %v2867 = vshrl.u32 %v2866, 7
        %v2868 = vsub.s32 3, %v2867
        %v2869 = vrot.slane %v350, %v2868
        %v2870 = vlaneseq
        %v2871 = vshrl.u32 %v2870, 7
        %v2872 = vsub.s32 3, %v2871
        %v2873 = vrot.slane %v351, %v2872
        %v2874 = vsel %vm2834, %v2869, 0.0
        %v2875 = vsel %vm2835, %v2873, 0.0
        %v2876 = vsel %vm2836, %v2869, 0.0
        %v2877 = vsel %vm2837, %v2873, 0.0
        %v2878 = vsel %vm2838, %v2869, 0.0
        %v2879 = vsel %vm2839, %v2873, 0.0
        %v2880 = vsel %vm2840, %v2869, 0.0
        %v2881 = vsel %vm2841, %v2873, 0.0
        %v2882 = vsel %vm2842, %v2869, 0.0
        %v2883 = vsel %vm2843, %v2873, 0.0
        %v2884 = vsel %vm2844, %v2869, 0.0
        %v2885 = vsel %vm2845, %v2873, 0.0
        %v2886 = vsel %vm2846, %v2869, 0.0
        %v2887 = vsel %vm2847, %v2873, 0.0
        %v2888 = vsel %vm2848, %v2869, 0.0
        %v2889 = vsel %vm2849, %v2873, 0.0
        %v2890 = vsel %vm2850, %v2869, 0.0
        %v2891 = vsel %vm2851, %v2873, 0.0
        %v2892 = vsel %vm2852, %v2869, 0.0
        %v2893 = vsel %vm2853, %v2873, 0.0
        %v2894 = vsel %vm2854, %v2869, 0.0
        %v2895 = vsel %vm2855, %v2873, 0.0
        %v2896 = vsel %vm2856, %v2869, 0.0
        %v2897 = vsel %vm2857, %v2873, 0.0
        %v2898 = vsel %vm2858, %v2869, 0.0
        %v2899 = vsel %vm2859, %v2873, 0.0
        %v2900 = vsel %vm2860, %v2869, 0.0
        %v2901 = vsel %vm2861, %v2873, 0.0
        %v2902 = vsel %vm2862, %v2869, 0.0
        %v2903 = vsel %vm2863, %v2873, 0.0
        %v2904 = vsel %vm2864, %v2869, 0.0
        %v2905 = vsel %vm2865, %v2873, 0.0
        %v2906 = vadd.f32 %v2794, %v2874
        %v2907 = vadd.f32 %v2795, %v2875
        %v2908 = vadd.f32 %v2796, %v2876
        %v2909 = vadd.f32 %v2797, %v2877
        %v2910 = vadd.f32 %v2798, %v2878
        %v2911 = vadd.f32 %v2799, %v2879
        %v2912 = vadd.f32 %v2800, %v2880
        %v2913 = vadd.f32 %v2801, %v2881
        %v2914 = vadd.f32 %v2802, %v2882
        %v2915 = vadd.f32 %v2803, %v2883
        %v2916 = vadd.f32 %v2804, %v2884
        %v2917 = vadd.f32 %v2805, %v2885
        %v2918 = vadd.f32 %v2806, %v2886
        %v2919 = vadd.f32 %v2807, %v2887
        %v2920 = vadd.f32 %v2808, %v2888
        %v2921 = vadd.f32 %v2809, %v2889
        %v2922 = vadd.f32 %v2810, %v2890
        %v2923 = vadd.f32 %v2811, %v2891
        %v2924 = vadd.f32 %v2812, %v2892
        %v2925 = vadd.f32 %v2813, %v2893
        %v2926 = vadd.f32 %v2814, %v2894
        %v2927 = vadd.f32 %v2815, %v2895
        %v2928 = vadd.f32 %v2816, %v2896
        %v2929 = vadd.f32 %v2817, %v2897
        %v2930 = vadd.f32 %v2818, %v2898
        %v2931 = vadd.f32 %v2819, %v2899
        %v2932 = vadd.f32 %v2820, %v2900
        %v2933 = vadd.f32 %v2821, %v2901
        %v2934 = vadd.f32 %v2822, %v2902
        %v2935 = vadd.f32 %v2823, %v2903
        %v2936 = vadd.f32 %v2824, %v2904
        %v2937 = vadd.f32 %v2825, %v2905
        %v2938 = vpack.c.bf16 %v2908, %v2906
        %v2939 = vpack.c.bf16 %v2909, %v2907
        %v2940 = vpack.c.bf16 %v2912, %v2910
        %v2941 = vpack.c.bf16 %v2913, %v2911
        %v2942 = vpack.c.bf16 %v2916, %v2914
        %v2943 = vpack.c.bf16 %v2917, %v2915
        %v2944 = vpack.c.bf16 %v2920, %v2918
        %v2945 = vpack.c.bf16 %v2921, %v2919
        %v2946 = vpack.c.bf16 %v2924, %v2922
        %v2947 = vpack.c.bf16 %v2925, %v2923
        %v2948 = vpack.c.bf16 %v2928, %v2926
        %v2949 = vpack.c.bf16 %v2929, %v2927
        %v2950 = vpack.c.bf16 %v2932, %v2930
        %v2951 = vpack.c.bf16 %v2933, %v2931
        %v2952 = vpack.c.bf16 %v2936, %v2934
        %v2953 = vpack.c.bf16 %v2937, %v2935
        %v2954 = vlaneseq
        %v2955 = vshrl.u32 %v2954, 7
        %v2956 = vsub.s32 3, %v2955
        %v2957 = vrot.slane %v354, %v2956
        %v2958 = vlaneseq
        %v2959 = vshrl.u32 %v2958, 7
        %v2960 = vsub.s32 3, %v2959
        %v2961 = vrot.slane %v355, %v2960
        %vm2962 = vcmp.eq.s32.totalorder %v371, %v2957
        %vm2963 = vcmp.eq.s32.totalorder %v371, %v2961
        %vm2964 = vcmp.eq.s32.totalorder %v372, %v2957
        %vm2965 = vcmp.eq.s32.totalorder %v372, %v2961
        %vm2966 = vcmp.eq.s32.totalorder %v373, %v2957
        %vm2967 = vcmp.eq.s32.totalorder %v373, %v2961
        %v2968 = vlaneseq
        %v2969 = vshrl.u32 %v2968, 7
        %v2970 = vsub.s32 3, %v2969
        %v2971 = vrot.slane %v326, %v2970
        %v2972 = vlaneseq
        %v2973 = vshrl.u32 %v2972, 7
        %v2974 = vsub.s32 3, %v2973
        %v2975 = vrot.slane %v327, %v2974
        %v2976 = vsel %vm2962, %v2971, 0.0
        %v2977 = vsel %vm2963, %v2975, 0.0
        %v2978 = vsel %vm2964, %v2971, 0.0
        %v2979 = vsel %vm2965, %v2975, 0.0
        %v2980 = vsel %vm2966, %v2971, 0.0
        %v2981 = vsel %vm2967, %v2975, 0.0
        %v2982 = vlaneseq
        %v2983 = vshrl.u32 %v2982, 7
        %v2984 = vsub.s32 3, %v2983
        %v2985 = vrot.slane %v358, %v2984
        %v2986 = vlaneseq
        %v2987 = vshrl.u32 %v2986, 7
        %v2988 = vsub.s32 3, %v2987
        %v2989 = vrot.slane %v359, %v2988
        %vm2990 = vcmp.eq.s32.totalorder %v371, %v2985
        %vm2991 = vcmp.eq.s32.totalorder %v371, %v2989
        %vm2992 = vcmp.eq.s32.totalorder %v372, %v2985
        %vm2993 = vcmp.eq.s32.totalorder %v372, %v2989
        %vm2994 = vcmp.eq.s32.totalorder %v373, %v2985
        %vm2995 = vcmp.eq.s32.totalorder %v373, %v2989
        %v2996 = vlaneseq
        %v2997 = vshrl.u32 %v2996, 7
        %v2998 = vsub.s32 3, %v2997
        %v2999 = vrot.slane %v334, %v2998
        %v3000 = vlaneseq
        %v3001 = vshrl.u32 %v3000, 7
        %v3002 = vsub.s32 3, %v3001
        %v3003 = vrot.slane %v335, %v3002
        %v3004 = vsel %vm2990, %v2999, 0.0
        %v3005 = vsel %vm2991, %v3003, 0.0
        %v3006 = vsel %vm2992, %v2999, 0.0
        %v3007 = vsel %vm2993, %v3003, 0.0
        %v3008 = vsel %vm2994, %v2999, 0.0
        %v3009 = vsel %vm2995, %v3003, 0.0
        %v3010 = vadd.f32 %v2976, %v3004
        %v3011 = vadd.f32 %v2977, %v3005
        %v3012 = vadd.f32 %v2978, %v3006
        %v3013 = vadd.f32 %v2979, %v3007
        %v3014 = vadd.f32 %v2980, %v3008
        %v3015 = vadd.f32 %v2981, %v3009
        %v3016 = vld [vmem:[%s210] sm:$0xf]
        %v3017 = vld [vmem:[%s210 + $0x4] sm:$0xf]
        %v3018 = vld [vmem:[%s210 + $0x8] sm:$0xf]
        %v3019 = vld [vmem:[%s210 + $0xc] sm:$0xf]
        %v3020 = vld [vmem:[%s210 + $0x10] sm:$0xf]
        %v3021 = vld [vmem:[%s210 + $0x14] sm:$0xf]
        %v3022 = vld [vmem:[%s210 + $0x18] sm:$0xf]
        %v3023 = vld [vmem:[%s210 + $0x1c] sm:$0xf]
        %v3024 = vld [vmem:[%s210 + $0x20] sm:$0xf]
        %v3025 = vld [vmem:[%s210 + $0x24] sm:$0xf]
        %v3026 = vld [vmem:[%s210 + $0x28] sm:$0xf]
        %v3027 = vld [vmem:[%s210 + $0x2c] sm:$0xf]
        %v3028 = vld [vmem:[%s210 + $0x30] sm:$0xf]
        %v3029 = vld [vmem:[%s210 + $0x34] sm:$0xf]
        %v3030 = vld [vmem:[%s210 + $0x38] sm:$0xf]
        %v3031 = vld [vmem:[%s210 + $0x3c] sm:$0xf]
        %v3032 = vld [vmem:[%s210 + $0x40] sm:$0xf]
        %v3033 = vld [vmem:[%s210 + $0x44] sm:$0xf]
        %v3034 = vld [vmem:[%s210 + $0x48] sm:$0xf]
        %v3035 = vld [vmem:[%s210 + $0x4c] sm:$0xf]
        %v3036 = vld [vmem:[%s210 + $0x50] sm:$0xf]
        %v3037 = vld [vmem:[%s210 + $0x54] sm:$0xf]
        %v3038 = vld [vmem:[%s210 + $0x58] sm:$0xf]
        %v3039 = vld [vmem:[%s210 + $0x5c] sm:$0xf]
        %v3064 = vunpack.c.l.b16 %v3016
        %v3065 = vunpack.c.l.b16 %v3017
        %v3066 = vunpack.c.l.b16 %v3018
        %v3067 = vunpack.c.l.b16 %v3019
        %v3068 = vunpack.c.l.b16 %v3020
        %v3069 = vunpack.c.l.b16 %v3021
        %v3070 = vunpack.c.l.b16 %v3022
        %v3071 = vunpack.c.l.b16 %v3023
        %v3072 = vunpack.c.l.b16 %v3024
        %v3073 = vunpack.c.l.b16 %v3025
        %v3074 = vunpack.c.l.b16 %v3026
        %v3075 = vunpack.c.l.b16 %v3027
        %v3076 = vunpack.c.l.b16 %v3028
        %v3077 = vunpack.c.l.b16 %v3029
        %v3078 = vunpack.c.l.b16 %v3030
        %v3079 = vunpack.c.l.b16 %v3031
        %v3080 = vunpack.c.l.b16 %v3032
        %v3081 = vunpack.c.l.b16 %v3033
        %v3082 = vunpack.c.l.b16 %v3034
        %v3083 = vunpack.c.l.b16 %v3035
        %v3084 = vunpack.c.l.b16 %v3036
        %v3085 = vunpack.c.l.b16 %v3037
        %v3086 = vunpack.c.l.b16 %v3038
        %v3087 = vunpack.c.l.b16 %v3039
        %v3088 = vpack.c.b16 %v3065, %v3064
        %v3089 = vpack.c.b16 %v3067, %v3066
        %v3090 = vpack.c.b16 %v3069, %v3068
        %v3091 = vpack.c.b16 %v3071, %v3070
        %v3092 = vpack.c.b16 %v3073, %v3072
        %v3093 = vpack.c.b16 %v3075, %v3074
        %v3094 = vpack.c.b16 %v3077, %v3076
        %v3095 = vpack.c.b16 %v3079, %v3078
        %v3096 = vpack.c.b16 %v3081, %v3080
        %v3097 = vpack.c.b16 %v3083, %v3082
        %v3098 = vpack.c.b16 %v3085, %v3084
        %v3099 = vpack.c.b16 %v3087, %v3086
        %3112 = vmatprep.subr.bf16.mxu0 %v2939
        %3113 = vmatpush1.bf16.msra.mxu0 %v2938
        %3114 = vmatprep.subr.bf16.mxu0 %v2941
        %3115 = vmatpush1.bf16.msra.mxu0 %v2940
        %3116 = vmatprep.subr.bf16.mxu0 %v2943
        %3117 = vmatpush1.bf16.msra.mxu0 %v2942
        %3118 = vmatprep.subr.bf16.mxu0 %v2945
        %3119 = vmatpush1.bf16.msra.mxu0 %v2944
        %3120 = vmatprep.subr.bf16.mxu0 %v2947
        %3121 = vmatpush1.bf16.msra.mxu0 %v2946
        %3122 = vmatprep.subr.bf16.mxu0 %v2949
        %3123 = vmatpush1.bf16.msra.mxu0 %v2948
        %3124 = vmatprep.subr.bf16.mxu0 %v2951
        %3125 = vmatpush1.bf16.msra.mxu0 %v2950
        %3126 = vmatprep.subr.bf16.mxu0 %v2953
        %3127 = vmatpush1.bf16.msra.mxu0 %v2952
        %3128 = vmatprep.subr.bf16.mxu0 0
        %3129 = vmatpush1.bf16.msra.mxu0 0
        %3130 = vmatprep.subr.bf16.mxu0 0
        %3131 = vmatpush1.bf16.msra.mxu0 0
        %3132 = vmatprep.subr.bf16.mxu0 0
        %3133 = vmatpush1.bf16.msra.mxu0 0
        %3134 = vmatprep.subr.bf16.mxu0 0
        %3135 = vmatpush1.bf16.msra.mxu0 0
        %3136 = vmatprep.subr.bf16.mxu0 0
        %3137 = vmatpush1.bf16.msra.mxu0 0
        %3138 = vmatprep.subr.bf16.mxu0 0
        %3139 = vmatpush1.bf16.msra.mxu0 0
        %3140 = vmatprep.subr.bf16.mxu0 0
        %3141 = vmatpush1.bf16.msra.mxu0 0
        %3142 = vmatprep.subr.bf16.mxu0 0
        %3143 = vmatpush1.bf16.msra.mxu0 0
        %3144 = vmatprep.mubr.bf16.mxu0 0
        %3145 = vmatmul.mubr.bf16.gmra.mrb[0].mxu0 %v3088
        %v3146 = vpop.f32.mrb[0].mxu0
        %v3147 = vadd.f32 0.0, %v3146
        %v3148 = vpop.f32.mrb[0].mxu0
        %v3149 = vadd.f32 0.0, %v3148
        %v3150 = vpop.f32.mrb[0].mxu0
        %v3151 = vadd.f32 0.0, %v3150
        %v3152 = vpop.f32.mrb[0].mxu0
        %v3153 = vadd.f32 0.0, %v3152
        %3154 = vmatprep.mubr.bf16.mxu0 0
        %3155 = vmatmul.mubr.bf16.gmra.mrb[0].mxu0 %v3089
        %v3156 = vpop.f32.mrb[0].mxu0
        %v3157 = vadd.f32 0.0, %v3156
        %v3158 = vpop.f32.mrb[0].mxu0
        %v3159 = vadd.f32 0.0, %v3158
        %v3160 = vpop.f32.mrb[0].mxu0
        %v3161 = vadd.f32 0.0, %v3160
        %v3162 = vpop.f32.mrb[0].mxu0
        %v3163 = vadd.f32 0.0, %v3162
        %3164 = vmatprep.mubr.bf16.mxu0 0
        %3165 = vmatmul.mubr.bf16.gmra.mrb[0].mxu0 %v3090
        %v3166 = vpop.f32.mrb[0].mxu0
        %v3167 = vadd.f32 0.0, %v3166
        %v3168 = vpop.f32.mrb[0].mxu0
        %v3169 = vadd.f32 0.0, %v3168
        %v3170 = vpop.f32.mrb[0].mxu0
        %v3171 = vadd.f32 0.0, %v3170
        %v3172 = vpop.f32.mrb[0].mxu0
        %v3173 = vadd.f32 0.0, %v3172
        %3174 = vmatprep.mubr.bf16.mxu0 0
        %3175 = vmatmul.mubr.bf16.gmra.mrb[0].mxu0 %v3091
        %v3176 = vpop.f32.mrb[0].mxu0
        %v3177 = vadd.f32 0.0, %v3176
        %v3178 = vpop.f32.mrb[0].mxu0
        %v3179 = vadd.f32 0.0, %v3178
        %v3180 = vpop.f32.mrb[0].mxu0
        %v3181 = vadd.f32 0.0, %v3180
        %v3182 = vpop.f32.mrb[0].mxu0
        %v3183 = vadd.f32 0.0, %v3182
        %3184 = vmatprep.mubr.bf16.mxu0 0
        %3185 = vmatmul.mubr.bf16.gmra.mrb[0].mxu0 %v3092
        %v3186 = vpop.f32.mrb[0].mxu0
        %v3187 = vadd.f32 0.0, %v3186
        %v3188 = vpop.f32.mrb[0].mxu0
        %v3189 = vadd.f32 0.0, %v3188
        %v3190 = vpop.f32.mrb[0].mxu0
        %v3191 = vadd.f32 0.0, %v3190
        %v3192 = vpop.f32.mrb[0].mxu0
        %v3193 = vadd.f32 0.0, %v3192
        %3194 = vmatprep.mubr.bf16.mxu0 0
        %3195 = vmatmul.mubr.bf16.gmra.mrb[0].mxu0 %v3093
        %v3196 = vpop.f32.mrb[0].mxu0
        %v3197 = vadd.f32 0.0, %v3196
        %v3198 = vpop.f32.mrb[0].mxu0
        %v3199 = vadd.f32 0.0, %v3198
        %v3200 = vpop.f32.mrb[0].mxu0
        %v3201 = vadd.f32 0.0, %v3200
        %v3202 = vpop.f32.mrb[0].mxu0
        %v3203 = vadd.f32 0.0, %v3202
        %3204 = vmatprep.mubr.bf16.mxu0 0
        %3205 = vmatmul.mubr.bf16.gmra.mrb[0].mxu0 %v3094
        %v3206 = vpop.f32.mrb[0].mxu0
        %v3207 = vadd.f32 0.0, %v3206
        %v3208 = vpop.f32.mrb[0].mxu0
        %v3209 = vadd.f32 0.0, %v3208
        %v3210 = vpop.f32.mrb[0].mxu0
        %v3211 = vadd.f32 0.0, %v3210
        %v3212 = vpop.f32.mrb[0].mxu0
        %v3213 = vadd.f32 0.0, %v3212
        %3214 = vmatprep.mubr.bf16.mxu0 0
        %3215 = vmatmul.mubr.bf16.gmra.mrb[0].mxu0 %v3095
        %v3216 = vpop.f32.mrb[0].mxu0
        %v3217 = vadd.f32 0.0, %v3216
        %v3218 = vpop.f32.mrb[0].mxu0
        %v3219 = vadd.f32 0.0, %v3218
        %v3220 = vpop.f32.mrb[0].mxu0
        %v3221 = vadd.f32 0.0, %v3220
        %v3222 = vpop.f32.mrb[0].mxu0
        %v3223 = vadd.f32 0.0, %v3222
        %3224 = vmatprep.mubr.bf16.mxu0 0
        %3225 = vmatmul.mubr.bf16.gmra.mrb[0].mxu0 %v3096
        %v3226 = vpop.f32.mrb[0].mxu0
        %v3227 = vadd.f32 0.0, %v3226
        %v3228 = vpop.f32.mrb[0].mxu0
        %v3229 = vadd.f32 0.0, %v3228
        %v3230 = vpop.f32.mrb[0].mxu0
        %v3231 = vadd.f32 0.0, %v3230
        %v3232 = vpop.f32.mrb[0].mxu0
        %v3233 = vadd.f32 0.0, %v3232
        %3234 = vmatprep.mubr.bf16.mxu0 0
        %3235 = vmatmul.mubr.bf16.gmra.mrb[0].mxu0 %v3097
        %v3236 = vpop.f32.mrb[0].mxu0
        %v3237 = vadd.f32 0.0, %v3236
        %v3238 = vpop.f32.mrb[0].mxu0
        %v3239 = vadd.f32 0.0, %v3238
        %v3240 = vpop.f32.mrb[0].mxu0
        %v3241 = vadd.f32 0.0, %v3240
        %v3242 = vpop.f32.mrb[0].mxu0
        %v3243 = vadd.f32 0.0, %v3242
        %3244 = vmatprep.mubr.bf16.mxu0 0
        %3245 = vmatmul.mubr.bf16.gmra.mrb[0].mxu0 %v3098
        %v3246 = vpop.f32.mrb[0].mxu0
        %v3247 = vadd.f32 0.0, %v3246
        %v3248 = vpop.f32.mrb[0].mxu0
        %v3249 = vadd.f32 0.0, %v3248
        %v3250 = vpop.f32.mrb[0].mxu0
        %v3251 = vadd.f32 0.0, %v3250
        %v3252 = vpop.f32.mrb[0].mxu0
        %v3253 = vadd.f32 0.0, %v3252
        %3254 = vmatprep.mubr.bf16.mxu0 0
        %3255 = vmatmul.mubr.bf16.gmra.mrb[0].mxu0 %v3099
        %v3256 = vpop.f32.mrb[0].mxu0
        %v3257 = vadd.f32 0.0, %v3256
        %v3258 = vpop.f32.mrb[0].mxu0
        %v3259 = vadd.f32 0.0, %v3258
        %v3260 = vpop.f32.mrb[0].mxu0
        %v3261 = vadd.f32 0.0, %v3260
        %v3262 = vpop.f32.mrb[0].mxu0
        %v3263 = vadd.f32 0.0, %v3262
        %3264 = vdwg.mxu0
        %v3265 = vmul.f32 %v3147, %v3010
        %v3266 = vmul.f32 %v3149, %v3011
        %v3267 = vmul.f32 %v3151, %v3012
        %v3268 = vmul.f32 %v3153, %v3013
        %v3269 = vmul.f32 %v3157, %v3014
        %v3270 = vmul.f32 %v3159, %v3015
        %v3271 = vmul.f32 %v3161, %v3010
        %v3272 = vmul.f32 %v3163, %v3011
        %v3273 = vmul.f32 %v3167, %v3012
        %v3274 = vmul.f32 %v3169, %v3013
        %v3275 = vmul.f32 %v3171, %v3014
        %v3276 = vmul.f32 %v3173, %v3015
        %v3277 = vmul.f32 %v3177, %v3010
        %v3278 = vmul.f32 %v3179, %v3011
        %v3279 = vmul.f32 %v3181, %v3012
        %v3280 = vmul.f32 %v3183, %v3013
        %v3281 = vmul.f32 %v3187, %v3014
        %v3282 = vmul.f32 %v3189, %v3015
        %v3283 = vmul.f32 %v3191, %v3010
        %v3284 = vmul.f32 %v3193, %v3011
        %v3285 = vmul.f32 %v3197, %v3012
        %v3286 = vmul.f32 %v3199, %v3013
        %v3287 = vmul.f32 %v3201, %v3014
        %v3288 = vmul.f32 %v3203, %v3015
        %v3289 = vmul.f32 %v3207, %v3010
        %v3290 = vmul.f32 %v3209, %v3011
        %v3291 = vmul.f32 %v3211, %v3012
        %v3292 = vmul.f32 %v3213, %v3013
        %v3293 = vmul.f32 %v3217, %v3014
        %v3294 = vmul.f32 %v3219, %v3015
        %v3295 = vmul.f32 %v3221, %v3010
        %v3296 = vmul.f32 %v3223, %v3011
        %v3297 = vmul.f32 %v3227, %v3012
        %v3298 = vmul.f32 %v3229, %v3013
        %v3299 = vmul.f32 %v3231, %v3014
        %v3300 = vmul.f32 %v3233, %v3015
        %v3301 = vmul.f32 %v3237, %v3010
        %v3302 = vmul.f32 %v3239, %v3011
        %v3303 = vmul.f32 %v3241, %v3012
        %v3304 = vmul.f32 %v3243, %v3013
        %v3305 = vmul.f32 %v3247, %v3014
        %v3306 = vmul.f32 %v3249, %v3015
        %v3307 = vmul.f32 %v3251, %v3010
        %v3308 = vmul.f32 %v3253, %v3011
        %v3309 = vmul.f32 %v3257, %v3012
        %v3310 = vmul.f32 %v3259, %v3013
        %v3311 = vmul.f32 %v3261, %v3014
        %v3312 = vmul.f32 %v3263, %v3015
        %v3313 = vadd.f32 %v3265, %v3267
        %v3314 = vadd.f32 %v3313, %v3269
        %v3315 = vrot.slane %v3314, 4
        %v3316 = vadd.f32 %v3314, %v3315
        %v3317 = vrot.slane %v3316, 2
        %v3318 = vadd.f32 %v3316, %v3317
        %v3319 = vrot.slane %v3318, 1
        %v3320 = vadd.f32 %v3318, %v3319
        %v3321 = vadd.f32 %v3266, %v3268
        %v3322 = vadd.f32 %v3321, %v3270
        %v3323 = vrot.slane %v3322, 4
        %v3324 = vadd.f32 %v3322, %v3323
        %v3325 = vrot.slane %v3324, 2
        %v3326 = vadd.f32 %v3324, %v3325
        %v3327 = vrot.slane %v3326, 1
        %v3328 = vadd.f32 %v3326, %v3327
        %v3329 = vadd.f32 %v3271, %v3273
        %v3330 = vadd.f32 %v3329, %v3275
        %v3331 = vrot.slane %v3330, 4
        %v3332 = vadd.f32 %v3330, %v3331
        %v3333 = vrot.slane %v3332, 2
        %v3334 = vadd.f32 %v3332, %v3333
        %v3335 = vrot.slane %v3334, 1
        %v3336 = vadd.f32 %v3334, %v3335
        %v3337 = vadd.f32 %v3272, %v3274
        %v3338 = vadd.f32 %v3337, %v3276
        %v3339 = vrot.slane %v3338, 4
        %v3340 = vadd.f32 %v3338, %v3339
        %v3341 = vrot.slane %v3340, 2
        %v3342 = vadd.f32 %v3340, %v3341
        %v3343 = vrot.slane %v3342, 1
        %v3344 = vadd.f32 %v3342, %v3343
        %v3345 = vadd.f32 %v3277, %v3279
        %v3346 = vadd.f32 %v3345, %v3281
        %v3347 = vrot.slane %v3346, 4
        %v3348 = vadd.f32 %v3346, %v3347
        %v3349 = vrot.slane %v3348, 2
        %v3350 = vadd.f32 %v3348, %v3349
        %v3351 = vrot.slane %v3350, 1
        %v3352 = vadd.f32 %v3350, %v3351
        %v3353 = vadd.f32 %v3278, %v3280
        %v3354 = vadd.f32 %v3353, %v3282
        %v3355 = vrot.slane %v3354, 4
        %v3356 = vadd.f32 %v3354, %v3355
        %v3357 = vrot.slane %v3356, 2
        %v3358 = vadd.f32 %v3356, %v3357
        %v3359 = vrot.slane %v3358, 1
        %v3360 = vadd.f32 %v3358, %v3359
        %v3361 = vadd.f32 %v3283, %v3285
        %v3362 = vadd.f32 %v3361, %v3287
        %v3363 = vrot.slane %v3362, 4
        %v3364 = vadd.f32 %v3362, %v3363
        %v3365 = vrot.slane %v3364, 2
        %v3366 = vadd.f32 %v3364, %v3365
        %v3367 = vrot.slane %v3366, 1
        %v3368 = vadd.f32 %v3366, %v3367
        %v3369 = vadd.f32 %v3284, %v3286
        %v3370 = vadd.f32 %v3369, %v3288
        %v3371 = vrot.slane %v3370, 4
        %v3372 = vadd.f32 %v3370, %v3371
        %v3373 = vrot.slane %v3372, 2
        %v3374 = vadd.f32 %v3372, %v3373
        %v3375 = vrot.slane %v3374, 1
        %v3376 = vadd.f32 %v3374, %v3375
        %v3377 = vadd.f32 %v3289, %v3291
        %v3378 = vadd.f32 %v3377, %v3293
        %v3379 = vrot.slane %v3378, 4
        %v3380 = vadd.f32 %v3378, %v3379
        %v3381 = vrot.slane %v3380, 2
        %v3382 = vadd.f32 %v3380, %v3381
        %v3383 = vrot.slane %v3382, 1
        %v3384 = vadd.f32 %v3382, %v3383
        %v3385 = vadd.f32 %v3290, %v3292
        %v3386 = vadd.f32 %v3385, %v3294
        %v3387 = vrot.slane %v3386, 4
        %v3388 = vadd.f32 %v3386, %v3387
        %v3389 = vrot.slane %v3388, 2
        %v3390 = vadd.f32 %v3388, %v3389
        %v3391 = vrot.slane %v3390, 1
        %v3392 = vadd.f32 %v3390, %v3391
        %v3393 = vadd.f32 %v3295, %v3297
        %v3394 = vadd.f32 %v3393, %v3299
        %v3395 = vrot.slane %v3394, 4
        %v3396 = vadd.f32 %v3394, %v3395
        %v3397 = vrot.slane %v3396, 2
        %v3398 = vadd.f32 %v3396, %v3397
        %v3399 = vrot.slane %v3398, 1
        %v3400 = vadd.f32 %v3398, %v3399
        %v3401 = vadd.f32 %v3296, %v3298
        %v3402 = vadd.f32 %v3401, %v3300
        %v3403 = vrot.slane %v3402, 4
        %v3404 = vadd.f32 %v3402, %v3403
        %v3405 = vrot.slane %v3404, 2
        %v3406 = vadd.f32 %v3404, %v3405
        %v3407 = vrot.slane %v3406, 1
        %v3408 = vadd.f32 %v3406, %v3407
        %v3409 = vadd.f32 %v3301, %v3303
        %v3410 = vadd.f32 %v3409, %v3305
        %v3411 = vrot.slane %v3410, 4
        %v3412 = vadd.f32 %v3410, %v3411
        %v3413 = vrot.slane %v3412, 2
        %v3414 = vadd.f32 %v3412, %v3413
        %v3415 = vrot.slane %v3414, 1
        %v3416 = vadd.f32 %v3414, %v3415
        %v3417 = vadd.f32 %v3302, %v3304
        %v3418 = vadd.f32 %v3417, %v3306
        %v3419 = vrot.slane %v3418, 4
        %v3420 = vadd.f32 %v3418, %v3419
        %v3421 = vrot.slane %v3420, 2
        %v3422 = vadd.f32 %v3420, %v3421
        %v3423 = vrot.slane %v3422, 1
        %v3424 = vadd.f32 %v3422, %v3423
        %v3425 = vadd.f32 %v3307, %v3309
        %v3426 = vadd.f32 %v3425, %v3311
        %v3427 = vrot.slane %v3426, 4
        %v3428 = vadd.f32 %v3426, %v3427
        %v3429 = vrot.slane %v3428, 2
        %v3430 = vadd.f32 %v3428, %v3429
        %v3431 = vrot.slane %v3430, 1
        %v3432 = vadd.f32 %v3430, %v3431
        %v3433 = vadd.f32 %v3308, %v3310
        %v3434 = vadd.f32 %v3433, %v3312
        %v3435 = vrot.slane %v3434, 4
        %v3436 = vadd.f32 %v3434, %v3435
        %v3437 = vrot.slane %v3436, 2
        %v3438 = vadd.f32 %v3436, %v3437
        %v3439 = vrot.slane %v3438, 1
        %v3440 = vadd.f32 %v3438, %v3439
        %v3441 = vpack.c.bf16 %v3320, %v3320
        %v3442 = vpack.c.bf16 %v3328, %v3328
        %v3443 = vpack.c.bf16 %v3336, %v3336
        %v3444 = vpack.c.bf16 %v3344, %v3344
        %v3445 = vpack.c.bf16 %v3352, %v3352
        %v3446 = vpack.c.bf16 %v3360, %v3360
        %v3447 = vpack.c.bf16 %v3368, %v3368
        %v3448 = vpack.c.bf16 %v3376, %v3376
        %v3449 = vpack.c.bf16 %v3384, %v3384
        %v3450 = vpack.c.bf16 %v3392, %v3392
        %v3451 = vpack.c.bf16 %v3400, %v3400
        %v3452 = vpack.c.bf16 %v3408, %v3408
        %v3453 = vpack.c.bf16 %v3416, %v3416
        %v3454 = vpack.c.bf16 %v3424, %v3424
        %v3455 = vpack.c.bf16 %v3432, %v3432
        %v3456 = vpack.c.bf16 %v3440, %v3440
        %v3473 = vunpack.c.l.b16 %v3441
        %v3474 = vunpack.c.l.b16 %v3442
        %v3475 = vunpack.c.l.b16 %v3443
        %v3476 = vunpack.c.l.b16 %v3444
        %v3477 = vunpack.c.l.b16 %v3445
        %v3478 = vunpack.c.l.b16 %v3446
        %v3479 = vunpack.c.l.b16 %v3447
        %v3480 = vunpack.c.l.b16 %v3448
        %v3481 = vunpack.c.l.b16 %v3449
        %v3482 = vunpack.c.l.b16 %v3450
        %v3483 = vunpack.c.l.b16 %v3451
        %v3484 = vunpack.c.l.b16 %v3452
        %v3485 = vunpack.c.l.b16 %v3453
        %v3486 = vunpack.c.l.b16 %v3454
        %v3487 = vunpack.c.l.b16 %v3455
        %v3488 = vunpack.c.l.b16 %v3456
        %v3489 = vpack.c.b16 %v3474, %v3473
        %v3490 = vpack.c.b16 %v3476, %v3475
        %v3491 = vpack.c.b16 %v3478, %v3477
        %v3492 = vpack.c.b16 %v3480, %v3479
        %v3493 = vpack.c.b16 %v3482, %v3481
        %v3494 = vpack.c.b16 %v3484, %v3483
        %v3495 = vpack.c.b16 %v3486, %v3485
        %v3496 = vpack.c.b16 %v3488, %v3487
        %v3497 = vunpack.c.l.b16 %v3489
        %v3498 = vunpack.c.h.b16 %v3489
        %v3499 = vunpack.c.l.b16 %v3490
        %v3500 = vunpack.c.h.b16 %v3490
        %v3501 = vunpack.c.l.b16 %v3491
        %v3502 = vunpack.c.h.b16 %v3491
        %v3503 = vunpack.c.l.b16 %v3492
        %v3504 = vunpack.c.h.b16 %v3492
        %v3505 = vunpack.c.l.b16 %v3493
        %v3506 = vunpack.c.h.b16 %v3493
        %v3507 = vunpack.c.l.b16 %v3494
        %v3508 = vunpack.c.h.b16 %v3494
        %v3509 = vunpack.c.l.b16 %v3495
        %v3510 = vunpack.c.h.b16 %v3495
        %v3511 = vunpack.c.l.b16 %v3496
        %v3512 = vunpack.c.h.b16 %v3496
        %v3513 = vsel %vm1154, %v3499, %v3497
        %v3514 = vsel %vm1156, %v3501, %v3513
        %v3515 = vsel %vm1158, %v3503, %v3514
        %v3516 = vsel %vm1160, %v3505, %v3515
        %v3517 = vsel %vm1162, %v3507, %v3516
        %v3518 = vsel %vm1164, %v3509, %v3517
        %v3519 = vsel %vm1166, %v3511, %v3518
        %v3520 = vsel %vm1154, %v3500, %v3498
        %v3521 = vsel %vm1156, %v3502, %v3520
        %v3522 = vsel %vm1158, %v3504, %v3521
        %v3523 = vsel %vm1160, %v3506, %v3522
        %v3524 = vsel %vm1162, %v3508, %v3523
        %v3525 = vsel %vm1164, %v3510, %v3524
        %v3526 = vsel %vm1166, %v3512, %v3525
        %v3527 = vpack.c.b16 %v3526, %v3519
        %3529 = vst [vmem:[#allocation2 + $0x18] sm:$0xff] %v3527
        %v3530 = vlaneseq
        %v3531 = vshrl.u32 %v3530, 7
        %v3532 = vsub.s32 4, %v3531
        %v3533 = vrot.slane %v362, %v3532
        %v3534 = vlaneseq
        %v3535 = vshrl.u32 %v3534, 7
        %v3536 = vsub.s32 4, %v3535
        %v3537 = vrot.slane %v363, %v3536
        %vm3538 = vcmp.eq.s32.totalorder %v371, %v3533
        %vm3539 = vcmp.eq.s32.totalorder %v371, %v3537
        %vm3540 = vcmp.eq.s32.totalorder %v372, %v3533
        %vm3541 = vcmp.eq.s32.totalorder %v372, %v3537
        %vm3542 = vcmp.eq.s32.totalorder %v373, %v3533
        %vm3543 = vcmp.eq.s32.totalorder %v373, %v3537
        %vm3544 = vcmp.eq.s32.totalorder %v374, %v3533
        %vm3545 = vcmp.eq.s32.totalorder %v374, %v3537
        %vm3546 = vcmp.eq.s32.totalorder %v375, %v3533
        %vm3547 = vcmp.eq.s32.totalorder %v375, %v3537
        %vm3548 = vcmp.eq.s32.totalorder %v376, %v3533
        %vm3549 = vcmp.eq.s32.totalorder %v376, %v3537
        %vm3550 = vcmp.eq.s32.totalorder %v377, %v3533
        %vm3551 = vcmp.eq.s32.totalorder %v377, %v3537
        %vm3552 = vcmp.eq.s32.totalorder %v378, %v3533
        %vm3553 = vcmp.eq.s32.totalorder %v378, %v3537
        %vm3554 = vcmp.eq.s32.totalorder %v379, %v3533
        %vm3555 = vcmp.eq.s32.totalorder %v379, %v3537
        %vm3556 = vcmp.eq.s32.totalorder %v380, %v3533
        %vm3557 = vcmp.eq.s32.totalorder %v380, %v3537
        %vm3558 = vcmp.eq.s32.totalorder %v381, %v3533
        %vm3559 = vcmp.eq.s32.totalorder %v381, %v3537
        %vm3560 = vcmp.eq.s32.totalorder %v382, %v3533
        %vm3561 = vcmp.eq.s32.totalorder %v382, %v3537
        %vm3562 = vcmp.eq.s32.totalorder %v383, %v3533
        %vm3563 = vcmp.eq.s32.totalorder %v383, %v3537
        %vm3564 = vcmp.eq.s32.totalorder %v384, %v3533
        %vm3565 = vcmp.eq.s32.totalorder %v384, %v3537
        %vm3566 = vcmp.eq.s32.totalorder %v385, %v3533
        %vm3567 = vcmp.eq.s32.totalorder %v385, %v3537
        %vm3568 = vcmp.eq.s32.totalorder %v386, %v3533
        %vm3569 = vcmp.eq.s32.totalorder %v386, %v3537
        %v3570 = vlaneseq
        %v3571 = vshrl.u32 %v3570, 7
        %v3572 = vsub.s32 4, %v3571
        %v3573 = vrot.slane %v342, %v3572
        %v3574 = vlaneseq
        %v3575 = vshrl.u32 %v3574, 7
        %v3576 = vsub.s32 4, %v3575
        %v3577 = vrot.slane %v343, %v3576
        %v3578 = vsel %vm3538, %v3573, 0.0
        %v3579 = vsel %vm3539, %v3577, 0.0
        %v3580 = vsel %vm3540, %v3573, 0.0
        %v3581 = vsel %vm3541, %v3577, 0.0
        %v3582 = vsel %vm3542, %v3573, 0.0
        %v3583 = vsel %vm3543, %v3577, 0.0
        %v3584 = vsel %vm3544, %v3573, 0.0
        %v3585 = vsel %vm3545, %v3577, 0.0
        %v3586 = vsel %vm3546, %v3573, 0.0
        %v3587 = vsel %vm3547, %v3577, 0.0
        %v3588 = vsel %vm3548, %v3573, 0.0
        %v3589 = vsel %vm3549, %v3577, 0.0
        %v3590 = vsel %vm3550, %v3573, 0.0
        %v3591 = vsel %vm3551, %v3577, 0.0
        %v3592 = vsel %vm3552, %v3573, 0.0
        %v3593 = vsel %vm3553, %v3577, 0.0
        %v3594 = vsel %vm3554, %v3573, 0.0
        %v3595 = vsel %vm3555, %v3577, 0.0
        %v3596 = vsel %vm3556, %v3573, 0.0
        %v3597 = vsel %vm3557, %v3577, 0.0
        %v3598 = vsel %vm3558, %v3573, 0.0
        %v3599 = vsel %vm3559, %v3577, 0.0
        %v3600 = vsel %vm3560, %v3573, 0.0
        %v3601 = vsel %vm3561, %v3577, 0.0
        %v3602 = vsel %vm3562, %v3573, 0.0
        %v3603 = vsel %vm3563, %v3577, 0.0
        %v3604 = vsel %vm3564, %v3573, 0.0
        %v3605 = vsel %vm3565, %v3577, 0.0
        %v3606 = vsel %vm3566, %v3573, 0.0
        %v3607 = vsel %vm3567, %v3577, 0.0
        %v3608 = vsel %vm3568, %v3573, 0.0
        %v3609 = vsel %vm3569, %v3577, 0.0
        %v3610 = vlaneseq
        %v3611 = vshrl.u32 %v3610, 7
        %v3612 = vsub.s32 4, %v3611
        %v3613 = vrot.slane %v366, %v3612
        %v3614 = vlaneseq
        %v3615 = vshrl.u32 %v3614, 7
        %v3616 = vsub.s32 4, %v3615
        %v3617 = vrot.slane %v367, %v3616
        %vm3618 = vcmp.eq.s32.totalorder %v371, %v3613
        %vm3619 = vcmp.eq.s32.totalorder %v371, %v3617
        %vm3620 = vcmp.eq.s32.totalorder %v372, %v3613
        %vm3621 = vcmp.eq.s32.totalorder %v372, %v3617
        %vm3622 = vcmp.eq.s32.totalorder %v373, %v3613
        %vm3623 = vcmp.eq.s32.totalorder %v373, %v3617
        %vm3624 = vcmp.eq.s32.totalorder %v374, %v3613
        %vm3625 = vcmp.eq.s32.totalorder %v374, %v3617
        %vm3626 = vcmp.eq.s32.totalorder %v375, %v3613
        %vm3627 = vcmp.eq.s32.totalorder %v375, %v3617
        %vm3628 = vcmp.eq.s32.totalorder %v376, %v3613
        %vm3629 = vcmp.eq.s32.totalorder %v376, %v3617
        %vm3630 = vcmp.eq.s32.totalorder %v377, %v3613
        %vm3631 = vcmp.eq.s32.totalorder %v377, %v3617
        %vm3632 = vcmp.eq.s32.totalorder %v378, %v3613
        %vm3633 = vcmp.eq.s32.totalorder %v378, %v3617
        %vm3634 = vcmp.eq.s32.totalorder %v379, %v3613
        %vm3635 = vcmp.eq.s32.totalorder %v379, %v3617
        %vm3636 = vcmp.eq.s32.totalorder %v380, %v3613
        %vm3637 = vcmp.eq.s32.totalorder %v380, %v3617
        %vm3638 = vcmp.eq.s32.totalorder %v381, %v3613
        %vm3639 = vcmp.eq.s32.totalorder %v381, %v3617
        %vm3640 = vcmp.eq.s32.totalorder %v382, %v3613
        %vm3641 = vcmp.eq.s32.totalorder %v382, %v3617
        %vm3642 = vcmp.eq.s32.totalorder %v383, %v3613
        %vm3643 = vcmp.eq.s32.totalorder %v383, %v3617
        %vm3644 = vcmp.eq.s32.totalorder %v384, %v3613
        %vm3645 = vcmp.eq.s32.totalorder %v384, %v3617
        %vm3646 = vcmp.eq.s32.totalorder %v385, %v3613
        %vm3647 = vcmp.eq.s32.totalorder %v385, %v3617
        %vm3648 = vcmp.eq.s32.totalorder %v386, %v3613
        %vm3649 = vcmp.eq.s32.totalorder %v386, %v3617
        %v3650 = vlaneseq
        %v3651 = vshrl.u32 %v3650, 7
        %v3652 = vsub.s32 4, %v3651
        %v3653 = vrot.slane %v350, %v3652
        %v3654 = vlaneseq
        %v3655 = vshrl.u32 %v3654, 7
        %v3656 = vsub.s32 4, %v3655
        %v3657 = vrot.slane %v351, %v3656
        %v3658 = vsel %vm3618, %v3653, 0.0
        %v3659 = vsel %vm3619, %v3657, 0.0
        %v3660 = vsel %vm3620, %v3653, 0.0
        %v3661 = vsel %vm3621, %v3657, 0.0
        %v3662 = vsel %vm3622, %v3653, 0.0
        %v3663 = vsel %vm3623, %v3657, 0.0
        %v3664 = vsel %vm3624, %v3653, 0.0
        %v3665 = vsel %vm3625, %v3657, 0.0
        %v3666 = vsel %vm3626, %v3653, 0.0
        %v3667 = vsel %vm3627, %v3657, 0.0
        %v3668 = vsel %vm3628, %v3653, 0.0
        %v3669 = vsel %vm3629, %v3657, 0.0
        %v3670 = vsel %vm3630, %v3653, 0.0
        %v3671 = vsel %vm3631, %v3657, 0.0
        %v3672 = vsel %vm3632, %v3653, 0.0
        %v3673 = vsel %vm3633, %v3657, 0.0
        %v3674 = vsel %vm3634, %v3653, 0.0
        %v3675 = vsel %vm3635, %v3657, 0.0
        %v3676 = vsel %vm3636, %v3653, 0.0
        %v3677 = vsel %vm3637, %v3657, 0.0
        %v3678 = vsel %vm3638, %v3653, 0.0
        %v3679 = vsel %vm3639, %v3657, 0.0
        %v3680 = vsel %vm3640, %v3653, 0.0
        %v3681 = vsel %vm3641, %v3657, 0.0
        %v3682 = vsel %vm3642, %v3653, 0.0
        %v3683 = vsel %vm3643, %v3657, 0.0
        %v3684 = vsel %vm3644, %v3653, 0.0
        %v3685 = vsel %vm3645, %v3657, 0.0
        %v3686 = vsel %vm3646, %v3653, 0.0
        %v3687 = vsel %vm3647, %v3657, 0.0
        %v3688 = vsel %vm3648, %v3653, 0.0
        %v3689 = vsel %vm3649, %v3657, 0.0
        %v3690 = vadd.f32 %v3578, %v3658
        %v3691 = vadd.f32 %v3579, %v3659
        %v3692 = vadd.f32 %v3580, %v3660
        %v3693 = vadd.f32 %v3581, %v3661
        %v3694 = vadd.f32 %v3582, %v3662
        %v3695 = vadd.f32 %v3583, %v3663
        %v3696 = vadd.f32 %v3584, %v3664
        %v3697 = vadd.f32 %v3585, %v3665
        %v3698 = vadd.f32 %v3586, %v3666
        %v3699 = vadd.f32 %v3587, %v3667
        %v3700 = vadd.f32 %v3588, %v3668
        %v3701 = vadd.f32 %v3589, %v3669
        %v3702 = vadd.f32 %v3590, %v3670
        %v3703 = vadd.f32 %v3591, %v3671
        %v3704 = vadd.f32 %v3592, %v3672
        %v3705 = vadd.f32 %v3593, %v3673
        %v3706 = vadd.f32 %v3594, %v3674
        %v3707 = vadd.f32 %v3595, %v3675
        %v3708 = vadd.f32 %v3596, %v3676
        %v3709 = vadd.f32 %v3597, %v3677
        %v3710 = vadd.f32 %v3598, %v3678
        %v3711 = vadd.f32 %v3599, %v3679
        %v3712 = vadd.f32 %v3600, %v3680
        %v3713 = vadd.f32 %v3601, %v3681
        %v3714 = vadd.f32 %v3602, %v3682
        %v3715 = vadd.f32 %v3603, %v3683
        %v3716 = vadd.f32 %v3604, %v3684
        %v3717 = vadd.f32 %v3605, %v3685
        %v3718 = vadd.f32 %v3606, %v3686
        %v3719 = vadd.f32 %v3607, %v3687
        %v3720 = vadd.f32 %v3608, %v3688
        %v3721 = vadd.f32 %v3609, %v3689
        %v3722 = vpack.c.bf16 %v3692, %v3690
        %v3723 = vpack.c.bf16 %v3693, %v3691
        %v3724 = vpack.c.bf16 %v3696, %v3694
        %v3725 = vpack.c.bf16 %v3697, %v3695
        %v3726 = vpack.c.bf16 %v3700, %v3698
        %v3727 = vpack.c.bf16 %v3701, %v3699
        %v3728 = vpack.c.bf16 %v3704, %v3702
        %v3729 = vpack.c.bf16 %v3705, %v3703
        %v3730 = vpack.c.bf16 %v3708, %v3706
        %v3731 = vpack.c.bf16 %v3709, %v3707
        %v3732 = vpack.c.bf16 %v3712, %v3710
        %v3733 = vpack.c.bf16 %v3713, %v3711
        %v3734 = vpack.c.bf16 %v3716, %v3714
        %v3735 = vpack.c.bf16 %v3717, %v3715
        %v3736 = vpack.c.bf16 %v3720, %v3718
        %v3737 = vpack.c.bf16 %v3721, %v3719
        %v3738 = vlaneseq
        %v3739 = vshrl.u32 %v3738, 7
        %v3740 = vsub.s32 4, %v3739
        %v3741 = vrot.slane %v354, %v3740
        %v3742 = vlaneseq
        %v3743 = vshrl.u32 %v3742, 7
        %v3744 = vsub.s32 4, %v3743
        %v3745 = vrot.slane %v355, %v3744
        %vm3746 = vcmp.eq.s32.totalorder %v371, %v3741
        %vm3747 = vcmp.eq.s32.totalorder %v371, %v3745
        %vm3748 = vcmp.eq.s32.totalorder %v372, %v3741
        %vm3749 = vcmp.eq.s32.totalorder %v372, %v3745
        %vm3750 = vcmp.eq.s32.totalorder %v373, %v3741
        %vm3751 = vcmp.eq.s32.totalorder %v373, %v3745
        %v3752 = vlaneseq
        %v3753 = vshrl.u32 %v3752, 7
        %v3754 = vsub.s32 4, %v3753
        %v3755 = vrot.slane %v326, %v3754
        %v3756 = vlaneseq
        %v3757 = vshrl.u32 %v3756, 7
        %v3758 = vsub.s32 4, %v3757
        %v3759 = vrot.slane %v327, %v3758
        %v3760 = vsel %vm3746, %v3755, 0.0
        %v3761 = vsel %vm3747, %v3759, 0.0
        %v3762 = vsel %vm3748, %v3755, 0.0
        %v3763 = vsel %vm3749, %v3759, 0.0
        %v3764 = vsel %vm3750, %v3755, 0.0
        %v3765 = vsel %vm3751, %v3759, 0.0
        %v3766 = vlaneseq
        %v3767 = vshrl.u32 %v3766, 7
        %v3768 = vsub.s32 4, %v3767
        %v3769 = vrot.slane %v358, %v3768
        %v3770 = vlaneseq
        %v3771 = vshrl.u32 %v3770, 7
        %v3772 = vsub.s32 4, %v3771
        %v3773 = vrot.slane %v359, %v3772
        %vm3774 = vcmp.eq.s32.totalorder %v371, %v3769
        %vm3775 = vcmp.eq.s32.totalorder %v371, %v3773
        %vm3776 = vcmp.eq.s32.totalorder %v372, %v3769
        %vm3777 = vcmp.eq.s32.totalorder %v372, %v3773
        %vm3778 = vcmp.eq.s32.totalorder %v373, %v3769
        %vm3779 = vcmp.eq.s32.totalorder %v373, %v3773
        %v3780 = vlaneseq
        %v3781 = vshrl.u32 %v3780, 7
        %v3782 = vsub.s32 4, %v3781
        %v3783 = vrot.slane %v334, %v3782
        %v3784 = vlaneseq
        %v3785 = vshrl.u32 %v3784, 7
        %v3786 = vsub.s32 4, %v3785
        %v3787 = vrot.slane %v335, %v3786
        %v3788 = vsel %vm3774, %v3783, 0.0
        %v3789 = vsel %vm3775, %v3787, 0.0
        %v3790 = vsel %vm3776, %v3783, 0.0
        %v3791 = vsel %vm3777, %v3787, 0.0
        %v3792 = vsel %vm3778, %v3783, 0.0
        %v3793 = vsel %vm3779, %v3787, 0.0
        %v3794 = vadd.f32 %v3760, %v3788
        %v3795 = vadd.f32 %v3761, %v3789
        %v3796 = vadd.f32 %v3762, %v3790
        %v3797 = vadd.f32 %v3763, %v3791
        %v3798 = vadd.f32 %v3764, %v3792
        %v3799 = vadd.f32 %v3765, %v3793
        %v3800 = vld [vmem:[%s210] sm:$0xf]
        %v3801 = vld [vmem:[%s210 + $0x4] sm:$0xf]
        %v3802 = vld [vmem:[%s210 + $0x8] sm:$0xf]
        %v3803 = vld [vmem:[%s210 + $0xc] sm:$0xf]
        %v3804 = vld [vmem:[%s210 + $0x10] sm:$0xf]
        %v3805 = vld [vmem:[%s210 + $0x14] sm:$0xf]
        %v3806 = vld [vmem:[%s210 + $0x18] sm:$0xf]
        %v3807 = vld [vmem:[%s210 + $0x1c] sm:$0xf]
        %v3808 = vld [vmem:[%s210 + $0x20] sm:$0xf]
        %v3809 = vld [vmem:[%s210 + $0x24] sm:$0xf]
        %v3810 = vld [vmem:[%s210 + $0x28] sm:$0xf]
        %v3811 = vld [vmem:[%s210 + $0x2c] sm:$0xf]
        %v3812 = vld [vmem:[%s210 + $0x30] sm:$0xf]
        %v3813 = vld [vmem:[%s210 + $0x34] sm:$0xf]
        %v3814 = vld [vmem:[%s210 + $0x38] sm:$0xf]
        %v3815 = vld [vmem:[%s210 + $0x3c] sm:$0xf]
        %v3816 = vld [vmem:[%s210 + $0x40] sm:$0xf]
        %v3817 = vld [vmem:[%s210 + $0x44] sm:$0xf]
        %v3818 = vld [vmem:[%s210 + $0x48] sm:$0xf]
        %v3819 = vld [vmem:[%s210 + $0x4c] sm:$0xf]
        %v3820 = vld [vmem:[%s210 + $0x50] sm:$0xf]
        %v3821 = vld [vmem:[%s210 + $0x54] sm:$0xf]
        %v3822 = vld [vmem:[%s210 + $0x58] sm:$0xf]
        %v3823 = vld [vmem:[%s210 + $0x5c] sm:$0xf]
        %v3848 = vunpack.c.l.b16 %v3800
        %v3849 = vunpack.c.l.b16 %v3801
        %v3850 = vunpack.c.l.b16 %v3802
        %v3851 = vunpack.c.l.b16 %v3803
        %v3852 = vunpack.c.l.b16 %v3804
        %v3853 = vunpack.c.l.b16 %v3805
        %v3854 = vunpack.c.l.b16 %v3806
        %v3855 = vunpack.c.l.b16 %v3807
        %v3856 = vunpack.c.l.b16 %v3808
        %v3857 = vunpack.c.l.b16 %v3809
        %v3858 = vunpack.c.l.b16 %v3810
        %v3859 = vunpack.c.l.b16 %v3811
        %v3860 = vunpack.c.l.b16 %v3812
        %v3861 = vunpack.c.l.b16 %v3813
        %v3862 = vunpack.c.l.b16 %v3814
        %v3863 = vunpack.c.l.b16 %v3815
        %v3864 = vunpack.c.l.b16 %v3816
        %v3865 = vunpack.c.l.b16 %v3817
        %v3866 = vunpack.c.l.b16 %v3818
        %v3867 = vunpack.c.l.b16 %v3819
        %v3868 = vunpack.c.l.b16 %v3820
        %v3869 = vunpack.c.l.b16 %v3821
        %v3870 = vunpack.c.l.b16 %v3822
        %v3871 = vunpack.c.l.b16 %v3823
        %v3872 = vpack.c.b16 %v3849, %v3848
        %v3873 = vpack.c.b16 %v3851, %v3850
        %v3874 = vpack.c.b16 %v3853, %v3852
        %v3875 = vpack.c.b16 %v3855, %v3854
        %v3876 = vpack.c.b16 %v3857, %v3856
        %v3877 = vpack.c.b16 %v3859, %v3858
        %v3878 = vpack.c.b16 %v3861, %v3860
        %v3879 = vpack.c.b16 %v3863, %v3862
        %v3880 = vpack.c.b16 %v3865, %v3864
        %v3881 = vpack.c.b16 %v3867, %v3866
        %v3882 = vpack.c.b16 %v3869, %v3868
        %v3883 = vpack.c.b16 %v3871, %v3870
        %3896 = vmatprep.subr.bf16.mxu0 %v3723
        %3897 = vmatpush1.bf16.msra.mxu0 %v3722
        %3898 = vmatprep.subr.bf16.mxu0 %v3725
        %3899 = vmatpush1.bf16.msra.mxu0 %v3724
        %3900 = vmatprep.subr.bf16.mxu0 %v3727
        %3901 = vmatpush1.bf16.msra.mxu0 %v3726
        %3902 = vmatprep.subr.bf16.mxu0 %v3729
        %3903 = vmatpush1.bf16.msra.mxu0 %v3728
        %3904 = vmatprep.subr.bf16.mxu0 %v3731
        %3905 = vmatpush1.bf16.msra.mxu0 %v3730
        %3906 = vmatprep.subr.bf16.mxu0 %v3733
        %3907 = vmatpush1.bf16.msra.mxu0 %v3732
        %3908 = vmatprep.subr.bf16.mxu0 %v3735
        %3909 = vmatpush1.bf16.msra.mxu0 %v3734
        %3910 = vmatprep.subr.bf16.mxu0 %v3737
        %3911 = vmatpush1.bf16.msra.mxu0 %v3736
        %3912 = vmatprep.subr.bf16.mxu0 0
        %3913 = vmatpush1.bf16.msra.mxu0 0
        %3914 = vmatprep.subr.bf16.mxu0 0
        %3915 = vmatpush1.bf16.msra.mxu0 0
        %3916 = vmatprep.subr.bf16.mxu0 0
        %3917 = vmatpush1.bf16.msra.mxu0 0
        %3918 = vmatprep.subr.bf16.mxu0 0
        %3919 = vmatpush1.bf16.msra.mxu0 0
        %3920 = vmatprep.subr.bf16.mxu0 0
        %3921 = vmatpush1.bf16.msra.mxu0 0
        %3922 = vmatprep.subr.bf16.mxu0 0
        %3923 = vmatpush1.bf16.msra.mxu0 0
        %3924 = vmatprep.subr.bf16.mxu0 0
        %3925 = vmatpush1.bf16.msra.mxu0 0
        %3926 = vmatprep.subr.bf16.mxu0 0
        %3927 = vmatpush1.bf16.msra.mxu0 0
        %3928 = vmatprep.mubr.bf16.mxu0 0
        %3929 = vmatmul.mubr.bf16.gmra.mrb[0].mxu0 %v3872
        %v3930 = vpop.f32.mrb[0].mxu0
        %v3931 = vadd.f32 0.0, %v3930
        %v3932 = vpop.f32.mrb[0].mxu0
        %v3933 = vadd.f32 0.0, %v3932
        %v3934 = vpop.f32.mrb[0].mxu0
        %v3935 = vadd.f32 0.0, %v3934
        %v3936 = vpop.f32.mrb[0].mxu0
        %v3937 = vadd.f32 0.0, %v3936
        %3938 = vmatprep.mubr.bf16.mxu0 0
        %3939 = vmatmul.mubr.bf16.gmra.mrb[0].mxu0 %v3873
        %v3940 = vpop.f32.mrb[0].mxu0
        %v3941 = vadd.f32 0.0, %v3940
        %v3942 = vpop.f32.mrb[0].mxu0
        %v3943 = vadd.f32 0.0, %v3942
        %v3944 = vpop.f32.mrb[0].mxu0
        %v3945 = vadd.f32 0.0, %v3944
        %v3946 = vpop.f32.mrb[0].mxu0
        %v3947 = vadd.f32 0.0, %v3946
        %3948 = vmatprep.mubr.bf16.mxu0 0
        %3949 = vmatmul.mubr.bf16.gmra.mrb[0].mxu0 %v3874
        %v3950 = vpop.f32.mrb[0].mxu0
        %v3951 = vadd.f32 0.0, %v3950
        %v3952 = vpop.f32.mrb[0].mxu0
        %v3953 = vadd.f32 0.0, %v3952
        %v3954 = vpop.f32.mrb[0].mxu0
        %v3955 = vadd.f32 0.0, %v3954
        %v3956 = vpop.f32.mrb[0].mxu0
        %v3957 = vadd.f32 0.0, %v3956
        %3958 = vmatprep.mubr.bf16.mxu0 0
        %3959 = vmatmul.mubr.bf16.gmra.mrb[0].mxu0 %v3875
        %v3960 = vpop.f32.mrb[0].mxu0
        %v3961 = vadd.f32 0.0, %v3960
        %v3962 = vpop.f32.mrb[0].mxu0
        %v3963 = vadd.f32 0.0, %v3962
        %v3964 = vpop.f32.mrb[0].mxu0
        %v3965 = vadd.f32 0.0, %v3964
        %v3966 = vpop.f32.mrb[0].mxu0
        %v3967 = vadd.f32 0.0, %v3966
        %3968 = vmatprep.mubr.bf16.mxu0 0
        %3969 = vmatmul.mubr.bf16.gmra.mrb[0].mxu0 %v3876
        %v3970 = vpop.f32.mrb[0].mxu0
        %v3971 = vadd.f32 0.0, %v3970
        %v3972 = vpop.f32.mrb[0].mxu0
        %v3973 = vadd.f32 0.0, %v3972
        %v3974 = vpop.f32.mrb[0].mxu0
        %v3975 = vadd.f32 0.0, %v3974
        %v3976 = vpop.f32.mrb[0].mxu0
        %v3977 = vadd.f32 0.0, %v3976
        %3978 = vmatprep.mubr.bf16.mxu0 0
        %3979 = vmatmul.mubr.bf16.gmra.mrb[0].mxu0 %v3877
        %v3980 = vpop.f32.mrb[0].mxu0
        %v3981 = vadd.f32 0.0, %v3980
        %v3982 = vpop.f32.mrb[0].mxu0
        %v3983 = vadd.f32 0.0, %v3982
        %v3984 = vpop.f32.mrb[0].mxu0
        %v3985 = vadd.f32 0.0, %v3984
        %v3986 = vpop.f32.mrb[0].mxu0
        %v3987 = vadd.f32 0.0, %v3986
        %3988 = vmatprep.mubr.bf16.mxu0 0
        %3989 = vmatmul.mubr.bf16.gmra.mrb[0].mxu0 %v3878
        %v3990 = vpop.f32.mrb[0].mxu0
        %v3991 = vadd.f32 0.0, %v3990
        %v3992 = vpop.f32.mrb[0].mxu0
        %v3993 = vadd.f32 0.0, %v3992
        %v3994 = vpop.f32.mrb[0].mxu0
        %v3995 = vadd.f32 0.0, %v3994
        %v3996 = vpop.f32.mrb[0].mxu0
        %v3997 = vadd.f32 0.0, %v3996
        %3998 = vmatprep.mubr.bf16.mxu0 0
        %3999 = vmatmul.mubr.bf16.gmra.mrb[0].mxu0 %v3879
        %v4000 = vpop.f32.mrb[0].mxu0
        %v4001 = vadd.f32 0.0, %v4000
        %v4002 = vpop.f32.mrb[0].mxu0
        %v4003 = vadd.f32 0.0, %v4002
        %v4004 = vpop.f32.mrb[0].mxu0
        %v4005 = vadd.f32 0.0, %v4004
        %v4006 = vpop.f32.mrb[0].mxu0
        %v4007 = vadd.f32 0.0, %v4006
        %4008 = vmatprep.mubr.bf16.mxu0 0
        %4009 = vmatmul.mubr.bf16.gmra.mrb[0].mxu0 %v3880
        %v4010 = vpop.f32.mrb[0].mxu0
        %v4011 = vadd.f32 0.0, %v4010
        %v4012 = vpop.f32.mrb[0].mxu0
        %v4013 = vadd.f32 0.0, %v4012
        %v4014 = vpop.f32.mrb[0].mxu0
        %v4015 = vadd.f32 0.0, %v4014
        %v4016 = vpop.f32.mrb[0].mxu0
        %v4017 = vadd.f32 0.0, %v4016
        %4018 = vmatprep.mubr.bf16.mxu0 0
        %4019 = vmatmul.mubr.bf16.gmra.mrb[0].mxu0 %v3881
        %v4020 = vpop.f32.mrb[0].mxu0
        %v4021 = vadd.f32 0.0, %v4020
        %v4022 = vpop.f32.mrb[0].mxu0
        %v4023 = vadd.f32 0.0, %v4022
        %v4024 = vpop.f32.mrb[0].mxu0
        %v4025 = vadd.f32 0.0, %v4024
        %v4026 = vpop.f32.mrb[0].mxu0
        %v4027 = vadd.f32 0.0, %v4026
        %4028 = vmatprep.mubr.bf16.mxu0 0
        %4029 = vmatmul.mubr.bf16.gmra.mrb[0].mxu0 %v3882
        %v4030 = vpop.f32.mrb[0].mxu0
        %v4031 = vadd.f32 0.0, %v4030
        %v4032 = vpop.f32.mrb[0].mxu0
        %v4033 = vadd.f32 0.0, %v4032
        %v4034 = vpop.f32.mrb[0].mxu0
        %v4035 = vadd.f32 0.0, %v4034
        %v4036 = vpop.f32.mrb[0].mxu0
        %v4037 = vadd.f32 0.0, %v4036
        %4038 = vmatprep.mubr.bf16.mxu0 0
        %4039 = vmatmul.mubr.bf16.gmra.mrb[0].mxu0 %v3883
        %v4040 = vpop.f32.mrb[0].mxu0
        %v4041 = vadd.f32 0.0, %v4040
        %v4042 = vpop.f32.mrb[0].mxu0
        %v4043 = vadd.f32 0.0, %v4042
        %v4044 = vpop.f32.mrb[0].mxu0
        %v4045 = vadd.f32 0.0, %v4044
        %v4046 = vpop.f32.mrb[0].mxu0
        %v4047 = vadd.f32 0.0, %v4046
        %4048 = vdwg.mxu0
        %v4049 = vmul.f32 %v3931, %v3794
        %v4050 = vmul.f32 %v3933, %v3795
        %v4051 = vmul.f32 %v3935, %v3796
        %v4052 = vmul.f32 %v3937, %v3797
        %v4053 = vmul.f32 %v3941, %v3798
        %v4054 = vmul.f32 %v3943, %v3799
        %v4055 = vmul.f32 %v3945, %v3794
        %v4056 = vmul.f32 %v3947, %v3795
        %v4057 = vmul.f32 %v3951, %v3796
        %v4058 = vmul.f32 %v3953, %v3797
        %v4059 = vmul.f32 %v3955, %v3798
        %v4060 = vmul.f32 %v3957, %v3799
        %v4061 = vmul.f32 %v3961, %v3794
        %v4062 = vmul.f32 %v3963, %v3795
        %v4063 = vmul.f32 %v3965, %v3796
        %v4064 = vmul.f32 %v3967, %v3797
        %v4065 = vmul.f32 %v3971, %v3798
        %v4066 = vmul.f32 %v3973, %v3799
        %v4067 = vmul.f32 %v3975, %v3794
        %v4068 = vmul.f32 %v3977, %v3795
        %v4069 = vmul.f32 %v3981, %v3796
        %v4070 = vmul.f32 %v3983, %v3797
        %v4071 = vmul.f32 %v3985, %v3798
        %v4072 = vmul.f32 %v3987, %v3799
        %v4073 = vmul.f32 %v3991, %v3794
        %v4074 = vmul.f32 %v3993, %v3795
        %v4075 = vmul.f32 %v3995, %v3796
        %v4076 = vmul.f32 %v3997, %v3797
        %v4077 = vmul.f32 %v4001, %v3798
        %v4078 = vmul.f32 %v4003, %v3799
        %v4079 = vmul.f32 %v4005, %v3794
        %v4080 = vmul.f32 %v4007, %v3795
        %v4081 = vmul.f32 %v4011, %v3796
        %v4082 = vmul.f32 %v4013, %v3797
        %v4083 = vmul.f32 %v4015, %v3798
        %v4084 = vmul.f32 %v4017, %v3799
        %v4085 = vmul.f32 %v4021, %v3794
        %v4086 = vmul.f32 %v4023, %v3795
        %v4087 = vmul.f32 %v4025, %v3796
        %v4088 = vmul.f32 %v4027, %v3797
        %v4089 = vmul.f32 %v4031, %v3798
        %v4090 = vmul.f32 %v4033, %v3799
        %v4091 = vmul.f32 %v4035, %v3794
        %v4092 = vmul.f32 %v4037, %v3795
        %v4093 = vmul.f32 %v4041, %v3796
        %v4094 = vmul.f32 %v4043, %v3797
        %v4095 = vmul.f32 %v4045, %v3798
        %v4096 = vmul.f32 %v4047, %v3799
        %v4097 = vadd.f32 %v4049, %v4051
        %v4098 = vadd.f32 %v4097, %v4053
        %v4099 = vrot.slane %v4098, 4
        %v4100 = vadd.f32 %v4098, %v4099
        %v4101 = vrot.slane %v4100, 2
        %v4102 = vadd.f32 %v4100, %v4101
        %v4103 = vrot.slane %v4102, 1
        %v4104 = vadd.f32 %v4102, %v4103
        %v4105 = vadd.f32 %v4050, %v4052
        %v4106 = vadd.f32 %v4105, %v4054
        %v4107 = vrot.slane %v4106, 4
        %v4108 = vadd.f32 %v4106, %v4107
        %v4109 = vrot.slane %v4108, 2
        %v4110 = vadd.f32 %v4108, %v4109
        %v4111 = vrot.slane %v4110, 1
        %v4112 = vadd.f32 %v4110, %v4111
        %v4113 = vadd.f32 %v4055, %v4057
        %v4114 = vadd.f32 %v4113, %v4059
        %v4115 = vrot.slane %v4114, 4
        %v4116 = vadd.f32 %v4114, %v4115
        %v4117 = vrot.slane %v4116, 2
        %v4118 = vadd.f32 %v4116, %v4117
        %v4119 = vrot.slane %v4118, 1
        %v4120 = vadd.f32 %v4118, %v4119
        %v4121 = vadd.f32 %v4056, %v4058
        %v4122 = vadd.f32 %v4121, %v4060
        %v4123 = vrot.slane %v4122, 4
        %v4124 = vadd.f32 %v4122, %v4123
        %v4125 = vrot.slane %v4124, 2
        %v4126 = vadd.f32 %v4124, %v4125
        %v4127 = vrot.slane %v4126, 1
        %v4128 = vadd.f32 %v4126, %v4127
        %v4129 = vadd.f32 %v4061, %v4063
        %v4130 = vadd.f32 %v4129, %v4065
        %v4131 = vrot.slane %v4130, 4
        %v4132 = vadd.f32 %v4130, %v4131
        %v4133 = vrot.slane %v4132, 2
        %v4134 = vadd.f32 %v4132, %v4133
        %v4135 = vrot.slane %v4134, 1
        %v4136 = vadd.f32 %v4134, %v4135
        %v4137 = vadd.f32 %v4062, %v4064
        %v4138 = vadd.f32 %v4137, %v4066
        %v4139 = vrot.slane %v4138, 4
        %v4140 = vadd.f32 %v4138, %v4139
        %v4141 = vrot.slane %v4140, 2
        %v4142 = vadd.f32 %v4140, %v4141
        %v4143 = vrot.slane %v4142, 1
        %v4144 = vadd.f32 %v4142, %v4143
        %v4145 = vadd.f32 %v4067, %v4069
        %v4146 = vadd.f32 %v4145, %v4071
        %v4147 = vrot.slane %v4146, 4
        %v4148 = vadd.f32 %v4146, %v4147
        %v4149 = vrot.slane %v4148, 2
        %v4150 = vadd.f32 %v4148, %v4149
        %v4151 = vrot.slane %v4150, 1
        %v4152 = vadd.f32 %v4150, %v4151
        %v4153 = vadd.f32 %v4068, %v4070
        %v4154 = vadd.f32 %v4153, %v4072
        %v4155 = vrot.slane %v4154, 4
        %v4156 = vadd.f32 %v4154, %v4155
        %v4157 = vrot.slane %v4156, 2
        %v4158 = vadd.f32 %v4156, %v4157
        %v4159 = vrot.slane %v4158, 1
        %v4160 = vadd.f32 %v4158, %v4159
        %v4161 = vadd.f32 %v4073, %v4075
        %v4162 = vadd.f32 %v4161, %v4077
        %v4163 = vrot.slane %v4162, 4
        %v4164 = vadd.f32 %v4162, %v4163
        %v4165 = vrot.slane %v4164, 2
        %v4166 = vadd.f32 %v4164, %v4165
        %v4167 = vrot.slane %v4166, 1
        %v4168 = vadd.f32 %v4166, %v4167
        %v4169 = vadd.f32 %v4074, %v4076
        %v4170 = vadd.f32 %v4169, %v4078
        %v4171 = vrot.slane %v4170, 4
        %v4172 = vadd.f32 %v4170, %v4171
        %v4173 = vrot.slane %v4172, 2
        %v4174 = vadd.f32 %v4172, %v4173
        %v4175 = vrot.slane %v4174, 1
        %v4176 = vadd.f32 %v4174, %v4175
        %v4177 = vadd.f32 %v4079, %v4081
        %v4178 = vadd.f32 %v4177, %v4083
        %v4179 = vrot.slane %v4178, 4
        %v4180 = vadd.f32 %v4178, %v4179
        %v4181 = vrot.slane %v4180, 2
        %v4182 = vadd.f32 %v4180, %v4181
        %v4183 = vrot.slane %v4182, 1
        %v4184 = vadd.f32 %v4182, %v4183
        %v4185 = vadd.f32 %v4080, %v4082
        %v4186 = vadd.f32 %v4185, %v4084
        %v4187 = vrot.slane %v4186, 4
        %v4188 = vadd.f32 %v4186, %v4187
        %v4189 = vrot.slane %v4188, 2
        %v4190 = vadd.f32 %v4188, %v4189
        %v4191 = vrot.slane %v4190, 1
        %v4192 = vadd.f32 %v4190, %v4191
        %v4193 = vadd.f32 %v4085, %v4087
        %v4194 = vadd.f32 %v4193, %v4089
        %v4195 = vrot.slane %v4194, 4
        %v4196 = vadd.f32 %v4194, %v4195
        %v4197 = vrot.slane %v4196, 2
        %v4198 = vadd.f32 %v4196, %v4197
        %v4199 = vrot.slane %v4198, 1
        %v4200 = vadd.f32 %v4198, %v4199
        %v4201 = vadd.f32 %v4086, %v4088
        %v4202 = vadd.f32 %v4201, %v4090
        %v4203 = vrot.slane %v4202, 4
        %v4204 = vadd.f32 %v4202, %v4203
        %v4205 = vrot.slane %v4204, 2
        %v4206 = vadd.f32 %v4204, %v4205
        %v4207 = vrot.slane %v4206, 1
        %v4208 = vadd.f32 %v4206, %v4207
        %v4209 = vadd.f32 %v4091, %v4093
        %v4210 = vadd.f32 %v4209, %v4095
        %v4211 = vrot.slane %v4210, 4
        %v4212 = vadd.f32 %v4210, %v4211
        %v4213 = vrot.slane %v4212, 2
        %v4214 = vadd.f32 %v4212, %v4213
        %v4215 = vrot.slane %v4214, 1
        %v4216 = vadd.f32 %v4214, %v4215
        %v4217 = vadd.f32 %v4092, %v4094
        %v4218 = vadd.f32 %v4217, %v4096
        %v4219 = vrot.slane %v4218, 4
        %v4220 = vadd.f32 %v4218, %v4219
        %v4221 = vrot.slane %v4220, 2
        %v4222 = vadd.f32 %v4220, %v4221
        %v4223 = vrot.slane %v4222, 1
        %v4224 = vadd.f32 %v4222, %v4223
        %v4225 = vpack.c.bf16 %v4104, %v4104
        %v4226 = vpack.c.bf16 %v4112, %v4112
        %v4227 = vpack.c.bf16 %v4120, %v4120
        %v4228 = vpack.c.bf16 %v4128, %v4128
        %v4229 = vpack.c.bf16 %v4136, %v4136
        %v4230 = vpack.c.bf16 %v4144, %v4144
        %v4231 = vpack.c.bf16 %v4152, %v4152
        %v4232 = vpack.c.bf16 %v4160, %v4160
        %v4233 = vpack.c.bf16 %v4168, %v4168
        %v4234 = vpack.c.bf16 %v4176, %v4176
        %v4235 = vpack.c.bf16 %v4184, %v4184
        %v4236 = vpack.c.bf16 %v4192, %v4192
        %v4237 = vpack.c.bf16 %v4200, %v4200
        %v4238 = vpack.c.bf16 %v4208, %v4208
        %v4239 = vpack.c.bf16 %v4216, %v4216
        %v4240 = vpack.c.bf16 %v4224, %v4224
        %v4257 = vunpack.c.l.b16 %v4225
        %v4258 = vunpack.c.l.b16 %v4226
        %v4259 = vunpack.c.l.b16 %v4227
        %v4260 = vunpack.c.l.b16 %v4228
        %v4261 = vunpack.c.l.b16 %v4229
        %v4262 = vunpack.c.l.b16 %v4230
        %v4263 = vunpack.c.l.b16 %v4231
        %v4264 = vunpack.c.l.b16 %v4232
        %v4265 = vunpack.c.l.b16 %v4233
        %v4266 = vunpack.c.l.b16 %v4234
        %v4267 = vunpack.c.l.b16 %v4235
        %v4268 = vunpack.c.l.b16 %v4236
        %v4269 = vunpack.c.l.b16 %v4237
        %v4270 = vunpack.c.l.b16 %v4238
        %v4271 = vunpack.c.l.b16 %v4239
        %v4272 = vunpack.c.l.b16 %v4240
        %v4273 = vpack.c.b16 %v4258, %v4257
        %v4274 = vpack.c.b16 %v4260, %v4259
        %v4275 = vpack.c.b16 %v4262, %v4261
        %v4276 = vpack.c.b16 %v4264, %v4263
        %v4277 = vpack.c.b16 %v4266, %v4265
        %v4278 = vpack.c.b16 %v4268, %v4267
        %v4279 = vpack.c.b16 %v4270, %v4269
        %v4280 = vpack.c.b16 %v4272, %v4271
        %v4281 = vunpack.c.l.b16 %v4273
        %v4282 = vunpack.c.h.b16 %v4273
        %v4283 = vunpack.c.l.b16 %v4274
        %v4284 = vunpack.c.h.b16 %v4274
        %v4285 = vunpack.c.l.b16 %v4275
        %v4286 = vunpack.c.h.b16 %v4275
        %v4287 = vunpack.c.l.b16 %v4276
        %v4288 = vunpack.c.h.b16 %v4276
        %v4289 = vunpack.c.l.b16 %v4277
        %v4290 = vunpack.c.h.b16 %v4277
        %v4291 = vunpack.c.l.b16 %v4278
        %v4292 = vunpack.c.h.b16 %v4278
        %v4293 = vunpack.c.l.b16 %v4279
        %v4294 = vunpack.c.h.b16 %v4279
        %v4295 = vunpack.c.l.b16 %v4280
        %v4296 = vunpack.c.h.b16 %v4280
        %v4297 = vsel %vm1154, %v4283, %v4281
        %v4298 = vsel %vm1156, %v4285, %v4297
        %v4299 = vsel %vm1158, %v4287, %v4298
        %v4300 = vsel %vm1160, %v4289, %v4299
        %v4301 = vsel %vm1162, %v4291, %v4300
        %v4302 = vsel %vm1164, %v4293, %v4301
        %v4303 = vsel %vm1166, %v4295, %v4302
        %v4304 = vsel %vm1154, %v4284, %v4282
        %v4305 = vsel %vm1156, %v4286, %v4304
        %v4306 = vsel %vm1158, %v4288, %v4305
        %v4307 = vsel %vm1160, %v4290, %v4306
        %v4308 = vsel %vm1162, %v4292, %v4307
        %v4309 = vsel %vm1164, %v4294, %v4308
        %v4310 = vsel %vm1166, %v4296, %v4309
        %v4311 = vpack.c.b16 %v4310, %v4303
        %4313 = vst [vmem:[#allocation2 + $0x20] sm:$0xff] %v4311
        %v4314 = vlaneseq
        %v4315 = vshrl.u32 %v4314, 7
        %v4316 = vsub.s32 5, %v4315
        %v4317 = vrot.slane %v362, %v4316
        %v4318 = vlaneseq
        %v4319 = vshrl.u32 %v4318, 7
        %v4320 = vsub.s32 5, %v4319
        %v4321 = vrot.slane %v363, %v4320
        %vm4322 = vcmp.eq.s32.totalorder %v371, %v4317
        %vm4323 = vcmp.eq.s32.totalorder %v371, %v4321
        %vm4324 = vcmp.eq.s32.totalorder %v372, %v4317
        %vm4325 = vcmp.eq.s32.totalorder %v372, %v4321
        %vm4326 = vcmp.eq.s32.totalorder %v373, %v4317
        %vm4327 = vcmp.eq.s32.totalorder %v373, %v4321
        %vm4328 = vcmp.eq.s32.totalorder %v374, %v4317
        %vm4329 = vcmp.eq.s32.totalorder %v374, %v4321
        %vm4330 = vcmp.eq.s32.totalorder %v375, %v4317
        %vm4331 = vcmp.eq.s32.totalorder %v375, %v4321
        %vm4332 = vcmp.eq.s32.totalorder %v376, %v4317
        %vm4333 = vcmp.eq.s32.totalorder %v376, %v4321
        %vm4334 = vcmp.eq.s32.totalorder %v377, %v4317
        %vm4335 = vcmp.eq.s32.totalorder %v377, %v4321
        %vm4336 = vcmp.eq.s32.totalorder %v378, %v4317
        %vm4337 = vcmp.eq.s32.totalorder %v378, %v4321
        %vm4338 = vcmp.eq.s32.totalorder %v379, %v4317
        %vm4339 = vcmp.eq.s32.totalorder %v379, %v4321
        %vm4340 = vcmp.eq.s32.totalorder %v380, %v4317
        %vm4341 = vcmp.eq.s32.totalorder %v380, %v4321
        %vm4342 = vcmp.eq.s32.totalorder %v381, %v4317
        %vm4343 = vcmp.eq.s32.totalorder %v381, %v4321
        %vm4344 = vcmp.eq.s32.totalorder %v382, %v4317
        %vm4345 = vcmp.eq.s32.totalorder %v382, %v4321
        %vm4346 = vcmp.eq.s32.totalorder %v383, %v4317
        %vm4347 = vcmp.eq.s32.totalorder %v383, %v4321
        %vm4348 = vcmp.eq.s32.totalorder %v384, %v4317
        %vm4349 = vcmp.eq.s32.totalorder %v384, %v4321
        %vm4350 = vcmp.eq.s32.totalorder %v385, %v4317
        %vm4351 = vcmp.eq.s32.totalorder %v385, %v4321
        %vm4352 = vcmp.eq.s32.totalorder %v386, %v4317
        %vm4353 = vcmp.eq.s32.totalorder %v386, %v4321
        %v4354 = vlaneseq
        %v4355 = vshrl.u32 %v4354, 7
        %v4356 = vsub.s32 5, %v4355
        %v4357 = vrot.slane %v342, %v4356
        %v4358 = vlaneseq
        %v4359 = vshrl.u32 %v4358, 7
        %v4360 = vsub.s32 5, %v4359
        %v4361 = vrot.slane %v343, %v4360
        %v4362 = vsel %vm4322, %v4357, 0.0
        %v4363 = vsel %vm4323, %v4361, 0.0
        %v4364 = vsel %vm4324, %v4357, 0.0
        %v4365 = vsel %vm4325, %v4361, 0.0
        %v4366 = vsel %vm4326, %v4357, 0.0
        %v4367 = vsel %vm4327, %v4361, 0.0
        %v4368 = vsel %vm4328, %v4357, 0.0
        %v4369 = vsel %vm4329, %v4361, 0.0
        %v4370 = vsel %vm4330, %v4357, 0.0
        %v4371 = vsel %vm4331, %v4361, 0.0
        %v4372 = vsel %vm4332, %v4357, 0.0
        %v4373 = vsel %vm4333, %v4361, 0.0
        %v4374 = vsel %vm4334, %v4357, 0.0
        %v4375 = vsel %vm4335, %v4361, 0.0
        %v4376 = vsel %vm4336, %v4357, 0.0
        %v4377 = vsel %vm4337, %v4361, 0.0
        %v4378 = vsel %vm4338, %v4357, 0.0
        %v4379 = vsel %vm4339, %v4361, 0.0
        %v4380 = vsel %vm4340, %v4357, 0.0
        %v4381 = vsel %vm4341, %v4361, 0.0
        %v4382 = vsel %vm4342, %v4357, 0.0
        %v4383 = vsel %vm4343, %v4361, 0.0
        %v4384 = vsel %vm4344, %v4357, 0.0
        %v4385 = vsel %vm4345, %v4361, 0.0
        %v4386 = vsel %vm4346, %v4357, 0.0
        %v4387 = vsel %vm4347, %v4361, 0.0
        %v4388 = vsel %vm4348, %v4357, 0.0
        %v4389 = vsel %vm4349, %v4361, 0.0
        %v4390 = vsel %vm4350, %v4357, 0.0
        %v4391 = vsel %vm4351, %v4361, 0.0
        %v4392 = vsel %vm4352, %v4357, 0.0
        %v4393 = vsel %vm4353, %v4361, 0.0
        %v4394 = vlaneseq
        %v4395 = vshrl.u32 %v4394, 7
        %v4396 = vsub.s32 5, %v4395
        %v4397 = vrot.slane %v366, %v4396
        %v4398 = vlaneseq
        %v4399 = vshrl.u32 %v4398, 7
        %v4400 = vsub.s32 5, %v4399
        %v4401 = vrot.slane %v367, %v4400
        %vm4402 = vcmp.eq.s32.totalorder %v371, %v4397
        %vm4403 = vcmp.eq.s32.totalorder %v371, %v4401
        %vm4404 = vcmp.eq.s32.totalorder %v372, %v4397
        %vm4405 = vcmp.eq.s32.totalorder %v372, %v4401
        %vm4406 = vcmp.eq.s32.totalorder %v373, %v4397
        %vm4407 = vcmp.eq.s32.totalorder %v373, %v4401
        %vm4408 = vcmp.eq.s32.totalorder %v374, %v4397
        %vm4409 = vcmp.eq.s32.totalorder %v374, %v4401
        %vm4410 = vcmp.eq.s32.totalorder %v375, %v4397
        %vm4411 = vcmp.eq.s32.totalorder %v375, %v4401
        %vm4412 = vcmp.eq.s32.totalorder %v376, %v4397
        %vm4413 = vcmp.eq.s32.totalorder %v376, %v4401
        %vm4414 = vcmp.eq.s32.totalorder %v377, %v4397
        %vm4415 = vcmp.eq.s32.totalorder %v377, %v4401
        %vm4416 = vcmp.eq.s32.totalorder %v378, %v4397
        %vm4417 = vcmp.eq.s32.totalorder %v378, %v4401
        %vm4418 = vcmp.eq.s32.totalorder %v379, %v4397
        %vm4419 = vcmp.eq.s32.totalorder %v379, %v4401
        %vm4420 = vcmp.eq.s32.totalorder %v380, %v4397
        %vm4421 = vcmp.eq.s32.totalorder %v380, %v4401
        %vm4422 = vcmp.eq.s32.totalorder %v381, %v4397
        %vm4423 = vcmp.eq.s32.totalorder %v381, %v4401
        %vm4424 = vcmp.eq.s32.totalorder %v382, %v4397
        %vm4425 = vcmp.eq.s32.totalorder %v382, %v4401
        %vm4426 = vcmp.eq.s32.totalorder %v383, %v4397
        %vm4427 = vcmp.eq.s32.totalorder %v383, %v4401
        %vm4428 = vcmp.eq.s32.totalorder %v384, %v4397
        %vm4429 = vcmp.eq.s32.totalorder %v384, %v4401
        %vm4430 = vcmp.eq.s32.totalorder %v385, %v4397
        %vm4431 = vcmp.eq.s32.totalorder %v385, %v4401
        %vm4432 = vcmp.eq.s32.totalorder %v386, %v4397
        %vm4433 = vcmp.eq.s32.totalorder %v386, %v4401
        %v4434 = vlaneseq
        %v4435 = vshrl.u32 %v4434, 7
        %v4436 = vsub.s32 5, %v4435
        %v4437 = vrot.slane %v350, %v4436
        %v4438 = vlaneseq
        %v4439 = vshrl.u32 %v4438, 7
        %v4440 = vsub.s32 5, %v4439
        %v4441 = vrot.slane %v351, %v4440
        %v4442 = vsel %vm4402, %v4437, 0.0
        %v4443 = vsel %vm4403, %v4441, 0.0
        %v4444 = vsel %vm4404, %v4437, 0.0
        %v4445 = vsel %vm4405, %v4441, 0.0
        %v4446 = vsel %vm4406, %v4437, 0.0
        %v4447 = vsel %vm4407, %v4441, 0.0
        %v4448 = vsel %vm4408, %v4437, 0.0
        %v4449 = vsel %vm4409, %v4441, 0.0
        %v4450 = vsel %vm4410, %v4437, 0.0
        %v4451 = vsel %vm4411, %v4441, 0.0
        %v4452 = vsel %vm4412, %v4437, 0.0
        %v4453 = vsel %vm4413, %v4441, 0.0
        %v4454 = vsel %vm4414, %v4437, 0.0
        %v4455 = vsel %vm4415, %v4441, 0.0
        %v4456 = vsel %vm4416, %v4437, 0.0
        %v4457 = vsel %vm4417, %v4441, 0.0
        %v4458 = vsel %vm4418, %v4437, 0.0
        %v4459 = vsel %vm4419, %v4441, 0.0
        %v4460 = vsel %vm4420, %v4437, 0.0
        %v4461 = vsel %vm4421, %v4441, 0.0
        %v4462 = vsel %vm4422, %v4437, 0.0
        %v4463 = vsel %vm4423, %v4441, 0.0
        %v4464 = vsel %vm4424, %v4437, 0.0
        %v4465 = vsel %vm4425, %v4441, 0.0
        %v4466 = vsel %vm4426, %v4437, 0.0
        %v4467 = vsel %vm4427, %v4441, 0.0
        %v4468 = vsel %vm4428, %v4437, 0.0
        %v4469 = vsel %vm4429, %v4441, 0.0
        %v4470 = vsel %vm4430, %v4437, 0.0
        %v4471 = vsel %vm4431, %v4441, 0.0
        %v4472 = vsel %vm4432, %v4437, 0.0
        %v4473 = vsel %vm4433, %v4441, 0.0
        %v4474 = vadd.f32 %v4362, %v4442
        %v4475 = vadd.f32 %v4363, %v4443
        %v4476 = vadd.f32 %v4364, %v4444
        %v4477 = vadd.f32 %v4365, %v4445
        %v4478 = vadd.f32 %v4366, %v4446
        %v4479 = vadd.f32 %v4367, %v4447
        %v4480 = vadd.f32 %v4368, %v4448
        %v4481 = vadd.f32 %v4369, %v4449
        %v4482 = vadd.f32 %v4370, %v4450
        %v4483 = vadd.f32 %v4371, %v4451
        %v4484 = vadd.f32 %v4372, %v4452
        %v4485 = vadd.f32 %v4373, %v4453
        %v4486 = vadd.f32 %v4374, %v4454
        %v4487 = vadd.f32 %v4375, %v4455
        %v4488 = vadd.f32 %v4376, %v4456
        %v4489 = vadd.f32 %v4377, %v4457
        %v4490 = vadd.f32 %v4378, %v4458
        %v4491 = vadd.f32 %v4379, %v4459
        %v4492 = vadd.f32 %v4380, %v4460
        %v4493 = vadd.f32 %v4381, %v4461
        %v4494 = vadd.f32 %v4382, %v4462
        %v4495 = vadd.f32 %v4383, %v4463
        %v4496 = vadd.f32 %v4384, %v4464
        %v4497 = vadd.f32 %v4385, %v4465
        %v4498 = vadd.f32 %v4386, %v4466
        %v4499 = vadd.f32 %v4387, %v4467
        %v4500 = vadd.f32 %v4388, %v4468
        %v4501 = vadd.f32 %v4389, %v4469
        %v4502 = vadd.f32 %v4390, %v4470
        %v4503 = vadd.f32 %v4391, %v4471
        %v4504 = vadd.f32 %v4392, %v4472
        %v4505 = vadd.f32 %v4393, %v4473
        %v4506 = vpack.c.bf16 %v4476, %v4474
        %v4507 = vpack.c.bf16 %v4477, %v4475
        %v4508 = vpack.c.bf16 %v4480, %v4478
        %v4509 = vpack.c.bf16 %v4481, %v4479
        %v4510 = vpack.c.bf16 %v4484, %v4482
        %v4511 = vpack.c.bf16 %v4485, %v4483
        %v4512 = vpack.c.bf16 %v4488, %v4486
        %v4513 = vpack.c.bf16 %v4489, %v4487
        %v4514 = vpack.c.bf16 %v4492, %v4490
        %v4515 = vpack.c.bf16 %v4493, %v4491
        %v4516 = vpack.c.bf16 %v4496, %v4494
        %v4517 = vpack.c.bf16 %v4497, %v4495
        %v4518 = vpack.c.bf16 %v4500, %v4498
        %v4519 = vpack.c.bf16 %v4501, %v4499
        %v4520 = vpack.c.bf16 %v4504, %v4502
        %v4521 = vpack.c.bf16 %v4505, %v4503
        %v4522 = vlaneseq
        %v4523 = vshrl.u32 %v4522, 7
        %v4524 = vsub.s32 5, %v4523
        %v4525 = vrot.slane %v354, %v4524
        %v4526 = vlaneseq
        %v4527 = vshrl.u32 %v4526, 7
        %v4528 = vsub.s32 5, %v4527
        %v4529 = vrot.slane %v355, %v4528
        %vm4530 = vcmp.eq.s32.totalorder %v371, %v4525
        %vm4531 = vcmp.eq.s32.totalorder %v371, %v4529
        %vm4532 = vcmp.eq.s32.totalorder %v372, %v4525
        %vm4533 = vcmp.eq.s32.totalorder %v372, %v4529
        %vm4534 = vcmp.eq.s32.totalorder %v373, %v4525
        %vm4535 = vcmp.eq.s32.totalorder %v373, %v4529
        %v4536 = vlaneseq
        %v4537 = vshrl.u32 %v4536, 7
        %v4538 = vsub.s32 5, %v4537
        %v4539 = vrot.slane %v326, %v4538
        %v4540 = vlaneseq
        %v4541 = vshrl.u32 %v4540, 7
        %v4542 = vsub.s32 5, %v4541
        %v4543 = vrot.slane %v327, %v4542
        %v4544 = vsel %vm4530, %v4539, 0.0
        %v4545 = vsel %vm4531, %v4543, 0.0
        %v4546 = vsel %vm4532, %v4539, 0.0
        %v4547 = vsel %vm4533, %v4543, 0.0
        %v4548 = vsel %vm4534, %v4539, 0.0
        %v4549 = vsel %vm4535, %v4543, 0.0
        %v4550 = vlaneseq
        %v4551 = vshrl.u32 %v4550, 7
        %v4552 = vsub.s32 5, %v4551
        %v4553 = vrot.slane %v358, %v4552
        %v4554 = vlaneseq
        %v4555 = vshrl.u32 %v4554, 7
        %v4556 = vsub.s32 5, %v4555
        %v4557 = vrot.slane %v359, %v4556
        %vm4558 = vcmp.eq.s32.totalorder %v371, %v4553
        %vm4559 = vcmp.eq.s32.totalorder %v371, %v4557
        %vm4560 = vcmp.eq.s32.totalorder %v372, %v4553
        %vm4561 = vcmp.eq.s32.totalorder %v372, %v4557
        %vm4562 = vcmp.eq.s32.totalorder %v373, %v4553
        %vm4563 = vcmp.eq.s32.totalorder %v373, %v4557
        %v4564 = vlaneseq
        %v4565 = vshrl.u32 %v4564, 7
        %v4566 = vsub.s32 5, %v4565
        %v4567 = vrot.slane %v334, %v4566
        %v4568 = vlaneseq
        %v4569 = vshrl.u32 %v4568, 7
        %v4570 = vsub.s32 5, %v4569
        %v4571 = vrot.slane %v335, %v4570
        %v4572 = vsel %vm4558, %v4567, 0.0
        %v4573 = vsel %vm4559, %v4571, 0.0
        %v4574 = vsel %vm4560, %v4567, 0.0
        %v4575 = vsel %vm4561, %v4571, 0.0
        %v4576 = vsel %vm4562, %v4567, 0.0
        %v4577 = vsel %vm4563, %v4571, 0.0
        %v4578 = vadd.f32 %v4544, %v4572
        %v4579 = vadd.f32 %v4545, %v4573
        %v4580 = vadd.f32 %v4546, %v4574
        %v4581 = vadd.f32 %v4547, %v4575
        %v4582 = vadd.f32 %v4548, %v4576
        %v4583 = vadd.f32 %v4549, %v4577
        %v4584 = vld [vmem:[%s210] sm:$0xf]
        %v4585 = vld [vmem:[%s210 + $0x4] sm:$0xf]
        %v4586 = vld [vmem:[%s210 + $0x8] sm:$0xf]
        %v4587 = vld [vmem:[%s210 + $0xc] sm:$0xf]
        %v4588 = vld [vmem:[%s210 + $0x10] sm:$0xf]
        %v4589 = vld [vmem:[%s210 + $0x14] sm:$0xf]
        %v4590 = vld [vmem:[%s210 + $0x18] sm:$0xf]
        %v4591 = vld [vmem:[%s210 + $0x1c] sm:$0xf]
        %v4592 = vld [vmem:[%s210 + $0x20] sm:$0xf]
        %v4593 = vld [vmem:[%s210 + $0x24] sm:$0xf]
        %v4594 = vld [vmem:[%s210 + $0x28] sm:$0xf]
        %v4595 = vld [vmem:[%s210 + $0x2c] sm:$0xf]
        %v4596 = vld [vmem:[%s210 + $0x30] sm:$0xf]
        %v4597 = vld [vmem:[%s210 + $0x34] sm:$0xf]
        %v4598 = vld [vmem:[%s210 + $0x38] sm:$0xf]
        %v4599 = vld [vmem:[%s210 + $0x3c] sm:$0xf]
        %v4600 = vld [vmem:[%s210 + $0x40] sm:$0xf]
        %v4601 = vld [vmem:[%s210 + $0x44] sm:$0xf]
        %v4602 = vld [vmem:[%s210 + $0x48] sm:$0xf]
        %v4603 = vld [vmem:[%s210 + $0x4c] sm:$0xf]
        %v4604 = vld [vmem:[%s210 + $0x50] sm:$0xf]
        %v4605 = vld [vmem:[%s210 + $0x54] sm:$0xf]
        %v4606 = vld [vmem:[%s210 + $0x58] sm:$0xf]
        %v4607 = vld [vmem:[%s210 + $0x5c] sm:$0xf]
        %v4632 = vunpack.c.l.b16 %v4584
        %v4633 = vunpack.c.l.b16 %v4585
        %v4634 = vunpack.c.l.b16 %v4586
        %v4635 = vunpack.c.l.b16 %v4587
        %v4636 = vunpack.c.l.b16 %v4588
        %v4637 = vunpack.c.l.b16 %v4589
        %v4638 = vunpack.c.l.b16 %v4590
        %v4639 = vunpack.c.l.b16 %v4591
        %v4640 = vunpack.c.l.b16 %v4592
        %v4641 = vunpack.c.l.b16 %v4593
        %v4642 = vunpack.c.l.b16 %v4594
        %v4643 = vunpack.c.l.b16 %v4595
        %v4644 = vunpack.c.l.b16 %v4596
        %v4645 = vunpack.c.l.b16 %v4597
        %v4646 = vunpack.c.l.b16 %v4598
        %v4647 = vunpack.c.l.b16 %v4599
        %v4648 = vunpack.c.l.b16 %v4600
        %v4649 = vunpack.c.l.b16 %v4601
        %v4650 = vunpack.c.l.b16 %v4602
        %v4651 = vunpack.c.l.b16 %v4603
        %v4652 = vunpack.c.l.b16 %v4604
        %v4653 = vunpack.c.l.b16 %v4605
        %v4654 = vunpack.c.l.b16 %v4606
        %v4655 = vunpack.c.l.b16 %v4607
        %v4656 = vpack.c.b16 %v4633, %v4632
        %v4657 = vpack.c.b16 %v4635, %v4634
        %v4658 = vpack.c.b16 %v4637, %v4636
        %v4659 = vpack.c.b16 %v4639, %v4638
        %v4660 = vpack.c.b16 %v4641, %v4640
        %v4661 = vpack.c.b16 %v4643, %v4642
        %v4662 = vpack.c.b16 %v4645, %v4644
        %v4663 = vpack.c.b16 %v4647, %v4646
        %v4664 = vpack.c.b16 %v4649, %v4648
        %v4665 = vpack.c.b16 %v4651, %v4650
        %v4666 = vpack.c.b16 %v4653, %v4652
        %v4667 = vpack.c.b16 %v4655, %v4654
        %4680 = vmatprep.subr.bf16.mxu0 %v4507
        %4681 = vmatpush1.bf16.msra.mxu0 %v4506
        %4682 = vmatprep.subr.bf16.mxu0 %v4509
        %4683 = vmatpush1.bf16.msra.mxu0 %v4508
        %4684 = vmatprep.subr.bf16.mxu0 %v4511
        %4685 = vmatpush1.bf16.msra.mxu0 %v4510
        %4686 = vmatprep.subr.bf16.mxu0 %v4513
        %4687 = vmatpush1.bf16.msra.mxu0 %v4512
        %4688 = vmatprep.subr.bf16.mxu0 %v4515
        %4689 = vmatpush1.bf16.msra.mxu0 %v4514
        %4690 = vmatprep.subr.bf16.mxu0 %v4517
        %4691 = vmatpush1.bf16.msra.mxu0 %v4516
        %4692 = vmatprep.subr.bf16.mxu0 %v4519
        %4693 = vmatpush1.bf16.msra.mxu0 %v4518
        %4694 = vmatprep.subr.bf16.mxu0 %v4521
        %4695 = vmatpush1.bf16.msra.mxu0 %v4520
        %4696 = vmatprep.subr.bf16.mxu0 0
        %4697 = vmatpush1.bf16.msra.mxu0 0
        %4698 = vmatprep.subr.bf16.mxu0 0
        %4699 = vmatpush1.bf16.msra.mxu0 0
        %4700 = vmatprep.subr.bf16.mxu0 0
        %4701 = vmatpush1.bf16.msra.mxu0 0
        %4702 = vmatprep.subr.bf16.mxu0 0
        %4703 = vmatpush1.bf16.msra.mxu0 0
        %4704 = vmatprep.subr.bf16.mxu0 0
        %4705 = vmatpush1.bf16.msra.mxu0 0
        %4706 = vmatprep.subr.bf16.mxu0 0
        %4707 = vmatpush1.bf16.msra.mxu0 0
        %4708 = vmatprep.subr.bf16.mxu0 0
        %4709 = vmatpush1.bf16.msra.mxu0 0
        %4710 = vmatprep.subr.bf16.mxu0 0
        %4711 = vmatpush1.bf16.msra.mxu0 0
        %4712 = vmatprep.mubr.bf16.mxu0 0
        %4713 = vmatmul.mubr.bf16.gmra.mrb[0].mxu0 %v4656
        %v4714 = vpop.f32.mrb[0].mxu0
        %v4715 = vadd.f32 0.0, %v4714
        %v4716 = vpop.f32.mrb[0].mxu0
        %v4717 = vadd.f32 0.0, %v4716
        %v4718 = vpop.f32.mrb[0].mxu0
        %v4719 = vadd.f32 0.0, %v4718
        %v4720 = vpop.f32.mrb[0].mxu0
        %v4721 = vadd.f32 0.0, %v4720
        %4722 = vmatprep.mubr.bf16.mxu0 0
        %4723 = vmatmul.mubr.bf16.gmra.mrb[0].mxu0 %v4657
        %v4724 = vpop.f32.mrb[0].mxu0
        %v4725 = vadd.f32 0.0, %v4724
        %v4726 = vpop.f32.mrb[0].mxu0
        %v4727 = vadd.f32 0.0, %v4726
        %v4728 = vpop.f32.mrb[0].mxu0
        %v4729 = vadd.f32 0.0, %v4728
        %v4730 = vpop.f32.mrb[0].mxu0
        %v4731 = vadd.f32 0.0, %v4730
        %4732 = vmatprep.mubr.bf16.mxu0 0
        %4733 = vmatmul.mubr.bf16.gmra.mrb[0].mxu0 %v4658
        %v4734 = vpop.f32.mrb[0].mxu0
        %v4735 = vadd.f32 0.0, %v4734
        %v4736 = vpop.f32.mrb[0].mxu0
        %v4737 = vadd.f32 0.0, %v4736
        %v4738 = vpop.f32.mrb[0].mxu0
        %v4739 = vadd.f32 0.0, %v4738
        %v4740 = vpop.f32.mrb[0].mxu0
        %v4741 = vadd.f32 0.0, %v4740
        %4742 = vmatprep.mubr.bf16.mxu0 0
        %4743 = vmatmul.mubr.bf16.gmra.mrb[0].mxu0 %v4659
        %v4744 = vpop.f32.mrb[0].mxu0
        %v4745 = vadd.f32 0.0, %v4744
        %v4746 = vpop.f32.mrb[0].mxu0
        %v4747 = vadd.f32 0.0, %v4746
        %v4748 = vpop.f32.mrb[0].mxu0
        %v4749 = vadd.f32 0.0, %v4748
        %v4750 = vpop.f32.mrb[0].mxu0
        %v4751 = vadd.f32 0.0, %v4750
        %4752 = vmatprep.mubr.bf16.mxu0 0
        %4753 = vmatmul.mubr.bf16.gmra.mrb[0].mxu0 %v4660
        %v4754 = vpop.f32.mrb[0].mxu0
        %v4755 = vadd.f32 0.0, %v4754
        %v4756 = vpop.f32.mrb[0].mxu0
        %v4757 = vadd.f32 0.0, %v4756
        %v4758 = vpop.f32.mrb[0].mxu0
        %v4759 = vadd.f32 0.0, %v4758
        %v4760 = vpop.f32.mrb[0].mxu0
        %v4761 = vadd.f32 0.0, %v4760
        %4762 = vmatprep.mubr.bf16.mxu0 0
        %4763 = vmatmul.mubr.bf16.gmra.mrb[0].mxu0 %v4661
        %v4764 = vpop.f32.mrb[0].mxu0
        %v4765 = vadd.f32 0.0, %v4764
        %v4766 = vpop.f32.mrb[0].mxu0
        %v4767 = vadd.f32 0.0, %v4766
        %v4768 = vpop.f32.mrb[0].mxu0
        %v4769 = vadd.f32 0.0, %v4768
        %v4770 = vpop.f32.mrb[0].mxu0
        %v4771 = vadd.f32 0.0, %v4770
        %4772 = vmatprep.mubr.bf16.mxu0 0
        %4773 = vmatmul.mubr.bf16.gmra.mrb[0].mxu0 %v4662
        %v4774 = vpop.f32.mrb[0].mxu0
        %v4775 = vadd.f32 0.0, %v4774
        %v4776 = vpop.f32.mrb[0].mxu0
        %v4777 = vadd.f32 0.0, %v4776
        %v4778 = vpop.f32.mrb[0].mxu0
        %v4779 = vadd.f32 0.0, %v4778
        %v4780 = vpop.f32.mrb[0].mxu0
        %v4781 = vadd.f32 0.0, %v4780
        %4782 = vmatprep.mubr.bf16.mxu0 0
        %4783 = vmatmul.mubr.bf16.gmra.mrb[0].mxu0 %v4663
        %v4784 = vpop.f32.mrb[0].mxu0
        %v4785 = vadd.f32 0.0, %v4784
        %v4786 = vpop.f32.mrb[0].mxu0
        %v4787 = vadd.f32 0.0, %v4786
        %v4788 = vpop.f32.mrb[0].mxu0
        %v4789 = vadd.f32 0.0, %v4788
        %v4790 = vpop.f32.mrb[0].mxu0
        %v4791 = vadd.f32 0.0, %v4790
        %4792 = vmatprep.mubr.bf16.mxu0 0
        %4793 = vmatmul.mubr.bf16.gmra.mrb[0].mxu0 %v4664
        %v4794 = vpop.f32.mrb[0].mxu0
        %v4795 = vadd.f32 0.0, %v4794
        %v4796 = vpop.f32.mrb[0].mxu0
        %v4797 = vadd.f32 0.0, %v4796
        %v4798 = vpop.f32.mrb[0].mxu0
        %v4799 = vadd.f32 0.0, %v4798
        %v4800 = vpop.f32.mrb[0].mxu0
        %v4801 = vadd.f32 0.0, %v4800
        %4802 = vmatprep.mubr.bf16.mxu0 0
        %4803 = vmatmul.mubr.bf16.gmra.mrb[0].mxu0 %v4665
        %v4804 = vpop.f32.mrb[0].mxu0
        %v4805 = vadd.f32 0.0, %v4804
        %v4806 = vpop.f32.mrb[0].mxu0
        %v4807 = vadd.f32 0.0, %v4806
        %v4808 = vpop.f32.mrb[0].mxu0
        %v4809 = vadd.f32 0.0, %v4808
        %v4810 = vpop.f32.mrb[0].mxu0
        %v4811 = vadd.f32 0.0, %v4810
        %4812 = vmatprep.mubr.bf16.mxu0 0
        %4813 = vmatmul.mubr.bf16.gmra.mrb[0].mxu0 %v4666
        %v4814 = vpop.f32.mrb[0].mxu0
        %v4815 = vadd.f32 0.0, %v4814
        %v4816 = vpop.f32.mrb[0].mxu0
        %v4817 = vadd.f32 0.0, %v4816
        %v4818 = vpop.f32.mrb[0].mxu0
        %v4819 = vadd.f32 0.0, %v4818
        %v4820 = vpop.f32.mrb[0].mxu0
        %v4821 = vadd.f32 0.0, %v4820
        %4822 = vmatprep.mubr.bf16.mxu0 0
        %4823 = vmatmul.mubr.bf16.gmra.mrb[0].mxu0 %v4667
        %v4824 = vpop.f32.mrb[0].mxu0
        %v4825 = vadd.f32 0.0, %v4824
        %v4826 = vpop.f32.mrb[0].mxu0
        %v4827 = vadd.f32 0.0, %v4826
        %v4828 = vpop.f32.mrb[0].mxu0
        %v4829 = vadd.f32 0.0, %v4828
        %v4830 = vpop.f32.mrb[0].mxu0
        %v4831 = vadd.f32 0.0, %v4830
        %4832 = vdwg.mxu0
        %v4833 = vmul.f32 %v4715, %v4578
        %v4834 = vmul.f32 %v4717, %v4579
        %v4835 = vmul.f32 %v4719, %v4580
        %v4836 = vmul.f32 %v4721, %v4581
        %v4837 = vmul.f32 %v4725, %v4582
        %v4838 = vmul.f32 %v4727, %v4583
        %v4839 = vmul.f32 %v4729, %v4578
        %v4840 = vmul.f32 %v4731, %v4579
        %v4841 = vmul.f32 %v4735, %v4580
        %v4842 = vmul.f32 %v4737, %v4581
        %v4843 = vmul.f32 %v4739, %v4582
        %v4844 = vmul.f32 %v4741, %v4583
        %v4845 = vmul.f32 %v4745, %v4578
        %v4846 = vmul.f32 %v4747, %v4579
        %v4847 = vmul.f32 %v4749, %v4580
        %v4848 = vmul.f32 %v4751, %v4581
        %v4849 = vmul.f32 %v4755, %v4582
        %v4850 = vmul.f32 %v4757, %v4583
        %v4851 = vmul.f32 %v4759, %v4578
        %v4852 = vmul.f32 %v4761, %v4579
        %v4853 = vmul.f32 %v4765, %v4580
        %v4854 = vmul.f32 %v4767, %v4581
        %v4855 = vmul.f32 %v4769, %v4582
        %v4856 = vmul.f32 %v4771, %v4583
        %v4857 = vmul.f32 %v4775, %v4578
        %v4858 = vmul.f32 %v4777, %v4579
        %v4859 = vmul.f32 %v4779, %v4580
        %v4860 = vmul.f32 %v4781, %v4581
        %v4861 = vmul.f32 %v4785, %v4582
        %v4862 = vmul.f32 %v4787, %v4583
        %v4863 = vmul.f32 %v4789, %v4578
        %v4864 = vmul.f32 %v4791, %v4579
        %v4865 = vmul.f32 %v4795, %v4580
        %v4866 = vmul.f32 %v4797, %v4581
        %v4867 = vmul.f32 %v4799, %v4582
        %v4868 = vmul.f32 %v4801, %v4583
        %v4869 = vmul.f32 %v4805, %v4578
        %v4870 = vmul.f32 %v4807, %v4579
        %v4871 = vmul.f32 %v4809, %v4580
        %v4872 = vmul.f32 %v4811, %v4581
        %v4873 = vmul.f32 %v4815, %v4582
        %v4874 = vmul.f32 %v4817, %v4583
        %v4875 = vmul.f32 %v4819, %v4578
        %v4876 = vmul.f32 %v4821, %v4579
        %v4877 = vmul.f32 %v4825, %v4580
        %v4878 = vmul.f32 %v4827, %v4581
        %v4879 = vmul.f32 %v4829, %v4582
        %v4880 = vmul.f32 %v4831, %v4583
        %v4881 = vadd.f32 %v4833, %v4835
        %v4882 = vadd.f32 %v4881, %v4837
        %v4883 = vrot.slane %v4882, 4
        %v4884 = vadd.f32 %v4882, %v4883
        %v4885 = vrot.slane %v4884, 2
        %v4886 = vadd.f32 %v4884, %v4885
        %v4887 = vrot.slane %v4886, 1
        %v4888 = vadd.f32 %v4886, %v4887
        %v4889 = vadd.f32 %v4834, %v4836
        %v4890 = vadd.f32 %v4889, %v4838
        %v4891 = vrot.slane %v4890, 4
        %v4892 = vadd.f32 %v4890, %v4891
        %v4893 = vrot.slane %v4892, 2
        %v4894 = vadd.f32 %v4892, %v4893
        %v4895 = vrot.slane %v4894, 1
        %v4896 = vadd.f32 %v4894, %v4895
        %v4897 = vadd.f32 %v4839, %v4841
        %v4898 = vadd.f32 %v4897, %v4843
        %v4899 = vrot.slane %v4898, 4
        %v4900 = vadd.f32 %v4898, %v4899
        %v4901 = vrot.slane %v4900, 2
        %v4902 = vadd.f32 %v4900, %v4901
        %v4903 = vrot.slane %v4902, 1
        %v4904 = vadd.f32 %v4902, %v4903
        %v4905 = vadd.f32 %v4840, %v4842
        %v4906 = vadd.f32 %v4905, %v4844
        %v4907 = vrot.slane %v4906, 4
        %v4908 = vadd.f32 %v4906, %v4907
        %v4909 = vrot.slane %v4908, 2
        %v4910 = vadd.f32 %v4908, %v4909
        %v4911 = vrot.slane %v4910, 1
        %v4912 = vadd.f32 %v4910, %v4911
        %v4913 = vadd.f32 %v4845, %v4847
        %v4914 = vadd.f32 %v4913, %v4849
        %v4915 = vrot.slane %v4914, 4
        %v4916 = vadd.f32 %v4914, %v4915
        %v4917 = vrot.slane %v4916, 2
        %v4918 = vadd.f32 %v4916, %v4917
        %v4919 = vrot.slane %v4918, 1
        %v4920 = vadd.f32 %v4918, %v4919
        %v4921 = vadd.f32 %v4846, %v4848
        %v4922 = vadd.f32 %v4921, %v4850
        %v4923 = vrot.slane %v4922, 4
        %v4924 = vadd.f32 %v4922, %v4923
        %v4925 = vrot.slane %v4924, 2
        %v4926 = vadd.f32 %v4924, %v4925
        %v4927 = vrot.slane %v4926, 1
        %v4928 = vadd.f32 %v4926, %v4927
        %v4929 = vadd.f32 %v4851, %v4853
        %v4930 = vadd.f32 %v4929, %v4855
        %v4931 = vrot.slane %v4930, 4
        %v4932 = vadd.f32 %v4930, %v4931
        %v4933 = vrot.slane %v4932, 2
        %v4934 = vadd.f32 %v4932, %v4933
        %v4935 = vrot.slane %v4934, 1
        %v4936 = vadd.f32 %v4934, %v4935
        %v4937 = vadd.f32 %v4852, %v4854
        %v4938 = vadd.f32 %v4937, %v4856
        %v4939 = vrot.slane %v4938, 4
        %v4940 = vadd.f32 %v4938, %v4939
        %v4941 = vrot.slane %v4940, 2
        %v4942 = vadd.f32 %v4940, %v4941
        %v4943 = vrot.slane %v4942, 1
        %v4944 = vadd.f32 %v4942, %v4943
        %v4945 = vadd.f32 %v4857, %v4859
        %v4946 = vadd.f32 %v4945, %v4861
        %v4947 = vrot.slane %v4946, 4
        %v4948 = vadd.f32 %v4946, %v4947
        %v4949 = vrot.slane %v4948, 2
        %v4950 = vadd.f32 %v4948, %v4949
        %v4951 = vrot.slane %v4950, 1
        %v4952 = vadd.f32 %v4950, %v4951
        %v4953 = vadd.f32 %v4858, %v4860
        %v4954 = vadd.f32 %v4953, %v4862
        %v4955 = vrot.slane %v4954, 4
        %v4956 = vadd.f32 %v4954, %v4955
        %v4957 = vrot.slane %v4956, 2
        %v4958 = vadd.f32 %v4956, %v4957
        %v4959 = vrot.slane %v4958, 1
        %v4960 = vadd.f32 %v4958, %v4959
        %v4961 = vadd.f32 %v4863, %v4865
        %v4962 = vadd.f32 %v4961, %v4867
        %v4963 = vrot.slane %v4962, 4
        %v4964 = vadd.f32 %v4962, %v4963
        %v4965 = vrot.slane %v4964, 2
        %v4966 = vadd.f32 %v4964, %v4965
        %v4967 = vrot.slane %v4966, 1
        %v4968 = vadd.f32 %v4966, %v4967
        %v4969 = vadd.f32 %v4864, %v4866
        %v4970 = vadd.f32 %v4969, %v4868
        %v4971 = vrot.slane %v4970, 4
        %v4972 = vadd.f32 %v4970, %v4971
        %v4973 = vrot.slane %v4972, 2
        %v4974 = vadd.f32 %v4972, %v4973
        %v4975 = vrot.slane %v4974, 1
        %v4976 = vadd.f32 %v4974, %v4975
        %v4977 = vadd.f32 %v4869, %v4871
        %v4978 = vadd.f32 %v4977, %v4873
        %v4979 = vrot.slane %v4978, 4
        %v4980 = vadd.f32 %v4978, %v4979
        %v4981 = vrot.slane %v4980, 2
        %v4982 = vadd.f32 %v4980, %v4981
        %v4983 = vrot.slane %v4982, 1
        %v4984 = vadd.f32 %v4982, %v4983
        %v4985 = vadd.f32 %v4870, %v4872
        %v4986 = vadd.f32 %v4985, %v4874
        %v4987 = vrot.slane %v4986, 4
        %v4988 = vadd.f32 %v4986, %v4987
        %v4989 = vrot.slane %v4988, 2
        %v4990 = vadd.f32 %v4988, %v4989
        %v4991 = vrot.slane %v4990, 1
        %v4992 = vadd.f32 %v4990, %v4991
        %v4993 = vadd.f32 %v4875, %v4877
        %v4994 = vadd.f32 %v4993, %v4879
        %v4995 = vrot.slane %v4994, 4
        %v4996 = vadd.f32 %v4994, %v4995
        %v4997 = vrot.slane %v4996, 2
        %v4998 = vadd.f32 %v4996, %v4997
        %v4999 = vrot.slane %v4998, 1
        %v5000 = vadd.f32 %v4998, %v4999
        %v5001 = vadd.f32 %v4876, %v4878
        %v5002 = vadd.f32 %v5001, %v4880
        %v5003 = vrot.slane %v5002, 4
        %v5004 = vadd.f32 %v5002, %v5003
        %v5005 = vrot.slane %v5004, 2
        %v5006 = vadd.f32 %v5004, %v5005
        %v5007 = vrot.slane %v5006, 1
        %v5008 = vadd.f32 %v5006, %v5007
        %v5009 = vpack.c.bf16 %v4888, %v4888
        %v5010 = vpack.c.bf16 %v4896, %v4896
        %v5011 = vpack.c.bf16 %v4904, %v4904
        %v5012 = vpack.c.bf16 %v4912, %v4912
        %v5013 = vpack.c.bf16 %v4920, %v4920
        %v5014 = vpack.c.bf16 %v4928, %v4928
        %v5015 = vpack.c.bf16 %v4936, %v4936
        %v5016 = vpack.c.bf16 %v4944, %v4944
        %v5017 = vpack.c.bf16 %v4952, %v4952
        %v5018 = vpack.c.bf16 %v4960, %v4960
        %v5019 = vpack.c.bf16 %v4968, %v4968
        %v5020 = vpack.c.bf16 %v4976, %v4976
        %v5021 = vpack.c.bf16 %v4984, %v4984
        %v5022 = vpack.c.bf16 %v4992, %v4992
        %v5023 = vpack.c.bf16 %v5000, %v5000
        %v5024 = vpack.c.bf16 %v5008, %v5008
        %v5041 = vunpack.c.l.b16 %v5009
        %v5042 = vunpack.c.l.b16 %v5010
        %v5043 = vunpack.c.l.b16 %v5011
        %v5044 = vunpack.c.l.b16 %v5012
        %v5045 = vunpack.c.l.b16 %v5013
        %v5046 = vunpack.c.l.b16 %v5014
        %v5047 = vunpack.c.l.b16 %v5015
        %v5048 = vunpack.c.l.b16 %v5016
        %v5049 = vunpack.c.l.b16 %v5017
        %v5050 = vunpack.c.l.b16 %v5018
        %v5051 = vunpack.c.l.b16 %v5019
        %v5052 = vunpack.c.l.b16 %v5020
        %v5053 = vunpack.c.l.b16 %v5021
        %v5054 = vunpack.c.l.b16 %v5022
        %v5055 = vunpack.c.l.b16 %v5023
        %v5056 = vunpack.c.l.b16 %v5024
        %v5057 = vpack.c.b16 %v5042, %v5041
        %v5058 = vpack.c.b16 %v5044, %v5043
        %v5059 = vpack.c.b16 %v5046, %v5045
        %v5060 = vpack.c.b16 %v5048, %v5047
        %v5061 = vpack.c.b16 %v5050, %v5049
        %v5062 = vpack.c.b16 %v5052, %v5051
        %v5063 = vpack.c.b16 %v5054, %v5053
        %v5064 = vpack.c.b16 %v5056, %v5055
        %v5065 = vunpack.c.l.b16 %v5057
        %v5066 = vunpack.c.h.b16 %v5057
        %v5067 = vunpack.c.l.b16 %v5058
        %v5068 = vunpack.c.h.b16 %v5058
        %v5069 = vunpack.c.l.b16 %v5059
        %v5070 = vunpack.c.h.b16 %v5059
        %v5071 = vunpack.c.l.b16 %v5060
        %v5072 = vunpack.c.h.b16 %v5060
        %v5073 = vunpack.c.l.b16 %v5061
        %v5074 = vunpack.c.h.b16 %v5061
        %v5075 = vunpack.c.l.b16 %v5062
        %v5076 = vunpack.c.h.b16 %v5062
        %v5077 = vunpack.c.l.b16 %v5063
        %v5078 = vunpack.c.h.b16 %v5063
        %v5079 = vunpack.c.l.b16 %v5064
        %v5080 = vunpack.c.h.b16 %v5064
        %v5081 = vsel %vm1154, %v5067, %v5065
        %v5082 = vsel %vm1156, %v5069, %v5081
        %v5083 = vsel %vm1158, %v5071, %v5082
        %v5084 = vsel %vm1160, %v5073, %v5083
        %v5085 = vsel %vm1162, %v5075, %v5084
        %v5086 = vsel %vm1164, %v5077, %v5085
        %v5087 = vsel %vm1166, %v5079, %v5086
        %v5088 = vsel %vm1154, %v5068, %v5066
        %v5089 = vsel %vm1156, %v5070, %v5088
        %v5090 = vsel %vm1158, %v5072, %v5089
        %v5091 = vsel %vm1160, %v5074, %v5090
        %v5092 = vsel %vm1162, %v5076, %v5091
        %v5093 = vsel %vm1164, %v5078, %v5092
        %v5094 = vsel %vm1166, %v5080, %v5093
        %v5095 = vpack.c.b16 %v5094, %v5087
        %5097 = vst [vmem:[#allocation2 + $0x28] sm:$0xff] %v5095
        %v5098 = vlaneseq
        %v5099 = vshrl.u32 %v5098, 7
        %v5100 = vsub.s32 6, %v5099
        %v5101 = vrot.slane %v362, %v5100
        %v5102 = vlaneseq
        %v5103 = vshrl.u32 %v5102, 7
        %v5104 = vsub.s32 6, %v5103
        %v5105 = vrot.slane %v363, %v5104
        %vm5106 = vcmp.eq.s32.totalorder %v371, %v5101
        %vm5107 = vcmp.eq.s32.totalorder %v371, %v5105
        %vm5108 = vcmp.eq.s32.totalorder %v372, %v5101
        %vm5109 = vcmp.eq.s32.totalorder %v372, %v5105
        %vm5110 = vcmp.eq.s32.totalorder %v373, %v5101
        %vm5111 = vcmp.eq.s32.totalorder %v373, %v5105
        %vm5112 = vcmp.eq.s32.totalorder %v374, %v5101
        %vm5113 = vcmp.eq.s32.totalorder %v374, %v5105
        %vm5114 = vcmp.eq.s32.totalorder %v375, %v5101
        %vm5115 = vcmp.eq.s32.totalorder %v375, %v5105
        %vm5116 = vcmp.eq.s32.totalorder %v376, %v5101
        %vm5117 = vcmp.eq.s32.totalorder %v376, %v5105
        %vm5118 = vcmp.eq.s32.totalorder %v377, %v5101
        %vm5119 = vcmp.eq.s32.totalorder %v377, %v5105
        %vm5120 = vcmp.eq.s32.totalorder %v378, %v5101
        %vm5121 = vcmp.eq.s32.totalorder %v378, %v5105
        %vm5122 = vcmp.eq.s32.totalorder %v379, %v5101
        %vm5123 = vcmp.eq.s32.totalorder %v379, %v5105
        %vm5124 = vcmp.eq.s32.totalorder %v380, %v5101
        %vm5125 = vcmp.eq.s32.totalorder %v380, %v5105
        %vm5126 = vcmp.eq.s32.totalorder %v381, %v5101
        %vm5127 = vcmp.eq.s32.totalorder %v381, %v5105
        %vm5128 = vcmp.eq.s32.totalorder %v382, %v5101
        %vm5129 = vcmp.eq.s32.totalorder %v382, %v5105
        %vm5130 = vcmp.eq.s32.totalorder %v383, %v5101
        %vm5131 = vcmp.eq.s32.totalorder %v383, %v5105
        %vm5132 = vcmp.eq.s32.totalorder %v384, %v5101
        %vm5133 = vcmp.eq.s32.totalorder %v384, %v5105
        %vm5134 = vcmp.eq.s32.totalorder %v385, %v5101
        %vm5135 = vcmp.eq.s32.totalorder %v385, %v5105
        %vm5136 = vcmp.eq.s32.totalorder %v386, %v5101
        %vm5137 = vcmp.eq.s32.totalorder %v386, %v5105
        %v5138 = vlaneseq
        %v5139 = vshrl.u32 %v5138, 7
        %v5140 = vsub.s32 6, %v5139
        %v5141 = vrot.slane %v342, %v5140
        %v5142 = vlaneseq
        %v5143 = vshrl.u32 %v5142, 7
        %v5144 = vsub.s32 6, %v5143
        %v5145 = vrot.slane %v343, %v5144
        %v5146 = vsel %vm5106, %v5141, 0.0
        %v5147 = vsel %vm5107, %v5145, 0.0
        %v5148 = vsel %vm5108, %v5141, 0.0
        %v5149 = vsel %vm5109, %v5145, 0.0
        %v5150 = vsel %vm5110, %v5141, 0.0
        %v5151 = vsel %vm5111, %v5145, 0.0
        %v5152 = vsel %vm5112, %v5141, 0.0
        %v5153 = vsel %vm5113, %v5145, 0.0
        %v5154 = vsel %vm5114, %v5141, 0.0
        %v5155 = vsel %vm5115, %v5145, 0.0
        %v5156 = vsel %vm5116, %v5141, 0.0
        %v5157 = vsel %vm5117, %v5145, 0.0
        %v5158 = vsel %vm5118, %v5141, 0.0
        %v5159 = vsel %vm5119, %v5145, 0.0
        %v5160 = vsel %vm5120, %v5141, 0.0
        %v5161 = vsel %vm5121, %v5145, 0.0
        %v5162 = vsel %vm5122, %v5141, 0.0
        %v5163 = vsel %vm5123, %v5145, 0.0
        %v5164 = vsel %vm5124, %v5141, 0.0
        %v5165 = vsel %vm5125, %v5145, 0.0
        %v5166 = vsel %vm5126, %v5141, 0.0
        %v5167 = vsel %vm5127, %v5145, 0.0
        %v5168 = vsel %vm5128, %v5141, 0.0
        %v5169 = vsel %vm5129, %v5145, 0.0
        %v5170 = vsel %vm5130, %v5141, 0.0
        %v5171 = vsel %vm5131, %v5145, 0.0
        %v5172 = vsel %vm5132, %v5141, 0.0
        %v5173 = vsel %vm5133, %v5145, 0.0
        %v5174 = vsel %vm5134, %v5141, 0.0
        %v5175 = vsel %vm5135, %v5145, 0.0
        %v5176 = vsel %vm5136, %v5141, 0.0
        %v5177 = vsel %vm5137, %v5145, 0.0
        %v5178 = vlaneseq
        %v5179 = vshrl.u32 %v5178, 7
        %v5180 = vsub.s32 6, %v5179
        %v5181 = vrot.slane %v366, %v5180
        %v5182 = vlaneseq
        %v5183 = vshrl.u32 %v5182, 7
        %v5184 = vsub.s32 6, %v5183
        %v5185 = vrot.slane %v367, %v5184
        %vm5186 = vcmp.eq.s32.totalorder %v371, %v5181
        %vm5187 = vcmp.eq.s32.totalorder %v371, %v5185
        %vm5188 = vcmp.eq.s32.totalorder %v372, %v5181
        %vm5189 = vcmp.eq.s32.totalorder %v372, %v5185
        %vm5190 = vcmp.eq.s32.totalorder %v373, %v5181
        %vm5191 = vcmp.eq.s32.totalorder %v373, %v5185
        %vm5192 = vcmp.eq.s32.totalorder %v374, %v5181
        %vm5193 = vcmp.eq.s32.totalorder %v374, %v5185
        %vm5194 = vcmp.eq.s32.totalorder %v375, %v5181
        %vm5195 = vcmp.eq.s32.totalorder %v375, %v5185
        %vm5196 = vcmp.eq.s32.totalorder %v376, %v5181
        %vm5197 = vcmp.eq.s32.totalorder %v376, %v5185
        %vm5198 = vcmp.eq.s32.totalorder %v377, %v5181
        %vm5199 = vcmp.eq.s32.totalorder %v377, %v5185
        %vm5200 = vcmp.eq.s32.totalorder %v378, %v5181
        %vm5201 = vcmp.eq.s32.totalorder %v378, %v5185
        %vm5202 = vcmp.eq.s32.totalorder %v379, %v5181
        %vm5203 = vcmp.eq.s32.totalorder %v379, %v5185
        %vm5204 = vcmp.eq.s32.totalorder %v380, %v5181
        %vm5205 = vcmp.eq.s32.totalorder %v380, %v5185
        %vm5206 = vcmp.eq.s32.totalorder %v381, %v5181
        %vm5207 = vcmp.eq.s32.totalorder %v381, %v5185
        %vm5208 = vcmp.eq.s32.totalorder %v382, %v5181
        %vm5209 = vcmp.eq.s32.totalorder %v382, %v5185
        %vm5210 = vcmp.eq.s32.totalorder %v383, %v5181
        %vm5211 = vcmp.eq.s32.totalorder %v383, %v5185
        %vm5212 = vcmp.eq.s32.totalorder %v384, %v5181
        %vm5213 = vcmp.eq.s32.totalorder %v384, %v5185
        %vm5214 = vcmp.eq.s32.totalorder %v385, %v5181
        %vm5215 = vcmp.eq.s32.totalorder %v385, %v5185
        %vm5216 = vcmp.eq.s32.totalorder %v386, %v5181
        %vm5217 = vcmp.eq.s32.totalorder %v386, %v5185
        %v5218 = vlaneseq
        %v5219 = vshrl.u32 %v5218, 7
        %v5220 = vsub.s32 6, %v5219
        %v5221 = vrot.slane %v350, %v5220
        %v5222 = vlaneseq
        %v5223 = vshrl.u32 %v5222, 7
        %v5224 = vsub.s32 6, %v5223
        %v5225 = vrot.slane %v351, %v5224
        %v5226 = vsel %vm5186, %v5221, 0.0
        %v5227 = vsel %vm5187, %v5225, 0.0
        %v5228 = vsel %vm5188, %v5221, 0.0
        %v5229 = vsel %vm5189, %v5225, 0.0
        %v5230 = vsel %vm5190, %v5221, 0.0
        %v5231 = vsel %vm5191, %v5225, 0.0
        %v5232 = vsel %vm5192, %v5221, 0.0
        %v5233 = vsel %vm5193, %v5225, 0.0
        %v5234 = vsel %vm5194, %v5221, 0.0
        %v5235 = vsel %vm5195, %v5225, 0.0
        %v5236 = vsel %vm5196, %v5221, 0.0
        %v5237 = vsel %vm5197, %v5225, 0.0
        %v5238 = vsel %vm5198, %v5221, 0.0
        %v5239 = vsel %vm5199, %v5225, 0.0
        %v5240 = vsel %vm5200, %v5221, 0.0
        %v5241 = vsel %vm5201, %v5225, 0.0
        %v5242 = vsel %vm5202, %v5221, 0.0
        %v5243 = vsel %vm5203, %v5225, 0.0
        %v5244 = vsel %vm5204, %v5221, 0.0
        %v5245 = vsel %vm5205, %v5225, 0.0
        %v5246 = vsel %vm5206, %v5221, 0.0
        %v5247 = vsel %vm5207, %v5225, 0.0
        %v5248 = vsel %vm5208, %v5221, 0.0
        %v5249 = vsel %vm5209, %v5225, 0.0
        %v5250 = vsel %vm5210, %v5221, 0.0
        %v5251 = vsel %vm5211, %v5225, 0.0
        %v5252 = vsel %vm5212, %v5221, 0.0
        %v5253 = vsel %vm5213, %v5225, 0.0
        %v5254 = vsel %vm5214, %v5221, 0.0
        %v5255 = vsel %vm5215, %v5225, 0.0
        %v5256 = vsel %vm5216, %v5221, 0.0
        %v5257 = vsel %vm5217, %v5225, 0.0
        %v5258 = vadd.f32 %v5146, %v5226
        %v5259 = vadd.f32 %v5147, %v5227
        %v5260 = vadd.f32 %v5148, %v5228
        %v5261 = vadd.f32 %v5149, %v5229
        %v5262 = vadd.f32 %v5150, %v5230
        %v5263 = vadd.f32 %v5151, %v5231
        %v5264 = vadd.f32 %v5152, %v5232
        %v5265 = vadd.f32 %v5153, %v5233
        %v5266 = vadd.f32 %v5154, %v5234
        %v5267 = vadd.f32 %v5155, %v5235
        %v5268 = vadd.f32 %v5156, %v5236
        %v5269 = vadd.f32 %v5157, %v5237
        %v5270 = vadd.f32 %v5158, %v5238
        %v5271 = vadd.f32 %v5159, %v5239
        %v5272 = vadd.f32 %v5160, %v5240
        %v5273 = vadd.f32 %v5161, %v5241
        %v5274 = vadd.f32 %v5162, %v5242
        %v5275 = vadd.f32 %v5163, %v5243
        %v5276 = vadd.f32 %v5164, %v5244
        %v5277 = vadd.f32 %v5165, %v5245
        %v5278 = vadd.f32 %v5166, %v5246
        %v5279 = vadd.f32 %v5167, %v5247
        %v5280 = vadd.f32 %v5168, %v5248
        %v5281 = vadd.f32 %v5169, %v5249
        %v5282 = vadd.f32 %v5170, %v5250
        %v5283 = vadd.f32 %v5171, %v5251
        %v5284 = vadd.f32 %v5172, %v5252
        %v5285 = vadd.f32 %v5173, %v5253
        %v5286 = vadd.f32 %v5174, %v5254
        %v5287 = vadd.f32 %v5175, %v5255
        %v5288 = vadd.f32 %v5176, %v5256
        %v5289 = vadd.f32 %v5177, %v5257
        %v5290 = vpack.c.bf16 %v5260, %v5258
        %v5291 = vpack.c.bf16 %v5261, %v5259
        %v5292 = vpack.c.bf16 %v5264, %v5262
        %v5293 = vpack.c.bf16 %v5265, %v5263
        %v5294 = vpack.c.bf16 %v5268, %v5266
        %v5295 = vpack.c.bf16 %v5269, %v5267
        %v5296 = vpack.c.bf16 %v5272, %v5270
        %v5297 = vpack.c.bf16 %v5273, %v5271
        %v5298 = vpack.c.bf16 %v5276, %v5274
        %v5299 = vpack.c.bf16 %v5277, %v5275
        %v5300 = vpack.c.bf16 %v5280, %v5278
        %v5301 = vpack.c.bf16 %v5281, %v5279
        %v5302 = vpack.c.bf16 %v5284, %v5282
        %v5303 = vpack.c.bf16 %v5285, %v5283
        %v5304 = vpack.c.bf16 %v5288, %v5286
        %v5305 = vpack.c.bf16 %v5289, %v5287
        %v5306 = vlaneseq
        %v5307 = vshrl.u32 %v5306, 7
        %v5308 = vsub.s32 6, %v5307
        %v5309 = vrot.slane %v354, %v5308
        %v5310 = vlaneseq
        %v5311 = vshrl.u32 %v5310, 7
        %v5312 = vsub.s32 6, %v5311
        %v5313 = vrot.slane %v355, %v5312
        %vm5314 = vcmp.eq.s32.totalorder %v371, %v5309
        %vm5315 = vcmp.eq.s32.totalorder %v371, %v5313
        %vm5316 = vcmp.eq.s32.totalorder %v372, %v5309
        %vm5317 = vcmp.eq.s32.totalorder %v372, %v5313
        %vm5318 = vcmp.eq.s32.totalorder %v373, %v5309
        %vm5319 = vcmp.eq.s32.totalorder %v373, %v5313
        %v5320 = vlaneseq
        %v5321 = vshrl.u32 %v5320, 7
        %v5322 = vsub.s32 6, %v5321
        %v5323 = vrot.slane %v326, %v5322
        %v5324 = vlaneseq
        %v5325 = vshrl.u32 %v5324, 7
        %v5326 = vsub.s32 6, %v5325
        %v5327 = vrot.slane %v327, %v5326
        %v5328 = vsel %vm5314, %v5323, 0.0
        %v5329 = vsel %vm5315, %v5327, 0.0
        %v5330 = vsel %vm5316, %v5323, 0.0
        %v5331 = vsel %vm5317, %v5327, 0.0
        %v5332 = vsel %vm5318, %v5323, 0.0
        %v5333 = vsel %vm5319, %v5327, 0.0
        %v5334 = vlaneseq
        %v5335 = vshrl.u32 %v5334, 7
        %v5336 = vsub.s32 6, %v5335
        %v5337 = vrot.slane %v358, %v5336
        %v5338 = vlaneseq
        %v5339 = vshrl.u32 %v5338, 7
        %v5340 = vsub.s32 6, %v5339
        %v5341 = vrot.slane %v359, %v5340
        %vm5342 = vcmp.eq.s32.totalorder %v371, %v5337
        %vm5343 = vcmp.eq.s32.totalorder %v371, %v5341
        %vm5344 = vcmp.eq.s32.totalorder %v372, %v5337
        %vm5345 = vcmp.eq.s32.totalorder %v372, %v5341
        %vm5346 = vcmp.eq.s32.totalorder %v373, %v5337
        %vm5347 = vcmp.eq.s32.totalorder %v373, %v5341
        %v5348 = vlaneseq
        %v5349 = vshrl.u32 %v5348, 7
        %v5350 = vsub.s32 6, %v5349
        %v5351 = vrot.slane %v334, %v5350
        %v5352 = vlaneseq
        %v5353 = vshrl.u32 %v5352, 7
        %v5354 = vsub.s32 6, %v5353
        %v5355 = vrot.slane %v335, %v5354
        %v5356 = vsel %vm5342, %v5351, 0.0
        %v5357 = vsel %vm5343, %v5355, 0.0
        %v5358 = vsel %vm5344, %v5351, 0.0
        %v5359 = vsel %vm5345, %v5355, 0.0
        %v5360 = vsel %vm5346, %v5351, 0.0
        %v5361 = vsel %vm5347, %v5355, 0.0
        %v5362 = vadd.f32 %v5328, %v5356
        %v5363 = vadd.f32 %v5329, %v5357
        %v5364 = vadd.f32 %v5330, %v5358
        %v5365 = vadd.f32 %v5331, %v5359
        %v5366 = vadd.f32 %v5332, %v5360
        %v5367 = vadd.f32 %v5333, %v5361
        %v5368 = vld [vmem:[%s210] sm:$0xf]
        %v5369 = vld [vmem:[%s210 + $0x4] sm:$0xf]
        %v5370 = vld [vmem:[%s210 + $0x8] sm:$0xf]
        %v5371 = vld [vmem:[%s210 + $0xc] sm:$0xf]
        %v5372 = vld [vmem:[%s210 + $0x10] sm:$0xf]
        %v5373 = vld [vmem:[%s210 + $0x14] sm:$0xf]
        %v5374 = vld [vmem:[%s210 + $0x18] sm:$0xf]
        %v5375 = vld [vmem:[%s210 + $0x1c] sm:$0xf]
        %v5376 = vld [vmem:[%s210 + $0x20] sm:$0xf]
        %v5377 = vld [vmem:[%s210 + $0x24] sm:$0xf]
        %v5378 = vld [vmem:[%s210 + $0x28] sm:$0xf]
        %v5379 = vld [vmem:[%s210 + $0x2c] sm:$0xf]
        %v5380 = vld [vmem:[%s210 + $0x30] sm:$0xf]
        %v5381 = vld [vmem:[%s210 + $0x34] sm:$0xf]
        %v5382 = vld [vmem:[%s210 + $0x38] sm:$0xf]
        %v5383 = vld [vmem:[%s210 + $0x3c] sm:$0xf]
        %v5384 = vld [vmem:[%s210 + $0x40] sm:$0xf]
        %v5385 = vld [vmem:[%s210 + $0x44] sm:$0xf]
        %v5386 = vld [vmem:[%s210 + $0x48] sm:$0xf]
        %v5387 = vld [vmem:[%s210 + $0x4c] sm:$0xf]
        %v5388 = vld [vmem:[%s210 + $0x50] sm:$0xf]
        %v5389 = vld [vmem:[%s210 + $0x54] sm:$0xf]
        %v5390 = vld [vmem:[%s210 + $0x58] sm:$0xf]
        %v5391 = vld [vmem:[%s210 + $0x5c] sm:$0xf]
        %v5416 = vunpack.c.l.b16 %v5368
        %v5417 = vunpack.c.l.b16 %v5369
        %v5418 = vunpack.c.l.b16 %v5370
        %v5419 = vunpack.c.l.b16 %v5371
        %v5420 = vunpack.c.l.b16 %v5372
        %v5421 = vunpack.c.l.b16 %v5373
        %v5422 = vunpack.c.l.b16 %v5374
        %v5423 = vunpack.c.l.b16 %v5375
        %v5424 = vunpack.c.l.b16 %v5376
        %v5425 = vunpack.c.l.b16 %v5377
        %v5426 = vunpack.c.l.b16 %v5378
        %v5427 = vunpack.c.l.b16 %v5379
        %v5428 = vunpack.c.l.b16 %v5380
        %v5429 = vunpack.c.l.b16 %v5381
        %v5430 = vunpack.c.l.b16 %v5382
        %v5431 = vunpack.c.l.b16 %v5383
        %v5432 = vunpack.c.l.b16 %v5384
        %v5433 = vunpack.c.l.b16 %v5385
        %v5434 = vunpack.c.l.b16 %v5386
        %v5435 = vunpack.c.l.b16 %v5387
        %v5436 = vunpack.c.l.b16 %v5388
        %v5437 = vunpack.c.l.b16 %v5389
        %v5438 = vunpack.c.l.b16 %v5390
        %v5439 = vunpack.c.l.b16 %v5391
        %v5440 = vpack.c.b16 %v5417, %v5416
        %v5441 = vpack.c.b16 %v5419, %v5418
        %v5442 = vpack.c.b16 %v5421, %v5420
        %v5443 = vpack.c.b16 %v5423, %v5422
        %v5444 = vpack.c.b16 %v5425, %v5424
        %v5445 = vpack.c.b16 %v5427, %v5426
        %v5446 = vpack.c.b16 %v5429, %v5428
        %v5447 = vpack.c.b16 %v5431, %v5430
        %v5448 = vpack.c.b16 %v5433, %v5432
        %v5449 = vpack.c.b16 %v5435, %v5434
        %v5450 = vpack.c.b16 %v5437, %v5436
        %v5451 = vpack.c.b16 %v5439, %v5438
        %5464 = vmatprep.subr.bf16.mxu0 %v5291
        %5465 = vmatpush1.bf16.msra.mxu0 %v5290
        %5466 = vmatprep.subr.bf16.mxu0 %v5293
        %5467 = vmatpush1.bf16.msra.mxu0 %v5292
        %5468 = vmatprep.subr.bf16.mxu0 %v5295
        %5469 = vmatpush1.bf16.msra.mxu0 %v5294
        %5470 = vmatprep.subr.bf16.mxu0 %v5297
        %5471 = vmatpush1.bf16.msra.mxu0 %v5296
        %5472 = vmatprep.subr.bf16.mxu0 %v5299
        %5473 = vmatpush1.bf16.msra.mxu0 %v5298
        %5474 = vmatprep.subr.bf16.mxu0 %v5301
        %5475 = vmatpush1.bf16.msra.mxu0 %v5300
        %5476 = vmatprep.subr.bf16.mxu0 %v5303
        %5477 = vmatpush1.bf16.msra.mxu0 %v5302
        %5478 = vmatprep.subr.bf16.mxu0 %v5305
        %5479 = vmatpush1.bf16.msra.mxu0 %v5304
        %5480 = vmatprep.subr.bf16.mxu0 0
        %5481 = vmatpush1.bf16.msra.mxu0 0
        %5482 = vmatprep.subr.bf16.mxu0 0
        %5483 = vmatpush1.bf16.msra.mxu0 0
        %5484 = vmatprep.subr.bf16.mxu0 0
        %5485 = vmatpush1.bf16.msra.mxu0 0
        %5486 = vmatprep.subr.bf16.mxu0 0
        %5487 = vmatpush1.bf16.msra.mxu0 0
        %5488 = vmatprep.subr.bf16.mxu0 0
        %5489 = vmatpush1.bf16.msra.mxu0 0
        %5490 = vmatprep.subr.bf16.mxu0 0
        %5491 = vmatpush1.bf16.msra.mxu0 0
        %5492 = vmatprep.subr.bf16.mxu0 0
        %5493 = vmatpush1.bf16.msra.mxu0 0
        %5494 = vmatprep.subr.bf16.mxu0 0
        %5495 = vmatpush1.bf16.msra.mxu0 0
        %5496 = vmatprep.mubr.bf16.mxu0 0
        %5497 = vmatmul.mubr.bf16.gmra.mrb[0].mxu0 %v5440
        %v5498 = vpop.f32.mrb[0].mxu0
        %v5499 = vadd.f32 0.0, %v5498
        %v5500 = vpop.f32.mrb[0].mxu0
        %v5501 = vadd.f32 0.0, %v5500
        %v5502 = vpop.f32.mrb[0].mxu0
        %v5503 = vadd.f32 0.0, %v5502
        %v5504 = vpop.f32.mrb[0].mxu0
        %v5505 = vadd.f32 0.0, %v5504
        %5506 = vmatprep.mubr.bf16.mxu0 0
        %5507 = vmatmul.mubr.bf16.gmra.mrb[0].mxu0 %v5441
        %v5508 = vpop.f32.mrb[0].mxu0
        %v5509 = vadd.f32 0.0, %v5508
        %v5510 = vpop.f32.mrb[0].mxu0
        %v5511 = vadd.f32 0.0, %v5510
        %v5512 = vpop.f32.mrb[0].mxu0
        %v5513 = vadd.f32 0.0, %v5512
        %v5514 = vpop.f32.mrb[0].mxu0
        %v5515 = vadd.f32 0.0, %v5514
        %5516 = vmatprep.mubr.bf16.mxu0 0
        %5517 = vmatmul.mubr.bf16.gmra.mrb[0].mxu0 %v5442
        %v5518 = vpop.f32.mrb[0].mxu0
        %v5519 = vadd.f32 0.0, %v5518
        %v5520 = vpop.f32.mrb[0].mxu0
        %v5521 = vadd.f32 0.0, %v5520
        %v5522 = vpop.f32.mrb[0].mxu0
        %v5523 = vadd.f32 0.0, %v5522
        %v5524 = vpop.f32.mrb[0].mxu0
        %v5525 = vadd.f32 0.0, %v5524
        %5526 = vmatprep.mubr.bf16.mxu0 0
        %5527 = vmatmul.mubr.bf16.gmra.mrb[0].mxu0 %v5443
        %v5528 = vpop.f32.mrb[0].mxu0
        %v5529 = vadd.f32 0.0, %v5528
        %v5530 = vpop.f32.mrb[0].mxu0
        %v5531 = vadd.f32 0.0, %v5530
        %v5532 = vpop.f32.mrb[0].mxu0
        %v5533 = vadd.f32 0.0, %v5532
        %v5534 = vpop.f32.mrb[0].mxu0
        %v5535 = vadd.f32 0.0, %v5534
        %5536 = vmatprep.mubr.bf16.mxu0 0
        %5537 = vmatmul.mubr.bf16.gmra.mrb[0].mxu0 %v5444
        %v5538 = vpop.f32.mrb[0].mxu0
        %v5539 = vadd.f32 0.0, %v5538
        %v5540 = vpop.f32.mrb[0].mxu0
        %v5541 = vadd.f32 0.0, %v5540
        %v5542 = vpop.f32.mrb[0].mxu0
        %v5543 = vadd.f32 0.0, %v5542
        %v5544 = vpop.f32.mrb[0].mxu0
        %v5545 = vadd.f32 0.0, %v5544
        %5546 = vmatprep.mubr.bf16.mxu0 0
        %5547 = vmatmul.mubr.bf16.gmra.mrb[0].mxu0 %v5445
        %v5548 = vpop.f32.mrb[0].mxu0
        %v5549 = vadd.f32 0.0, %v5548
        %v5550 = vpop.f32.mrb[0].mxu0
        %v5551 = vadd.f32 0.0, %v5550
        %v5552 = vpop.f32.mrb[0].mxu0
        %v5553 = vadd.f32 0.0, %v5552
        %v5554 = vpop.f32.mrb[0].mxu0
        %v5555 = vadd.f32 0.0, %v5554
        %5556 = vmatprep.mubr.bf16.mxu0 0
        %5557 = vmatmul.mubr.bf16.gmra.mrb[0].mxu0 %v5446
        %v5558 = vpop.f32.mrb[0].mxu0
        %v5559 = vadd.f32 0.0, %v5558
        %v5560 = vpop.f32.mrb[0].mxu0
        %v5561 = vadd.f32 0.0, %v5560
        %v5562 = vpop.f32.mrb[0].mxu0
        %v5563 = vadd.f32 0.0, %v5562
        %v5564 = vpop.f32.mrb[0].mxu0
        %v5565 = vadd.f32 0.0, %v5564
        %5566 = vmatprep.mubr.bf16.mxu0 0
        %5567 = vmatmul.mubr.bf16.gmra.mrb[0].mxu0 %v5447
        %v5568 = vpop.f32.mrb[0].mxu0
        %v5569 = vadd.f32 0.0, %v5568
        %v5570 = vpop.f32.mrb[0].mxu0
        %v5571 = vadd.f32 0.0, %v5570
        %v5572 = vpop.f32.mrb[0].mxu0
        %v5573 = vadd.f32 0.0, %v5572
        %v5574 = vpop.f32.mrb[0].mxu0
        %v5575 = vadd.f32 0.0, %v5574
        %5576 = vmatprep.mubr.bf16.mxu0 0
        %5577 = vmatmul.mubr.bf16.gmra.mrb[0].mxu0 %v5448
        %v5578 = vpop.f32.mrb[0].mxu0
        %v5579 = vadd.f32 0.0, %v5578
        %v5580 = vpop.f32.mrb[0].mxu0
        %v5581 = vadd.f32 0.0, %v5580
        %v5582 = vpop.f32.mrb[0].mxu0
        %v5583 = vadd.f32 0.0, %v5582
        %v5584 = vpop.f32.mrb[0].mxu0
        %v5585 = vadd.f32 0.0, %v5584
        %5586 = vmatprep.mubr.bf16.mxu0 0
        %5587 = vmatmul.mubr.bf16.gmra.mrb[0].mxu0 %v5449
        %v5588 = vpop.f32.mrb[0].mxu0
        %v5589 = vadd.f32 0.0, %v5588
        %v5590 = vpop.f32.mrb[0].mxu0
        %v5591 = vadd.f32 0.0, %v5590
        %v5592 = vpop.f32.mrb[0].mxu0
        %v5593 = vadd.f32 0.0, %v5592
        %v5594 = vpop.f32.mrb[0].mxu0
        %v5595 = vadd.f32 0.0, %v5594
        %5596 = vmatprep.mubr.bf16.mxu0 0
        %5597 = vmatmul.mubr.bf16.gmra.mrb[0].mxu0 %v5450
        %v5598 = vpop.f32.mrb[0].mxu0
        %v5599 = vadd.f32 0.0, %v5598
        %v5600 = vpop.f32.mrb[0].mxu0
        %v5601 = vadd.f32 0.0, %v5600
        %v5602 = vpop.f32.mrb[0].mxu0
        %v5603 = vadd.f32 0.0, %v5602
        %v5604 = vpop.f32.mrb[0].mxu0
        %v5605 = vadd.f32 0.0, %v5604
        %5606 = vmatprep.mubr.bf16.mxu0 0
        %5607 = vmatmul.mubr.bf16.gmra.mrb[0].mxu0 %v5451
        %v5608 = vpop.f32.mrb[0].mxu0
        %v5609 = vadd.f32 0.0, %v5608
        %v5610 = vpop.f32.mrb[0].mxu0
        %v5611 = vadd.f32 0.0, %v5610
        %v5612 = vpop.f32.mrb[0].mxu0
        %v5613 = vadd.f32 0.0, %v5612
        %v5614 = vpop.f32.mrb[0].mxu0
        %v5615 = vadd.f32 0.0, %v5614
        %5616 = vdwg.mxu0
        %v5617 = vmul.f32 %v5499, %v5362
        %v5618 = vmul.f32 %v5501, %v5363
        %v5619 = vmul.f32 %v5503, %v5364
        %v5620 = vmul.f32 %v5505, %v5365
        %v5621 = vmul.f32 %v5509, %v5366
        %v5622 = vmul.f32 %v5511, %v5367
        %v5623 = vmul.f32 %v5513, %v5362
        %v5624 = vmul.f32 %v5515, %v5363
        %v5625 = vmul.f32 %v5519, %v5364
        %v5626 = vmul.f32 %v5521, %v5365
        %v5627 = vmul.f32 %v5523, %v5366
        %v5628 = vmul.f32 %v5525, %v5367
        %v5629 = vmul.f32 %v5529, %v5362
        %v5630 = vmul.f32 %v5531, %v5363
        %v5631 = vmul.f32 %v5533, %v5364
        %v5632 = vmul.f32 %v5535, %v5365
        %v5633 = vmul.f32 %v5539, %v5366
        %v5634 = vmul.f32 %v5541, %v5367
        %v5635 = vmul.f32 %v5543, %v5362
        %v5636 = vmul.f32 %v5545, %v5363
        %v5637 = vmul.f32 %v5549, %v5364
        %v5638 = vmul.f32 %v5551, %v5365
        %v5639 = vmul.f32 %v5553, %v5366
        %v5640 = vmul.f32 %v5555, %v5367
        %v5641 = vmul.f32 %v5559, %v5362
        %v5642 = vmul.f32 %v5561, %v5363
        %v5643 = vmul.f32 %v5563, %v5364
        %v5644 = vmul.f32 %v5565, %v5365
        %v5645 = vmul.f32 %v5569, %v5366
        %v5646 = vmul.f32 %v5571, %v5367
        %v5647 = vmul.f32 %v5573, %v5362
        %v5648 = vmul.f32 %v5575, %v5363
        %v5649 = vmul.f32 %v5579, %v5364
        %v5650 = vmul.f32 %v5581, %v5365
        %v5651 = vmul.f32 %v5583, %v5366
        %v5652 = vmul.f32 %v5585, %v5367
        %v5653 = vmul.f32 %v5589, %v5362
        %v5654 = vmul.f32 %v5591, %v5363
        %v5655 = vmul.f32 %v5593, %v5364
        %v5656 = vmul.f32 %v5595, %v5365
        %v5657 = vmul.f32 %v5599, %v5366
        %v5658 = vmul.f32 %v5601, %v5367
        %v5659 = vmul.f32 %v5603, %v5362
        %v5660 = vmul.f32 %v5605, %v5363
        %v5661 = vmul.f32 %v5609, %v5364
        %v5662 = vmul.f32 %v5611, %v5365
        %v5663 = vmul.f32 %v5613, %v5366
        %v5664 = vmul.f32 %v5615, %v5367
        %v5665 = vadd.f32 %v5617, %v5619
        %v5666 = vadd.f32 %v5665, %v5621
        %v5667 = vrot.slane %v5666, 4
        %v5668 = vadd.f32 %v5666, %v5667
        %v5669 = vrot.slane %v5668, 2
        %v5670 = vadd.f32 %v5668, %v5669
        %v5671 = vrot.slane %v5670, 1
        %v5672 = vadd.f32 %v5670, %v5671
        %v5673 = vadd.f32 %v5618, %v5620
        %v5674 = vadd.f32 %v5673, %v5622
        %v5675 = vrot.slane %v5674, 4
        %v5676 = vadd.f32 %v5674, %v5675
        %v5677 = vrot.slane %v5676, 2
        %v5678 = vadd.f32 %v5676, %v5677
        %v5679 = vrot.slane %v5678, 1
        %v5680 = vadd.f32 %v5678, %v5679
        %v5681 = vadd.f32 %v5623, %v5625
        %v5682 = vadd.f32 %v5681, %v5627
        %v5683 = vrot.slane %v5682, 4
        %v5684 = vadd.f32 %v5682, %v5683
        %v5685 = vrot.slane %v5684, 2
        %v5686 = vadd.f32 %v5684, %v5685
        %v5687 = vrot.slane %v5686, 1
        %v5688 = vadd.f32 %v5686, %v5687
        %v5689 = vadd.f32 %v5624, %v5626
        %v5690 = vadd.f32 %v5689, %v5628
        %v5691 = vrot.slane %v5690, 4
        %v5692 = vadd.f32 %v5690, %v5691
        %v5693 = vrot.slane %v5692, 2
        %v5694 = vadd.f32 %v5692, %v5693
        %v5695 = vrot.slane %v5694, 1
        %v5696 = vadd.f32 %v5694, %v5695
        %v5697 = vadd.f32 %v5629, %v5631
        %v5698 = vadd.f32 %v5697, %v5633
        %v5699 = vrot.slane %v5698, 4
        %v5700 = vadd.f32 %v5698, %v5699
        %v5701 = vrot.slane %v5700, 2
        %v5702 = vadd.f32 %v5700, %v5701
        %v5703 = vrot.slane %v5702, 1
        %v5704 = vadd.f32 %v5702, %v5703
        %v5705 = vadd.f32 %v5630, %v5632
        %v5706 = vadd.f32 %v5705, %v5634
        %v5707 = vrot.slane %v5706, 4
        %v5708 = vadd.f32 %v5706, %v5707
        %v5709 = vrot.slane %v5708, 2
        %v5710 = vadd.f32 %v5708, %v5709
        %v5711 = vrot.slane %v5710, 1
        %v5712 = vadd.f32 %v5710, %v5711
        %v5713 = vadd.f32 %v5635, %v5637
        %v5714 = vadd.f32 %v5713, %v5639
        %v5715 = vrot.slane %v5714, 4
        %v5716 = vadd.f32 %v5714, %v5715
        %v5717 = vrot.slane %v5716, 2
        %v5718 = vadd.f32 %v5716, %v5717
        %v5719 = vrot.slane %v5718, 1
        %v5720 = vadd.f32 %v5718, %v5719
        %v5721 = vadd.f32 %v5636, %v5638
        %v5722 = vadd.f32 %v5721, %v5640
        %v5723 = vrot.slane %v5722, 4
        %v5724 = vadd.f32 %v5722, %v5723
        %v5725 = vrot.slane %v5724, 2
        %v5726 = vadd.f32 %v5724, %v5725
        %v5727 = vrot.slane %v5726, 1
        %v5728 = vadd.f32 %v5726, %v5727
        %v5729 = vadd.f32 %v5641, %v5643
        %v5730 = vadd.f32 %v5729, %v5645
        %v5731 = vrot.slane %v5730, 4
        %v5732 = vadd.f32 %v5730, %v5731
        %v5733 = vrot.slane %v5732, 2
        %v5734 = vadd.f32 %v5732, %v5733
        %v5735 = vrot.slane %v5734, 1
        %v5736 = vadd.f32 %v5734, %v5735
        %v5737 = vadd.f32 %v5642, %v5644
        %v5738 = vadd.f32 %v5737, %v5646
        %v5739 = vrot.slane %v5738, 4
        %v5740 = vadd.f32 %v5738, %v5739
        %v5741 = vrot.slane %v5740, 2
        %v5742 = vadd.f32 %v5740, %v5741
        %v5743 = vrot.slane %v5742, 1
        %v5744 = vadd.f32 %v5742, %v5743
        %v5745 = vadd.f32 %v5647, %v5649
        %v5746 = vadd.f32 %v5745, %v5651
        %v5747 = vrot.slane %v5746, 4
        %v5748 = vadd.f32 %v5746, %v5747
        %v5749 = vrot.slane %v5748, 2
        %v5750 = vadd.f32 %v5748, %v5749
        %v5751 = vrot.slane %v5750, 1
        %v5752 = vadd.f32 %v5750, %v5751
        %v5753 = vadd.f32 %v5648, %v5650
        %v5754 = vadd.f32 %v5753, %v5652
        %v5755 = vrot.slane %v5754, 4
        %v5756 = vadd.f32 %v5754, %v5755
        %v5757 = vrot.slane %v5756, 2
        %v5758 = vadd.f32 %v5756, %v5757
        %v5759 = vrot.slane %v5758, 1
        %v5760 = vadd.f32 %v5758, %v5759
        %v5761 = vadd.f32 %v5653, %v5655
        %v5762 = vadd.f32 %v5761, %v5657
        %v5763 = vrot.slane %v5762, 4
        %v5764 = vadd.f32 %v5762, %v5763
        %v5765 = vrot.slane %v5764, 2
        %v5766 = vadd.f32 %v5764, %v5765
        %v5767 = vrot.slane %v5766, 1
        %v5768 = vadd.f32 %v5766, %v5767
        %v5769 = vadd.f32 %v5654, %v5656
        %v5770 = vadd.f32 %v5769, %v5658
        %v5771 = vrot.slane %v5770, 4
        %v5772 = vadd.f32 %v5770, %v5771
        %v5773 = vrot.slane %v5772, 2
        %v5774 = vadd.f32 %v5772, %v5773
        %v5775 = vrot.slane %v5774, 1
        %v5776 = vadd.f32 %v5774, %v5775
        %v5777 = vadd.f32 %v5659, %v5661
        %v5778 = vadd.f32 %v5777, %v5663
        %v5779 = vrot.slane %v5778, 4
        %v5780 = vadd.f32 %v5778, %v5779
        %v5781 = vrot.slane %v5780, 2
        %v5782 = vadd.f32 %v5780, %v5781
        %v5783 = vrot.slane %v5782, 1
        %v5784 = vadd.f32 %v5782, %v5783
        %v5785 = vadd.f32 %v5660, %v5662
        %v5786 = vadd.f32 %v5785, %v5664
        %v5787 = vrot.slane %v5786, 4
        %v5788 = vadd.f32 %v5786, %v5787
        %v5789 = vrot.slane %v5788, 2
        %v5790 = vadd.f32 %v5788, %v5789
        %v5791 = vrot.slane %v5790, 1
        %v5792 = vadd.f32 %v5790, %v5791
        %v5793 = vpack.c.bf16 %v5672, %v5672
        %v5794 = vpack.c.bf16 %v5680, %v5680
        %v5795 = vpack.c.bf16 %v5688, %v5688
        %v5796 = vpack.c.bf16 %v5696, %v5696
        %v5797 = vpack.c.bf16 %v5704, %v5704
        %v5798 = vpack.c.bf16 %v5712, %v5712
        %v5799 = vpack.c.bf16 %v5720, %v5720
        %v5800 = vpack.c.bf16 %v5728, %v5728
        %v5801 = vpack.c.bf16 %v5736, %v5736
        %v5802 = vpack.c.bf16 %v5744, %v5744
        %v5803 = vpack.c.bf16 %v5752, %v5752
        %v5804 = vpack.c.bf16 %v5760, %v5760
        %v5805 = vpack.c.bf16 %v5768, %v5768
        %v5806 = vpack.c.bf16 %v5776, %v5776
        %v5807 = vpack.c.bf16 %v5784, %v5784
        %v5808 = vpack.c.bf16 %v5792, %v5792
        %v5825 = vunpack.c.l.b16 %v5793
        %v5826 = vunpack.c.l.b16 %v5794
        %v5827 = vunpack.c.l.b16 %v5795
        %v5828 = vunpack.c.l.b16 %v5796
        %v5829 = vunpack.c.l.b16 %v5797
        %v5830 = vunpack.c.l.b16 %v5798
        %v5831 = vunpack.c.l.b16 %v5799
        %v5832 = vunpack.c.l.b16 %v5800
        %v5833 = vunpack.c.l.b16 %v5801
        %v5834 = vunpack.c.l.b16 %v5802
        %v5835 = vunpack.c.l.b16 %v5803
        %v5836 = vunpack.c.l.b16 %v5804
        %v5837 = vunpack.c.l.b16 %v5805
        %v5838 = vunpack.c.l.b16 %v5806
        %v5839 = vunpack.c.l.b16 %v5807
        %v5840 = vunpack.c.l.b16 %v5808
        %v5841 = vpack.c.b16 %v5826, %v5825
        %v5842 = vpack.c.b16 %v5828, %v5827
        %v5843 = vpack.c.b16 %v5830, %v5829
        %v5844 = vpack.c.b16 %v5832, %v5831
        %v5845 = vpack.c.b16 %v5834, %v5833
        %v5846 = vpack.c.b16 %v5836, %v5835
        %v5847 = vpack.c.b16 %v5838, %v5837
        %v5848 = vpack.c.b16 %v5840, %v5839
        %v5849 = vunpack.c.l.b16 %v5841
        %v5850 = vunpack.c.h.b16 %v5841
        %v5851 = vunpack.c.l.b16 %v5842
        %v5852 = vunpack.c.h.b16 %v5842
        %v5853 = vunpack.c.l.b16 %v5843
        %v5854 = vunpack.c.h.b16 %v5843
        %v5855 = vunpack.c.l.b16 %v5844
        %v5856 = vunpack.c.h.b16 %v5844
        %v5857 = vunpack.c.l.b16 %v5845
        %v5858 = vunpack.c.h.b16 %v5845
        %v5859 = vunpack.c.l.b16 %v5846
        %v5860 = vunpack.c.h.b16 %v5846
        %v5861 = vunpack.c.l.b16 %v5847
        %v5862 = vunpack.c.h.b16 %v5847
        %v5863 = vunpack.c.l.b16 %v5848
        %v5864 = vunpack.c.h.b16 %v5848
        %v5865 = vsel %vm1154, %v5851, %v5849
        %v5866 = vsel %vm1156, %v5853, %v5865
        %v5867 = vsel %vm1158, %v5855, %v5866
        %v5868 = vsel %vm1160, %v5857, %v5867
        %v5869 = vsel %vm1162, %v5859, %v5868
        %v5870 = vsel %vm1164, %v5861, %v5869
        %v5871 = vsel %vm1166, %v5863, %v5870
        %v5872 = vsel %vm1154, %v5852, %v5850
        %v5873 = vsel %vm1156, %v5854, %v5872
        %v5874 = vsel %vm1158, %v5856, %v5873
        %v5875 = vsel %vm1160, %v5858, %v5874
        %v5876 = vsel %vm1162, %v5860, %v5875
        %v5877 = vsel %vm1164, %v5862, %v5876
        %v5878 = vsel %vm1166, %v5864, %v5877
        %v5879 = vpack.c.b16 %v5878, %v5871
        %5881 = vst [vmem:[#allocation2 + $0x30] sm:$0xff] %v5879
        %v5882 = vlaneseq
        %v5883 = vshrl.u32 %v5882, 7
        %v5884 = vsub.s32 7, %v5883
        %v5885 = vrot.slane %v362, %v5884
        %v5886 = vlaneseq
        %v5887 = vshrl.u32 %v5886, 7
        %v5888 = vsub.s32 7, %v5887
        %v5889 = vrot.slane %v363, %v5888
        %vm5890 = vcmp.eq.s32.totalorder %v371, %v5885
        %vm5891 = vcmp.eq.s32.totalorder %v371, %v5889
        %vm5892 = vcmp.eq.s32.totalorder %v372, %v5885
        %vm5893 = vcmp.eq.s32.totalorder %v372, %v5889
        %vm5894 = vcmp.eq.s32.totalorder %v373, %v5885
        %vm5895 = vcmp.eq.s32.totalorder %v373, %v5889
        %vm5896 = vcmp.eq.s32.totalorder %v374, %v5885
        %vm5897 = vcmp.eq.s32.totalorder %v374, %v5889
        %vm5898 = vcmp.eq.s32.totalorder %v375, %v5885
        %vm5899 = vcmp.eq.s32.totalorder %v375, %v5889
        %vm5900 = vcmp.eq.s32.totalorder %v376, %v5885
        %vm5901 = vcmp.eq.s32.totalorder %v376, %v5889
        %vm5902 = vcmp.eq.s32.totalorder %v377, %v5885
        %vm5903 = vcmp.eq.s32.totalorder %v377, %v5889
        %vm5904 = vcmp.eq.s32.totalorder %v378, %v5885
        %vm5905 = vcmp.eq.s32.totalorder %v378, %v5889
        %vm5906 = vcmp.eq.s32.totalorder %v379, %v5885
        %vm5907 = vcmp.eq.s32.totalorder %v379, %v5889
        %vm5908 = vcmp.eq.s32.totalorder %v380, %v5885
        %vm5909 = vcmp.eq.s32.totalorder %v380, %v5889
        %vm5910 = vcmp.eq.s32.totalorder %v381, %v5885
        %vm5911 = vcmp.eq.s32.totalorder %v381, %v5889
        %vm5912 = vcmp.eq.s32.totalorder %v382, %v5885
        %vm5913 = vcmp.eq.s32.totalorder %v382, %v5889
        %vm5914 = vcmp.eq.s32.totalorder %v383, %v5885
        %vm5915 = vcmp.eq.s32.totalorder %v383, %v5889
        %vm5916 = vcmp.eq.s32.totalorder %v384, %v5885
        %vm5917 = vcmp.eq.s32.totalorder %v384, %v5889
        %vm5918 = vcmp.eq.s32.totalorder %v385, %v5885
        %vm5919 = vcmp.eq.s32.totalorder %v385, %v5889
        %vm5920 = vcmp.eq.s32.totalorder %v386, %v5885
        %vm5921 = vcmp.eq.s32.totalorder %v386, %v5889
        %v5922 = vlaneseq
        %v5923 = vshrl.u32 %v5922, 7
        %v5924 = vsub.s32 7, %v5923
        %v5925 = vrot.slane %v342, %v5924
        %v5926 = vlaneseq
        %v5927 = vshrl.u32 %v5926, 7
        %v5928 = vsub.s32 7, %v5927
        %v5929 = vrot.slane %v343, %v5928
        %v5930 = vsel %vm5890, %v5925, 0.0
        %v5931 = vsel %vm5891, %v5929, 0.0
        %v5932 = vsel %vm5892, %v5925, 0.0
        %v5933 = vsel %vm5893, %v5929, 0.0
        %v5934 = vsel %vm5894, %v5925, 0.0
        %v5935 = vsel %vm5895, %v5929, 0.0
        %v5936 = vsel %vm5896, %v5925, 0.0
        %v5937 = vsel %vm5897, %v5929, 0.0
        %v5938 = vsel %vm5898, %v5925, 0.0
        %v5939 = vsel %vm5899, %v5929, 0.0
        %v5940 = vsel %vm5900, %v5925, 0.0
        %v5941 = vsel %vm5901, %v5929, 0.0
        %v5942 = vsel %vm5902, %v5925, 0.0
        %v5943 = vsel %vm5903, %v5929, 0.0
        %v5944 = vsel %vm5904, %v5925, 0.0
        %v5945 = vsel %vm5905, %v5929, 0.0
        %v5946 = vsel %vm5906, %v5925, 0.0
        %v5947 = vsel %vm5907, %v5929, 0.0
        %v5948 = vsel %vm5908, %v5925, 0.0
        %v5949 = vsel %vm5909, %v5929, 0.0
        %v5950 = vsel %vm5910, %v5925, 0.0
        %v5951 = vsel %vm5911, %v5929, 0.0
        %v5952 = vsel %vm5912, %v5925, 0.0
        %v5953 = vsel %vm5913, %v5929, 0.0
        %v5954 = vsel %vm5914, %v5925, 0.0
        %v5955 = vsel %vm5915, %v5929, 0.0
        %v5956 = vsel %vm5916, %v5925, 0.0
        %v5957 = vsel %vm5917, %v5929, 0.0
        %v5958 = vsel %vm5918, %v5925, 0.0
        %v5959 = vsel %vm5919, %v5929, 0.0
        %v5960 = vsel %vm5920, %v5925, 0.0
        %v5961 = vsel %vm5921, %v5929, 0.0
        %v5962 = vlaneseq
        %v5963 = vshrl.u32 %v5962, 7
        %v5964 = vsub.s32 7, %v5963
        %v5965 = vrot.slane %v366, %v5964
        %v5966 = vlaneseq
        %v5967 = vshrl.u32 %v5966, 7
        %v5968 = vsub.s32 7, %v5967
        %v5969 = vrot.slane %v367, %v5968
        %vm5970 = vcmp.eq.s32.totalorder %v371, %v5965
        %vm5971 = vcmp.eq.s32.totalorder %v371, %v5969
        %vm5972 = vcmp.eq.s32.totalorder %v372, %v5965
        %vm5973 = vcmp.eq.s32.totalorder %v372, %v5969
        %vm5974 = vcmp.eq.s32.totalorder %v373, %v5965
        %vm5975 = vcmp.eq.s32.totalorder %v373, %v5969
        %vm5976 = vcmp.eq.s32.totalorder %v374, %v5965
        %vm5977 = vcmp.eq.s32.totalorder %v374, %v5969
        %vm5978 = vcmp.eq.s32.totalorder %v375, %v5965
        %vm5979 = vcmp.eq.s32.totalorder %v375, %v5969
        %vm5980 = vcmp.eq.s32.totalorder %v376, %v5965
        %vm5981 = vcmp.eq.s32.totalorder %v376, %v5969
        %vm5982 = vcmp.eq.s32.totalorder %v377, %v5965
        %vm5983 = vcmp.eq.s32.totalorder %v377, %v5969
        %vm5984 = vcmp.eq.s32.totalorder %v378, %v5965
        %vm5985 = vcmp.eq.s32.totalorder %v378, %v5969
        %vm5986 = vcmp.eq.s32.totalorder %v379, %v5965
        %vm5987 = vcmp.eq.s32.totalorder %v379, %v5969
        %vm5988 = vcmp.eq.s32.totalorder %v380, %v5965
        %vm5989 = vcmp.eq.s32.totalorder %v380, %v5969
        %vm5990 = vcmp.eq.s32.totalorder %v381, %v5965
        %vm5991 = vcmp.eq.s32.totalorder %v381, %v5969
        %vm5992 = vcmp.eq.s32.totalorder %v382, %v5965
        %vm5993 = vcmp.eq.s32.totalorder %v382, %v5969
        %vm5994 = vcmp.eq.s32.totalorder %v383, %v5965
        %vm5995 = vcmp.eq.s32.totalorder %v383, %v5969
        %vm5996 = vcmp.eq.s32.totalorder %v384, %v5965
        %vm5997 = vcmp.eq.s32.totalorder %v384, %v5969
        %vm5998 = vcmp.eq.s32.totalorder %v385, %v5965
        %vm5999 = vcmp.eq.s32.totalorder %v385, %v5969
        %vm6000 = vcmp.eq.s32.totalorder %v386, %v5965
        %vm6001 = vcmp.eq.s32.totalorder %v386, %v5969
        %v6002 = vlaneseq
        %v6003 = vshrl.u32 %v6002, 7
        %v6004 = vsub.s32 7, %v6003
        %v6005 = vrot.slane %v350, %v6004
        %v6006 = vlaneseq
        %v6007 = vshrl.u32 %v6006, 7
        %v6008 = vsub.s32 7, %v6007
        %v6009 = vrot.slane %v351, %v6008
        %v6010 = vsel %vm5970, %v6005, 0.0
        %v6011 = vsel %vm5971, %v6009, 0.0
        %v6012 = vsel %vm5972, %v6005, 0.0
        %v6013 = vsel %vm5973, %v6009, 0.0
        %v6014 = vsel %vm5974, %v6005, 0.0
        %v6015 = vsel %vm5975, %v6009, 0.0
        %v6016 = vsel %vm5976, %v6005, 0.0
        %v6017 = vsel %vm5977, %v6009, 0.0
        %v6018 = vsel %vm5978, %v6005, 0.0
        %v6019 = vsel %vm5979, %v6009, 0.0
        %v6020 = vsel %vm5980, %v6005, 0.0
        %v6021 = vsel %vm5981, %v6009, 0.0
        %v6022 = vsel %vm5982, %v6005, 0.0
        %v6023 = vsel %vm5983, %v6009, 0.0
        %v6024 = vsel %vm5984, %v6005, 0.0
        %v6025 = vsel %vm5985, %v6009, 0.0
        %v6026 = vsel %vm5986, %v6005, 0.0
        %v6027 = vsel %vm5987, %v6009, 0.0
        %v6028 = vsel %vm5988, %v6005, 0.0
        %v6029 = vsel %vm5989, %v6009, 0.0
        %v6030 = vsel %vm5990, %v6005, 0.0
        %v6031 = vsel %vm5991, %v6009, 0.0
        %v6032 = vsel %vm5992, %v6005, 0.0
        %v6033 = vsel %vm5993, %v6009, 0.0
        %v6034 = vsel %vm5994, %v6005, 0.0
        %v6035 = vsel %vm5995, %v6009, 0.0
        %v6036 = vsel %vm5996, %v6005, 0.0
        %v6037 = vsel %vm5997, %v6009, 0.0
        %v6038 = vsel %vm5998, %v6005, 0.0
        %v6039 = vsel %vm5999, %v6009, 0.0
        %v6040 = vsel %vm6000, %v6005, 0.0
        %v6041 = vsel %vm6001, %v6009, 0.0
        %v6042 = vadd.f32 %v5930, %v6010
        %v6043 = vadd.f32 %v5931, %v6011
        %v6044 = vadd.f32 %v5932, %v6012
        %v6045 = vadd.f32 %v5933, %v6013
        %v6046 = vadd.f32 %v5934, %v6014
        %v6047 = vadd.f32 %v5935, %v6015
        %v6048 = vadd.f32 %v5936, %v6016
        %v6049 = vadd.f32 %v5937, %v6017
        %v6050 = vadd.f32 %v5938, %v6018
        %v6051 = vadd.f32 %v5939, %v6019
        %v6052 = vadd.f32 %v5940, %v6020
        %v6053 = vadd.f32 %v5941, %v6021
        %v6054 = vadd.f32 %v5942, %v6022
        %v6055 = vadd.f32 %v5943, %v6023
        %v6056 = vadd.f32 %v5944, %v6024
        %v6057 = vadd.f32 %v5945, %v6025
        %v6058 = vadd.f32 %v5946, %v6026
        %v6059 = vadd.f32 %v5947, %v6027
        %v6060 = vadd.f32 %v5948, %v6028
        %v6061 = vadd.f32 %v5949, %v6029
        %v6062 = vadd.f32 %v5950, %v6030
        %v6063 = vadd.f32 %v5951, %v6031
        %v6064 = vadd.f32 %v5952, %v6032
        %v6065 = vadd.f32 %v5953, %v6033
        %v6066 = vadd.f32 %v5954, %v6034
        %v6067 = vadd.f32 %v5955, %v6035
        %v6068 = vadd.f32 %v5956, %v6036
        %v6069 = vadd.f32 %v5957, %v6037
        %v6070 = vadd.f32 %v5958, %v6038
        %v6071 = vadd.f32 %v5959, %v6039
        %v6072 = vadd.f32 %v5960, %v6040
        %v6073 = vadd.f32 %v5961, %v6041
        %v6074 = vpack.c.bf16 %v6044, %v6042
        %v6075 = vpack.c.bf16 %v6045, %v6043
        %v6076 = vpack.c.bf16 %v6048, %v6046
        %v6077 = vpack.c.bf16 %v6049, %v6047
        %v6078 = vpack.c.bf16 %v6052, %v6050
        %v6079 = vpack.c.bf16 %v6053, %v6051
        %v6080 = vpack.c.bf16 %v6056, %v6054
        %v6081 = vpack.c.bf16 %v6057, %v6055
        %v6082 = vpack.c.bf16 %v6060, %v6058
        %v6083 = vpack.c.bf16 %v6061, %v6059
        %v6084 = vpack.c.bf16 %v6064, %v6062
        %v6085 = vpack.c.bf16 %v6065, %v6063
        %v6086 = vpack.c.bf16 %v6068, %v6066
        %v6087 = vpack.c.bf16 %v6069, %v6067
        %v6088 = vpack.c.bf16 %v6072, %v6070
        %v6089 = vpack.c.bf16 %v6073, %v6071
        %v6090 = vlaneseq
        %v6091 = vshrl.u32 %v6090, 7
        %v6092 = vsub.s32 7, %v6091
        %v6093 = vrot.slane %v354, %v6092
        %v6094 = vlaneseq
        %v6095 = vshrl.u32 %v6094, 7
        %v6096 = vsub.s32 7, %v6095
        %v6097 = vrot.slane %v355, %v6096
        %vm6098 = vcmp.eq.s32.totalorder %v371, %v6093
        %vm6099 = vcmp.eq.s32.totalorder %v371, %v6097
        %vm6100 = vcmp.eq.s32.totalorder %v372, %v6093
        %vm6101 = vcmp.eq.s32.totalorder %v372, %v6097
        %vm6102 = vcmp.eq.s32.totalorder %v373, %v6093
        %vm6103 = vcmp.eq.s32.totalorder %v373, %v6097
        %v6104 = vlaneseq
        %v6105 = vshrl.u32 %v6104, 7
        %v6106 = vsub.s32 7, %v6105
        %v6107 = vrot.slane %v326, %v6106
        %v6108 = vlaneseq
        %v6109 = vshrl.u32 %v6108, 7
        %v6110 = vsub.s32 7, %v6109
        %v6111 = vrot.slane %v327, %v6110
        %v6112 = vsel %vm6098, %v6107, 0.0
        %v6113 = vsel %vm6099, %v6111, 0.0
        %v6114 = vsel %vm6100, %v6107, 0.0
        %v6115 = vsel %vm6101, %v6111, 0.0
        %v6116 = vsel %vm6102, %v6107, 0.0
        %v6117 = vsel %vm6103, %v6111, 0.0
        %v6118 = vlaneseq
        %v6119 = vshrl.u32 %v6118, 7
        %v6120 = vsub.s32 7, %v6119
        %v6121 = vrot.slane %v358, %v6120
        %v6122 = vlaneseq
        %v6123 = vshrl.u32 %v6122, 7
        %v6124 = vsub.s32 7, %v6123
        %v6125 = vrot.slane %v359, %v6124
        %vm6126 = vcmp.eq.s32.totalorder %v371, %v6121
        %vm6127 = vcmp.eq.s32.totalorder %v371, %v6125
        %vm6128 = vcmp.eq.s32.totalorder %v372, %v6121
        %vm6129 = vcmp.eq.s32.totalorder %v372, %v6125
        %vm6130 = vcmp.eq.s32.totalorder %v373, %v6121
        %vm6131 = vcmp.eq.s32.totalorder %v373, %v6125
        %v6132 = vlaneseq
        %v6133 = vshrl.u32 %v6132, 7
        %v6134 = vsub.s32 7, %v6133
        %v6135 = vrot.slane %v334, %v6134
        %v6136 = vlaneseq
        %v6137 = vshrl.u32 %v6136, 7
        %v6138 = vsub.s32 7, %v6137
        %v6139 = vrot.slane %v335, %v6138
        %v6140 = vsel %vm6126, %v6135, 0.0
        %v6141 = vsel %vm6127, %v6139, 0.0
        %v6142 = vsel %vm6128, %v6135, 0.0
        %v6143 = vsel %vm6129, %v6139, 0.0
        %v6144 = vsel %vm6130, %v6135, 0.0
        %v6145 = vsel %vm6131, %v6139, 0.0
        %v6146 = vadd.f32 %v6112, %v6140
        %v6147 = vadd.f32 %v6113, %v6141
        %v6148 = vadd.f32 %v6114, %v6142
        %v6149 = vadd.f32 %v6115, %v6143
        %v6150 = vadd.f32 %v6116, %v6144
        %v6151 = vadd.f32 %v6117, %v6145
        %v6152 = vld [vmem:[%s210] sm:$0xf]
        %v6153 = vld [vmem:[%s210 + $0x4] sm:$0xf]
        %v6154 = vld [vmem:[%s210 + $0x8] sm:$0xf]
        %v6155 = vld [vmem:[%s210 + $0xc] sm:$0xf]
        %v6156 = vld [vmem:[%s210 + $0x10] sm:$0xf]
        %v6157 = vld [vmem:[%s210 + $0x14] sm:$0xf]
        %v6158 = vld [vmem:[%s210 + $0x18] sm:$0xf]
        %v6159 = vld [vmem:[%s210 + $0x1c] sm:$0xf]
        %v6160 = vld [vmem:[%s210 + $0x20] sm:$0xf]
        %v6161 = vld [vmem:[%s210 + $0x24] sm:$0xf]
        %v6162 = vld [vmem:[%s210 + $0x28] sm:$0xf]
        %v6163 = vld [vmem:[%s210 + $0x2c] sm:$0xf]
        %v6164 = vld [vmem:[%s210 + $0x30] sm:$0xf]
        %v6165 = vld [vmem:[%s210 + $0x34] sm:$0xf]
        %v6166 = vld [vmem:[%s210 + $0x38] sm:$0xf]
        %v6167 = vld [vmem:[%s210 + $0x3c] sm:$0xf]
        %v6168 = vld [vmem:[%s210 + $0x40] sm:$0xf]
        %v6169 = vld [vmem:[%s210 + $0x44] sm:$0xf]
        %v6170 = vld [vmem:[%s210 + $0x48] sm:$0xf]
        %v6171 = vld [vmem:[%s210 + $0x4c] sm:$0xf]
        %v6172 = vld [vmem:[%s210 + $0x50] sm:$0xf]
        %v6173 = vld [vmem:[%s210 + $0x54] sm:$0xf]
        %v6174 = vld [vmem:[%s210 + $0x58] sm:$0xf]
        %v6175 = vld [vmem:[%s210 + $0x5c] sm:$0xf]
        %v6200 = vunpack.c.l.b16 %v6152
        %v6201 = vunpack.c.l.b16 %v6153
        %v6202 = vunpack.c.l.b16 %v6154
        %v6203 = vunpack.c.l.b16 %v6155
        %v6204 = vunpack.c.l.b16 %v6156
        %v6205 = vunpack.c.l.b16 %v6157
        %v6206 = vunpack.c.l.b16 %v6158
        %v6207 = vunpack.c.l.b16 %v6159
        %v6208 = vunpack.c.l.b16 %v6160
        %v6209 = vunpack.c.l.b16 %v6161
        %v6210 = vunpack.c.l.b16 %v6162
        %v6211 = vunpack.c.l.b16 %v6163
        %v6212 = vunpack.c.l.b16 %v6164
        %v6213 = vunpack.c.l.b16 %v6165
        %v6214 = vunpack.c.l.b16 %v6166
        %v6215 = vunpack.c.l.b16 %v6167
        %v6216 = vunpack.c.l.b16 %v6168
        %v6217 = vunpack.c.l.b16 %v6169
        %v6218 = vunpack.c.l.b16 %v6170
        %v6219 = vunpack.c.l.b16 %v6171
        %v6220 = vunpack.c.l.b16 %v6172
        %v6221 = vunpack.c.l.b16 %v6173
        %v6222 = vunpack.c.l.b16 %v6174
        %v6223 = vunpack.c.l.b16 %v6175
        %v6224 = vpack.c.b16 %v6201, %v6200
        %v6225 = vpack.c.b16 %v6203, %v6202
        %v6226 = vpack.c.b16 %v6205, %v6204
        %v6227 = vpack.c.b16 %v6207, %v6206
        %v6228 = vpack.c.b16 %v6209, %v6208
        %v6229 = vpack.c.b16 %v6211, %v6210
        %v6230 = vpack.c.b16 %v6213, %v6212
        %v6231 = vpack.c.b16 %v6215, %v6214
        %v6232 = vpack.c.b16 %v6217, %v6216
        %v6233 = vpack.c.b16 %v6219, %v6218
        %v6234 = vpack.c.b16 %v6221, %v6220
        %v6235 = vpack.c.b16 %v6223, %v6222
        %6248 = vmatprep.subr.bf16.mxu0 %v6075
        %6249 = vmatpush1.bf16.msra.mxu0 %v6074
        %6250 = vmatprep.subr.bf16.mxu0 %v6077
        %6251 = vmatpush1.bf16.msra.mxu0 %v6076
        %6252 = vmatprep.subr.bf16.mxu0 %v6079
        %6253 = vmatpush1.bf16.msra.mxu0 %v6078
        %6254 = vmatprep.subr.bf16.mxu0 %v6081
        %6255 = vmatpush1.bf16.msra.mxu0 %v6080
        %6256 = vmatprep.subr.bf16.mxu0 %v6083
        %6257 = vmatpush1.bf16.msra.mxu0 %v6082
        %6258 = vmatprep.subr.bf16.mxu0 %v6085
        %6259 = vmatpush1.bf16.msra.mxu0 %v6084
        %6260 = vmatprep.subr.bf16.mxu0 %v6087
        %6261 = vmatpush1.bf16.msra.mxu0 %v6086
        %6262 = vmatprep.subr.bf16.mxu0 %v6089
        %6263 = vmatpush1.bf16.msra.mxu0 %v6088
        %6264 = vmatprep.subr.bf16.mxu0 0
        %6265 = vmatpush1.bf16.msra.mxu0 0
        %6266 = vmatprep.subr.bf16.mxu0 0
        %6267 = vmatpush1.bf16.msra.mxu0 0
        %6268 = vmatprep.subr.bf16.mxu0 0
        %6269 = vmatpush1.bf16.msra.mxu0 0
        %6270 = vmatprep.subr.bf16.mxu0 0
        %6271 = vmatpush1.bf16.msra.mxu0 0
        %6272 = vmatprep.subr.bf16.mxu0 0
        %6273 = vmatpush1.bf16.msra.mxu0 0
        %6274 = vmatprep.subr.bf16.mxu0 0
        %6275 = vmatpush1.bf16.msra.mxu0 0
        %6276 = vmatprep.subr.bf16.mxu0 0
        %6277 = vmatpush1.bf16.msra.mxu0 0
        %6278 = vmatprep.subr.bf16.mxu0 0
        %6279 = vmatpush1.bf16.msra.mxu0 0
        %6280 = vmatprep.mubr.bf16.mxu0 0
        %6281 = vmatmul.mubr.bf16.gmra.mrb[0].mxu0 %v6224
        %v6282 = vpop.f32.mrb[0].mxu0
        %v6283 = vadd.f32 0.0, %v6282
        %v6284 = vpop.f32.mrb[0].mxu0
        %v6285 = vadd.f32 0.0, %v6284
        %v6286 = vpop.f32.mrb[0].mxu0
        %v6287 = vadd.f32 0.0, %v6286
        %v6288 = vpop.f32.mrb[0].mxu0
        %v6289 = vadd.f32 0.0, %v6288
        %6290 = vmatprep.mubr.bf16.mxu0 0
        %6291 = vmatmul.mubr.bf16.gmra.mrb[0].mxu0 %v6225
        %v6292 = vpop.f32.mrb[0].mxu0
        %v6293 = vadd.f32 0.0, %v6292
        %v6294 = vpop.f32.mrb[0].mxu0
        %v6295 = vadd.f32 0.0, %v6294
        %v6296 = vpop.f32.mrb[0].mxu0
        %v6297 = vadd.f32 0.0, %v6296
        %v6298 = vpop.f32.mrb[0].mxu0
        %v6299 = vadd.f32 0.0, %v6298
        %6300 = vmatprep.mubr.bf16.mxu0 0
        %6301 = vmatmul.mubr.bf16.gmra.mrb[0].mxu0 %v6226
        %v6302 = vpop.f32.mrb[0].mxu0
        %v6303 = vadd.f32 0.0, %v6302
        %v6304 = vpop.f32.mrb[0].mxu0
        %v6305 = vadd.f32 0.0, %v6304
        %v6306 = vpop.f32.mrb[0].mxu0
        %v6307 = vadd.f32 0.0, %v6306
        %v6308 = vpop.f32.mrb[0].mxu0
        %v6309 = vadd.f32 0.0, %v6308
        %6310 = vmatprep.mubr.bf16.mxu0 0
        %6311 = vmatmul.mubr.bf16.gmra.mrb[0].mxu0 %v6227
        %v6312 = vpop.f32.mrb[0].mxu0
        %v6313 = vadd.f32 0.0, %v6312
        %v6314 = vpop.f32.mrb[0].mxu0
        %v6315 = vadd.f32 0.0, %v6314
        %v6316 = vpop.f32.mrb[0].mxu0
        %v6317 = vadd.f32 0.0, %v6316
        %v6318 = vpop.f32.mrb[0].mxu0
        %v6319 = vadd.f32 0.0, %v6318
        %6320 = vmatprep.mubr.bf16.mxu0 0
        %6321 = vmatmul.mubr.bf16.gmra.mrb[0].mxu0 %v6228
        %v6322 = vpop.f32.mrb[0].mxu0
        %v6323 = vadd.f32 0.0, %v6322
        %v6324 = vpop.f32.mrb[0].mxu0
        %v6325 = vadd.f32 0.0, %v6324
        %v6326 = vpop.f32.mrb[0].mxu0
        %v6327 = vadd.f32 0.0, %v6326
        %v6328 = vpop.f32.mrb[0].mxu0
        %v6329 = vadd.f32 0.0, %v6328
        %6330 = vmatprep.mubr.bf16.mxu0 0
        %6331 = vmatmul.mubr.bf16.gmra.mrb[0].mxu0 %v6229
        %v6332 = vpop.f32.mrb[0].mxu0
        %v6333 = vadd.f32 0.0, %v6332
        %v6334 = vpop.f32.mrb[0].mxu0
        %v6335 = vadd.f32 0.0, %v6334
        %v6336 = vpop.f32.mrb[0].mxu0
        %v6337 = vadd.f32 0.0, %v6336
        %v6338 = vpop.f32.mrb[0].mxu0
        %v6339 = vadd.f32 0.0, %v6338
        %6340 = vmatprep.mubr.bf16.mxu0 0
        %6341 = vmatmul.mubr.bf16.gmra.mrb[0].mxu0 %v6230
        %v6342 = vpop.f32.mrb[0].mxu0
        %v6343 = vadd.f32 0.0, %v6342
        %v6344 = vpop.f32.mrb[0].mxu0
        %v6345 = vadd.f32 0.0, %v6344
        %v6346 = vpop.f32.mrb[0].mxu0
        %v6347 = vadd.f32 0.0, %v6346
        %v6348 = vpop.f32.mrb[0].mxu0
        %v6349 = vadd.f32 0.0, %v6348
        %6350 = vmatprep.mubr.bf16.mxu0 0
        %6351 = vmatmul.mubr.bf16.gmra.mrb[0].mxu0 %v6231
        %v6352 = vpop.f32.mrb[0].mxu0
        %v6353 = vadd.f32 0.0, %v6352
        %v6354 = vpop.f32.mrb[0].mxu0
        %v6355 = vadd.f32 0.0, %v6354
        %v6356 = vpop.f32.mrb[0].mxu0
        %v6357 = vadd.f32 0.0, %v6356
        %v6358 = vpop.f32.mrb[0].mxu0
        %v6359 = vadd.f32 0.0, %v6358
        %6360 = vmatprep.mubr.bf16.mxu0 0
        %6361 = vmatmul.mubr.bf16.gmra.mrb[0].mxu0 %v6232
        %v6362 = vpop.f32.mrb[0].mxu0
        %v6363 = vadd.f32 0.0, %v6362
        %v6364 = vpop.f32.mrb[0].mxu0
        %v6365 = vadd.f32 0.0, %v6364
        %v6366 = vpop.f32.mrb[0].mxu0
        %v6367 = vadd.f32 0.0, %v6366
        %v6368 = vpop.f32.mrb[0].mxu0
        %v6369 = vadd.f32 0.0, %v6368
        %6370 = vmatprep.mubr.bf16.mxu0 0
        %6371 = vmatmul.mubr.bf16.gmra.mrb[0].mxu0 %v6233
        %v6372 = vpop.f32.mrb[0].mxu0
        %v6373 = vadd.f32 0.0, %v6372
        %v6374 = vpop.f32.mrb[0].mxu0
        %v6375 = vadd.f32 0.0, %v6374
        %v6376 = vpop.f32.mrb[0].mxu0
        %v6377 = vadd.f32 0.0, %v6376
        %v6378 = vpop.f32.mrb[0].mxu0
        %v6379 = vadd.f32 0.0, %v6378
        %6380 = vmatprep.mubr.bf16.mxu0 0
        %6381 = vmatmul.mubr.bf16.gmra.mrb[0].mxu0 %v6234
        %v6382 = vpop.f32.mrb[0].mxu0
        %v6383 = vadd.f32 0.0, %v6382
        %v6384 = vpop.f32.mrb[0].mxu0
        %v6385 = vadd.f32 0.0, %v6384
        %v6386 = vpop.f32.mrb[0].mxu0
        %v6387 = vadd.f32 0.0, %v6386
        %v6388 = vpop.f32.mrb[0].mxu0
        %v6389 = vadd.f32 0.0, %v6388
        %6390 = vmatprep.mubr.bf16.mxu0 0
        %6391 = vmatmul.mubr.bf16.gmra.mrb[0].mxu0 %v6235
        %v6392 = vpop.f32.mrb[0].mxu0
        %v6393 = vadd.f32 0.0, %v6392
        %v6394 = vpop.f32.mrb[0].mxu0
        %v6395 = vadd.f32 0.0, %v6394
        %v6396 = vpop.f32.mrb[0].mxu0
        %v6397 = vadd.f32 0.0, %v6396
        %v6398 = vpop.f32.mrb[0].mxu0
        %v6399 = vadd.f32 0.0, %v6398
        %6400 = vdwg.mxu0
        %v6401 = vmul.f32 %v6283, %v6146
        %v6402 = vmul.f32 %v6285, %v6147
        %v6403 = vmul.f32 %v6287, %v6148
        %v6404 = vmul.f32 %v6289, %v6149
        %v6405 = vmul.f32 %v6293, %v6150
        %v6406 = vmul.f32 %v6295, %v6151
        %v6407 = vmul.f32 %v6297, %v6146
        %v6408 = vmul.f32 %v6299, %v6147
        %v6409 = vmul.f32 %v6303, %v6148
        %v6410 = vmul.f32 %v6305, %v6149
        %v6411 = vmul.f32 %v6307, %v6150
        %v6412 = vmul.f32 %v6309, %v6151
        %v6413 = vmul.f32 %v6313, %v6146
        %v6414 = vmul.f32 %v6315, %v6147
        %v6415 = vmul.f32 %v6317, %v6148
        %v6416 = vmul.f32 %v6319, %v6149
        %v6417 = vmul.f32 %v6323, %v6150
        %v6418 = vmul.f32 %v6325, %v6151
        %v6419 = vmul.f32 %v6327, %v6146
        %v6420 = vmul.f32 %v6329, %v6147
        %v6421 = vmul.f32 %v6333, %v6148
        %v6422 = vmul.f32 %v6335, %v6149
        %v6423 = vmul.f32 %v6337, %v6150
        %v6424 = vmul.f32 %v6339, %v6151
        %v6425 = vmul.f32 %v6343, %v6146
        %v6426 = vmul.f32 %v6345, %v6147
        %v6427 = vmul.f32 %v6347, %v6148
        %v6428 = vmul.f32 %v6349, %v6149
        %v6429 = vmul.f32 %v6353, %v6150
        %v6430 = vmul.f32 %v6355, %v6151
        %v6431 = vmul.f32 %v6357, %v6146
        %v6432 = vmul.f32 %v6359, %v6147
        %v6433 = vmul.f32 %v6363, %v6148
        %v6434 = vmul.f32 %v6365, %v6149
        %v6435 = vmul.f32 %v6367, %v6150
        %v6436 = vmul.f32 %v6369, %v6151
        %v6437 = vmul.f32 %v6373, %v6146
        %v6438 = vmul.f32 %v6375, %v6147
        %v6439 = vmul.f32 %v6377, %v6148
        %v6440 = vmul.f32 %v6379, %v6149
        %v6441 = vmul.f32 %v6383, %v6150
        %v6442 = vmul.f32 %v6385, %v6151
        %v6443 = vmul.f32 %v6387, %v6146
        %v6444 = vmul.f32 %v6389, %v6147
        %v6445 = vmul.f32 %v6393, %v6148
        %v6446 = vmul.f32 %v6395, %v6149
        %v6447 = vmul.f32 %v6397, %v6150
        %v6448 = vmul.f32 %v6399, %v6151
        %v6449 = vadd.f32 %v6401, %v6403
        %v6450 = vadd.f32 %v6449, %v6405
        %v6451 = vrot.slane %v6450, 4
        %v6452 = vadd.f32 %v6450, %v6451
        %v6453 = vrot.slane %v6452, 2
        %v6454 = vadd.f32 %v6452, %v6453
        %v6455 = vrot.slane %v6454, 1
        %v6456 = vadd.f32 %v6454, %v6455
        %v6457 = vadd.f32 %v6402, %v6404
        %v6458 = vadd.f32 %v6457, %v6406
        %v6459 = vrot.slane %v6458, 4
        %v6460 = vadd.f32 %v6458, %v6459
        %v6461 = vrot.slane %v6460, 2
        %v6462 = vadd.f32 %v6460, %v6461
        %v6463 = vrot.slane %v6462, 1
        %v6464 = vadd.f32 %v6462, %v6463
        %v6465 = vadd.f32 %v6407, %v6409
        %v6466 = vadd.f32 %v6465, %v6411
        %v6467 = vrot.slane %v6466, 4
        %v6468 = vadd.f32 %v6466, %v6467
        %v6469 = vrot.slane %v6468, 2
        %v6470 = vadd.f32 %v6468, %v6469
        %v6471 = vrot.slane %v6470, 1
        %v6472 = vadd.f32 %v6470, %v6471
        %v6473 = vadd.f32 %v6408, %v6410
        %v6474 = vadd.f32 %v6473, %v6412
        %v6475 = vrot.slane %v6474, 4
        %v6476 = vadd.f32 %v6474, %v6475
        %v6477 = vrot.slane %v6476, 2
        %v6478 = vadd.f32 %v6476, %v6477
        %v6479 = vrot.slane %v6478, 1
        %v6480 = vadd.f32 %v6478, %v6479
        %v6481 = vadd.f32 %v6413, %v6415
        %v6482 = vadd.f32 %v6481, %v6417
        %v6483 = vrot.slane %v6482, 4
        %v6484 = vadd.f32 %v6482, %v6483
        %v6485 = vrot.slane %v6484, 2
        %v6486 = vadd.f32 %v6484, %v6485
        %v6487 = vrot.slane %v6486, 1
        %v6488 = vadd.f32 %v6486, %v6487
        %v6489 = vadd.f32 %v6414, %v6416
        %v6490 = vadd.f32 %v6489, %v6418
        %v6491 = vrot.slane %v6490, 4
        %v6492 = vadd.f32 %v6490, %v6491
        %v6493 = vrot.slane %v6492, 2
        %v6494 = vadd.f32 %v6492, %v6493
        %v6495 = vrot.slane %v6494, 1
        %v6496 = vadd.f32 %v6494, %v6495
        %v6497 = vadd.f32 %v6419, %v6421
        %v6498 = vadd.f32 %v6497, %v6423
        %v6499 = vrot.slane %v6498, 4
        %v6500 = vadd.f32 %v6498, %v6499
        %v6501 = vrot.slane %v6500, 2
        %v6502 = vadd.f32 %v6500, %v6501
        %v6503 = vrot.slane %v6502, 1
        %v6504 = vadd.f32 %v6502, %v6503
        %v6505 = vadd.f32 %v6420, %v6422
        %v6506 = vadd.f32 %v6505, %v6424
        %v6507 = vrot.slane %v6506, 4
        %v6508 = vadd.f32 %v6506, %v6507
        %v6509 = vrot.slane %v6508, 2
        %v6510 = vadd.f32 %v6508, %v6509
        %v6511 = vrot.slane %v6510, 1
        %v6512 = vadd.f32 %v6510, %v6511
        %v6513 = vadd.f32 %v6425, %v6427
        %v6514 = vadd.f32 %v6513, %v6429
        %v6515 = vrot.slane %v6514, 4
        %v6516 = vadd.f32 %v6514, %v6515
        %v6517 = vrot.slane %v6516, 2
        %v6518 = vadd.f32 %v6516, %v6517
        %v6519 = vrot.slane %v6518, 1
        %v6520 = vadd.f32 %v6518, %v6519
        %v6521 = vadd.f32 %v6426, %v6428
        %v6522 = vadd.f32 %v6521, %v6430
        %v6523 = vrot.slane %v6522, 4
        %v6524 = vadd.f32 %v6522, %v6523
        %v6525 = vrot.slane %v6524, 2
        %v6526 = vadd.f32 %v6524, %v6525
        %v6527 = vrot.slane %v6526, 1
        %v6528 = vadd.f32 %v6526, %v6527
        %v6529 = vadd.f32 %v6431, %v6433
        %v6530 = vadd.f32 %v6529, %v6435
        %v6531 = vrot.slane %v6530, 4
        %v6532 = vadd.f32 %v6530, %v6531
        %v6533 = vrot.slane %v6532, 2
        %v6534 = vadd.f32 %v6532, %v6533
        %v6535 = vrot.slane %v6534, 1
        %v6536 = vadd.f32 %v6534, %v6535
        %v6537 = vadd.f32 %v6432, %v6434
        %v6538 = vadd.f32 %v6537, %v6436
        %v6539 = vrot.slane %v6538, 4
        %v6540 = vadd.f32 %v6538, %v6539
        %v6541 = vrot.slane %v6540, 2
        %v6542 = vadd.f32 %v6540, %v6541
        %v6543 = vrot.slane %v6542, 1
        %v6544 = vadd.f32 %v6542, %v6543
        %v6545 = vadd.f32 %v6437, %v6439
        %v6546 = vadd.f32 %v6545, %v6441
        %v6547 = vrot.slane %v6546, 4
        %v6548 = vadd.f32 %v6546, %v6547
        %v6549 = vrot.slane %v6548, 2
        %v6550 = vadd.f32 %v6548, %v6549
        %v6551 = vrot.slane %v6550, 1
        %v6552 = vadd.f32 %v6550, %v6551
        %v6553 = vadd.f32 %v6438, %v6440
        %v6554 = vadd.f32 %v6553, %v6442
        %v6555 = vrot.slane %v6554, 4
        %v6556 = vadd.f32 %v6554, %v6555
        %v6557 = vrot.slane %v6556, 2
        %v6558 = vadd.f32 %v6556, %v6557
        %v6559 = vrot.slane %v6558, 1
        %v6560 = vadd.f32 %v6558, %v6559
        %v6561 = vadd.f32 %v6443, %v6445
        %v6562 = vadd.f32 %v6561, %v6447
        %v6563 = vrot.slane %v6562, 4
        %v6564 = vadd.f32 %v6562, %v6563
        %v6565 = vrot.slane %v6564, 2
        %v6566 = vadd.f32 %v6564, %v6565
        %v6567 = vrot.slane %v6566, 1
        %v6568 = vadd.f32 %v6566, %v6567
        %v6569 = vadd.f32 %v6444, %v6446
        %v6570 = vadd.f32 %v6569, %v6448
        %v6571 = vrot.slane %v6570, 4
        %v6572 = vadd.f32 %v6570, %v6571
        %v6573 = vrot.slane %v6572, 2
        %v6574 = vadd.f32 %v6572, %v6573
        %v6575 = vrot.slane %v6574, 1
        %v6576 = vadd.f32 %v6574, %v6575
        %v6577 = vpack.c.bf16 %v6456, %v6456
        %v6578 = vpack.c.bf16 %v6464, %v6464
        %v6579 = vpack.c.bf16 %v6472, %v6472
        %v6580 = vpack.c.bf16 %v6480, %v6480
        %v6581 = vpack.c.bf16 %v6488, %v6488
        %v6582 = vpack.c.bf16 %v6496, %v6496
        %v6583 = vpack.c.bf16 %v6504, %v6504
        %v6584 = vpack.c.bf16 %v6512, %v6512
        %v6585 = vpack.c.bf16 %v6520, %v6520
        %v6586 = vpack.c.bf16 %v6528, %v6528
        %v6587 = vpack.c.bf16 %v6536, %v6536
        %v6588 = vpack.c.bf16 %v6544, %v6544
        %v6589 = vpack.c.bf16 %v6552, %v6552
        %v6590 = vpack.c.bf16 %v6560, %v6560
        %v6591 = vpack.c.bf16 %v6568, %v6568
        %v6592 = vpack.c.bf16 %v6576, %v6576
        %v6609 = vunpack.c.l.b16 %v6577
        %v6610 = vunpack.c.l.b16 %v6578
        %v6611 = vunpack.c.l.b16 %v6579
        %v6612 = vunpack.c.l.b16 %v6580
        %v6613 = vunpack.c.l.b16 %v6581
        %v6614 = vunpack.c.l.b16 %v6582
        %v6615 = vunpack.c.l.b16 %v6583
        %v6616 = vunpack.c.l.b16 %v6584
        %v6617 = vunpack.c.l.b16 %v6585
        %v6618 = vunpack.c.l.b16 %v6586
        %v6619 = vunpack.c.l.b16 %v6587
        %v6620 = vunpack.c.l.b16 %v6588
        %v6621 = vunpack.c.l.b16 %v6589
        %v6622 = vunpack.c.l.b16 %v6590
        %v6623 = vunpack.c.l.b16 %v6591
        %v6624 = vunpack.c.l.b16 %v6592
        %v6625 = vpack.c.b16 %v6610, %v6609
        %v6626 = vpack.c.b16 %v6612, %v6611
        %v6627 = vpack.c.b16 %v6614, %v6613
        %v6628 = vpack.c.b16 %v6616, %v6615
        %v6629 = vpack.c.b16 %v6618, %v6617
        %v6630 = vpack.c.b16 %v6620, %v6619
        %v6631 = vpack.c.b16 %v6622, %v6621
        %v6632 = vpack.c.b16 %v6624, %v6623
        %v6633 = vunpack.c.l.b16 %v6625
        %v6634 = vunpack.c.h.b16 %v6625
        %v6635 = vunpack.c.l.b16 %v6626
        %v6636 = vunpack.c.h.b16 %v6626
        %v6637 = vunpack.c.l.b16 %v6627
        %v6638 = vunpack.c.h.b16 %v6627
        %v6639 = vunpack.c.l.b16 %v6628
        %v6640 = vunpack.c.h.b16 %v6628
        %v6641 = vunpack.c.l.b16 %v6629
        %v6642 = vunpack.c.h.b16 %v6629
        %v6643 = vunpack.c.l.b16 %v6630
        %v6644 = vunpack.c.h.b16 %v6630
        %v6645 = vunpack.c.l.b16 %v6631
        %v6646 = vunpack.c.h.b16 %v6631
        %v6647 = vunpack.c.l.b16 %v6632
        %v6648 = vunpack.c.h.b16 %v6632
        %v6649 = vsel %vm1154, %v6635, %v6633
        %v6650 = vsel %vm1156, %v6637, %v6649
        %v6651 = vsel %vm1158, %v6639, %v6650
        %v6652 = vsel %vm1160, %v6641, %v6651
        %v6653 = vsel %vm1162, %v6643, %v6652
        %v6654 = vsel %vm1164, %v6645, %v6653
        %v6655 = vsel %vm1166, %v6647, %v6654
        %v6656 = vsel %vm1154, %v6636, %v6634
        %v6657 = vsel %vm1156, %v6638, %v6656
        %v6658 = vsel %vm1158, %v6640, %v6657
        %v6659 = vsel %vm1160, %v6642, %v6658
        %v6660 = vsel %vm1162, %v6644, %v6659
        %v6661 = vsel %vm1164, %v6646, %v6660
        %v6662 = vsel %vm1166, %v6648, %v6661
        %v6663 = vpack.c.b16 %v6662, %v6655
        %6665 = vst [vmem:[#allocation2 + $0x38] sm:$0xff] %v6663
        %v6666 = vlaneseq
        %v6667 = vshrl.u32 %v6666, 7
        %v6668 = vsub.s32 0, %v6667
        %v6669 = vrot.slane %v364, %v6668
        %v6670 = vlaneseq
        %v6671 = vshrl.u32 %v6670, 7
        %v6672 = vsub.s32 0, %v6671
        %v6673 = vrot.slane %v365, %v6672
        %vm6674 = vcmp.eq.s32.totalorder %v371, %v6669
        %vm6675 = vcmp.eq.s32.totalorder %v371, %v6673
        %vm6676 = vcmp.eq.s32.totalorder %v372, %v6669
        %vm6677 = vcmp.eq.s32.totalorder %v372, %v6673
        %vm6678 = vcmp.eq.s32.totalorder %v373, %v6669
        %vm6679 = vcmp.eq.s32.totalorder %v373, %v6673
        %vm6680 = vcmp.eq.s32.totalorder %v374, %v6669
        %vm6681 = vcmp.eq.s32.totalorder %v374, %v6673
        %vm6682 = vcmp.eq.s32.totalorder %v375, %v6669
        %vm6683 = vcmp.eq.s32.totalorder %v375, %v6673
        %vm6684 = vcmp.eq.s32.totalorder %v376, %v6669
        %vm6685 = vcmp.eq.s32.totalorder %v376, %v6673
        %vm6686 = vcmp.eq.s32.totalorder %v377, %v6669
        %vm6687 = vcmp.eq.s32.totalorder %v377, %v6673
        %vm6688 = vcmp.eq.s32.totalorder %v378, %v6669
        %vm6689 = vcmp.eq.s32.totalorder %v378, %v6673
        %vm6690 = vcmp.eq.s32.totalorder %v379, %v6669
        %vm6691 = vcmp.eq.s32.totalorder %v379, %v6673
        %vm6692 = vcmp.eq.s32.totalorder %v380, %v6669
        %vm6693 = vcmp.eq.s32.totalorder %v380, %v6673
        %vm6694 = vcmp.eq.s32.totalorder %v381, %v6669
        %vm6695 = vcmp.eq.s32.totalorder %v381, %v6673
        %vm6696 = vcmp.eq.s32.totalorder %v382, %v6669
        %vm6697 = vcmp.eq.s32.totalorder %v382, %v6673
        %vm6698 = vcmp.eq.s32.totalorder %v383, %v6669
        %vm6699 = vcmp.eq.s32.totalorder %v383, %v6673
        %vm6700 = vcmp.eq.s32.totalorder %v384, %v6669
        %vm6701 = vcmp.eq.s32.totalorder %v384, %v6673
        %vm6702 = vcmp.eq.s32.totalorder %v385, %v6669
        %vm6703 = vcmp.eq.s32.totalorder %v385, %v6673
        %vm6704 = vcmp.eq.s32.totalorder %v386, %v6669
        %vm6705 = vcmp.eq.s32.totalorder %v386, %v6673
        %v6706 = vlaneseq
        %v6707 = vshrl.u32 %v6706, 7
        %v6708 = vsub.s32 0, %v6707
        %v6709 = vrot.slane %v344, %v6708
        %v6710 = vlaneseq
        %v6711 = vshrl.u32 %v6710, 7
        %v6712 = vsub.s32 0, %v6711
        %v6713 = vrot.slane %v345, %v6712
        %v6714 = vsel %vm6674, %v6709, 0.0
        %v6715 = vsel %vm6675, %v6713, 0.0
        %v6716 = vsel %vm6676, %v6709, 0.0
        %v6717 = vsel %vm6677, %v6713, 0.0
        %v6718 = vsel %vm6678, %v6709, 0.0
        %v6719 = vsel %vm6679, %v6713, 0.0
        %v6720 = vsel %vm6680, %v6709, 0.0
        %v6721 = vsel %vm6681, %v6713, 0.0
        %v6722 = vsel %vm6682, %v6709, 0.0
        %v6723 = vsel %vm6683, %v6713, 0.0
        %v6724 = vsel %vm6684, %v6709, 0.0
        %v6725 = vsel %vm6685, %v6713, 0.0
        %v6726 = vsel %vm6686, %v6709, 0.0
        %v6727 = vsel %vm6687, %v6713, 0.0
        %v6728 = vsel %vm6688, %v6709, 0.0
        %v6729 = vsel %vm6689, %v6713, 0.0
        %v6730 = vsel %vm6690, %v6709, 0.0
        %v6731 = vsel %vm6691, %v6713, 0.0
        %v6732 = vsel %vm6692, %v6709, 0.0
        %v6733 = vsel %vm6693, %v6713, 0.0
        %v6734 = vsel %vm6694, %v6709, 0.0
        %v6735 = vsel %vm6695, %v6713, 0.0
        %v6736 = vsel %vm6696, %v6709, 0.0
        %v6737 = vsel %vm6697, %v6713, 0.0
        %v6738 = vsel %vm6698, %v6709, 0.0
        %v6739 = vsel %vm6699, %v6713, 0.0
        %v6740 = vsel %vm6700, %v6709, 0.0
        %v6741 = vsel %vm6701, %v6713, 0.0
        %v6742 = vsel %vm6702, %v6709, 0.0
        %v6743 = vsel %vm6703, %v6713, 0.0
        %v6744 = vsel %vm6704, %v6709, 0.0
        %v6745 = vsel %vm6705, %v6713, 0.0
        %v6746 = vlaneseq
        %v6747 = vshrl.u32 %v6746, 7
        %v6748 = vsub.s32 0, %v6747
        %v6749 = vrot.slane %v368, %v6748
        %v6750 = vlaneseq
        %v6751 = vshrl.u32 %v6750, 7
        %v6752 = vsub.s32 0, %v6751
        %v6753 = vrot.slane %v369, %v6752
        %vm6754 = vcmp.eq.s32.totalorder %v371, %v6749
        %vm6755 = vcmp.eq.s32.totalorder %v371, %v6753
        %vm6756 = vcmp.eq.s32.totalorder %v372, %v6749
        %vm6757 = vcmp.eq.s32.totalorder %v372, %v6753
        %vm6758 = vcmp.eq.s32.totalorder %v373, %v6749
        %vm6759 = vcmp.eq.s32.totalorder %v373, %v6753
        %vm6760 = vcmp.eq.s32.totalorder %v374, %v6749
        %vm6761 = vcmp.eq.s32.totalorder %v374, %v6753
        %vm6762 = vcmp.eq.s32.totalorder %v375, %v6749
        %vm6763 = vcmp.eq.s32.totalorder %v375, %v6753
        %vm6764 = vcmp.eq.s32.totalorder %v376, %v6749
        %vm6765 = vcmp.eq.s32.totalorder %v376, %v6753
        %vm6766 = vcmp.eq.s32.totalorder %v377, %v6749
        %vm6767 = vcmp.eq.s32.totalorder %v377, %v6753
        %vm6768 = vcmp.eq.s32.totalorder %v378, %v6749
        %vm6769 = vcmp.eq.s32.totalorder %v378, %v6753
        %vm6770 = vcmp.eq.s32.totalorder %v379, %v6749
        %vm6771 = vcmp.eq.s32.totalorder %v379, %v6753
        %vm6772 = vcmp.eq.s32.totalorder %v380, %v6749
        %vm6773 = vcmp.eq.s32.totalorder %v380, %v6753
        %vm6774 = vcmp.eq.s32.totalorder %v381, %v6749
        %vm6775 = vcmp.eq.s32.totalorder %v381, %v6753
        %vm6776 = vcmp.eq.s32.totalorder %v382, %v6749
        %vm6777 = vcmp.eq.s32.totalorder %v382, %v6753
        %vm6778 = vcmp.eq.s32.totalorder %v383, %v6749
        %vm6779 = vcmp.eq.s32.totalorder %v383, %v6753
        %vm6780 = vcmp.eq.s32.totalorder %v384, %v6749
        %vm6781 = vcmp.eq.s32.totalorder %v384, %v6753
        %vm6782 = vcmp.eq.s32.totalorder %v385, %v6749
        %vm6783 = vcmp.eq.s32.totalorder %v385, %v6753
        %vm6784 = vcmp.eq.s32.totalorder %v386, %v6749
        %vm6785 = vcmp.eq.s32.totalorder %v386, %v6753
        %v6786 = vlaneseq
        %v6787 = vshrl.u32 %v6786, 7
        %v6788 = vsub.s32 0, %v6787
        %v6789 = vrot.slane %v352, %v6788
        %v6790 = vlaneseq
        %v6791 = vshrl.u32 %v6790, 7
        %v6792 = vsub.s32 0, %v6791
        %v6793 = vrot.slane %v353, %v6792
        %v6794 = vsel %vm6754, %v6789, 0.0
        %v6795 = vsel %vm6755, %v6793, 0.0
        %v6796 = vsel %vm6756, %v6789, 0.0
        %v6797 = vsel %vm6757, %v6793, 0.0
        %v6798 = vsel %vm6758, %v6789, 0.0
        %v6799 = vsel %vm6759, %v6793, 0.0
        %v6800 = vsel %vm6760, %v6789, 0.0
        %v6801 = vsel %vm6761, %v6793, 0.0
        %v6802 = vsel %vm6762, %v6789, 0.0
        %v6803 = vsel %vm6763, %v6793, 0.0
        %v6804 = vsel %vm6764, %v6789, 0.0
        %v6805 = vsel %vm6765, %v6793, 0.0
        %v6806 = vsel %vm6766, %v6789, 0.0
        %v6807 = vsel %vm6767, %v6793, 0.0
        %v6808 = vsel %vm6768, %v6789, 0.0
        %v6809 = vsel %vm6769, %v6793, 0.0
        %v6810 = vsel %vm6770, %v6789, 0.0
        %v6811 = vsel %vm6771, %v6793, 0.0
        %v6812 = vsel %vm6772, %v6789, 0.0
        %v6813 = vsel %vm6773, %v6793, 0.0
        %v6814 = vsel %vm6774, %v6789, 0.0
        %v6815 = vsel %vm6775, %v6793, 0.0
        %v6816 = vsel %vm6776, %v6789, 0.0
        %v6817 = vsel %vm6777, %v6793, 0.0
        %v6818 = vsel %vm6778, %v6789, 0.0
        %v6819 = vsel %vm6779, %v6793, 0.0
        %v6820 = vsel %vm6780, %v6789, 0.0
        %v6821 = vsel %vm6781, %v6793, 0.0
        %v6822 = vsel %vm6782, %v6789, 0.0
        %v6823 = vsel %vm6783, %v6793, 0.0
        %v6824 = vsel %vm6784, %v6789, 0.0
        %v6825 = vsel %vm6785, %v6793, 0.0
        %v6826 = vadd.f32 %v6714, %v6794
        %v6827 = vadd.f32 %v6715, %v6795
        %v6828 = vadd.f32 %v6716, %v6796
        %v6829 = vadd.f32 %v6717, %v6797
        %v6830 = vadd.f32 %v6718, %v6798
        %v6831 = vadd.f32 %v6719, %v6799
        %v6832 = vadd.f32 %v6720, %v6800
        %v6833 = vadd.f32 %v6721, %v6801
        %v6834 = vadd.f32 %v6722, %v6802
        %v6835 = vadd.f32 %v6723, %v6803
        %v6836 = vadd.f32 %v6724, %v6804
        %v6837 = vadd.f32 %v6725, %v6805
        %v6838 = vadd.f32 %v6726, %v6806
        %v6839 = vadd.f32 %v6727, %v6807
        %v6840 = vadd.f32 %v6728, %v6808
        %v6841 = vadd.f32 %v6729, %v6809
        %v6842 = vadd.f32 %v6730, %v6810
        %v6843 = vadd.f32 %v6731, %v6811
        %v6844 = vadd.f32 %v6732, %v6812
        %v6845 = vadd.f32 %v6733, %v6813
        %v6846 = vadd.f32 %v6734, %v6814
        %v6847 = vadd.f32 %v6735, %v6815
        %v6848 = vadd.f32 %v6736, %v6816
        %v6849 = vadd.f32 %v6737, %v6817
        %v6850 = vadd.f32 %v6738, %v6818
        %v6851 = vadd.f32 %v6739, %v6819
        %v6852 = vadd.f32 %v6740, %v6820
        %v6853 = vadd.f32 %v6741, %v6821
        %v6854 = vadd.f32 %v6742, %v6822
        %v6855 = vadd.f32 %v6743, %v6823
        %v6856 = vadd.f32 %v6744, %v6824
        %v6857 = vadd.f32 %v6745, %v6825
        %v6858 = vpack.c.bf16 %v6828, %v6826
        %v6859 = vpack.c.bf16 %v6829, %v6827
        %v6860 = vpack.c.bf16 %v6832, %v6830
        %v6861 = vpack.c.bf16 %v6833, %v6831
        %v6862 = vpack.c.bf16 %v6836, %v6834
        %v6863 = vpack.c.bf16 %v6837, %v6835
        %v6864 = vpack.c.bf16 %v6840, %v6838
        %v6865 = vpack.c.bf16 %v6841, %v6839
        %v6866 = vpack.c.bf16 %v6844, %v6842
        %v6867 = vpack.c.bf16 %v6845, %v6843
        %v6868 = vpack.c.bf16 %v6848, %v6846
        %v6869 = vpack.c.bf16 %v6849, %v6847
        %v6870 = vpack.c.bf16 %v6852, %v6850
        %v6871 = vpack.c.bf16 %v6853, %v6851
        %v6872 = vpack.c.bf16 %v6856, %v6854
        %v6873 = vpack.c.bf16 %v6857, %v6855
        %v6874 = vlaneseq
        %v6875 = vshrl.u32 %v6874, 7
        %v6876 = vsub.s32 0, %v6875
        %v6877 = vrot.slane %v356, %v6876
        %v6878 = vlaneseq
        %v6879 = vshrl.u32 %v6878, 7
        %v6880 = vsub.s32 0, %v6879
        %v6881 = vrot.slane %v357, %v6880
        %vm6882 = vcmp.eq.s32.totalorder %v371, %v6877
        %vm6883 = vcmp.eq.s32.totalorder %v371, %v6881
        %vm6884 = vcmp.eq.s32.totalorder %v372, %v6877
        %vm6885 = vcmp.eq.s32.totalorder %v372, %v6881
        %vm6886 = vcmp.eq.s32.totalorder %v373, %v6877
        %vm6887 = vcmp.eq.s32.totalorder %v373, %v6881
        %v6888 = vlaneseq
        %v6889 = vshrl.u32 %v6888, 7
        %v6890 = vsub.s32 0, %v6889
        %v6891 = vrot.slane %v328, %v6890
        %v6892 = vlaneseq
        %v6893 = vshrl.u32 %v6892, 7
        %v6894 = vsub.s32 0, %v6893
        %v6895 = vrot.slane %v329, %v6894
        %v6896 = vsel %vm6882, %v6891, 0.0
        %v6897 = vsel %vm6883, %v6895, 0.0
        %v6898 = vsel %vm6884, %v6891, 0.0
        %v6899 = vsel %vm6885, %v6895, 0.0
        %v6900 = vsel %vm6886, %v6891, 0.0
        %v6901 = vsel %vm6887, %v6895, 0.0
        %v6902 = vlaneseq
        %v6903 = vshrl.u32 %v6902, 7
        %v6904 = vsub.s32 0, %v6903
        %v6905 = vrot.slane %v360, %v6904
        %v6906 = vlaneseq
        %v6907 = vshrl.u32 %v6906, 7
        %v6908 = vsub.s32 0, %v6907
        %v6909 = vrot.slane %v361, %v6908
        %vm6910 = vcmp.eq.s32.totalorder %v371, %v6905
        %vm6911 = vcmp.eq.s32.totalorder %v371, %v6909
        %vm6912 = vcmp.eq.s32.totalorder %v372, %v6905
        %vm6913 = vcmp.eq.s32.totalorder %v372, %v6909
        %vm6914 = vcmp.eq.s32.totalorder %v373, %v6905
        %vm6915 = vcmp.eq.s32.totalorder %v373, %v6909
        %v6916 = vlaneseq
        %v6917 = vshrl.u32 %v6916, 7
        %v6918 = vsub.s32 0, %v6917
        %v6919 = vrot.slane %v336, %v6918
        %v6920 = vlaneseq
        %v6921 = vshrl.u32 %v6920, 7
        %v6922 = vsub.s32 0, %v6921
        %v6923 = vrot.slane %v337, %v6922
        %v6924 = vsel %vm6910, %v6919, 0.0
        %v6925 = vsel %vm6911, %v6923, 0.0
        %v6926 = vsel %vm6912, %v6919, 0.0
        %v6927 = vsel %vm6913, %v6923, 0.0
        %v6928 = vsel %vm6914, %v6919, 0.0
        %v6929 = vsel %vm6915, %v6923, 0.0
        %v6930 = vadd.f32 %v6896, %v6924
        %v6931 = vadd.f32 %v6897, %v6925
        %v6932 = vadd.f32 %v6898, %v6926
        %v6933 = vadd.f32 %v6899, %v6927
        %v6934 = vadd.f32 %v6900, %v6928
        %v6935 = vadd.f32 %v6901, %v6929
        %v6936 = vld [vmem:[%s210] sm:$0xf]
        %v6937 = vld [vmem:[%s210 + $0x4] sm:$0xf]
        %v6938 = vld [vmem:[%s210 + $0x8] sm:$0xf]
        %v6939 = vld [vmem:[%s210 + $0xc] sm:$0xf]
        %v6940 = vld [vmem:[%s210 + $0x10] sm:$0xf]
        %v6941 = vld [vmem:[%s210 + $0x14] sm:$0xf]
        %v6942 = vld [vmem:[%s210 + $0x18] sm:$0xf]
        %v6943 = vld [vmem:[%s210 + $0x1c] sm:$0xf]
        %v6944 = vld [vmem:[%s210 + $0x20] sm:$0xf]
        %v6945 = vld [vmem:[%s210 + $0x24] sm:$0xf]
        %v6946 = vld [vmem:[%s210 + $0x28] sm:$0xf]
        %v6947 = vld [vmem:[%s210 + $0x2c] sm:$0xf]
        %v6948 = vld [vmem:[%s210 + $0x30] sm:$0xf]
        %v6949 = vld [vmem:[%s210 + $0x34] sm:$0xf]
        %v6950 = vld [vmem:[%s210 + $0x38] sm:$0xf]
        %v6951 = vld [vmem:[%s210 + $0x3c] sm:$0xf]
        %v6952 = vld [vmem:[%s210 + $0x40] sm:$0xf]
        %v6953 = vld [vmem:[%s210 + $0x44] sm:$0xf]
        %v6954 = vld [vmem:[%s210 + $0x48] sm:$0xf]
        %v6955 = vld [vmem:[%s210 + $0x4c] sm:$0xf]
        %v6956 = vld [vmem:[%s210 + $0x50] sm:$0xf]
        %v6957 = vld [vmem:[%s210 + $0x54] sm:$0xf]
        %v6958 = vld [vmem:[%s210 + $0x58] sm:$0xf]
        %v6959 = vld [vmem:[%s210 + $0x5c] sm:$0xf]
        %v6984 = vunpack.c.l.b16 %v6936
        %v6985 = vunpack.c.l.b16 %v6937
        %v6986 = vunpack.c.l.b16 %v6938
        %v6987 = vunpack.c.l.b16 %v6939
        %v6988 = vunpack.c.l.b16 %v6940
        %v6989 = vunpack.c.l.b16 %v6941
        %v6990 = vunpack.c.l.b16 %v6942
        %v6991 = vunpack.c.l.b16 %v6943
        %v6992 = vunpack.c.l.b16 %v6944
        %v6993 = vunpack.c.l.b16 %v6945
        %v6994 = vunpack.c.l.b16 %v6946
        %v6995 = vunpack.c.l.b16 %v6947
        %v6996 = vunpack.c.l.b16 %v6948
        %v6997 = vunpack.c.l.b16 %v6949
        %v6998 = vunpack.c.l.b16 %v6950
        %v6999 = vunpack.c.l.b16 %v6951
        %v7000 = vunpack.c.l.b16 %v6952
        %v7001 = vunpack.c.l.b16 %v6953
        %v7002 = vunpack.c.l.b16 %v6954
        %v7003 = vunpack.c.l.b16 %v6955
        %v7004 = vunpack.c.l.b16 %v6956
        %v7005 = vunpack.c.l.b16 %v6957
        %v7006 = vunpack.c.l.b16 %v6958
        %v7007 = vunpack.c.l.b16 %v6959
        %v7008 = vpack.c.b16 %v6985, %v6984
        %v7009 = vpack.c.b16 %v6987, %v6986
        %v7010 = vpack.c.b16 %v6989, %v6988
        %v7011 = vpack.c.b16 %v6991, %v6990
        %v7012 = vpack.c.b16 %v6993, %v6992
        %v7013 = vpack.c.b16 %v6995, %v6994
        %v7014 = vpack.c.b16 %v6997, %v6996
        %v7015 = vpack.c.b16 %v6999, %v6998
        %v7016 = vpack.c.b16 %v7001, %v7000
        %v7017 = vpack.c.b16 %v7003, %v7002
        %v7018 = vpack.c.b16 %v7005, %v7004
        %v7019 = vpack.c.b16 %v7007, %v7006
        %7032 = vmatprep.subr.bf16.mxu0 %v6859
        %7033 = vmatpush1.bf16.msra.mxu0 %v6858
        %7034 = vmatprep.subr.bf16.mxu0 %v6861
        %7035 = vmatpush1.bf16.msra.mxu0 %v6860
        %7036 = vmatprep.subr.bf16.mxu0 %v6863
        %7037 = vmatpush1.bf16.msra.mxu0 %v6862
        %7038 = vmatprep.subr.bf16.mxu0 %v6865
        %7039 = vmatpush1.bf16.msra.mxu0 %v6864
        %7040 = vmatprep.subr.bf16.mxu0 %v6867
        %7041 = vmatpush1.bf16.msra.mxu0 %v6866
        %7042 = vmatprep.subr.bf16.mxu0 %v6869
        %7043 = vmatpush1.bf16.msra.mxu0 %v6868
        %7044 = vmatprep.subr.bf16.mxu0 %v6871
        %7045 = vmatpush1.bf16.msra.mxu0 %v6870
        %7046 = vmatprep.subr.bf16.mxu0 %v6873
        %7047 = vmatpush1.bf16.msra.mxu0 %v6872
        %7048 = vmatprep.subr.bf16.mxu0 0
        %7049 = vmatpush1.bf16.msra.mxu0 0
        %7050 = vmatprep.subr.bf16.mxu0 0
        %7051 = vmatpush1.bf16.msra.mxu0 0
        %7052 = vmatprep.subr.bf16.mxu0 0
        %7053 = vmatpush1.bf16.msra.mxu0 0
        %7054 = vmatprep.subr.bf16.mxu0 0
        %7055 = vmatpush1.bf16.msra.mxu0 0
        %7056 = vmatprep.subr.bf16.mxu0 0
        %7057 = vmatpush1.bf16.msra.mxu0 0
        %7058 = vmatprep.subr.bf16.mxu0 0
        %7059 = vmatpush1.bf16.msra.mxu0 0
        %7060 = vmatprep.subr.bf16.mxu0 0
        %7061 = vmatpush1.bf16.msra.mxu0 0
        %7062 = vmatprep.subr.bf16.mxu0 0
        %7063 = vmatpush1.bf16.msra.mxu0 0
        %7064 = vmatprep.mubr.bf16.mxu0 0
        %7065 = vmatmul.mubr.bf16.gmra.mrb[0].mxu0 %v7008
        %v7066 = vpop.f32.mrb[0].mxu0
        %v7067 = vadd.f32 0.0, %v7066
        %v7068 = vpop.f32.mrb[0].mxu0
        %v7069 = vadd.f32 0.0, %v7068
        %v7070 = vpop.f32.mrb[0].mxu0
        %v7071 = vadd.f32 0.0, %v7070
        %v7072 = vpop.f32.mrb[0].mxu0
        %v7073 = vadd.f32 0.0, %v7072
        %7074 = vmatprep.mubr.bf16.mxu0 0
        %7075 = vmatmul.mubr.bf16.gmra.mrb[0].mxu0 %v7009
        %v7076 = vpop.f32.mrb[0].mxu0
        %v7077 = vadd.f32 0.0, %v7076
        %v7078 = vpop.f32.mrb[0].mxu0
        %v7079 = vadd.f32 0.0, %v7078
        %v7080 = vpop.f32.mrb[0].mxu0
        %v7081 = vadd.f32 0.0, %v7080
        %v7082 = vpop.f32.mrb[0].mxu0
        %v7083 = vadd.f32 0.0, %v7082
        %7084 = vmatprep.mubr.bf16.mxu0 0
        %7085 = vmatmul.mubr.bf16.gmra.mrb[0].mxu0 %v7010
        %v7086 = vpop.f32.mrb[0].mxu0
        %v7087 = vadd.f32 0.0, %v7086
        %v7088 = vpop.f32.mrb[0].mxu0
        %v7089 = vadd.f32 0.0, %v7088
        %v7090 = vpop.f32.mrb[0].mxu0
        %v7091 = vadd.f32 0.0, %v7090
        %v7092 = vpop.f32.mrb[0].mxu0
        %v7093 = vadd.f32 0.0, %v7092
        %7094 = vmatprep.mubr.bf16.mxu0 0
        %7095 = vmatmul.mubr.bf16.gmra.mrb[0].mxu0 %v7011
        %v7096 = vpop.f32.mrb[0].mxu0
        %v7097 = vadd.f32 0.0, %v7096
        %v7098 = vpop.f32.mrb[0].mxu0
        %v7099 = vadd.f32 0.0, %v7098
        %v7100 = vpop.f32.mrb[0].mxu0
        %v7101 = vadd.f32 0.0, %v7100
        %v7102 = vpop.f32.mrb[0].mxu0
        %v7103 = vadd.f32 0.0, %v7102
        %7104 = vmatprep.mubr.bf16.mxu0 0
        %7105 = vmatmul.mubr.bf16.gmra.mrb[0].mxu0 %v7012
        %v7106 = vpop.f32.mrb[0].mxu0
        %v7107 = vadd.f32 0.0, %v7106
        %v7108 = vpop.f32.mrb[0].mxu0
        %v7109 = vadd.f32 0.0, %v7108
        %v7110 = vpop.f32.mrb[0].mxu0
        %v7111 = vadd.f32 0.0, %v7110
        %v7112 = vpop.f32.mrb[0].mxu0
        %v7113 = vadd.f32 0.0, %v7112
        %7114 = vmatprep.mubr.bf16.mxu0 0
        %7115 = vmatmul.mubr.bf16.gmra.mrb[0].mxu0 %v7013
        %v7116 = vpop.f32.mrb[0].mxu0
        %v7117 = vadd.f32 0.0, %v7116
        %v7118 = vpop.f32.mrb[0].mxu0
        %v7119 = vadd.f32 0.0, %v7118
        %v7120 = vpop.f32.mrb[0].mxu0
        %v7121 = vadd.f32 0.0, %v7120
        %v7122 = vpop.f32.mrb[0].mxu0
        %v7123 = vadd.f32 0.0, %v7122
        %7124 = vmatprep.mubr.bf16.mxu0 0
        %7125 = vmatmul.mubr.bf16.gmra.mrb[0].mxu0 %v7014
        %v7126 = vpop.f32.mrb[0].mxu0
        %v7127 = vadd.f32 0.0, %v7126
        %v7128 = vpop.f32.mrb[0].mxu0
        %v7129 = vadd.f32 0.0, %v7128
        %v7130 = vpop.f32.mrb[0].mxu0
        %v7131 = vadd.f32 0.0, %v7130
        %v7132 = vpop.f32.mrb[0].mxu0
        %v7133 = vadd.f32 0.0, %v7132
        %7134 = vmatprep.mubr.bf16.mxu0 0
        %7135 = vmatmul.mubr.bf16.gmra.mrb[0].mxu0 %v7015
        %v7136 = vpop.f32.mrb[0].mxu0
        %v7137 = vadd.f32 0.0, %v7136
        %v7138 = vpop.f32.mrb[0].mxu0
        %v7139 = vadd.f32 0.0, %v7138
        %v7140 = vpop.f32.mrb[0].mxu0
        %v7141 = vadd.f32 0.0, %v7140
        %v7142 = vpop.f32.mrb[0].mxu0
        %v7143 = vadd.f32 0.0, %v7142
        %7144 = vmatprep.mubr.bf16.mxu0 0
        %7145 = vmatmul.mubr.bf16.gmra.mrb[0].mxu0 %v7016
        %v7146 = vpop.f32.mrb[0].mxu0
        %v7147 = vadd.f32 0.0, %v7146
        %v7148 = vpop.f32.mrb[0].mxu0
        %v7149 = vadd.f32 0.0, %v7148
        %v7150 = vpop.f32.mrb[0].mxu0
        %v7151 = vadd.f32 0.0, %v7150
        %v7152 = vpop.f32.mrb[0].mxu0
        %v7153 = vadd.f32 0.0, %v7152
        %7154 = vmatprep.mubr.bf16.mxu0 0
        %7155 = vmatmul.mubr.bf16.gmra.mrb[0].mxu0 %v7017
        %v7156 = vpop.f32.mrb[0].mxu0
        %v7157 = vadd.f32 0.0, %v7156
        %v7158 = vpop.f32.mrb[0].mxu0
        %v7159 = vadd.f32 0.0, %v7158
        %v7160 = vpop.f32.mrb[0].mxu0
        %v7161 = vadd.f32 0.0, %v7160
        %v7162 = vpop.f32.mrb[0].mxu0
        %v7163 = vadd.f32 0.0, %v7162
        %7164 = vmatprep.mubr.bf16.mxu0 0
        %7165 = vmatmul.mubr.bf16.gmra.mrb[0].mxu0 %v7018
        %v7166 = vpop.f32.mrb[0].mxu0
        %v7167 = vadd.f32 0.0, %v7166
        %v7168 = vpop.f32.mrb[0].mxu0
        %v7169 = vadd.f32 0.0, %v7168
        %v7170 = vpop.f32.mrb[0].mxu0
        %v7171 = vadd.f32 0.0, %v7170
        %v7172 = vpop.f32.mrb[0].mxu0
        %v7173 = vadd.f32 0.0, %v7172
        %7174 = vmatprep.mubr.bf16.mxu0 0
        %7175 = vmatmul.mubr.bf16.gmra.mrb[0].mxu0 %v7019
        %v7176 = vpop.f32.mrb[0].mxu0
        %v7177 = vadd.f32 0.0, %v7176
        %v7178 = vpop.f32.mrb[0].mxu0
        %v7179 = vadd.f32 0.0, %v7178
        %v7180 = vpop.f32.mrb[0].mxu0
        %v7181 = vadd.f32 0.0, %v7180
        %v7182 = vpop.f32.mrb[0].mxu0
        %v7183 = vadd.f32 0.0, %v7182
        %7184 = vdwg.mxu0
        %v7185 = vmul.f32 %v7067, %v6930
        %v7186 = vmul.f32 %v7069, %v6931
        %v7187 = vmul.f32 %v7071, %v6932
        %v7188 = vmul.f32 %v7073, %v6933
        %v7189 = vmul.f32 %v7077, %v6934
        %v7190 = vmul.f32 %v7079, %v6935
        %v7191 = vmul.f32 %v7081, %v6930
        %v7192 = vmul.f32 %v7083, %v6931
        %v7193 = vmul.f32 %v7087, %v6932
        %v7194 = vmul.f32 %v7089, %v6933
        %v7195 = vmul.f32 %v7091, %v6934
        %v7196 = vmul.f32 %v7093, %v6935
        %v7197 = vmul.f32 %v7097, %v6930
        %v7198 = vmul.f32 %v7099, %v6931
        %v7199 = vmul.f32 %v7101, %v6932
        %v7200 = vmul.f32 %v7103, %v6933
        %v7201 = vmul.f32 %v7107, %v6934
        %v7202 = vmul.f32 %v7109, %v6935
        %v7203 = vmul.f32 %v7111, %v6930
        %v7204 = vmul.f32 %v7113, %v6931
        %v7205 = vmul.f32 %v7117, %v6932
        %v7206 = vmul.f32 %v7119, %v6933
        %v7207 = vmul.f32 %v7121, %v6934
        %v7208 = vmul.f32 %v7123, %v6935
        %v7209 = vmul.f32 %v7127, %v6930
        %v7210 = vmul.f32 %v7129, %v6931
        %v7211 = vmul.f32 %v7131, %v6932
        %v7212 = vmul.f32 %v7133, %v6933
        %v7213 = vmul.f32 %v7137, %v6934
        %v7214 = vmul.f32 %v7139, %v6935
        %v7215 = vmul.f32 %v7141, %v6930
        %v7216 = vmul.f32 %v7143, %v6931
        %v7217 = vmul.f32 %v7147, %v6932
        %v7218 = vmul.f32 %v7149, %v6933
        %v7219 = vmul.f32 %v7151, %v6934
        %v7220 = vmul.f32 %v7153, %v6935
        %v7221 = vmul.f32 %v7157, %v6930
        %v7222 = vmul.f32 %v7159, %v6931
        %v7223 = vmul.f32 %v7161, %v6932
        %v7224 = vmul.f32 %v7163, %v6933
        %v7225 = vmul.f32 %v7167, %v6934
        %v7226 = vmul.f32 %v7169, %v6935
        %v7227 = vmul.f32 %v7171, %v6930
        %v7228 = vmul.f32 %v7173, %v6931
        %v7229 = vmul.f32 %v7177, %v6932
        %v7230 = vmul.f32 %v7179, %v6933
        %v7231 = vmul.f32 %v7181, %v6934
        %v7232 = vmul.f32 %v7183, %v6935
        %v7233 = vadd.f32 %v7185, %v7187
        %v7234 = vadd.f32 %v7233, %v7189
        %v7235 = vrot.slane %v7234, 4
        %v7236 = vadd.f32 %v7234, %v7235
        %v7237 = vrot.slane %v7236, 2
        %v7238 = vadd.f32 %v7236, %v7237
        %v7239 = vrot.slane %v7238, 1
        %v7240 = vadd.f32 %v7238, %v7239
        %v7241 = vadd.f32 %v7186, %v7188
        %v7242 = vadd.f32 %v7241, %v7190
        %v7243 = vrot.slane %v7242, 4
        %v7244 = vadd.f32 %v7242, %v7243
        %v7245 = vrot.slane %v7244, 2
        %v7246 = vadd.f32 %v7244, %v7245
        %v7247 = vrot.slane %v7246, 1
        %v7248 = vadd.f32 %v7246, %v7247
        %v7249 = vadd.f32 %v7191, %v7193
        %v7250 = vadd.f32 %v7249, %v7195
        %v7251 = vrot.slane %v7250, 4
        %v7252 = vadd.f32 %v7250, %v7251
        %v7253 = vrot.slane %v7252, 2
        %v7254 = vadd.f32 %v7252, %v7253
        %v7255 = vrot.slane %v7254, 1
        %v7256 = vadd.f32 %v7254, %v7255
        %v7257 = vadd.f32 %v7192, %v7194
        %v7258 = vadd.f32 %v7257, %v7196
        %v7259 = vrot.slane %v7258, 4
        %v7260 = vadd.f32 %v7258, %v7259
        %v7261 = vrot.slane %v7260, 2
        %v7262 = vadd.f32 %v7260, %v7261
        %v7263 = vrot.slane %v7262, 1
        %v7264 = vadd.f32 %v7262, %v7263
        %v7265 = vadd.f32 %v7197, %v7199
        %v7266 = vadd.f32 %v7265, %v7201
        %v7267 = vrot.slane %v7266, 4
        %v7268 = vadd.f32 %v7266, %v7267
        %v7269 = vrot.slane %v7268, 2
        %v7270 = vadd.f32 %v7268, %v7269
        %v7271 = vrot.slane %v7270, 1
        %v7272 = vadd.f32 %v7270, %v7271
        %v7273 = vadd.f32 %v7198, %v7200
        %v7274 = vadd.f32 %v7273, %v7202
        %v7275 = vrot.slane %v7274, 4
        %v7276 = vadd.f32 %v7274, %v7275
        %v7277 = vrot.slane %v7276, 2
        %v7278 = vadd.f32 %v7276, %v7277
        %v7279 = vrot.slane %v7278, 1
        %v7280 = vadd.f32 %v7278, %v7279
        %v7281 = vadd.f32 %v7203, %v7205
        %v7282 = vadd.f32 %v7281, %v7207
        %v7283 = vrot.slane %v7282, 4
        %v7284 = vadd.f32 %v7282, %v7283
        %v7285 = vrot.slane %v7284, 2
        %v7286 = vadd.f32 %v7284, %v7285
        %v7287 = vrot.slane %v7286, 1
        %v7288 = vadd.f32 %v7286, %v7287
        %v7289 = vadd.f32 %v7204, %v7206
        %v7290 = vadd.f32 %v7289, %v7208
        %v7291 = vrot.slane %v7290, 4
        %v7292 = vadd.f32 %v7290, %v7291
        %v7293 = vrot.slane %v7292, 2
        %v7294 = vadd.f32 %v7292, %v7293
        %v7295 = vrot.slane %v7294, 1
        %v7296 = vadd.f32 %v7294, %v7295
        %v7297 = vadd.f32 %v7209, %v7211
        %v7298 = vadd.f32 %v7297, %v7213
        %v7299 = vrot.slane %v7298, 4
        %v7300 = vadd.f32 %v7298, %v7299
        %v7301 = vrot.slane %v7300, 2
        %v7302 = vadd.f32 %v7300, %v7301
        %v7303 = vrot.slane %v7302, 1
        %v7304 = vadd.f32 %v7302, %v7303
        %v7305 = vadd.f32 %v7210, %v7212
        %v7306 = vadd.f32 %v7305, %v7214
        %v7307 = vrot.slane %v7306, 4
        %v7308 = vadd.f32 %v7306, %v7307
        %v7309 = vrot.slane %v7308, 2
        %v7310 = vadd.f32 %v7308, %v7309
        %v7311 = vrot.slane %v7310, 1
        %v7312 = vadd.f32 %v7310, %v7311
        %v7313 = vadd.f32 %v7215, %v7217
        %v7314 = vadd.f32 %v7313, %v7219
        %v7315 = vrot.slane %v7314, 4
        %v7316 = vadd.f32 %v7314, %v7315
        %v7317 = vrot.slane %v7316, 2
        %v7318 = vadd.f32 %v7316, %v7317
        %v7319 = vrot.slane %v7318, 1
        %v7320 = vadd.f32 %v7318, %v7319
        %v7321 = vadd.f32 %v7216, %v7218
        %v7322 = vadd.f32 %v7321, %v7220
        %v7323 = vrot.slane %v7322, 4
        %v7324 = vadd.f32 %v7322, %v7323
        %v7325 = vrot.slane %v7324, 2
        %v7326 = vadd.f32 %v7324, %v7325
        %v7327 = vrot.slane %v7326, 1
        %v7328 = vadd.f32 %v7326, %v7327
        %v7329 = vadd.f32 %v7221, %v7223
        %v7330 = vadd.f32 %v7329, %v7225
        %v7331 = vrot.slane %v7330, 4
        %v7332 = vadd.f32 %v7330, %v7331
        %v7333 = vrot.slane %v7332, 2
        %v7334 = vadd.f32 %v7332, %v7333
        %v7335 = vrot.slane %v7334, 1
        %v7336 = vadd.f32 %v7334, %v7335
        %v7337 = vadd.f32 %v7222, %v7224
        %v7338 = vadd.f32 %v7337, %v7226
        %v7339 = vrot.slane %v7338, 4
        %v7340 = vadd.f32 %v7338, %v7339
        %v7341 = vrot.slane %v7340, 2
        %v7342 = vadd.f32 %v7340, %v7341
        %v7343 = vrot.slane %v7342, 1
        %v7344 = vadd.f32 %v7342, %v7343
        %v7345 = vadd.f32 %v7227, %v7229
        %v7346 = vadd.f32 %v7345, %v7231
        %v7347 = vrot.slane %v7346, 4
        %v7348 = vadd.f32 %v7346, %v7347
        %v7349 = vrot.slane %v7348, 2
        %v7350 = vadd.f32 %v7348, %v7349
        %v7351 = vrot.slane %v7350, 1
        %v7352 = vadd.f32 %v7350, %v7351
        %v7353 = vadd.f32 %v7228, %v7230
        %v7354 = vadd.f32 %v7353, %v7232
        %v7355 = vrot.slane %v7354, 4
        %v7356 = vadd.f32 %v7354, %v7355
        %v7357 = vrot.slane %v7356, 2
        %v7358 = vadd.f32 %v7356, %v7357
        %v7359 = vrot.slane %v7358, 1
        %v7360 = vadd.f32 %v7358, %v7359
        %v7361 = vpack.c.bf16 %v7240, %v7240
        %v7362 = vpack.c.bf16 %v7248, %v7248
        %v7363 = vpack.c.bf16 %v7256, %v7256
        %v7364 = vpack.c.bf16 %v7264, %v7264
        %v7365 = vpack.c.bf16 %v7272, %v7272
        %v7366 = vpack.c.bf16 %v7280, %v7280
        %v7367 = vpack.c.bf16 %v7288, %v7288
        %v7368 = vpack.c.bf16 %v7296, %v7296
        %v7369 = vpack.c.bf16 %v7304, %v7304
        %v7370 = vpack.c.bf16 %v7312, %v7312
        %v7371 = vpack.c.bf16 %v7320, %v7320
        %v7372 = vpack.c.bf16 %v7328, %v7328
        %v7373 = vpack.c.bf16 %v7336, %v7336
        %v7374 = vpack.c.bf16 %v7344, %v7344
        %v7375 = vpack.c.bf16 %v7352, %v7352
        %v7376 = vpack.c.bf16 %v7360, %v7360
        %v7393 = vunpack.c.l.b16 %v7361
        %v7394 = vunpack.c.l.b16 %v7362
        %v7395 = vunpack.c.l.b16 %v7363
        %v7396 = vunpack.c.l.b16 %v7364
        %v7397 = vunpack.c.l.b16 %v7365
        %v7398 = vunpack.c.l.b16 %v7366
        %v7399 = vunpack.c.l.b16 %v7367
        %v7400 = vunpack.c.l.b16 %v7368
        %v7401 = vunpack.c.l.b16 %v7369
        %v7402 = vunpack.c.l.b16 %v7370
        %v7403 = vunpack.c.l.b16 %v7371
        %v7404 = vunpack.c.l.b16 %v7372
        %v7405 = vunpack.c.l.b16 %v7373
        %v7406 = vunpack.c.l.b16 %v7374
        %v7407 = vunpack.c.l.b16 %v7375
        %v7408 = vunpack.c.l.b16 %v7376
        %v7409 = vpack.c.b16 %v7394, %v7393
        %v7410 = vpack.c.b16 %v7396, %v7395
        %v7411 = vpack.c.b16 %v7398, %v7397
        %v7412 = vpack.c.b16 %v7400, %v7399
        %v7413 = vpack.c.b16 %v7402, %v7401
        %v7414 = vpack.c.b16 %v7404, %v7403
        %v7415 = vpack.c.b16 %v7406, %v7405
        %v7416 = vpack.c.b16 %v7408, %v7407
        %v7417 = vunpack.c.l.b16 %v7409
        %v7418 = vunpack.c.h.b16 %v7409
        %v7419 = vunpack.c.l.b16 %v7410
        %v7420 = vunpack.c.h.b16 %v7410
        %v7421 = vunpack.c.l.b16 %v7411
        %v7422 = vunpack.c.h.b16 %v7411
        %v7423 = vunpack.c.l.b16 %v7412
        %v7424 = vunpack.c.h.b16 %v7412
        %v7425 = vunpack.c.l.b16 %v7413
        %v7426 = vunpack.c.h.b16 %v7413
        %v7427 = vunpack.c.l.b16 %v7414
        %v7428 = vunpack.c.h.b16 %v7414
        %v7429 = vunpack.c.l.b16 %v7415
        %v7430 = vunpack.c.h.b16 %v7415
        %v7431 = vunpack.c.l.b16 %v7416
        %v7432 = vunpack.c.h.b16 %v7416
        %v7433 = vsel %vm1154, %v7419, %v7417
        %v7434 = vsel %vm1156, %v7421, %v7433
        %v7435 = vsel %vm1158, %v7423, %v7434
        %v7436 = vsel %vm1160, %v7425, %v7435
        %v7437 = vsel %vm1162, %v7427, %v7436
        %v7438 = vsel %vm1164, %v7429, %v7437
        %v7439 = vsel %vm1166, %v7431, %v7438
        %v7440 = vsel %vm1154, %v7420, %v7418
        %v7441 = vsel %vm1156, %v7422, %v7440
        %v7442 = vsel %vm1158, %v7424, %v7441
        %v7443 = vsel %vm1160, %v7426, %v7442
        %v7444 = vsel %vm1162, %v7428, %v7443
        %v7445 = vsel %vm1164, %v7430, %v7444
        %v7446 = vsel %vm1166, %v7432, %v7445
        %v7447 = vpack.c.b16 %v7446, %v7439
        %7449 = vst [vmem:[#allocation2 + $0x40] sm:$0xff] %v7447
        %v7450 = vld [vmem:[%s2] sm:$0xf]
        %v7451 = vld [vmem:[#allocation2] sm:$0xff]
        %v7452 = vld [vmem:[#allocation2 + $0x8] sm:$0xff]
        %v7453 = vld [vmem:[#allocation2 + $0x10] sm:$0xff]
        %v7454 = vld [vmem:[#allocation2 + $0x18] sm:$0xff]
        %v7455 = vld [vmem:[#allocation2 + $0x20] sm:$0xff]
        %v7456 = vld [vmem:[#allocation2 + $0x28] sm:$0xff]
        %v7457 = vld [vmem:[#allocation2 + $0x30] sm:$0xff]
        %v7458 = vld [vmem:[#allocation2 + $0x38] sm:$0xff]
        %v7459 = vld [vmem:[#allocation2 + $0x40] sm:$0xff]
        %v7469 = vunpack.c.l.b16 %v7451
        %v7470 = vunpack.c.h.b16 %v7451
        %v7471 = vunpack.c.l.b16 %v7452
        %v7472 = vunpack.c.h.b16 %v7452
        %v7473 = vunpack.c.l.b16 %v7453
        %v7474 = vunpack.c.h.b16 %v7453
        %v7475 = vunpack.c.l.b16 %v7454
        %v7476 = vunpack.c.h.b16 %v7454
        %v7477 = vunpack.c.l.b16 %v7455
        %v7478 = vunpack.c.h.b16 %v7455
        %v7479 = vunpack.c.l.b16 %v7456
        %v7480 = vunpack.c.h.b16 %v7456
        %v7481 = vunpack.c.l.b16 %v7457
        %v7482 = vunpack.c.h.b16 %v7457
        %v7483 = vunpack.c.l.b16 %v7458
        %v7484 = vunpack.c.h.b16 %v7458
        %v7485 = vunpack.c.l.b16 %v7459
        %v7486 = vunpack.c.h.b16 %v7459
        %v7487 = vpack.c.b16 %v7471, %v7469
        %v7488 = vpack.c.b16 %v7472, %v7470
        %v7489 = vpack.c.b16 %v7475, %v7473
        %v7490 = vpack.c.b16 %v7476, %v7474
        %v7491 = vpack.c.b16 %v7479, %v7477
        %v7492 = vpack.c.b16 %v7480, %v7478
        %v7493 = vpack.c.b16 %v7483, %v7481
        %v7494 = vpack.c.b16 %v7484, %v7482
        %v7495 = vpack.c.b16 %v7485, %v7485
        %v7496 = vpack.c.b16 %v7486, %v7486
        %vm7505 = vcmask 588800
        %v7507 = vsel %vm7505, %v7450, 0
        %vm7509 = vcmask 1043456
        %v7511 = vsel %vm7509, %v7495, 0
        %v7514 = vsel %vm7509, %v7496, 0
        %7516 = vmatprep.subr.bf16.mxu0 %v7488
        %7517 = vmatpush1.bf16.msra.mxu0 %v7487
        %7518 = vmatprep.subr.bf16.mxu0 %v7490
        %7519 = vmatpush1.bf16.msra.mxu0 %v7489
        %7520 = vmatprep.subr.bf16.mxu0 %v7492
        %7521 = vmatpush1.bf16.msra.mxu0 %v7491
        %7522 = vmatprep.subr.bf16.mxu0 %v7494
        %7523 = vmatpush1.bf16.msra.mxu0 %v7493
        %7524 = vmatprep.subr.bf16.mxu0 %v7514
        %7525 = vmatpush1.bf16.msra.mxu0 %v7511
        %7526 = vmatprep.subr.bf16.mxu0 0
        %7527 = vmatpush1.bf16.msra.mxu0 0
        %7528 = vmatprep.subr.bf16.mxu0 0
        %7529 = vmatpush1.bf16.msra.mxu0 0
        %7530 = vmatprep.subr.bf16.mxu0 0
        %7531 = vmatpush1.bf16.msra.mxu0 0
        %7532 = vmatprep.subr.bf16.mxu0 0
        %7533 = vmatpush1.bf16.msra.mxu0 0
        %7534 = vmatprep.subr.bf16.mxu0 0
        %7535 = vmatpush1.bf16.msra.mxu0 0
        %7536 = vmatprep.subr.bf16.mxu0 0
        %7537 = vmatpush1.bf16.msra.mxu0 0
        %7538 = vmatprep.subr.bf16.mxu0 0
        %7539 = vmatpush1.bf16.msra.mxu0 0
        %7540 = vmatprep.subr.bf16.mxu0 0
        %7541 = vmatpush1.bf16.msra.mxu0 0
        %7542 = vmatprep.subr.bf16.mxu0 0
        %7543 = vmatpush1.bf16.msra.mxu0 0
        %7544 = vmatprep.subr.bf16.mxu0 0
        %7545 = vmatpush1.bf16.msra.mxu0 0
        %7546 = vmatprep.subr.bf16.mxu0 0
        %7547 = vmatpush1.bf16.msra.mxu0 0
        %7548 = vmatprep.mubr.bf16.mxu0 0
        %7549 = vmatmul.mubr.bf16.gmra.mrb[0].mxu0 %v7507
        %v7550 = vpop.f32.mrb[0].mxu0
        %v7551 = vadd.f32 0.0, %v7550
        %v7552 = vpop.f32.mrb[0].mxu0
        %v7553 = vadd.f32 0.0, %v7552
        %v7554 = vpop.f32.mrb[0].mxu0
        %v7555 = vpop.f32.mrb[0].mxu0
        %7556 = vdwg.mxu0
        %7557 = vst [vmem:[%s246] sm:$0xff] %v7551
        %7558 = vst [vmem:[%s246 + $0x8] sm:$0xff] %v7553
        %s7559 = sand.u32 %s120, 1
        %s7560 = scalar_lea.sflag [#allocation5], %s7559
        %s7561 = sand.u32 %s120, 1
        %s7562 = smul.addr %s7561, 16
        %s7563 = scalar_lea.vmem [#allocation8], %s7562
        // Predicated region
        $region41: #{tpu_custom_call.1} parent=31 // pred_check
          %p7564 = pneg %p130
        $region42: #{tpu_custom_call.1} parent=31 // pred_check_branch
          %7566 = sbr.rel (%p7564) target = $region44
        $region43: #{tpu_custom_call.1} parent=31 // pred_region
          %s7567 = smul.u32 2, %s28
          %s7569 = ssub.s32 256, 256
          %7570 = vsyncadd %s7560, %s7569
          %s7571 = smul.addr %s27, 2
          %s7572 = sadd.s32 %s7567, %s7571
          %s7573 = smul.addr %s7572, 128
          %s7574 = scalar_lea.hbm %s3, %s7573
          %s7576 = sshll.u32 %s7563, 4
          %s7577 = int_to_ptr.vmem [resolvable:$true] %s7576
          %7579 = dma.vmem_to_hbm [thread:$0]  %s7577, 256, %s7574, %s7560
        $region44: #{tpu_custom_call.1} parent=31 // pred_fallthru
          _
      $region32: #{tpu_custom_call.1} parent=5 // pred_fallthru
        _
      %p7580 = scmp.le.s32.totalorder 2, %s18
      // Predicated region
      $region45: #{tpu_custom_call.1} parent=5 // pred_check
        %p7581 = pneg %p7580
      $region46: #{tpu_custom_call.1} parent=5 // pred_check_branch
        %7583 = sbr.rel (%p7581) target = $region48
      $region47: #{tpu_custom_call.1} parent=5 // pred_region
        %s7584 = ssub.s32 %s18, 2
        // Predicated region
        $region49: #{tpu_custom_call.1} parent=47 // pred_check
          %p7585 = pneg %p136
        $region50: #{tpu_custom_call.1} parent=47 // pred_check_branch
          %7587 = sbr.rel (%p7585) target = $region52
        $region51: #{tpu_custom_call.1} parent=47 // pred_region
          %s7588 = sand.u32 %s121, 1
          %s7589 = scalar_lea.sflag [#allocation5], %s7588
          %s7590 = sand.u32 %s121, 1
          %s7591 = smul.addr %s7590, 16
          %s7592 = scalar_lea.vmem [#allocation8], %s7591
          %7593 = dma.done %s7589, 256
        $region52: #{tpu_custom_call.1} parent=47 // pred_fallthru
          _
      $region48: #{tpu_custom_call.1} parent=5 // pred_fallthru
        _
    $region6: #{tpu_custom_call.1} parent=1 // loop_footer
      %s22 = sadd.s32 1, %s18
    $region7: #{tpu_custom_call.1} parent=1 // loop_footer_branch
      %17 = sbr.rel target = $region3
    $region8: #{tpu_custom_call.1} parent=1 // loop_exit
      _
    %7594 = vsyncpa [#allocation4], 1
    %s7595 = scalar_lea.sflag [#allocation4], 1
    %7596 = vsyncpa %s7595, 1
    %7597 = vsyncpa [#allocation7], 1
    %s7598 = scalar_lea.sflag [#allocation7], 1
    %7599 = vsyncpa %s7598, 1
    %7600 = vsyncpa [#allocation5], 1
    %s7601 = scalar_lea.sflag [#allocation5], 1
    %7602 = vsyncpa %s7601, 1

</llo_original>
